<compile_context>
chip_gen: v6e
topology: v6e:2x2x1
jax: 0.10.0
libtpu: 0.0.40
codegen_flags: <defaults>
</compile_context>

<pallas_src>
import functools

import jax
import jax.numpy as jnp
from jax import lax
from jax.experimental import pallas as pl
from jax.experimental.pallas import tpu as pltpu


# ----------------------------------------------------------------------------
# Fused kernel: conv1(BN,ReLU) -> SE gate -> conv2(BN,ReLU), one batch element
# ----------------------------------------------------------------------------
def _fused_se_attention_kernel(x_ref, w1t_ref, s1_ref, sh1_ref,
                               fcw1_ref, fcw2t_ref,
                               w2t_ref, s2_ref, sh2_ref,
                               o_ref, xpad_ref, *, H, W, C, pad):
    # x_ref    : (1, H, W, C)   bf16 input tile (one batch element, NHWC)
    # w1t_ref  : (C, 9*C)       bf16 conv1 weights, transposed im2col (cout, tap*C+cin)
    # s1_ref   : (C, 1)         f32 folded BN scale  (conv1)
    # sh1_ref  : (C, 1)         f32 folded BN shift + conv-bias*scale (conv1)
    # fcw1_ref : (C, Cr)        f32 SE fc1 weight (y = pooled @ w1)
    # fcw2t_ref: (C, Cr)        f32 SE fc2 weight, transposed
    # w2t/s2/sh2                same as the *1* group but for conv2
    # o_ref    : (1, C, H*W)    f32 output, channel-major == NCHW (lane dim = HW)
    # xpad_ref : (H+2p, W+2p, C) bf16 VMEM scratch, zero-padded image buffer
    HW = H * W

    # ---- init: zero the pad scratch ONCE (first grid step only) -------------
    # Halo invariant: every step fully rewrites the interior and never touches
    # the halo, so the zeros written here remain valid for all later steps.
    @pl.when(pl.program_id(0) == 0)
    def _init():
        xpad_ref[...] = jnp.zeros(xpad_ref.shape, xpad_ref.dtype)

    # Interior write starts at sublane offset `pad` = 8 (multiple of 8 -> unmasked).
    xpad_ref[pad:pad + H, pad:pad + W, :] = x_ref[0]

    def dilated_conv(d, wt_ref, scale_ref, shift_ref):
        # Channel-major im2col: each of the 9 dilated taps is an (H, W, C) window,
        # flattened (layout-preserving) to (HW, C), transposed to (C, HW) and stacked
        # along rows -> slab_t (9C, HW).  The conv is then ONE MXU matmul
        #   W^T(C, 9C) @ slab_t(9C, HW) -> (C, HW) f32
        # so the array-width / lane dim is HW and the epilogue is lane-dense.
        # TODO(synk): for production C (>=128) drop the concat slab and accumulate 9
        # per-tap matmuls into an f32 VMEM accumulator (the slab alone is ~29 MB at
        # C=512, 56x56), tiling N to 256 (v6e/v7x) / 128 (v5e).
        off = pad - d                       # halo beyond the interior is zero
        taps = []
        for ky in range(3):
            for kx in range(3):
                r0 = off + ky * d
                c0 = off + kx * d
                win = xpad_ref[r0:r0 + H, c0:c0 + W, :].reshape(HW, C)
                taps.append(jnp.transpose(win))            # (C, HW) bf16
        slab_t = jnp.concatenate(taps, axis=0)              # (9C, HW) bf16
        acc = jnp.dot(wt_ref[...], slab_t,
                      preferred_element_type=jnp.float32)   # (C, HW) f32
        acc = acc * scale_ref[...] + shift_ref[...]         # folded bias + BN
        return jnp.maximum(acc, 0.0)                        # ReLU, f32

    # ---- stage 1: dilated conv (d=3) + BN + ReLU ----------------------------
    a1 = dilated_conv(3, w1t_ref, s1_ref, sh1_ref)          # (C, HW) f32

    # ---- stage 2: SE gate (avg pool -> fc -> relu -> fc -> sigmoid) ---------
    pooled = jnp.sum(a1, axis=1, keepdims=True) * (1.0 / HW)                 # (C, 1)
    h = jnp.maximum(
        jnp.sum(fcw1_ref[...] * pooled, axis=0, keepdims=True), 0.0)         # (1, Cr)
    gate = jax.nn.sigmoid(
        jnp.sum(fcw2t_ref[...] * h, axis=1, keepdims=True))                  # (C, 1)

    # scale (lane-broadcast), cast bf16, write back into the interior for conv2
    a1s = jnp.transpose(a1 * gate).astype(xpad_ref.dtype)                    # (HW, C)
    xpad_ref[pad:pad + H, pad:pad + W, :] = a1s.reshape(H, W, C)

    # ---- stage 3: dilated conv (d=5) + BN + ReLU ----------------------------
    a2 = dilated_conv(5, w2t_ref, s2_ref, sh2_ref)           # (C, HW) f32
    # Lane-dense store (last dim HW=256). Kept f32 for module fidelity; flip to bf16
    # if the downstream consumer allows (halves HBM writeback).
    o_ref[...] = a2.reshape(1, C, HW)


def _se_attention_fused_call(x_nhwc_bf16, w1t, s1, sh1, fcw1, fcw2t, w2t, s2, sh2):
    B, H, W, C = x_nhwc_bf16.shape
    Cr = fcw1.shape[1]
    pad = 8                                  # >= max dilation (5); 8 => aligned stores
    Hp, Wp = H + 2 * pad, W + 2 * pad
    HW = H * W

    # VMEM footprint of the pipelined blocks (2 buffers each) + scratch, with headroom.
    blk_bytes = (
        2 * (H * W * C) * 2            # x block, bf16
        + 2 * 2 * (C * 9 * C) * 2      # w1t, w2t, bf16
        + 2 * 4 * (C * 1) * 4          # s1, sh1, s2, sh2
        + 2 * 2 * (C * Cr) * 4         # fcw1, fcw2t
        + 2 * (C * HW) * 4             # out block, f32
        + Hp * Wp * C * 2              # xpad scratch
    )
    vmem_limit = int(min(100 * 1024 * 1024, max(32 * 1024 * 1024, 4 * blk_bytes)))

    # TODO(synk): for production shapes (C=512, 56x56) add an H-row-tiled grid axis
    # (TH=8..16) with a dilation halo and a two-pass SE (pool side-output), mark the
    # row-tile axis "parallel" for v7x megacore, and single-buffer the grid-invariant
    # conv weights (pipeline_mode=pl.Buffered(1) or a one-shot DMA into VMEM scratch)
    # so the working set fits v7x's 64 MiB VMEM.

    kern = functools.partial(_fused_se_attention_kernel, H=H, W=W, C=C, pad=pad)
    out = pl.pallas_call(
        kern,
        out_shape=jax.ShapeDtypeStruct((B, C, HW), jnp.float32),
        grid_spec=pltpu.PrefetchScalarGridSpec(
            num_scalar_prefetch=0,
            grid=(B,),
            in_specs=[
                pl.BlockSpec((1, H, W, C), lambda b: (b, 0, 0, 0)),   # x (NHWC)
                pl.BlockSpec((C, 9 * C), lambda b: (0, 0)),           # conv1 W^T
                pl.BlockSpec((C, 1), lambda b: (0, 0)),               # bn1 scale
                pl.BlockSpec((C, 1), lambda b: (0, 0)),               # bn1 shift
                pl.BlockSpec((C, Cr), lambda b: (0, 0)),              # se fc1
                pl.BlockSpec((C, Cr), lambda b: (0, 0)),              # se fc2^T
                pl.BlockSpec((C, 9 * C), lambda b: (0, 0)),           # conv2 W^T
                pl.BlockSpec((C, 1), lambda b: (0, 0)),               # bn2 scale
                pl.BlockSpec((C, 1), lambda b: (0, 0)),               # bn2 shift
            ],
            out_specs=pl.BlockSpec((1, C, HW), lambda b: (b, 0, 0)),
            scratch_shapes=[pltpu.VMEM((Hp, Wp, C), jnp.bfloat16)],
        ),
        compiler_params=pltpu.CompilerParams(
            # "arbitrary" (sequential) is REQUIRED for correctness here: the pad scratch
            # is zeroed only at program_id==0 and its halo is reused by every later step,
            # which only holds when a single core walks the whole grid in order.  This is
            # free on v5e/v6e (1 TensorCore); v7x megacore parallelism belongs on the
            # future row-tiled grid axis (see TODO above).
            dimension_semantics=("arbitrary",),
            vmem_limit_bytes=vmem_limit,
        ),
    )(x_nhwc_bf16, w1t, s1, sh1, fcw1, fcw2t, w2t, s2, sh2)
    return out


# ----------------------------------------------------------------------------
# SEAttention forward (NCHW public interface, like the PyTorch module)
# ----------------------------------------------------------------------------
def se_attention_forward(x_nchw, p):
    B, C, H, W = x_nchw.shape
    # One input-side layout pass (fused with the bf16 cast).  The output side needs NO
    # transpose: the kernel emits channel-major (C, H*W) which is already NCHW.
    x = jnp.transpose(x_nchw, (0, 2, 3, 1)).astype(jnp.bfloat16)

    # conv weights HWIO -> transposed im2col (C_out, 9*C_in), bf16 MXU inputs
    w1t = p["w_conv1"].reshape(9 * C, C).T.astype(jnp.bfloat16)
    w2t = p["w_conv2"].reshape(9 * C, C).T.astype(jnp.bfloat16)

    # fold conv bias into the BN shift; channel-major (C, 1) for lane broadcast
    s1 = p["bn1_scale"].reshape(C, 1)
    sh1 = (p["bn1_shift"] + p["b_conv1"] * p["bn1_scale"]).reshape(C, 1)
    s2 = p["bn2_scale"].reshape(C, 1)
    sh2 = (p["bn2_shift"] + p["b_conv2"] * p["bn2_scale"]).reshape(C, 1)

    # SE fc weights, f32: fc1 as (C, Cr) (y = pooled @ w1), fc2 transposed to (C, Cr)
    fcw1 = p["fc_w1"]
    fcw2t = p["fc_w2"].T

    out = _se_attention_fused_call(x, w1t, s1, sh1, fcw1, fcw2t, w2t, s2, sh2)
    return out.reshape(B, C, H, W)       # free reshape, already channel-major


# ----------------------------------------------------------------------------
# Pure-JAX reference (mirrors the kernel's bf16 cast points; math in f32)
# ----------------------------------------------------------------------------
def _ref_forward(x_nchw, p):
    f32 = jnp.float32
    x = jnp.transpose(x_nchw, (0, 2, 3, 1))
    x = x.astype(jnp.bfloat16).astype(f32)

    def conv_bn_relu(x, w, b, scale, shift, d):
        w = w.astype(jnp.bfloat16).astype(f32)
        y = lax.conv_general_dilated(
            x, w, window_strides=(1, 1), padding=[(d, d), (d, d)],
            rhs_dilation=(d, d), dimension_numbers=("NHWC", "HWIO", "NHWC"),
            precision=lax.Precision.HIGHEST)
        y = y + b[None, None, None, :]
        y = y * scale[None, None, None, :] + shift[None, None, None, :]
        return jnp.maximum(y, 0.0)

    x = conv_bn_relu(x, p["w_conv1"], p["b_conv1"],
                     p["bn1_scale"], p["bn1_shift"], 3)
    pooled = jnp.mean(x, axis=(1, 2))
    h = jnp.maximum(jnp.matmul(pooled, p["fc_w1"],
                               precision=lax.Precision.HIGHEST), 0.0)
    s = jax.nn.sigmoid(jnp.matmul(h, p["fc_w2"],
                                  precision=lax.Precision.HIGHEST))
    x = (x * s[:, None, None, :]).astype(jnp.bfloat16).astype(f32)
    x = conv_bn_relu(x, p["w_conv2"], p["b_conv2"],
                     p["bn2_scale"], p["bn2_shift"], 5)
    return jnp.transpose(x, (0, 3, 1, 2))


def _fold_bn(gamma, beta, running_mean, running_var, eps=1e-5):
    scale = gamma / jnp.sqrt(running_var + eps)
    shift = beta - running_mean * scale
    return scale, shift


if __name__ == "__main__":
    B, C, H, W = 2, 32, 16, 16
    reduction = 16
    Cr = C // reduction

    key = jax.random.PRNGKey(0)
    ks = jax.random.split(key, 13)

    # conv weights in HWIO layout; non-zero biases to exercise the bias->BN fold
    w_conv1 = 0.05 * jax.random.normal(ks[0], (3, 3, C, C), jnp.float32)
    b_conv1 = 0.01 * jax.random.normal(ks[1], (C,), jnp.float32)
    w_conv2 = 0.05 * jax.random.normal(ks[2], (3, 3, C, C), jnp.float32)
    b_conv2 = 0.01 * jax.random.normal(ks[3], (C,), jnp.float32)

    # BatchNorm eval-mode params (non-trivial affine + running stats)
    bn1_gamma = 1.0 + 0.1 * jax.random.normal(ks[4], (C,), jnp.float32)
    bn1_beta = 0.05 * jax.random.normal(ks[5], (C,), jnp.float32)
    bn2_gamma = 1.0 + 0.1 * jax.random.normal(ks[6], (C,), jnp.float32)
    bn2_beta = 0.05 * jax.random.normal(ks[7], (C,), jnp.float32)
    running_mean1 = 0.05 * jax.random.normal(ks[8], (C,), jnp.float32)
    running_var1 = 1.0 + 0.1 * jnp.abs(jax.random.normal(ks[9], (C,), jnp.float32))
    running_mean2 = jnp.zeros((C,), jnp.float32)
    running_var2 = jnp.ones((C,), jnp.float32)
    bn1_scale, bn1_shift = _fold_bn(bn1_gamma, bn1_beta, running_mean1, running_var1)
    bn2_scale, bn2_shift = _fold_bn(bn2_gamma, bn2_beta, running_mean2, running_var2)

    # SE fc weights (no bias); stored so that y = x @ w
    fc_w1 = 0.02 * jax.random.normal(ks[10], (C, Cr), jnp.float32)
    fc_w2 = 0.02 * jax.random.normal(ks[11], (Cr, C), jnp.float32)

    params = dict(
        w_conv1=w_conv1, b_conv1=b_conv1, bn1_scale=bn1_scale, bn1_shift=bn1_shift,
        w_conv2=w_conv2, b_conv2=b_conv2, bn2_scale=bn2_scale, bn2_shift=bn2_shift,
        fc_w1=fc_w1, fc_w2=fc_w2,
    )

    x = jax.random.normal(ks[12], (B, C, H, W), jnp.float32)

    out = jax.block_until_ready(jax.jit(se_attention_forward)(x, params))
    ref = jax.block_until_ready(_ref_forward(x, params))

    assert out.shape == (B, C, H, W)
    assert jnp.allclose(out, ref, rtol=1e-2, atol=1e-2), "mismatch vs reference"

    print("KERNEL_OK")
</pallas_src>

<mosaic_0001>
module attributes {stable_mosaic.version = 11 : i64} {
  func.func @_fused_se_attention_kernel(%arg0: i32, %arg1: memref<1x16x16x32xbf16, #tpu.memory_space<vmem>>, %arg2: memref<32x288xbf16, #tpu.memory_space<vmem>>, %arg3: memref<32x1xf32, #tpu.memory_space<vmem>>, %arg4: memref<32x1xf32, #tpu.memory_space<vmem>>, %arg5: memref<32x2xf32, #tpu.memory_space<vmem>>, %arg6: memref<32x2xf32, #tpu.memory_space<vmem>>, %arg7: memref<32x288xbf16, #tpu.memory_space<vmem>>, %arg8: memref<32x1xf32, #tpu.memory_space<vmem>>, %arg9: memref<32x1xf32, #tpu.memory_space<vmem>>, %arg10: memref<1x32x256xf32, #tpu.memory_space<vmem>>, %arg11: memref<32x32x32xbf16, #tpu.memory_space<vmem>>) attributes {dimension_semantics = [#tpu.dimension_semantics<arbitrary>], iteration_bounds = array<i64: 2>, scalar_prefetch = 0 : i64, scratch_operands = 1 : i64, tpu.core_type = #tpu.core_type<tc>, window_params = [{transform_indices = @transform_0, window_bounds = array<i64: 1, 16, 16, 32>}, {pipeline_mode = #tpu.pipeline_mode<synchronous>, transform_indices = @transform_1, window_bounds = array<i64: 32, 288>}, {pipeline_mode = #tpu.pipeline_mode<synchronous>, transform_indices = @transform_2, window_bounds = array<i64: 32, 1>}, {pipeline_mode = #tpu.pipeline_mode<synchronous>, transform_indices = @transform_3, window_bounds = array<i64: 32, 1>}, {pipeline_mode = #tpu.pipeline_mode<synchronous>, transform_indices = @transform_4, window_bounds = array<i64: 32, 2>}, {pipeline_mode = #tpu.pipeline_mode<synchronous>, transform_indices = @transform_5, window_bounds = array<i64: 32, 2>}, {pipeline_mode = #tpu.pipeline_mode<synchronous>, transform_indices = @transform_6, window_bounds = array<i64: 32, 288>}, {pipeline_mode = #tpu.pipeline_mode<synchronous>, transform_indices = @transform_7, window_bounds = array<i64: 32, 1>}, {pipeline_mode = #tpu.pipeline_mode<synchronous>, transform_indices = @transform_8, window_bounds = array<i64: 32, 1>}, {transform_indices = @transform_9, window_bounds = array<i64: 1, 32, 256>}]} {
    %c0_i32 = arith.constant 0 : i32
    %0 = arith.cmpi eq, %arg0, %c0_i32 : i32
    %1 = arith.extui %0 : i1 to i32
    %c0_i32_0 = arith.constant 0 : i32
    %2 = arith.cmpi ne, %1, %c0_i32_0 : i32
    scf.if %2 {
      %cst_87 = arith.constant 0.000000e+00 : bf16
      %111 = vector.broadcast %cst_87 : bf16 to vector<32x32x32xbf16>
      %c0_88 = arith.constant 0 : index
      %c0_89 = arith.constant 0 : index
      %c0_90 = arith.constant 0 : index
      %112 = vector.load %arg11[%c0_88, %c0_89, %c0_90] : memref<32x32x32xbf16, #tpu.memory_space<vmem>>, vector<32x32x32xbf16>
      tpu.vector_store %arg11[%c0_88, %c0_89, %c0_90], %111 {strides = array<i32>} : memref<32x32x32xbf16, #tpu.memory_space<vmem>>, vector<32x32x32xbf16>,
    } else {
    }
    %c0 = arith.constant 0 : index
    %c0_1 = arith.constant 0 : index
    %c0_2 = arith.constant 0 : index
    %c0_3 = arith.constant 0 : index
    %3 = vector.load %arg1[%c0, %c0_1, %c0_2, %c0_3] : memref<1x16x16x32xbf16, #tpu.memory_space<vmem>>, vector<1x16x16x32xbf16>
    %4 = vector.shape_cast %3 : vector<1x16x16x32xbf16> to vector<16x16x32xbf16>
    %c8 = arith.constant 8 : index
    %c8_4 = arith.constant 8 : index
    %c0_5 = arith.constant 0 : index
    %5 = vector.load %arg11[%c8, %c8_4, %c0_5] : memref<32x32x32xbf16, #tpu.memory_space<vmem>>, vector<16x16x32xbf16>
    tpu.vector_store %arg11[%c8, %c8_4, %c0_5], %4 {strides = array<i32>} : memref<32x32x32xbf16, #tpu.memory_space<vmem>>, vector<16x16x32xbf16>,
    %c5 = arith.constant 5 : index
    %c5_6 = arith.constant 5 : index
    %c0_7 = arith.constant 0 : index
    %6 = vector.load %arg11[%c5, %c5_6, %c0_7] : memref<32x32x32xbf16, #tpu.memory_space<vmem>>, vector<16x16x32xbf16>
    %7 = vector.shape_cast %6 : vector<16x16x32xbf16> to vector<256x32xbf16>
    %8 = tpu.transpose %7, [1, 0] : vector<256x32xbf16> -> vector<32x256xbf16>
    %c5_8 = arith.constant 5 : index
    %c8_9 = arith.constant 8 : index
    %c0_10 = arith.constant 0 : index
    %9 = vector.load %arg11[%c5_8, %c8_9, %c0_10] : memref<32x32x32xbf16, #tpu.memory_space<vmem>>, vector<16x16x32xbf16>
    %10 = vector.shape_cast %9 : vector<16x16x32xbf16> to vector<256x32xbf16>
    %11 = tpu.transpose %10, [1, 0] : vector<256x32xbf16> -> vector<32x256xbf16>
    %c5_11 = arith.constant 5 : index
    %c11 = arith.constant 11 : index
    %c0_12 = arith.constant 0 : index
    %12 = vector.load %arg11[%c5_11, %c11, %c0_12] : memref<32x32x32xbf16, #tpu.memory_space<vmem>>, vector<16x16x32xbf16>
    %13 = vector.shape_cast %12 : vector<16x16x32xbf16> to vector<256x32xbf16>
    %14 = tpu.transpose %13, [1, 0] : vector<256x32xbf16> -> vector<32x256xbf16>
    %c8_13 = arith.constant 8 : index
    %c5_14 = arith.constant 5 : index
    %c0_15 = arith.constant 0 : index
    %15 = vector.load %arg11[%c8_13, %c5_14, %c0_15] : memref<32x32x32xbf16, #tpu.memory_space<vmem>>, vector<16x16x32xbf16>
    %16 = vector.shape_cast %15 : vector<16x16x32xbf16> to vector<256x32xbf16>
    %17 = tpu.transpose %16, [1, 0] : vector<256x32xbf16> -> vector<32x256xbf16>
    %c8_16 = arith.constant 8 : index
    %c8_17 = arith.constant 8 : index
    %c0_18 = arith.constant 0 : index
    %18 = vector.load %arg11[%c8_16, %c8_17, %c0_18] : memref<32x32x32xbf16, #tpu.memory_space<vmem>>, vector<16x16x32xbf16>
    %19 = vector.shape_cast %18 : vector<16x16x32xbf16> to vector<256x32xbf16>
    %20 = tpu.transpose %19, [1, 0] : vector<256x32xbf16> -> vector<32x256xbf16>
    %c8_19 = arith.constant 8 : index
    %c11_20 = arith.constant 11 : index
    %c0_21 = arith.constant 0 : index
    %21 = vector.load %arg11[%c8_19, %c11_20, %c0_21] : memref<32x32x32xbf16, #tpu.memory_space<vmem>>, vector<16x16x32xbf16>
    %22 = vector.shape_cast %21 : vector<16x16x32xbf16> to vector<256x32xbf16>
    %23 = tpu.transpose %22, [1, 0] : vector<256x32xbf16> -> vector<32x256xbf16>
    %c11_22 = arith.constant 11 : index
    %c5_23 = arith.constant 5 : index
    %c0_24 = arith.constant 0 : index
    %24 = vector.load %arg11[%c11_22, %c5_23, %c0_24] : memref<32x32x32xbf16, #tpu.memory_space<vmem>>, vector<16x16x32xbf16>
    %25 = vector.shape_cast %24 : vector<16x16x32xbf16> to vector<256x32xbf16>
    %26 = tpu.transpose %25, [1, 0] : vector<256x32xbf16> -> vector<32x256xbf16>
    %c11_25 = arith.constant 11 : index
    %c8_26 = arith.constant 8 : index
    %c0_27 = arith.constant 0 : index
    %27 = vector.load %arg11[%c11_25, %c8_26, %c0_27] : memref<32x32x32xbf16, #tpu.memory_space<vmem>>, vector<16x16x32xbf16>
    %28 = vector.shape_cast %27 : vector<16x16x32xbf16> to vector<256x32xbf16>
    %29 = tpu.transpose %28, [1, 0] : vector<256x32xbf16> -> vector<32x256xbf16>
    %c11_28 = arith.constant 11 : index
    %c11_29 = arith.constant 11 : index
    %c0_30 = arith.constant 0 : index
    %30 = vector.load %arg11[%c11_28, %c11_29, %c0_30] : memref<32x32x32xbf16, #tpu.memory_space<vmem>>, vector<16x16x32xbf16>
    %31 = vector.shape_cast %30 : vector<16x16x32xbf16> to vector<256x32xbf16>
    %32 = tpu.transpose %31, [1, 0] : vector<256x32xbf16> -> vector<32x256xbf16>
    %33 = tpu.concatenate %8, %11, %14, %17, %20, %23, %26, %29, %32 in 0 : vector<32x256xbf16>, vector<32x256xbf16>, vector<32x256xbf16>, vector<32x256xbf16>, vector<32x256xbf16>, vector<32x256xbf16>, vector<32x256xbf16>, vector<32x256xbf16>, vector<32x256xbf16> -> vector<288x256xbf16>
    %c0_31 = arith.constant 0 : index
    %c0_32 = arith.constant 0 : index
    %34 = vector.load %arg2[%c0_31, %c0_32] : memref<32x288xbf16, #tpu.memory_space<vmem>>, vector<32x288xbf16>
    %cst = arith.constant dense<0.000000e+00> : vector<32x256xf32>
    %35 = tpu.matmul %34, %33, %cst {dimension_numbers = #tpu.dot_dimension_numbers<[1], [0], [0], [1], [0, 0, 1, 1], [], []>} : vector<32x288xbf16>, vector<288x256xbf16>, vector<32x256xf32> -> vector<32x256xf32>
    %c0_33 = arith.constant 0 : index
    %c0_34 = arith.constant 0 : index
    %36 = vector.load %arg3[%c0_33, %c0_34] : memref<32x1xf32, #tpu.memory_space<vmem>>, vector<32x1xf32>
    %37 = vector.broadcast %36 : vector<32x1xf32> to vector<32x256xf32>
    %38 = arith.mulf %35, %37 : vector<32x256xf32>
    %c0_35 = arith.constant 0 : index
    %c0_36 = arith.constant 0 : index
    %39 = vector.load %arg4[%c0_35, %c0_36] : memref<32x1xf32, #tpu.memory_space<vmem>>, vector<32x1xf32>
    %40 = vector.broadcast %39 : vector<32x1xf32> to vector<32x256xf32>
    %41 = arith.addf %38, %40 : vector<32x256xf32>
    %cst_37 = arith.constant 0.000000e+00 : f32
    %42 = vector.broadcast %cst_37 : f32 to vector<32x256xf32>
    %43 = arith.maximumf %41, %42 : vector<32x256xf32>
    %cst_38 = arith.constant dense<0.000000e+00> : vector<32xf32>
    %44 = vector.multi_reduction <add>, %43, %cst_38 [1] : vector<32x256xf32> to vector<32xf32>
    %45 = vector.shape_cast %44 : vector<32xf32> to vector<32x1xf32>
    %cst_39 = arith.constant 3.906250e-03 : f32
    %46 = vector.broadcast %cst_39 : f32 to vector<32x1xf32>
    %47 = arith.mulf %45, %46 : vector<32x1xf32>
    %c0_40 = arith.constant 0 : index
    %c0_41 = arith.constant 0 : index
    %48 = vector.load %arg5[%c0_40, %c0_41] : memref<32x2xf32, #tpu.memory_space<vmem>>, vector<32x2xf32>
    %49 = vector.broadcast %47 : vector<32x1xf32> to vector<32x2xf32>
    %50 = arith.mulf %48, %49 : vector<32x2xf32>
    %cst_42 = arith.constant dense<0.000000e+00> : vector<2xf32>
    %51 = vector.multi_reduction <add>, %50, %cst_42 [0] : vector<32x2xf32> to vector<2xf32>
    %52 = vector.shape_cast %51 : vector<2xf32> to vector<1x2xf32>
    %cst_43 = arith.constant 0.000000e+00 : f32
    %53 = vector.broadcast %cst_43 : f32 to vector<1x2xf32>
    %54 = arith.maximumf %52, %53 : vector<1x2xf32>
    %c0_44 = arith.constant 0 : index
    %c0_45 = arith.constant 0 : index
    %55 = vector.load %arg6[%c0_44, %c0_45] : memref<32x2xf32, #tpu.memory_space<vmem>>, vector<32x2xf32>
    %56 = vector.broadcast %54 : vector<1x2xf32> to vector<32x2xf32>
    %57 = arith.mulf %55, %56 : vector<32x2xf32>
    %cst_46 = arith.constant dense<0.000000e+00> : vector<32xf32>
    %58 = vector.multi_reduction <add>, %57, %cst_46 [1] : vector<32x2xf32> to vector<32xf32>
    %59 = vector.shape_cast %58 : vector<32xf32> to vector<32x1xf32>
    %60 = arith.negf %59 : vector<32x1xf32>
    %61 = math.exp %60 : vector<32x1xf32>
    %cst_47 = arith.constant 1.000000e+00 : f32
    %62 = vector.broadcast %cst_47 : f32 to vector<32x1xf32>
    %63 = arith.addf %62, %61 : vector<32x1xf32>
    %64 = arith.divf %62, %63 : vector<32x1xf32>
    %65 = vector.broadcast %64 : vector<32x1xf32> to vector<32x256xf32>
    %66 = arith.mulf %43, %65 : vector<32x256xf32>
    %67 = tpu.transpose %66, [1, 0] : vector<32x256xf32> -> vector<256x32xf32>
    %68 = arith.truncf %67 : vector<256x32xf32> to vector<256x32xbf16>
    %69 = vector.shape_cast %68 : vector<256x32xbf16> to vector<16x16x32xbf16>
    %c8_48 = arith.constant 8 : index
    %c8_49 = arith.constant 8 : index
    %c0_50 = arith.constant 0 : index
    %70 = vector.load %arg11[%c8_48, %c8_49, %c0_50] : memref<32x32x32xbf16, #tpu.memory_space<vmem>>, vector<16x16x32xbf16>
    tpu.vector_store %arg11[%c8_48, %c8_49, %c0_50], %69 {strides = array<i32>} : memref<32x32x32xbf16, #tpu.memory_space<vmem>>, vector<16x16x32xbf16>,
    %c3 = arith.constant 3 : index
    %c3_51 = arith.constant 3 : index
    %c0_52 = arith.constant 0 : index
    %71 = vector.load %arg11[%c3, %c3_51, %c0_52] : memref<32x32x32xbf16, #tpu.memory_space<vmem>>, vector<16x16x32xbf16>
    %72 = vector.shape_cast %71 : vector<16x16x32xbf16> to vector<256x32xbf16>
    %73 = tpu.transpose %72, [1, 0] : vector<256x32xbf16> -> vector<32x256xbf16>
    %c3_53 = arith.constant 3 : index
    %c8_54 = arith.constant 8 : index
    %c0_55 = arith.constant 0 : index
    %74 = vector.load %arg11[%c3_53, %c8_54, %c0_55] : memref<32x32x32xbf16, #tpu.memory_space<vmem>>, vector<16x16x32xbf16>
    %75 = vector.shape_cast %74 : vector<16x16x32xbf16> to vector<256x32xbf16>
    %76 = tpu.transpose %75, [1, 0] : vector<256x32xbf16> -> vector<32x256xbf16>
    %c3_56 = arith.constant 3 : index
    %c13 = arith.constant 13 : index
    %c0_57 = arith.constant 0 : index
    %77 = vector.load %arg11[%c3_56, %c13, %c0_57] : memref<32x32x32xbf16, #tpu.memory_space<vmem>>, vector<16x16x32xbf16>
    %78 = vector.shape_cast %77 : vector<16x16x32xbf16> to vector<256x32xbf16>
    %79 = tpu.transpose %78, [1, 0] : vector<256x32xbf16> -> vector<32x256xbf16>
    %c8_58 = arith.constant 8 : index
    %c3_59 = arith.constant 3 : index
    %c0_60 = arith.constant 0 : index
    %80 = vector.load %arg11[%c8_58, %c3_59, %c0_60] : memref<32x32x32xbf16, #tpu.memory_space<vmem>>, vector<16x16x32xbf16>
    %81 = vector.shape_cast %80 : vector<16x16x32xbf16> to vector<256x32xbf16>
    %82 = tpu.transpose %81, [1, 0] : vector<256x32xbf16> -> vector<32x256xbf16>
    %c8_61 = arith.constant 8 : index
    %c8_62 = arith.constant 8 : index
    %c0_63 = arith.constant 0 : index
    %83 = vector.load %arg11[%c8_61, %c8_62, %c0_63] : memref<32x32x32xbf16, #tpu.memory_space<vmem>>, vector<16x16x32xbf16>
    %84 = vector.shape_cast %83 : vector<16x16x32xbf16> to vector<256x32xbf16>
    %85 = tpu.transpose %84, [1, 0] : vector<256x32xbf16> -> vector<32x256xbf16>
    %c8_64 = arith.constant 8 : index
    %c13_65 = arith.constant 13 : index
    %c0_66 = arith.constant 0 : index
    %86 = vector.load %arg11[%c8_64, %c13_65, %c0_66] : memref<32x32x32xbf16, #tpu.memory_space<vmem>>, vector<16x16x32xbf16>
    %87 = vector.shape_cast %86 : vector<16x16x32xbf16> to vector<256x32xbf16>
    %88 = tpu.transpose %87, [1, 0] : vector<256x32xbf16> -> vector<32x256xbf16>
    %c13_67 = arith.constant 13 : index
    %c3_68 = arith.constant 3 : index
    %c0_69 = arith.constant 0 : index
    %89 = vector.load %arg11[%c13_67, %c3_68, %c0_69] : memref<32x32x32xbf16, #tpu.memory_space<vmem>>, vector<16x16x32xbf16>
    %90 = vector.shape_cast %89 : vector<16x16x32xbf16> to vector<256x32xbf16>
    %91 = tpu.transpose %90, [1, 0] : vector<256x32xbf16> -> vector<32x256xbf16>
    %c13_70 = arith.constant 13 : index
    %c8_71 = arith.constant 8 : index
    %c0_72 = arith.constant 0 : index
    %92 = vector.load %arg11[%c13_70, %c8_71, %c0_72] : memref<32x32x32xbf16, #tpu.memory_space<vmem>>, vector<16x16x32xbf16>
    %93 = vector.shape_cast %92 : vector<16x16x32xbf16> to vector<256x32xbf16>
    %94 = tpu.transpose %93, [1, 0] : vector<256x32xbf16> -> vector<32x256xbf16>
    %c13_73 = arith.constant 13 : index
    %c13_74 = arith.constant 13 : index
    %c0_75 = arith.constant 0 : index
    %95 = vector.load %arg11[%c13_73, %c13_74, %c0_75] : memref<32x32x32xbf16, #tpu.memory_space<vmem>>, vector<16x16x32xbf16>
    %96 = vector.shape_cast %95 : vector<16x16x32xbf16> to vector<256x32xbf16>
    %97 = tpu.transpose %96, [1, 0] : vector<256x32xbf16> -> vector<32x256xbf16>
    %98 = tpu.concatenate %73, %76, %79, %82, %85, %88, %91, %94, %97 in 0 : vector<32x256xbf16>, vector<32x256xbf16>, vector<32x256xbf16>, vector<32x256xbf16>, vector<32x256xbf16>, vector<32x256xbf16>, vector<32x256xbf16>, vector<32x256xbf16>, vector<32x256xbf16> -> vector<288x256xbf16>
    %c0_76 = arith.constant 0 : index
    %c0_77 = arith.constant 0 : index
    %99 = vector.load %arg7[%c0_76, %c0_77] : memref<32x288xbf16, #tpu.memory_space<vmem>>, vector<32x288xbf16>
    %cst_78 = arith.constant dense<0.000000e+00> : vector<32x256xf32>
    %100 = tpu.matmul %99, %98, %cst_78 {dimension_numbers = #tpu.dot_dimension_numbers<[1], [0], [0], [1], [0, 0, 1, 1], [], []>} : vector<32x288xbf16>, vector<288x256xbf16>, vector<32x256xf32> -> vector<32x256xf32>
    %c0_79 = arith.constant 0 : index
    %c0_80 = arith.constant 0 : index
    %101 = vector.load %arg8[%c0_79, %c0_80] : memref<32x1xf32, #tpu.memory_space<vmem>>, vector<32x1xf32>
    %102 = vector.broadcast %101 : vector<32x1xf32> to vector<32x256xf32>
    %103 = arith.mulf %100, %102 : vector<32x256xf32>
    %c0_81 = arith.constant 0 : index
    %c0_82 = arith.constant 0 : index
    %104 = vector.load %arg9[%c0_81, %c0_82] : memref<32x1xf32, #tpu.memory_space<vmem>>, vector<32x1xf32>
    %105 = vector.broadcast %104 : vector<32x1xf32> to vector<32x256xf32>
    %106 = arith.addf %103, %105 : vector<32x256xf32>
    %cst_83 = arith.constant 0.000000e+00 : f32
    %107 = vector.broadcast %cst_83 : f32 to vector<32x256xf32>
    %108 = arith.maximumf %106, %107 : vector<32x256xf32>
    %109 = vector.shape_cast %108 : vector<32x256xf32> to vector<1x32x256xf32>
    %c0_84 = arith.constant 0 : index
    %c0_85 = arith.constant 0 : index
    %c0_86 = arith.constant 0 : index
    %110 = vector.load %arg10[%c0_84, %c0_85, %c0_86] : memref<1x32x256xf32, #tpu.memory_space<vmem>>, vector<1x32x256xf32>
    tpu.vector_store %arg10[%c0_84, %c0_85, %c0_86], %109 {strides = array<i32>} : memref<1x32x256xf32, #tpu.memory_space<vmem>>, vector<1x32x256xf32>,
    return
  }
  func.func @transform_0(%arg0: i32) -> (i32, i32, i32, i32) {
    %c0_i32 = arith.constant 0 : i32
    %c0_i32_0 = arith.constant 0 : i32
    %c0_i32_1 = arith.constant 0 : i32
    %c0_i32_2 = arith.constant 0 : i32
    return %arg0, %c0_i32, %c0_i32_0, %c0_i32_1 : i32, i32, i32, i32
  }
  func.func @transform_1(%arg0: i32) -> (i32, i32) {
    %c0_i32 = arith.constant 0 : i32
    %c0_i32_0 = arith.constant 0 : i32
    %c0_i32_1 = arith.constant 0 : i32
    return %c0_i32, %c0_i32_0 : i32, i32
  }
  func.func @transform_2(%arg0: i32) -> (i32, i32) {
    %c0_i32 = arith.constant 0 : i32
    %c0_i32_0 = arith.constant 0 : i32
    %c0_i32_1 = arith.constant 0 : i32
    return %c0_i32, %c0_i32_0 : i32, i32
  }
  func.func @transform_3(%arg0: i32) -> (i32, i32) {
    %c0_i32 = arith.constant 0 : i32
    %c0_i32_0 = arith.constant 0 : i32
    %c0_i32_1 = arith.constant 0 : i32
    return %c0_i32, %c0_i32_0 : i32, i32
  }
  func.func @transform_4(%arg0: i32) -> (i32, i32) {
    %c0_i32 = arith.constant 0 : i32
    %c0_i32_0 = arith.constant 0 : i32
    %c0_i32_1 = arith.constant 0 : i32
    return %c0_i32, %c0_i32_0 : i32, i32
  }
  func.func @transform_5(%arg0: i32) -> (i32, i32) {
    %c0_i32 = arith.constant 0 : i32
    %c0_i32_0 = arith.constant 0 : i32
    %c0_i32_1 = arith.constant 0 : i32
    return %c0_i32, %c0_i32_0 : i32, i32
  }
  func.func @transform_6(%arg0: i32) -> (i32, i32) {
    %c0_i32 = arith.constant 0 : i32
    %c0_i32_0 = arith.constant 0 : i32
    %c0_i32_1 = arith.constant 0 : i32
    return %c0_i32, %c0_i32_0 : i32, i32
  }
  func.func @transform_7(%arg0: i32) -> (i32, i32) {
    %c0_i32 = arith.constant 0 : i32
    %c0_i32_0 = arith.constant 0 : i32
    %c0_i32_1 = arith.constant 0 : i32
    return %c0_i32, %c0_i32_0 : i32, i32
  }
  func.func @transform_8(%arg0: i32) -> (i32, i32) {
    %c0_i32 = arith.constant 0 : i32
    %c0_i32_0 = arith.constant 0 : i32
    %c0_i32_1 = arith.constant 0 : i32
    return %c0_i32, %c0_i32_0 : i32, i32
  }
  func.func @transform_9(%arg0: i32) -> (i32, i32, i32) {
    %c0_i32 = arith.constant 0 : i32
    %c0_i32_0 = arith.constant 0 : i32
    %c0_i32_1 = arith.constant 0 : i32
    return %arg0, %c0_i32, %c0_i32_0 : i32, i32, i32
  }
}

</mosaic_0001>

<llo_original>
// kernel: se_attention_forward.1
$region0: #{se_attention_forward.1}
  #allocation0 [shape = 'u32[]', space=smem, size = 0x4, offset = 0x4, fixed_abs, tag = 'smem constant byte address 0x4 - core index']
  #allocation1 [shape = 'u32[144,128]{1,0:T(1,128)}', space=vmem, size = 0x12000, scoped, tag = 'internal scratch']
  #allocation2 [shape = 'bf16[32,32,32]{2,1,0:T(8,128)(2,1)}', space=vmem, size = 0x40000, scoped, tag = 'scratch operand']
  %s0 = inlined_call_operand.vmem [shape: bf16[2,16,16,32], index: 0, kind: input, shape index: {}]
  %s1 = inlined_call_operand.vmem [shape: bf16[32,288], index: 1, kind: input, shape index: {}]
  %s2 = inlined_call_operand.vmem [shape: f32[32,1], index: 2, kind: input, shape index: {}]
  %s3 = inlined_call_operand.vmem [shape: f32[32,1], index: 3, kind: input, shape index: {}]
  %s4 = inlined_call_operand.vmem [shape: f32[32,2], index: 4, kind: input, shape index: {}]
  %s5 = inlined_call_operand.vmem [shape: f32[32,2], index: 5, kind: input, shape index: {}]
  %s6 = inlined_call_operand.vmem [shape: bf16[32,288], index: 6, kind: input, shape index: {}]
  %s7 = inlined_call_operand.vmem [shape: f32[32,1], index: 7, kind: input, shape index: {}]
  %s8 = inlined_call_operand.vmem [shape: f32[32,1], index: 8, kind: input, shape index: {}]
  %s9 = inlined_call_operand.vmem [shape: f32[2,32,256], index: 9, kind: output, shape index: {}]
  %s10 = sld [smem:[#allocation0]]
  $region73: #{se_attention_forward.1} parent=0
    _
  %s12 = ssub.s32 1, %s10
  %s13 = scalar_select 0, %s12, %s10
  loop: start=0, step=1, limit=4
  $region2: #{se_attention_forward.1} parent=0 // loop_pre_header
    _
  $region3: #{se_attention_forward.1} parent=0 // loop_header
    %s15 = sphi 0, %s19
    %p16 = scmp.ge.s32.totalorder %s15, 4
    %s25 = sphi 0, %s27
    %s28 = sphi 0, %s25
    %s29 = sphi 0, %s28
    %s45 = sphi 0, %s29
    %s49 = sphi 0, %s49
    %s51 = sphi 0, %s49
    %s52 = sphi 0, %s51
    %s66 = sphi 0, %s52
    %s70 = sphi 0, %s70
    %s72 = sphi 0, %s70
    %s73 = sphi 0, %s72
    %s87 = sphi 0, %s73
    %s91 = sphi 0, %s91
    %s93 = sphi 0, %s91
    %s94 = sphi 0, %s93
    %s108 = sphi 0, %s94
    %s112 = sphi 0, %s112
    %s114 = sphi 0, %s112
    %s115 = sphi 0, %s114
    %s129 = sphi 0, %s115
    %s133 = sphi 0, %s133
    %s135 = sphi 0, %s133
    %s136 = sphi 0, %s135
    %s150 = sphi 0, %s136
    %s154 = sphi 0, %s154
    %s156 = sphi 0, %s154
    %s157 = sphi 0, %s156
    %s171 = sphi 0, %s157
    %s175 = sphi 0, %s175
    %s177 = sphi 0, %s175
    %s178 = sphi 0, %s177
    %s192 = sphi 0, %s178
    %s196 = sphi 0, %s196
    %s198 = sphi 0, %s196
    %s199 = sphi 0, %s198
    %s213 = sphi 0, %s199
    %s219 = sphi 0, %s221
    %s222 = sphi 0, %s219
    %s223 = sphi 0, %s222
    %s239 = sphi 0, %s223
  $region4: #{se_attention_forward.1} parent=0 // loop_header_branch
    %18 = sbr.rel (%p16) target = $region8
  $region5: #{se_attention_forward.1} parent=0 // loop_body
    %s20 = ssub.s32 %s15, 1
    %s21 = ssub.s32 %s15, 2
    %s22 = sadd.s32 %s15, 1
    %s23 = ssub.s32 %s15, %s22
    %p24 = scmp.eq.s32.totalorder %s23, 0
    %s26 = sadd.s32 %s25, 1
    %s27 = scalar_select %p24, %s25, %s26
    %p30 = pneg %p24
    %p31 = scmp.eq.s32.totalorder %s15, 1
    %p32 = por %p30, %p31
    %p33 = scmp.ne.s32.totalorder %s25, %s28
    %p34 = scmp.eq.s32.totalorder %s15, 0
    %p35 = por %p33, %p34
    %p36 = scmp.ne.s32.totalorder %s25, %s28
    %p37 = scmp.eq.s32.totalorder %s20, 1
    %p38 = por %p36, %p37
    %p39 = scmp.ne.s32.totalorder %s28, %s29
    %p40 = scmp.eq.s32.totalorder %s20, 0
    %p41 = por %p39, %p40
    %p42 = scmp.ne.s32.totalorder %s28, %s29
    %p43 = scmp.eq.s32.totalorder %s21, 1
    %p44 = por %p42, %p43
    %p46 = scmp.ne.s32.totalorder %s29, %s45
    %p47 = scmp.eq.s32.totalorder %s21, 0
    %p48 = por %p46, %p47
    %s50 = sadd.s32 %s49, 1
    %p53 = scmp.eq.s32.totalorder %s15, 1
    %p54 = scmp.ne.s32.totalorder %s49, %s51
    %p55 = scmp.eq.s32.totalorder %s15, 0
    %p56 = por %p54, %p55
    %p57 = scmp.ne.s32.totalorder %s49, %s51
    %p58 = scmp.eq.s32.totalorder %s20, 1
    %p59 = por %p57, %p58
    %p60 = scmp.ne.s32.totalorder %s51, %s52
    %p61 = scmp.eq.s32.totalorder %s20, 0
    %p62 = por %p60, %p61
    %p63 = scmp.ne.s32.totalorder %s51, %s52
    %p64 = scmp.eq.s32.totalorder %s21, 1
    %p65 = por %p63, %p64
    %p67 = scmp.ne.s32.totalorder %s52, %s66
    %p68 = scmp.eq.s32.totalorder %s21, 0
    %p69 = por %p67, %p68
    %s71 = sadd.s32 %s70, 1
    %p74 = scmp.eq.s32.totalorder %s15, 1
    %p75 = scmp.ne.s32.totalorder %s70, %s72
    %p76 = scmp.eq.s32.totalorder %s15, 0
    %p77 = por %p75, %p76
    %p78 = scmp.ne.s32.totalorder %s70, %s72
    %p79 = scmp.eq.s32.totalorder %s20, 1
    %p80 = por %p78, %p79
    %p81 = scmp.ne.s32.totalorder %s72, %s73
    %p82 = scmp.eq.s32.totalorder %s20, 0
    %p83 = por %p81, %p82
    %p84 = scmp.ne.s32.totalorder %s72, %s73
    %p85 = scmp.eq.s32.totalorder %s21, 1
    %p86 = por %p84, %p85
    %p88 = scmp.ne.s32.totalorder %s73, %s87
    %p89 = scmp.eq.s32.totalorder %s21, 0
    %p90 = por %p88, %p89
    %s92 = sadd.s32 %s91, 1
    %p95 = scmp.eq.s32.totalorder %s15, 1
    %p96 = scmp.ne.s32.totalorder %s91, %s93
    %p97 = scmp.eq.s32.totalorder %s15, 0
    %p98 = por %p96, %p97
    %p99 = scmp.ne.s32.totalorder %s91, %s93
    %p100 = scmp.eq.s32.totalorder %s20, 1
    %p101 = por %p99, %p100
    %p102 = scmp.ne.s32.totalorder %s93, %s94
    %p103 = scmp.eq.s32.totalorder %s20, 0
    %p104 = por %p102, %p103
    %p105 = scmp.ne.s32.totalorder %s93, %s94
    %p106 = scmp.eq.s32.totalorder %s21, 1
    %p107 = por %p105, %p106
    %p109 = scmp.ne.s32.totalorder %s94, %s108
    %p110 = scmp.eq.s32.totalorder %s21, 0
    %p111 = por %p109, %p110
    %s113 = sadd.s32 %s112, 1
    %p116 = scmp.eq.s32.totalorder %s15, 1
    %p117 = scmp.ne.s32.totalorder %s112, %s114
    %p118 = scmp.eq.s32.totalorder %s15, 0
    %p119 = por %p117, %p118
    %p120 = scmp.ne.s32.totalorder %s112, %s114
    %p121 = scmp.eq.s32.totalorder %s20, 1
    %p122 = por %p120, %p121
    %p123 = scmp.ne.s32.totalorder %s114, %s115
    %p124 = scmp.eq.s32.totalorder %s20, 0
    %p125 = por %p123, %p124
    %p126 = scmp.ne.s32.totalorder %s114, %s115
    %p127 = scmp.eq.s32.totalorder %s21, 1
    %p128 = por %p126, %p127
    %p130 = scmp.ne.s32.totalorder %s115, %s129
    %p131 = scmp.eq.s32.totalorder %s21, 0
    %p132 = por %p130, %p131
    %s134 = sadd.s32 %s133, 1
    %p137 = scmp.eq.s32.totalorder %s15, 1
    %p138 = scmp.ne.s32.totalorder %s133, %s135
    %p139 = scmp.eq.s32.totalorder %s15, 0
    %p140 = por %p138, %p139
    %p141 = scmp.ne.s32.totalorder %s133, %s135
    %p142 = scmp.eq.s32.totalorder %s20, 1
    %p143 = por %p141, %p142
    %p144 = scmp.ne.s32.totalorder %s135, %s136
    %p145 = scmp.eq.s32.totalorder %s20, 0
    %p146 = por %p144, %p145
    %p147 = scmp.ne.s32.totalorder %s135, %s136
    %p148 = scmp.eq.s32.totalorder %s21, 1
    %p149 = por %p147, %p148
    %p151 = scmp.ne.s32.totalorder %s136, %s150
    %p152 = scmp.eq.s32.totalorder %s21, 0
    %p153 = por %p151, %p152
    %s155 = sadd.s32 %s154, 1
    %p158 = scmp.eq.s32.totalorder %s15, 1
    %p159 = scmp.ne.s32.totalorder %s154, %s156
    %p160 = scmp.eq.s32.totalorder %s15, 0
    %p161 = por %p159, %p160
    %p162 = scmp.ne.s32.totalorder %s154, %s156
    %p163 = scmp.eq.s32.totalorder %s20, 1
    %p164 = por %p162, %p163
    %p165 = scmp.ne.s32.totalorder %s156, %s157
    %p166 = scmp.eq.s32.totalorder %s20, 0
    %p167 = por %p165, %p166
    %p168 = scmp.ne.s32.totalorder %s156, %s157
    %p169 = scmp.eq.s32.totalorder %s21, 1
    %p170 = por %p168, %p169
    %p172 = scmp.ne.s32.totalorder %s157, %s171
    %p173 = scmp.eq.s32.totalorder %s21, 0
    %p174 = por %p172, %p173
    %s176 = sadd.s32 %s175, 1
    %p179 = scmp.eq.s32.totalorder %s15, 1
    %p180 = scmp.ne.s32.totalorder %s175, %s177
    %p181 = scmp.eq.s32.totalorder %s15, 0
    %p182 = por %p180, %p181
    %p183 = scmp.ne.s32.totalorder %s175, %s177
    %p184 = scmp.eq.s32.totalorder %s20, 1
    %p185 = por %p183, %p184
    %p186 = scmp.ne.s32.totalorder %s177, %s178
    %p187 = scmp.eq.s32.totalorder %s20, 0
    %p188 = por %p186, %p187
    %p189 = scmp.ne.s32.totalorder %s177, %s178
    %p190 = scmp.eq.s32.totalorder %s21, 1
    %p191 = por %p189, %p190
    %p193 = scmp.ne.s32.totalorder %s178, %s192
    %p194 = scmp.eq.s32.totalorder %s21, 0
    %p195 = por %p193, %p194
    %s197 = sadd.s32 %s196, 1
    %p200 = scmp.eq.s32.totalorder %s15, 1
    %p201 = scmp.ne.s32.totalorder %s196, %s198
    %p202 = scmp.eq.s32.totalorder %s15, 0
    %p203 = por %p201, %p202
    %p204 = scmp.ne.s32.totalorder %s196, %s198
    %p205 = scmp.eq.s32.totalorder %s20, 1
    %p206 = por %p204, %p205
    %p207 = scmp.ne.s32.totalorder %s198, %s199
    %p208 = scmp.eq.s32.totalorder %s20, 0
    %p209 = por %p207, %p208
    %p210 = scmp.ne.s32.totalorder %s198, %s199
    %p211 = scmp.eq.s32.totalorder %s21, 1
    %p212 = por %p210, %p211
    %p214 = scmp.ne.s32.totalorder %s199, %s213
    %p215 = scmp.eq.s32.totalorder %s21, 0
    %p216 = por %p214, %p215
    %s217 = ssub.s32 %s15, %s22
    %p218 = scmp.eq.s32.totalorder %s217, 0
    %s220 = sadd.s32 %s219, 1
    %s221 = scalar_select %p218, %s219, %s220
    %p224 = pneg %p218
    %p225 = scmp.eq.s32.totalorder %s15, 1
    %p226 = por %p224, %p225
    %p227 = scmp.ne.s32.totalorder %s219, %s222
    %p228 = scmp.eq.s32.totalorder %s15, 0
    %p229 = por %p227, %p228
    %p230 = scmp.ne.s32.totalorder %s219, %s222
    %p231 = scmp.eq.s32.totalorder %s20, 1
    %p232 = por %p230, %p231
    %p233 = scmp.ne.s32.totalorder %s222, %s223
    %p234 = scmp.eq.s32.totalorder %s20, 0
    %p235 = por %p233, %p234
    %p236 = scmp.ne.s32.totalorder %s222, %s223
    %p237 = scmp.eq.s32.totalorder %s21, 1
    %p238 = por %p236, %p237
    %p240 = scmp.ne.s32.totalorder %s223, %s239
    %p241 = scmp.eq.s32.totalorder %s21, 0
    %p242 = por %p240, %p241
    %p243 = scmp.le.s32.totalorder 1, %s15
    %p244 = scmp.lt.s32.totalorder %s15, 3
    %p245 = pnand %p243, %p244
    %p246 = pneg %p245
    // Predicated region
    $region9: #{se_attention_forward.1} parent=5 // pred_check
      _
    $region10: #{se_attention_forward.1} parent=5 // pred_check_branch
      %248 = sbr.rel (%p245) target = $region12
    $region11: #{se_attention_forward.1} parent=5 // pred_region
      %s249 = ssub.s32 %s15, 1
      // Predicated region
      $region13: #{se_attention_forward.1} parent=11 // pred_check
        %p250 = pneg %p62
      $region14: #{se_attention_forward.1} parent=11 // pred_check_branch
        %252 = sbr.rel (%p250) target = $region16
      $region15: #{se_attention_forward.1} parent=11 // pred_region
        _
      $region16: #{se_attention_forward.1} parent=11 // pred_fallthru
        _
      // Predicated region
      $region17: #{se_attention_forward.1} parent=11 // pred_check
        %p253 = pneg %p83
      $region18: #{se_attention_forward.1} parent=11 // pred_check_branch
        %255 = sbr.rel (%p253) target = $region20
      $region19: #{se_attention_forward.1} parent=11 // pred_region
        _
      $region20: #{se_attention_forward.1} parent=11 // pred_fallthru
        _
      // Predicated region
      $region21: #{se_attention_forward.1} parent=11 // pred_check
        %p256 = pneg %p104
      $region22: #{se_attention_forward.1} parent=11 // pred_check_branch
        %258 = sbr.rel (%p256) target = $region24
      $region23: #{se_attention_forward.1} parent=11 // pred_region
        _
      $region24: #{se_attention_forward.1} parent=11 // pred_fallthru
        _
      // Predicated region
      $region25: #{se_attention_forward.1} parent=11 // pred_check
        %p259 = pneg %p125
      $region26: #{se_attention_forward.1} parent=11 // pred_check_branch
        %261 = sbr.rel (%p259) target = $region28
      $region27: #{se_attention_forward.1} parent=11 // pred_region
        _
      $region28: #{se_attention_forward.1} parent=11 // pred_fallthru
        _
      // Predicated region
      $region29: #{se_attention_forward.1} parent=11 // pred_check
        %p262 = pneg %p146
      $region30: #{se_attention_forward.1} parent=11 // pred_check_branch
        %264 = sbr.rel (%p262) target = $region32
      $region31: #{se_attention_forward.1} parent=11 // pred_region
        _
      $region32: #{se_attention_forward.1} parent=11 // pred_fallthru
        _
      // Predicated region
      $region33: #{se_attention_forward.1} parent=11 // pred_check
        %p265 = pneg %p167
      $region34: #{se_attention_forward.1} parent=11 // pred_check_branch
        %267 = sbr.rel (%p265) target = $region36
      $region35: #{se_attention_forward.1} parent=11 // pred_region
        _
      $region36: #{se_attention_forward.1} parent=11 // pred_fallthru
        _
      // Predicated region
      $region37: #{se_attention_forward.1} parent=11 // pred_check
        %p268 = pneg %p188
      $region38: #{se_attention_forward.1} parent=11 // pred_check_branch
        %270 = sbr.rel (%p268) target = $region40
      $region39: #{se_attention_forward.1} parent=11 // pred_region
        _
      $region40: #{se_attention_forward.1} parent=11 // pred_fallthru
        _
      // Predicated region
      $region41: #{se_attention_forward.1} parent=11 // pred_check
        %p271 = pneg %p209
      $region42: #{se_attention_forward.1} parent=11 // pred_check_branch
        %273 = sbr.rel (%p271) target = $region44
      $region43: #{se_attention_forward.1} parent=11 // pred_region
        _
      $region44: #{se_attention_forward.1} parent=11 // pred_fallthru
        _
    $region12: #{se_attention_forward.1} parent=5 // pred_fallthru
      _
    %p274 = scmp.lt.s32.totalorder %s15, 2
    // Predicated region
    $region45: #{se_attention_forward.1} parent=5 // pred_check
      %p275 = pneg %p274
    $region46: #{se_attention_forward.1} parent=5 // pred_check_branch
      %277 = sbr.rel (%p275) target = $region48
    $region47: #{se_attention_forward.1} parent=5 // pred_region
      // Predicated region
      $region49: #{se_attention_forward.1} parent=47 // pred_check
        %p278 = pneg %p35
      $region50: #{se_attention_forward.1} parent=47 // pred_check_branch
        %280 = sbr.rel (%p278) target = $region52
      $region51: #{se_attention_forward.1} parent=47 // pred_region
        %p281 = scmp.lt.s32.totalorder %s15, 1
        %s282 = scalar_select %p281, %s15, 1
        %s283 = smul.addr %s282, 32
        %s284 = smul.addr %s283, 4
        %s285 = scalar_lea.vmem %s0, %s284
      $region52: #{se_attention_forward.1} parent=47 // pred_fallthru
        _
    $region48: #{se_attention_forward.1} parent=5 // pred_fallthru
      _
    %p286 = scmp.le.s32.totalorder 1, %s15
    %p287 = scmp.lt.s32.totalorder %s15, 3
    %p288 = pnand %p286, %p287
    %p289 = pneg %p288
    // Predicated region
    $region53: #{se_attention_forward.1} parent=5 // pred_check
      _
    $region54: #{se_attention_forward.1} parent=5 // pred_check_branch
      %291 = sbr.rel (%p288) target = $region56
    $region55: #{se_attention_forward.1} parent=5 // pred_region
      %s292 = ssub.s32 %s15, 1
      %p293 = scmp.lt.s32.totalorder %s20, 1
      %s294 = scalar_select %p293, %s20, 1
      %s295 = smul.addr %s294, 32
      %s296 = smul.addr %s295, 4
      %s297 = scalar_lea.vmem %s0, %s296
      %p298 = pneg %p41
      %p299 = pneg %p38
      %p300 = pneg %p62
      %p301 = pneg %p59
      %p302 = pneg %p83
      %p303 = pneg %p80
      %p304 = pneg %p104
      %p305 = pneg %p101
      %p306 = pneg %p125
      %p307 = pneg %p122
      %p308 = pneg %p146
      %p309 = pneg %p143
      %p310 = pneg %p167
      %p311 = pneg %p164
      %p312 = pneg %p188
      %p313 = pneg %p185
      %p314 = pneg %p209
      %p315 = pneg %p206
      %p316 = pneg %p235
      %p317 = pneg %p232
      %p318 = scmp.lt.s32.totalorder %s20, 1
      %s319 = scalar_select %p318, %s20, 1
      %s320 = smul.addr %s319, 8
      %s321 = smul.addr %s320, 8
      %s322 = scalar_lea.vmem %s9, %s321
      %p323 = scmp.lt.s32.totalorder %s20, 1
      %s324 = scalar_select %p323, %s20, 1
      %s325 = smul.addr %s324, 32
      %s326 = smul.addr %s325, 4
      %s327 = scalar_lea.vmem %s0, %s326
      %p328 = scmp.lt.s32.totalorder %s20, 1
      %s329 = scalar_select %p328, %s20, 1
      %s330 = smul.addr %s329, 8
      %s331 = smul.addr %s330, 8
      %s332 = scalar_lea.vmem %s9, %s331
      %p334 = scmp.eq.s32.totalorder %s20, 0
      // Predicated region
      $region57: #{se_attention_forward.1} parent=55 // pred_check
        %p335 = pneg %p334
      $region58: #{se_attention_forward.1} parent=55 // pred_check_branch
        %337 = sbr.rel (%p335) target = $region60
      $region59: #{se_attention_forward.1} parent=55 // pred_region
        %vm338 = vcmask 257024
        %339 = vst.msk [vmem:[#allocation2] sm:$0xf] %vm338, 0
        %340 = vst.msk [vmem:[#allocation2 + $0x4] sm:$0xf] %vm338, 0
        %341 = vst.msk [vmem:[#allocation2 + $0x8] sm:$0xf] %vm338, 0
        %342 = vst.msk [vmem:[#allocation2 + $0xc] sm:$0xf] %vm338, 0
        %343 = vst.msk [vmem:[#allocation2 + $0x10] sm:$0xf] %vm338, 0
        %344 = vst.msk [vmem:[#allocation2 + $0x14] sm:$0xf] %vm338, 0
        %345 = vst.msk [vmem:[#allocation2 + $0x18] sm:$0xf] %vm338, 0
        %346 = vst.msk [vmem:[#allocation2 + $0x1c] sm:$0xf] %vm338, 0
        %347 = vst.msk [vmem:[#allocation2 + $0x20] sm:$0xf] %vm338, 0
        %348 = vst.msk [vmem:[#allocation2 + $0x24] sm:$0xf] %vm338, 0
        %349 = vst.msk [vmem:[#allocation2 + $0x28] sm:$0xf] %vm338, 0
        %350 = vst.msk [vmem:[#allocation2 + $0x2c] sm:$0xf] %vm338, 0
        %351 = vst.msk [vmem:[#allocation2 + $0x30] sm:$0xf] %vm338, 0
        %352 = vst.msk [vmem:[#allocation2 + $0x34] sm:$0xf] %vm338, 0
        %353 = vst.msk [vmem:[#allocation2 + $0x38] sm:$0xf] %vm338, 0
        %354 = vst.msk [vmem:[#allocation2 + $0x3c] sm:$0xf] %vm338, 0
        %355 = vst.msk [vmem:[#allocation2 + $0x40] sm:$0xf] %vm338, 0
        %356 = vst.msk [vmem:[#allocation2 + $0x44] sm:$0xf] %vm338, 0
        %357 = vst.msk [vmem:[#allocation2 + $0x48] sm:$0xf] %vm338, 0
        %358 = vst.msk [vmem:[#allocation2 + $0x4c] sm:$0xf] %vm338, 0
        %359 = vst.msk [vmem:[#allocation2 + $0x50] sm:$0xf] %vm338, 0
        %360 = vst.msk [vmem:[#allocation2 + $0x54] sm:$0xf] %vm338, 0
        %361 = vst.msk [vmem:[#allocation2 + $0x58] sm:$0xf] %vm338, 0
        %362 = vst.msk [vmem:[#allocation2 + $0x5c] sm:$0xf] %vm338, 0
        %363 = vst.msk [vmem:[#allocation2 + $0x60] sm:$0xf] %vm338, 0
        %364 = vst.msk [vmem:[#allocation2 + $0x64] sm:$0xf] %vm338, 0
        %365 = vst.msk [vmem:[#allocation2 + $0x68] sm:$0xf] %vm338, 0
        %366 = vst.msk [vmem:[#allocation2 + $0x6c] sm:$0xf] %vm338, 0
        %367 = vst.msk [vmem:[#allocation2 + $0x70] sm:$0xf] %vm338, 0
        %368 = vst.msk [vmem:[#allocation2 + $0x74] sm:$0xf] %vm338, 0
        %369 = vst.msk [vmem:[#allocation2 + $0x78] sm:$0xf] %vm338, 0
        %370 = vst.msk [vmem:[#allocation2 + $0x7c] sm:$0xf] %vm338, 0
        %371 = vst.msk [vmem:[#allocation2 + $0x80] sm:$0xf] %vm338, 0
        %372 = vst.msk [vmem:[#allocation2 + $0x84] sm:$0xf] %vm338, 0
        %373 = vst.msk [vmem:[#allocation2 + $0x88] sm:$0xf] %vm338, 0
        %374 = vst.msk [vmem:[#allocation2 + $0x8c] sm:$0xf] %vm338, 0
        %375 = vst.msk [vmem:[#allocation2 + $0x90] sm:$0xf] %vm338, 0
        %376 = vst.msk [vmem:[#allocation2 + $0x94] sm:$0xf] %vm338, 0
        %377 = vst.msk [vmem:[#allocation2 + $0x98] sm:$0xf] %vm338, 0
        %378 = vst.msk [vmem:[#allocation2 + $0x9c] sm:$0xf] %vm338, 0
        %379 = vst.msk [vmem:[#allocation2 + $0xa0] sm:$0xf] %vm338, 0
        %380 = vst.msk [vmem:[#allocation2 + $0xa4] sm:$0xf] %vm338, 0
        %381 = vst.msk [vmem:[#allocation2 + $0xa8] sm:$0xf] %vm338, 0
        %382 = vst.msk [vmem:[#allocation2 + $0xac] sm:$0xf] %vm338, 0
        %383 = vst.msk [vmem:[#allocation2 + $0xb0] sm:$0xf] %vm338, 0
        %384 = vst.msk [vmem:[#allocation2 + $0xb4] sm:$0xf] %vm338, 0
        %385 = vst.msk [vmem:[#allocation2 + $0xb8] sm:$0xf] %vm338, 0
        %386 = vst.msk [vmem:[#allocation2 + $0xbc] sm:$0xf] %vm338, 0
        %387 = vst.msk [vmem:[#allocation2 + $0xc0] sm:$0xf] %vm338, 0
        %388 = vst.msk [vmem:[#allocation2 + $0xc4] sm:$0xf] %vm338, 0
        %389 = vst.msk [vmem:[#allocation2 + $0xc8] sm:$0xf] %vm338, 0
        %390 = vst.msk [vmem:[#allocation2 + $0xcc] sm:$0xf] %vm338, 0
        %391 = vst.msk [vmem:[#allocation2 + $0xd0] sm:$0xf] %vm338, 0
        %392 = vst.msk [vmem:[#allocation2 + $0xd4] sm:$0xf] %vm338, 0
        %393 = vst.msk [vmem:[#allocation2 + $0xd8] sm:$0xf] %vm338, 0
        %394 = vst.msk [vmem:[#allocation2 + $0xdc] sm:$0xf] %vm338, 0
        %395 = vst.msk [vmem:[#allocation2 + $0xe0] sm:$0xf] %vm338, 0
        %396 = vst.msk [vmem:[#allocation2 + $0xe4] sm:$0xf] %vm338, 0
        %397 = vst.msk [vmem:[#allocation2 + $0xe8] sm:$0xf] %vm338, 0
        %398 = vst.msk [vmem:[#allocation2 + $0xec] sm:$0xf] %vm338, 0
        %399 = vst.msk [vmem:[#allocation2 + $0xf0] sm:$0xf] %vm338, 0
        %400 = vst.msk [vmem:[#allocation2 + $0xf4] sm:$0xf] %vm338, 0
        %401 = vst.msk [vmem:[#allocation2 + $0xf8] sm:$0xf] %vm338, 0
        %402 = vst.msk [vmem:[#allocation2 + $0xfc] sm:$0xf] %vm338, 0
        %403 = vst.msk [vmem:[#allocation2 + $0x100] sm:$0xf] %vm338, 0
        %404 = vst.msk [vmem:[#allocation2 + $0x104] sm:$0xf] %vm338, 0
        %405 = vst.msk [vmem:[#allocation2 + $0x108] sm:$0xf] %vm338, 0
        %406 = vst.msk [vmem:[#allocation2 + $0x10c] sm:$0xf] %vm338, 0
        %407 = vst.msk [vmem:[#allocation2 + $0x110] sm:$0xf] %vm338, 0
        %408 = vst.msk [vmem:[#allocation2 + $0x114] sm:$0xf] %vm338, 0
        %409 = vst.msk [vmem:[#allocation2 + $0x118] sm:$0xf] %vm338, 0
        %410 = vst.msk [vmem:[#allocation2 + $0x11c] sm:$0xf] %vm338, 0
        %411 = vst.msk [vmem:[#allocation2 + $0x120] sm:$0xf] %vm338, 0
        %412 = vst.msk [vmem:[#allocation2 + $0x124] sm:$0xf] %vm338, 0
        %413 = vst.msk [vmem:[#allocation2 + $0x128] sm:$0xf] %vm338, 0
        %414 = vst.msk [vmem:[#allocation2 + $0x12c] sm:$0xf] %vm338, 0
        %415 = vst.msk [vmem:[#allocation2 + $0x130] sm:$0xf] %vm338, 0
        %416 = vst.msk [vmem:[#allocation2 + $0x134] sm:$0xf] %vm338, 0
        %417 = vst.msk [vmem:[#allocation2 + $0x138] sm:$0xf] %vm338, 0
        %418 = vst.msk [vmem:[#allocation2 + $0x13c] sm:$0xf] %vm338, 0
        %419 = vst.msk [vmem:[#allocation2 + $0x140] sm:$0xf] %vm338, 0
        %420 = vst.msk [vmem:[#allocation2 + $0x144] sm:$0xf] %vm338, 0
        %421 = vst.msk [vmem:[#allocation2 + $0x148] sm:$0xf] %vm338, 0
        %422 = vst.msk [vmem:[#allocation2 + $0x14c] sm:$0xf] %vm338, 0
        %423 = vst.msk [vmem:[#allocation2 + $0x150] sm:$0xf] %vm338, 0
        %424 = vst.msk [vmem:[#allocation2 + $0x154] sm:$0xf] %vm338, 0
        %425 = vst.msk [vmem:[#allocation2 + $0x158] sm:$0xf] %vm338, 0
        %426 = vst.msk [vmem:[#allocation2 + $0x15c] sm:$0xf] %vm338, 0
        %427 = vst.msk [vmem:[#allocation2 + $0x160] sm:$0xf] %vm338, 0
        %428 = vst.msk [vmem:[#allocation2 + $0x164] sm:$0xf] %vm338, 0
        %429 = vst.msk [vmem:[#allocation2 + $0x168] sm:$0xf] %vm338, 0
        %430 = vst.msk [vmem:[#allocation2 + $0x16c] sm:$0xf] %vm338, 0
        %431 = vst.msk [vmem:[#allocation2 + $0x170] sm:$0xf] %vm338, 0
        %432 = vst.msk [vmem:[#allocation2 + $0x174] sm:$0xf] %vm338, 0
        %433 = vst.msk [vmem:[#allocation2 + $0x178] sm:$0xf] %vm338, 0
        %434 = vst.msk [vmem:[#allocation2 + $0x17c] sm:$0xf] %vm338, 0
        %435 = vst.msk [vmem:[#allocation2 + $0x180] sm:$0xf] %vm338, 0
        %436 = vst.msk [vmem:[#allocation2 + $0x184] sm:$0xf] %vm338, 0
        %437 = vst.msk [vmem:[#allocation2 + $0x188] sm:$0xf] %vm338, 0
        %438 = vst.msk [vmem:[#allocation2 + $0x18c] sm:$0xf] %vm338, 0
        %439 = vst.msk [vmem:[#allocation2 + $0x190] sm:$0xf] %vm338, 0
        %440 = vst.msk [vmem:[#allocation2 + $0x194] sm:$0xf] %vm338, 0
        %441 = vst.msk [vmem:[#allocation2 + $0x198] sm:$0xf] %vm338, 0
        %442 = vst.msk [vmem:[#allocation2 + $0x19c] sm:$0xf] %vm338, 0
        %443 = vst.msk [vmem:[#allocation2 + $0x1a0] sm:$0xf] %vm338, 0
        %444 = vst.msk [vmem:[#allocation2 + $0x1a4] sm:$0xf] %vm338, 0
        %445 = vst.msk [vmem:[#allocation2 + $0x1a8] sm:$0xf] %vm338, 0
        %446 = vst.msk [vmem:[#allocation2 + $0x1ac] sm:$0xf] %vm338, 0
        %447 = vst.msk [vmem:[#allocation2 + $0x1b0] sm:$0xf] %vm338, 0
        %448 = vst.msk [vmem:[#allocation2 + $0x1b4] sm:$0xf] %vm338, 0
        %449 = vst.msk [vmem:[#allocation2 + $0x1b8] sm:$0xf] %vm338, 0
        %450 = vst.msk [vmem:[#allocation2 + $0x1bc] sm:$0xf] %vm338, 0
        %451 = vst.msk [vmem:[#allocation2 + $0x1c0] sm:$0xf] %vm338, 0
        %452 = vst.msk [vmem:[#allocation2 + $0x1c4] sm:$0xf] %vm338, 0
        %453 = vst.msk [vmem:[#allocation2 + $0x1c8] sm:$0xf] %vm338, 0
        %454 = vst.msk [vmem:[#allocation2 + $0x1cc] sm:$0xf] %vm338, 0
        %455 = vst.msk [vmem:[#allocation2 + $0x1d0] sm:$0xf] %vm338, 0
        %456 = vst.msk [vmem:[#allocation2 + $0x1d4] sm:$0xf] %vm338, 0
        %457 = vst.msk [vmem:[#allocation2 + $0x1d8] sm:$0xf] %vm338, 0
        %458 = vst.msk [vmem:[#allocation2 + $0x1dc] sm:$0xf] %vm338, 0
        %459 = vst.msk [vmem:[#allocation2 + $0x1e0] sm:$0xf] %vm338, 0
        %460 = vst.msk [vmem:[#allocation2 + $0x1e4] sm:$0xf] %vm338, 0
        %461 = vst.msk [vmem:[#allocation2 + $0x1e8] sm:$0xf] %vm338, 0
        %462 = vst.msk [vmem:[#allocation2 + $0x1ec] sm:$0xf] %vm338, 0
        %463 = vst.msk [vmem:[#allocation2 + $0x1f0] sm:$0xf] %vm338, 0
        %464 = vst.msk [vmem:[#allocation2 + $0x1f4] sm:$0xf] %vm338, 0
        %465 = vst.msk [vmem:[#allocation2 + $0x1f8] sm:$0xf] %vm338, 0
        %466 = vst.msk [vmem:[#allocation2 + $0x1fc] sm:$0xf] %vm338, 0
      $region60: #{se_attention_forward.1} parent=55 // pred_fallthru
        _
      %v467 = vld [vmem:[%s327] sm:$0xf]
      %v468 = vld [vmem:[%s327 + $0x4] sm:$0xf]
      %v469 = vld [vmem:[%s327 + $0x8] sm:$0xf]
      %v470 = vld [vmem:[%s327 + $0xc] sm:$0xf]
      %v471 = vld [vmem:[%s327 + $0x10] sm:$0xf]
      %v472 = vld [vmem:[%s327 + $0x14] sm:$0xf]
      %v473 = vld [vmem:[%s327 + $0x18] sm:$0xf]
      %v474 = vld [vmem:[%s327 + $0x1c] sm:$0xf]
      %v475 = vld [vmem:[%s327 + $0x20] sm:$0xf]
      %v476 = vld [vmem:[%s327 + $0x24] sm:$0xf]
      %v477 = vld [vmem:[%s327 + $0x28] sm:$0xf]
      %v478 = vld [vmem:[%s327 + $0x2c] sm:$0xf]
      %v479 = vld [vmem:[%s327 + $0x30] sm:$0xf]
      %v480 = vld [vmem:[%s327 + $0x34] sm:$0xf]
      %v481 = vld [vmem:[%s327 + $0x38] sm:$0xf]
      %v482 = vld [vmem:[%s327 + $0x3c] sm:$0xf]
      %v483 = vld [vmem:[%s327 + $0x40] sm:$0xf]
      %v484 = vld [vmem:[%s327 + $0x44] sm:$0xf]
      %v485 = vld [vmem:[%s327 + $0x48] sm:$0xf]
      %v486 = vld [vmem:[%s327 + $0x4c] sm:$0xf]
      %v487 = vld [vmem:[%s327 + $0x50] sm:$0xf]
      %v488 = vld [vmem:[%s327 + $0x54] sm:$0xf]
      %v489 = vld [vmem:[%s327 + $0x58] sm:$0xf]
      %v490 = vld [vmem:[%s327 + $0x5c] sm:$0xf]
      %v491 = vld [vmem:[%s327 + $0x60] sm:$0xf]
      %v492 = vld [vmem:[%s327 + $0x64] sm:$0xf]
      %v493 = vld [vmem:[%s327 + $0x68] sm:$0xf]
      %v494 = vld [vmem:[%s327 + $0x6c] sm:$0xf]
      %v495 = vld [vmem:[%s327 + $0x70] sm:$0xf]
      %v496 = vld [vmem:[%s327 + $0x74] sm:$0xf]
      %v497 = vld [vmem:[%s327 + $0x78] sm:$0xf]
      %v498 = vld [vmem:[%s327 + $0x7c] sm:$0xf]
      %s499 = scalar_lea.vmem [#allocation2], 128
      %vm500 = vcmask 257024
      %501 = vst.msk [vmem:[%s499 + $0x4] sm:$0xf] %vm500, %v467
      %502 = vst.msk [vmem:[%s499 + $0x8] sm:$0xf] %vm500, %v468
      %503 = vst.msk [vmem:[%s499 + $0x14] sm:$0xf] %vm500, %v469
      %504 = vst.msk [vmem:[%s499 + $0x18] sm:$0xf] %vm500, %v470
      %505 = vst.msk [vmem:[%s499 + $0x24] sm:$0xf] %vm500, %v471
      %506 = vst.msk [vmem:[%s499 + $0x28] sm:$0xf] %vm500, %v472
      %507 = vst.msk [vmem:[%s499 + $0x34] sm:$0xf] %vm500, %v473
      %508 = vst.msk [vmem:[%s499 + $0x38] sm:$0xf] %vm500, %v474
      %509 = vst.msk [vmem:[%s499 + $0x44] sm:$0xf] %vm500, %v475
      %510 = vst.msk [vmem:[%s499 + $0x48] sm:$0xf] %vm500, %v476
      %511 = vst.msk [vmem:[%s499 + $0x54] sm:$0xf] %vm500, %v477
      %512 = vst.msk [vmem:[%s499 + $0x58] sm:$0xf] %vm500, %v478
      %513 = vst.msk [vmem:[%s499 + $0x64] sm:$0xf] %vm500, %v479
      %514 = vst.msk [vmem:[%s499 + $0x68] sm:$0xf] %vm500, %v480
      %515 = vst.msk [vmem:[%s499 + $0x74] sm:$0xf] %vm500, %v481
      %516 = vst.msk [vmem:[%s499 + $0x78] sm:$0xf] %vm500, %v482
      %517 = vst.msk [vmem:[%s499 + $0x84] sm:$0xf] %vm500, %v483
      %518 = vst.msk [vmem:[%s499 + $0x88] sm:$0xf] %vm500, %v484
      %519 = vst.msk [vmem:[%s499 + $0x94] sm:$0xf] %vm500, %v485
      %520 = vst.msk [vmem:[%s499 + $0x98] sm:$0xf] %vm500, %v486
      %521 = vst.msk [vmem:[%s499 + $0xa4] sm:$0xf] %vm500, %v487
      %522 = vst.msk [vmem:[%s499 + $0xa8] sm:$0xf] %vm500, %v488
      %523 = vst.msk [vmem:[%s499 + $0xb4] sm:$0xf] %vm500, %v489
      %524 = vst.msk [vmem:[%s499 + $0xb8] sm:$0xf] %vm500, %v490
      %525 = vst.msk [vmem:[%s499 + $0xc4] sm:$0xf] %vm500, %v491
      %526 = vst.msk [vmem:[%s499 + $0xc8] sm:$0xf] %vm500, %v492
      %527 = vst.msk [vmem:[%s499 + $0xd4] sm:$0xf] %vm500, %v493
      %528 = vst.msk [vmem:[%s499 + $0xd8] sm:$0xf] %vm500, %v494
      %529 = vst.msk [vmem:[%s499 + $0xe4] sm:$0xf] %vm500, %v495
      %530 = vst.msk [vmem:[%s499 + $0xe8] sm:$0xf] %vm500, %v496
      %531 = vst.msk [vmem:[%s499 + $0xf4] sm:$0xf] %vm500, %v497
      %532 = vst.msk [vmem:[%s499 + $0xf8] sm:$0xf] %vm500, %v498
      %s533 = scalar_lea.vmem [#allocation2], 80
      %v534 = vld [vmem:[%s533] sm:$0xc]
      %v535 = vld [vmem:[%s533 + $0x4] sm:$0xf]
      %v536 = vld [vmem:[%s533 + $0x8] sm:$0x7]
      %v537 = vld [vmem:[%s533 + $0x10] sm:$0xc]
      %v538 = vld [vmem:[%s533 + $0x14] sm:$0xf]
      %v539 = vld [vmem:[%s533 + $0x18] sm:$0x7]
      %v540 = vld [vmem:[%s533 + $0x20] sm:$0xc]
      %v541 = vld [vmem:[%s533 + $0x24] sm:$0xf]
      %v542 = vld [vmem:[%s533 + $0x28] sm:$0x7]
      %v543 = vld [vmem:[%s533 + $0x30] sm:$0xc]
      %v544 = vld [vmem:[%s533 + $0x34] sm:$0xf]
      %v545 = vld [vmem:[%s533 + $0x38] sm:$0x7]
      %v546 = vld [vmem:[%s533 + $0x40] sm:$0xc]
      %v547 = vld [vmem:[%s533 + $0x44] sm:$0xf]
      %v548 = vld [vmem:[%s533 + $0x48] sm:$0x7]
      %v549 = vld [vmem:[%s533 + $0x50] sm:$0xc]
      %v550 = vld [vmem:[%s533 + $0x54] sm:$0xf]
      %v551 = vld [vmem:[%s533 + $0x58] sm:$0x7]
      %v552 = vld [vmem:[%s533 + $0x60] sm:$0xc]
      %v553 = vld [vmem:[%s533 + $0x64] sm:$0xf]
      %v554 = vld [vmem:[%s533 + $0x68] sm:$0x7]
      %v555 = vld [vmem:[%s533 + $0x70] sm:$0xc]
      %v556 = vld [vmem:[%s533 + $0x74] sm:$0xf]
      %v557 = vld [vmem:[%s533 + $0x78] sm:$0x7]
      %v558 = vld [vmem:[%s533 + $0x80] sm:$0xc]
      %v559 = vld [vmem:[%s533 + $0x84] sm:$0xf]
      %v560 = vld [vmem:[%s533 + $0x88] sm:$0x7]
      %v561 = vld [vmem:[%s533 + $0x90] sm:$0xc]
      %v562 = vld [vmem:[%s533 + $0x94] sm:$0xf]
      %v563 = vld [vmem:[%s533 + $0x98] sm:$0x7]
      %v564 = vld [vmem:[%s533 + $0xa0] sm:$0xc]
      %v565 = vld [vmem:[%s533 + $0xa4] sm:$0xf]
      %v566 = vld [vmem:[%s533 + $0xa8] sm:$0x7]
      %v567 = vld [vmem:[%s533 + $0xb0] sm:$0xc]
      %v568 = vld [vmem:[%s533 + $0xb4] sm:$0xf]
      %v569 = vld [vmem:[%s533 + $0xb8] sm:$0x7]
      %v570 = vld [vmem:[%s533 + $0xc0] sm:$0xc]
      %v571 = vld [vmem:[%s533 + $0xc4] sm:$0xf]
      %v572 = vld [vmem:[%s533 + $0xc8] sm:$0x7]
      %v573 = vld [vmem:[%s533 + $0xd0] sm:$0xc]
      %v574 = vld [vmem:[%s533 + $0xd4] sm:$0xf]
      %v575 = vld [vmem:[%s533 + $0xd8] sm:$0x7]
      %v576 = vld [vmem:[%s533 + $0xe0] sm:$0xc]
      %v577 = vld [vmem:[%s533 + $0xe4] sm:$0xf]
      %v578 = vld [vmem:[%s533 + $0xe8] sm:$0x7]
      %v579 = vld [vmem:[%s533 + $0xf0] sm:$0xc]
      %v580 = vld [vmem:[%s533 + $0xf4] sm:$0xf]
      %v581 = vld [vmem:[%s533 + $0xf8] sm:$0x7]
      %vm582 = vsmask.f32 1280
      %vm583 = vsmask.f32 5392
      %vm584 = vmor %vm582, %vm583
      %v586 = vshrl.u32 %v534, 16
      %v588 = vrot.slane %v586, 6
      %v589 = vshll.u32 %v534, 16
      %v591 = vrot.slane %v589, 7
      %v592 = vor.u32 %v588, %v591
      %v593 = vrot.slane %v592, 4
      %v595 = vshrl.u32 %v535, 16
      %v597 = vrot.slane %v595, 6
      %v598 = vshll.u32 %v535, 16
      %v600 = vrot.slane %v598, 7
      %v601 = vor.u32 %v597, %v600
      %v602 = vsel %vm584, %v593, %v601
      %v603 = vrot.slane %v601, 4
      %v605 = vshrl.u32 %v536, 16
      %v607 = vrot.slane %v605, 6
      %v608 = vshll.u32 %v536, 16
      %v610 = vrot.slane %v608, 7
      %v611 = vor.u32 %v607, %v610
      %v612 = vsel %vm584, %v603, %v611
      %v614 = vshrl.u32 %v537, 16
      %v616 = vrot.slane %v614, 6
      %v617 = vshll.u32 %v537, 16
      %v619 = vrot.slane %v617, 7
      %v620 = vor.u32 %v616, %v619
      %v621 = vrot.slane %v620, 4
      %v623 = vshrl.u32 %v538, 16
      %v625 = vrot.slane %v623, 6
      %v626 = vshll.u32 %v538, 16
      %v628 = vrot.slane %v626, 7
      %v629 = vor.u32 %v625, %v628
      %v630 = vsel %vm584, %v621, %v629
      %v631 = vrot.slane %v629, 4
      %v633 = vshrl.u32 %v539, 16
      %v635 = vrot.slane %v633, 6
      %v636 = vshll.u32 %v539, 16
      %v638 = vrot.slane %v636, 7
      %v639 = vor.u32 %v635, %v638
      %v640 = vsel %vm584, %v631, %v639
      %v642 = vshrl.u32 %v540, 16
      %v644 = vrot.slane %v642, 6
      %v645 = vshll.u32 %v540, 16
      %v647 = vrot.slane %v645, 7
      %v648 = vor.u32 %v644, %v647
      %v649 = vrot.slane %v648, 4
      %v651 = vshrl.u32 %v541, 16
      %v653 = vrot.slane %v651, 6
      %v654 = vshll.u32 %v541, 16
      %v656 = vrot.slane %v654, 7
      %v657 = vor.u32 %v653, %v656
      %v658 = vsel %vm584, %v649, %v657
      %v659 = vrot.slane %v657, 4
      %v661 = vshrl.u32 %v542, 16
      %v663 = vrot.slane %v661, 6
      %v664 = vshll.u32 %v542, 16
      %v666 = vrot.slane %v664, 7
      %v667 = vor.u32 %v663, %v666
      %v668 = vsel %vm584, %v659, %v667
      %v670 = vshrl.u32 %v543, 16
      %v672 = vrot.slane %v670, 6
      %v673 = vshll.u32 %v543, 16
      %v675 = vrot.slane %v673, 7
      %v676 = vor.u32 %v672, %v675
      %v677 = vrot.slane %v676, 4
      %v679 = vshrl.u32 %v544, 16
      %v681 = vrot.slane %v679, 6
      %v682 = vshll.u32 %v544, 16
      %v684 = vrot.slane %v682, 7
      %v685 = vor.u32 %v681, %v684
      %v686 = vsel %vm584, %v677, %v685
      %v687 = vrot.slane %v685, 4
      %v689 = vshrl.u32 %v545, 16
      %v691 = vrot.slane %v689, 6
      %v692 = vshll.u32 %v545, 16
      %v694 = vrot.slane %v692, 7
      %v695 = vor.u32 %v691, %v694
      %v696 = vsel %vm584, %v687, %v695
      %v698 = vshrl.u32 %v546, 16
      %v700 = vrot.slane %v698, 6
      %v701 = vshll.u32 %v546, 16
      %v703 = vrot.slane %v701, 7
      %v704 = vor.u32 %v700, %v703
      %v705 = vrot.slane %v704, 4
      %v707 = vshrl.u32 %v547, 16
      %v709 = vrot.slane %v707, 6
      %v710 = vshll.u32 %v547, 16
      %v712 = vrot.slane %v710, 7
      %v713 = vor.u32 %v709, %v712
      %v714 = vsel %vm584, %v705, %v713
      %v715 = vrot.slane %v713, 4
      %v717 = vshrl.u32 %v548, 16
      %v719 = vrot.slane %v717, 6
      %v720 = vshll.u32 %v548, 16
      %v722 = vrot.slane %v720, 7
      %v723 = vor.u32 %v719, %v722
      %v724 = vsel %vm584, %v715, %v723
      %v726 = vshrl.u32 %v549, 16
      %v728 = vrot.slane %v726, 6
      %v729 = vshll.u32 %v549, 16
      %v731 = vrot.slane %v729, 7
      %v732 = vor.u32 %v728, %v731
      %v733 = vrot.slane %v732, 4
      %v735 = vshrl.u32 %v550, 16
      %v737 = vrot.slane %v735, 6
      %v738 = vshll.u32 %v550, 16
      %v740 = vrot.slane %v738, 7
      %v741 = vor.u32 %v737, %v740
      %v742 = vsel %vm584, %v733, %v741
      %v743 = vrot.slane %v741, 4
      %v745 = vshrl.u32 %v551, 16
      %v747 = vrot.slane %v745, 6
      %v748 = vshll.u32 %v551, 16
      %v750 = vrot.slane %v748, 7
      %v751 = vor.u32 %v747, %v750
      %v752 = vsel %vm584, %v743, %v751
      %v754 = vshrl.u32 %v552, 16
      %v756 = vrot.slane %v754, 6
      %v757 = vshll.u32 %v552, 16
      %v759 = vrot.slane %v757, 7
      %v760 = vor.u32 %v756, %v759
      %v761 = vrot.slane %v760, 4
      %v763 = vshrl.u32 %v553, 16
      %v765 = vrot.slane %v763, 6
      %v766 = vshll.u32 %v553, 16
      %v768 = vrot.slane %v766, 7
      %v769 = vor.u32 %v765, %v768
      %v770 = vsel %vm584, %v761, %v769
      %v771 = vrot.slane %v769, 4
      %v773 = vshrl.u32 %v554, 16
      %v775 = vrot.slane %v773, 6
      %v776 = vshll.u32 %v554, 16
      %v778 = vrot.slane %v776, 7
      %v779 = vor.u32 %v775, %v778
      %v780 = vsel %vm584, %v771, %v779
      %v782 = vshrl.u32 %v555, 16
      %v784 = vrot.slane %v782, 6
      %v785 = vshll.u32 %v555, 16
      %v787 = vrot.slane %v785, 7
      %v788 = vor.u32 %v784, %v787
      %v789 = vrot.slane %v788, 4
      %v791 = vshrl.u32 %v556, 16
      %v793 = vrot.slane %v791, 6
      %v794 = vshll.u32 %v556, 16
      %v796 = vrot.slane %v794, 7
      %v797 = vor.u32 %v793, %v796
      %v798 = vsel %vm584, %v789, %v797
      %v799 = vrot.slane %v797, 4
      %v801 = vshrl.u32 %v557, 16
      %v803 = vrot.slane %v801, 6
      %v804 = vshll.u32 %v557, 16
      %v806 = vrot.slane %v804, 7
      %v807 = vor.u32 %v803, %v806
      %v808 = vsel %vm584, %v799, %v807
      %v810 = vshrl.u32 %v558, 16
      %v812 = vrot.slane %v810, 6
      %v813 = vshll.u32 %v558, 16
      %v815 = vrot.slane %v813, 7
      %v816 = vor.u32 %v812, %v815
      %v817 = vrot.slane %v816, 4
      %v819 = vshrl.u32 %v559, 16
      %v821 = vrot.slane %v819, 6
      %v822 = vshll.u32 %v559, 16
      %v824 = vrot.slane %v822, 7
      %v825 = vor.u32 %v821, %v824
      %v826 = vsel %vm584, %v817, %v825
      %v827 = vrot.slane %v825, 4
      %v829 = vshrl.u32 %v560, 16
      %v831 = vrot.slane %v829, 6
      %v832 = vshll.u32 %v560, 16
      %v834 = vrot.slane %v832, 7
      %v835 = vor.u32 %v831, %v834
      %v836 = vsel %vm584, %v827, %v835
      %v838 = vshrl.u32 %v561, 16
      %v840 = vrot.slane %v838, 6
      %v841 = vshll.u32 %v561, 16
      %v843 = vrot.slane %v841, 7
      %v844 = vor.u32 %v840, %v843
      %v845 = vrot.slane %v844, 4
      %v847 = vshrl.u32 %v562, 16
      %v849 = vrot.slane %v847, 6
      %v850 = vshll.u32 %v562, 16
      %v852 = vrot.slane %v850, 7
      %v853 = vor.u32 %v849, %v852
      %v854 = vsel %vm584, %v845, %v853
      %v855 = vrot.slane %v853, 4
      %v857 = vshrl.u32 %v563, 16
      %v859 = vrot.slane %v857, 6
      %v860 = vshll.u32 %v563, 16
      %v862 = vrot.slane %v860, 7
      %v863 = vor.u32 %v859, %v862
      %v864 = vsel %vm584, %v855, %v863
      %v866 = vshrl.u32 %v564, 16
      %v868 = vrot.slane %v866, 6
      %v869 = vshll.u32 %v564, 16
      %v871 = vrot.slane %v869, 7
      %v872 = vor.u32 %v868, %v871
      %v873 = vrot.slane %v872, 4
      %v875 = vshrl.u32 %v565, 16
      %v877 = vrot.slane %v875, 6
      %v878 = vshll.u32 %v565, 16
      %v880 = vrot.slane %v878, 7
      %v881 = vor.u32 %v877, %v880
      %v882 = vsel %vm584, %v873, %v881
      %v883 = vrot.slane %v881, 4
      %v885 = vshrl.u32 %v566, 16
      %v887 = vrot.slane %v885, 6
      %v888 = vshll.u32 %v566, 16
      %v890 = vrot.slane %v888, 7
      %v891 = vor.u32 %v887, %v890
      %v892 = vsel %vm584, %v883, %v891
      %v894 = vshrl.u32 %v567, 16
      %v896 = vrot.slane %v894, 6
      %v897 = vshll.u32 %v567, 16
      %v899 = vrot.slane %v897, 7
      %v900 = vor.u32 %v896, %v899
      %v901 = vrot.slane %v900, 4
      %v903 = vshrl.u32 %v568, 16
      %v905 = vrot.slane %v903, 6
      %v906 = vshll.u32 %v568, 16
      %v908 = vrot.slane %v906, 7
      %v909 = vor.u32 %v905, %v908
      %v910 = vsel %vm584, %v901, %v909
      %v911 = vrot.slane %v909, 4
      %v913 = vshrl.u32 %v569, 16
      %v915 = vrot.slane %v913, 6
      %v916 = vshll.u32 %v569, 16
      %v918 = vrot.slane %v916, 7
      %v919 = vor.u32 %v915, %v918
      %v920 = vsel %vm584, %v911, %v919
      %v922 = vshrl.u32 %v570, 16
      %v924 = vrot.slane %v922, 6
      %v925 = vshll.u32 %v570, 16
      %v927 = vrot.slane %v925, 7
      %v928 = vor.u32 %v924, %v927
      %v929 = vrot.slane %v928, 4
      %v931 = vshrl.u32 %v571, 16
      %v933 = vrot.slane %v931, 6
      %v934 = vshll.u32 %v571, 16
      %v936 = vrot.slane %v934, 7
      %v937 = vor.u32 %v933, %v936
      %v938 = vsel %vm584, %v929, %v937
      %v939 = vrot.slane %v937, 4
      %v941 = vshrl.u32 %v572, 16
      %v943 = vrot.slane %v941, 6
      %v944 = vshll.u32 %v572, 16
      %v946 = vrot.slane %v944, 7
      %v947 = vor.u32 %v943, %v946
      %v948 = vsel %vm584, %v939, %v947
      %v950 = vshrl.u32 %v573, 16
      %v952 = vrot.slane %v950, 6
      %v953 = vshll.u32 %v573, 16
      %v955 = vrot.slane %v953, 7
      %v956 = vor.u32 %v952, %v955
      %v957 = vrot.slane %v956, 4
      %v959 = vshrl.u32 %v574, 16
      %v961 = vrot.slane %v959, 6
      %v962 = vshll.u32 %v574, 16
      %v964 = vrot.slane %v962, 7
      %v965 = vor.u32 %v961, %v964
      %v966 = vsel %vm584, %v957, %v965
      %v967 = vrot.slane %v965, 4
      %v969 = vshrl.u32 %v575, 16
      %v971 = vrot.slane %v969, 6
      %v972 = vshll.u32 %v575, 16
      %v974 = vrot.slane %v972, 7
      %v975 = vor.u32 %v971, %v974
      %v976 = vsel %vm584, %v967, %v975
      %v978 = vshrl.u32 %v576, 16
      %v980 = vrot.slane %v978, 6
      %v981 = vshll.u32 %v576, 16
      %v983 = vrot.slane %v981, 7
      %v984 = vor.u32 %v980, %v983
      %v985 = vrot.slane %v984, 4
      %v987 = vshrl.u32 %v577, 16
      %v989 = vrot.slane %v987, 6
      %v990 = vshll.u32 %v577, 16
      %v992 = vrot.slane %v990, 7
      %v993 = vor.u32 %v989, %v992
      %v994 = vsel %vm584, %v985, %v993
      %v995 = vrot.slane %v993, 4
      %v997 = vshrl.u32 %v578, 16
      %v999 = vrot.slane %v997, 6
      %v1000 = vshll.u32 %v578, 16
      %v1002 = vrot.slane %v1000, 7
      %v1003 = vor.u32 %v999, %v1002
      %v1004 = vsel %vm584, %v995, %v1003
      %v1006 = vshrl.u32 %v579, 16
      %v1008 = vrot.slane %v1006, 6
      %v1009 = vshll.u32 %v579, 16
      %v1011 = vrot.slane %v1009, 7
      %v1012 = vor.u32 %v1008, %v1011
      %v1013 = vrot.slane %v1012, 4
      %v1015 = vshrl.u32 %v580, 16
      %v1017 = vrot.slane %v1015, 6
      %v1018 = vshll.u32 %v580, 16
      %v1020 = vrot.slane %v1018, 7
      %v1021 = vor.u32 %v1017, %v1020
      %v1022 = vsel %vm584, %v1013, %v1021
      %v1023 = vrot.slane %v1021, 4
      %v1025 = vshrl.u32 %v581, 16
      %v1027 = vrot.slane %v1025, 6
      %v1028 = vshll.u32 %v581, 16
      %v1030 = vrot.slane %v1028, 7
      %v1031 = vor.u32 %v1027, %v1030
      %v1032 = vsel %vm584, %v1023, %v1031
      %v1033 = vunpack.c.l.b16 %v602
      %v1034 = vunpack.c.l.b16 %v612
      %v1035 = vunpack.c.l.b16 %v630
      %v1036 = vunpack.c.l.b16 %v640
      %v1037 = vunpack.c.l.b16 %v658
      %v1038 = vunpack.c.l.b16 %v668
      %v1039 = vunpack.c.l.b16 %v686
      %v1040 = vunpack.c.l.b16 %v696
      %v1041 = vunpack.c.l.b16 %v714
      %v1042 = vunpack.c.l.b16 %v724
      %v1043 = vunpack.c.l.b16 %v742
      %v1044 = vunpack.c.l.b16 %v752
      %v1045 = vunpack.c.l.b16 %v770
      %v1046 = vunpack.c.l.b16 %v780
      %v1047 = vunpack.c.l.b16 %v798
      %v1048 = vunpack.c.l.b16 %v808
      %v1049 = vunpack.c.l.b16 %v826
      %v1050 = vunpack.c.l.b16 %v836
      %v1051 = vunpack.c.l.b16 %v854
      %v1052 = vunpack.c.l.b16 %v864
      %v1053 = vunpack.c.l.b16 %v882
      %v1054 = vunpack.c.l.b16 %v892
      %v1055 = vunpack.c.l.b16 %v910
      %v1056 = vunpack.c.l.b16 %v920
      %v1057 = vunpack.c.l.b16 %v938
      %v1058 = vunpack.c.l.b16 %v948
      %v1059 = vunpack.c.l.b16 %v966
      %v1060 = vunpack.c.l.b16 %v976
      %v1061 = vunpack.c.l.b16 %v994
      %v1062 = vunpack.c.l.b16 %v1004
      %v1063 = vunpack.c.l.b16 %v1022
      %v1064 = vunpack.c.l.b16 %v1032
      %v1065 = vpack.c.b16 %v1034, %v1033
      %v1066 = vpack.c.b16 %v1036, %v1035
      %v1067 = vpack.c.b16 %v1038, %v1037
      %v1068 = vpack.c.b16 %v1040, %v1039
      %v1069 = vpack.c.b16 %v1042, %v1041
      %v1070 = vpack.c.b16 %v1044, %v1043
      %v1071 = vpack.c.b16 %v1046, %v1045
      %v1072 = vpack.c.b16 %v1048, %v1047
      %v1073 = vpack.c.b16 %v1050, %v1049
      %v1074 = vpack.c.b16 %v1052, %v1051
      %v1075 = vpack.c.b16 %v1054, %v1053
      %v1076 = vpack.c.b16 %v1056, %v1055
      %v1077 = vpack.c.b16 %v1058, %v1057
      %v1078 = vpack.c.b16 %v1060, %v1059
      %v1079 = vpack.c.b16 %v1062, %v1061
      %v1080 = vpack.c.b16 %v1064, %v1063
      %1097 = vxpose.xlu0.c.b16.start [1/8] %v1065, 128
      %1098 = vxpose.xlu0.c.b16.cont [2/8] %v1066, 128
      %1099 = vxpose.xlu0.c.b16.cont [3/8] %v1067, 128
      %1100 = vxpose.xlu0.c.b16.cont [4/8] %v1068, 128
      %1101 = vxpose.xlu0.c.b16.cont [5/8] %v1069, 128
      %1102 = vxpose.xlu0.c.b16.cont [6/8] %v1070, 128
      %1103 = vxpose.xlu0.c.b16.cont [7/8] %v1071, 128
      %1104 = vxpose.xlu0.c.b16.end [8/8] %v1072, 128
      %v1105 = vpop.trf.xlu0
      %v1106 = vpop.trf.xlu0
      %v1107 = vpop.trf.xlu0
      %v1108 = vpop.trf.xlu0
      %v1109 = vpop.trf.xlu0
      %v1110 = vpop.trf.xlu0
      %v1111 = vpop.trf.xlu0
      %v1112 = vpop.trf.xlu0
      %1113 = vxpose.xlu0.c.b16.start [1/8] %v1073, 128
      %1114 = vxpose.xlu0.c.b16.cont [2/8] %v1074, 128
      %1115 = vxpose.xlu0.c.b16.cont [3/8] %v1075, 128
      %1116 = vxpose.xlu0.c.b16.cont [4/8] %v1076, 128
      %1117 = vxpose.xlu0.c.b16.cont [5/8] %v1077, 128
      %1118 = vxpose.xlu0.c.b16.cont [6/8] %v1078, 128
      %1119 = vxpose.xlu0.c.b16.cont [7/8] %v1079, 128
      %1120 = vxpose.xlu0.c.b16.end [8/8] %v1080, 128
      %v1121 = vpop.trf.xlu0
      %v1122 = vpop.trf.xlu0
      %v1123 = vpop.trf.xlu0
      %v1124 = vpop.trf.xlu0
      %v1125 = vpop.trf.xlu0
      %v1126 = vpop.trf.xlu0
      %v1127 = vpop.trf.xlu0
      %v1128 = vpop.trf.xlu0
      %v1129 = vld [vmem:[%s533 + $0x8] sm:$0xf]
      %v1130 = vld [vmem:[%s533 + $0x18] sm:$0xf]
      %v1131 = vld [vmem:[%s533 + $0x28] sm:$0xf]
      %v1132 = vld [vmem:[%s533 + $0x38] sm:$0xf]
      %v1133 = vld [vmem:[%s533 + $0x48] sm:$0xf]
      %v1134 = vld [vmem:[%s533 + $0x58] sm:$0xf]
      %v1135 = vld [vmem:[%s533 + $0x68] sm:$0xf]
      %v1136 = vld [vmem:[%s533 + $0x78] sm:$0xf]
      %v1137 = vld [vmem:[%s533 + $0x88] sm:$0xf]
      %v1138 = vld [vmem:[%s533 + $0x98] sm:$0xf]
      %v1139 = vld [vmem:[%s533 + $0xa8] sm:$0xf]
      %v1140 = vld [vmem:[%s533 + $0xb8] sm:$0xf]
      %v1141 = vld [vmem:[%s533 + $0xc8] sm:$0xf]
      %v1142 = vld [vmem:[%s533 + $0xd8] sm:$0xf]
      %v1143 = vld [vmem:[%s533 + $0xe8] sm:$0xf]
      %v1144 = vld [vmem:[%s533 + $0xf8] sm:$0xf]
      %v1177 = vunpack.c.l.b16 %v535
      %v1178 = vunpack.c.l.b16 %v1129
      %v1179 = vunpack.c.l.b16 %v538
      %v1180 = vunpack.c.l.b16 %v1130
      %v1181 = vunpack.c.l.b16 %v541
      %v1182 = vunpack.c.l.b16 %v1131
      %v1183 = vunpack.c.l.b16 %v544
      %v1184 = vunpack.c.l.b16 %v1132
      %v1185 = vunpack.c.l.b16 %v547
      %v1186 = vunpack.c.l.b16 %v1133
      %v1187 = vunpack.c.l.b16 %v550
      %v1188 = vunpack.c.l.b16 %v1134
      %v1189 = vunpack.c.l.b16 %v553
      %v1190 = vunpack.c.l.b16 %v1135
      %v1191 = vunpack.c.l.b16 %v556
      %v1192 = vunpack.c.l.b16 %v1136
      %v1193 = vunpack.c.l.b16 %v559
      %v1194 = vunpack.c.l.b16 %v1137
      %v1195 = vunpack.c.l.b16 %v562
      %v1196 = vunpack.c.l.b16 %v1138
      %v1197 = vunpack.c.l.b16 %v565
      %v1198 = vunpack.c.l.b16 %v1139
      %v1199 = vunpack.c.l.b16 %v568
      %v1200 = vunpack.c.l.b16 %v1140
      %v1201 = vunpack.c.l.b16 %v571
      %v1202 = vunpack.c.l.b16 %v1141
      %v1203 = vunpack.c.l.b16 %v574
      %v1204 = vunpack.c.l.b16 %v1142
      %v1205 = vunpack.c.l.b16 %v577
      %v1206 = vunpack.c.l.b16 %v1143
      %v1207 = vunpack.c.l.b16 %v580
      %v1208 = vunpack.c.l.b16 %v1144
      %v1209 = vpack.c.b16 %v1178, %v1177
      %v1210 = vpack.c.b16 %v1180, %v1179
      %v1211 = vpack.c.b16 %v1182, %v1181
      %v1212 = vpack.c.b16 %v1184, %v1183
      %v1213 = vpack.c.b16 %v1186, %v1185
      %v1214 = vpack.c.b16 %v1188, %v1187
      %v1215 = vpack.c.b16 %v1190, %v1189
      %v1216 = vpack.c.b16 %v1192, %v1191
      %v1217 = vpack.c.b16 %v1194, %v1193
      %v1218 = vpack.c.b16 %v1196, %v1195
      %v1219 = vpack.c.b16 %v1198, %v1197
      %v1220 = vpack.c.b16 %v1200, %v1199
      %v1221 = vpack.c.b16 %v1202, %v1201
      %v1222 = vpack.c.b16 %v1204, %v1203
      %v1223 = vpack.c.b16 %v1206, %v1205
      %v1224 = vpack.c.b16 %v1208, %v1207
      %1241 = vxpose.xlu0.c.b16.start [1/8] %v1209, 128
      %1242 = vxpose.xlu0.c.b16.cont [2/8] %v1210, 128
      %1243 = vxpose.xlu0.c.b16.cont [3/8] %v1211, 128
      %1244 = vxpose.xlu0.c.b16.cont [4/8] %v1212, 128
      %1245 = vxpose.xlu0.c.b16.cont [5/8] %v1213, 128
      %1246 = vxpose.xlu0.c.b16.cont [6/8] %v1214, 128
      %1247 = vxpose.xlu0.c.b16.cont [7/8] %v1215, 128
      %1248 = vxpose.xlu0.c.b16.end [8/8] %v1216, 128
      %v1249 = vpop.trf.xlu0
      %v1250 = vpop.trf.xlu0
      %v1251 = vpop.trf.xlu0
      %v1252 = vpop.trf.xlu0
      %v1253 = vpop.trf.xlu0
      %v1254 = vpop.trf.xlu0
      %v1255 = vpop.trf.xlu0
      %v1256 = vpop.trf.xlu0
      %1257 = vxpose.xlu0.c.b16.start [1/8] %v1217, 128
      %1258 = vxpose.xlu0.c.b16.cont [2/8] %v1218, 128
      %1259 = vxpose.xlu0.c.b16.cont [3/8] %v1219, 128
      %1260 = vxpose.xlu0.c.b16.cont [4/8] %v1220, 128
      %1261 = vxpose.xlu0.c.b16.cont [5/8] %v1221, 128
      %1262 = vxpose.xlu0.c.b16.cont [6/8] %v1222, 128
      %1263 = vxpose.xlu0.c.b16.cont [7/8] %v1223, 128
      %1264 = vxpose.xlu0.c.b16.end [8/8] %v1224, 128
      %v1265 = vpop.trf.xlu0
      %v1266 = vpop.trf.xlu0
      %v1267 = vpop.trf.xlu0
      %v1268 = vpop.trf.xlu0
      %v1269 = vpop.trf.xlu0
      %v1270 = vpop.trf.xlu0
      %v1271 = vpop.trf.xlu0
      %v1272 = vpop.trf.xlu0
      %v1273 = vld [vmem:[%s533 + $0x4] sm:$0xe]
      %v1274 = vld [vmem:[%s533 + $0x8] sm:$0xf]
      %v1275 = vld [vmem:[%s533 + $0xc] sm:$0x3]
      %v1276 = vld [vmem:[%s533 + $0x14] sm:$0xe]
      %v1277 = vld [vmem:[%s533 + $0x18] sm:$0xf]
      %v1278 = vld [vmem:[%s533 + $0x1c] sm:$0x3]
      %v1279 = vld [vmem:[%s533 + $0x24] sm:$0xe]
      %v1280 = vld [vmem:[%s533 + $0x28] sm:$0xf]
      %v1281 = vld [vmem:[%s533 + $0x2c] sm:$0x3]
      %v1282 = vld [vmem:[%s533 + $0x34] sm:$0xe]
      %v1283 = vld [vmem:[%s533 + $0x38] sm:$0xf]
      %v1284 = vld [vmem:[%s533 + $0x3c] sm:$0x3]
      %v1285 = vld [vmem:[%s533 + $0x44] sm:$0xe]
      %v1286 = vld [vmem:[%s533 + $0x48] sm:$0xf]
      %v1287 = vld [vmem:[%s533 + $0x4c] sm:$0x3]
      %v1288 = vld [vmem:[%s533 + $0x54] sm:$0xe]
      %v1289 = vld [vmem:[%s533 + $0x58] sm:$0xf]
      %v1290 = vld [vmem:[%s533 + $0x5c] sm:$0x3]
      %v1291 = vld [vmem:[%s533 + $0x64] sm:$0xe]
      %v1292 = vld [vmem:[%s533 + $0x68] sm:$0xf]
      %v1293 = vld [vmem:[%s533 + $0x6c] sm:$0x3]
      %v1294 = vld [vmem:[%s533 + $0x74] sm:$0xe]
      %v1295 = vld [vmem:[%s533 + $0x78] sm:$0xf]
      %v1296 = vld [vmem:[%s533 + $0x7c] sm:$0x3]
      %v1297 = vld [vmem:[%s533 + $0x84] sm:$0xe]
      %v1298 = vld [vmem:[%s533 + $0x88] sm:$0xf]
      %v1299 = vld [vmem:[%s533 + $0x8c] sm:$0x3]
      %v1300 = vld [vmem:[%s533 + $0x94] sm:$0xe]
      %v1301 = vld [vmem:[%s533 + $0x98] sm:$0xf]
      %v1302 = vld [vmem:[%s533 + $0x9c] sm:$0x3]
      %v1303 = vld [vmem:[%s533 + $0xa4] sm:$0xe]
      %v1304 = vld [vmem:[%s533 + $0xa8] sm:$0xf]
      %v1305 = vld [vmem:[%s533 + $0xac] sm:$0x3]
      %v1306 = vld [vmem:[%s533 + $0xb4] sm:$0xe]
      %v1307 = vld [vmem:[%s533 + $0xb8] sm:$0xf]
      %v1308 = vld [vmem:[%s533 + $0xbc] sm:$0x3]
      %v1309 = vld [vmem:[%s533 + $0xc4] sm:$0xe]
      %v1310 = vld [vmem:[%s533 + $0xc8] sm:$0xf]
      %v1311 = vld [vmem:[%s533 + $0xcc] sm:$0x3]
      %v1312 = vld [vmem:[%s533 + $0xd4] sm:$0xe]
      %v1313 = vld [vmem:[%s533 + $0xd8] sm:$0xf]
      %v1314 = vld [vmem:[%s533 + $0xdc] sm:$0x3]
      %v1315 = vld [vmem:[%s533 + $0xe4] sm:$0xe]
      %v1316 = vld [vmem:[%s533 + $0xe8] sm:$0xf]
      %v1317 = vld [vmem:[%s533 + $0xec] sm:$0x3]
      %v1318 = vld [vmem:[%s533 + $0xf4] sm:$0xe]
      %v1319 = vld [vmem:[%s533 + $0xf8] sm:$0xf]
      %v1320 = vld [vmem:[%s533 + $0xfc] sm:$0x3]
      %vm1321 = vsmask.f32 2304
      %vm1322 = vsmask.f32 6416
      %vm1323 = vmor %vm1321, %vm1322
      %v1325 = vshrl.u32 %v1273, 16
      %v1327 = vrot.slane %v1325, 5
      %v1328 = vshll.u32 %v1273, 16
      %v1330 = vrot.slane %v1328, 6
      %v1331 = vor.u32 %v1327, %v1330
      %v1332 = vrot.slane %v1331, 4
      %v1334 = vshrl.u32 %v1274, 16
      %v1336 = vrot.slane %v1334, 5
      %v1337 = vshll.u32 %v1274, 16
      %v1339 = vrot.slane %v1337, 6
      %v1340 = vor.u32 %v1336, %v1339
      %v1341 = vsel %vm1323, %v1332, %v1340
      %v1342 = vrot.slane %v1340, 4
      %v1344 = vshrl.u32 %v1275, 16
      %v1346 = vrot.slane %v1344, 5
      %v1347 = vshll.u32 %v1275, 16
      %v1349 = vrot.slane %v1347, 6
      %v1350 = vor.u32 %v1346, %v1349
      %v1351 = vsel %vm1323, %v1342, %v1350
      %v1353 = vshrl.u32 %v1276, 16
      %v1355 = vrot.slane %v1353, 5
      %v1356 = vshll.u32 %v1276, 16
      %v1358 = vrot.slane %v1356, 6
      %v1359 = vor.u32 %v1355, %v1358
      %v1360 = vrot.slane %v1359, 4
      %v1362 = vshrl.u32 %v1277, 16
      %v1364 = vrot.slane %v1362, 5
      %v1365 = vshll.u32 %v1277, 16
      %v1367 = vrot.slane %v1365, 6
      %v1368 = vor.u32 %v1364, %v1367
      %v1369 = vsel %vm1323, %v1360, %v1368
      %v1370 = vrot.slane %v1368, 4
      %v1372 = vshrl.u32 %v1278, 16
      %v1374 = vrot.slane %v1372, 5
      %v1375 = vshll.u32 %v1278, 16
      %v1377 = vrot.slane %v1375, 6
      %v1378 = vor.u32 %v1374, %v1377
      %v1379 = vsel %vm1323, %v1370, %v1378
      %v1381 = vshrl.u32 %v1279, 16
      %v1383 = vrot.slane %v1381, 5
      %v1384 = vshll.u32 %v1279, 16
      %v1386 = vrot.slane %v1384, 6
      %v1387 = vor.u32 %v1383, %v1386
      %v1388 = vrot.slane %v1387, 4
      %v1390 = vshrl.u32 %v1280, 16
      %v1392 = vrot.slane %v1390, 5
      %v1393 = vshll.u32 %v1280, 16
      %v1395 = vrot.slane %v1393, 6
      %v1396 = vor.u32 %v1392, %v1395
      %v1397 = vsel %vm1323, %v1388, %v1396
      %v1398 = vrot.slane %v1396, 4
      %v1400 = vshrl.u32 %v1281, 16
      %v1402 = vrot.slane %v1400, 5
      %v1403 = vshll.u32 %v1281, 16
      %v1405 = vrot.slane %v1403, 6
      %v1406 = vor.u32 %v1402, %v1405
      %v1407 = vsel %vm1323, %v1398, %v1406
      %v1409 = vshrl.u32 %v1282, 16
      %v1411 = vrot.slane %v1409, 5
      %v1412 = vshll.u32 %v1282, 16
      %v1414 = vrot.slane %v1412, 6
      %v1415 = vor.u32 %v1411, %v1414
      %v1416 = vrot.slane %v1415, 4
      %v1418 = vshrl.u32 %v1283, 16
      %v1420 = vrot.slane %v1418, 5
      %v1421 = vshll.u32 %v1283, 16
      %v1423 = vrot.slane %v1421, 6
      %v1424 = vor.u32 %v1420, %v1423
      %v1425 = vsel %vm1323, %v1416, %v1424
      %v1426 = vrot.slane %v1424, 4
      %v1428 = vshrl.u32 %v1284, 16
      %v1430 = vrot.slane %v1428, 5
      %v1431 = vshll.u32 %v1284, 16
      %v1433 = vrot.slane %v1431, 6
      %v1434 = vor.u32 %v1430, %v1433
      %v1435 = vsel %vm1323, %v1426, %v1434
      %v1437 = vshrl.u32 %v1285, 16
      %v1439 = vrot.slane %v1437, 5
      %v1440 = vshll.u32 %v1285, 16
      %v1442 = vrot.slane %v1440, 6
      %v1443 = vor.u32 %v1439, %v1442
      %v1444 = vrot.slane %v1443, 4
      %v1446 = vshrl.u32 %v1286, 16
      %v1448 = vrot.slane %v1446, 5
      %v1449 = vshll.u32 %v1286, 16
      %v1451 = vrot.slane %v1449, 6
      %v1452 = vor.u32 %v1448, %v1451
      %v1453 = vsel %vm1323, %v1444, %v1452
      %v1454 = vrot.slane %v1452, 4
      %v1456 = vshrl.u32 %v1287, 16
      %v1458 = vrot.slane %v1456, 5
      %v1459 = vshll.u32 %v1287, 16
      %v1461 = vrot.slane %v1459, 6
      %v1462 = vor.u32 %v1458, %v1461
      %v1463 = vsel %vm1323, %v1454, %v1462
      %v1465 = vshrl.u32 %v1288, 16
      %v1467 = vrot.slane %v1465, 5
      %v1468 = vshll.u32 %v1288, 16
      %v1470 = vrot.slane %v1468, 6
      %v1471 = vor.u32 %v1467, %v1470
      %v1472 = vrot.slane %v1471, 4
      %v1474 = vshrl.u32 %v1289, 16
      %v1476 = vrot.slane %v1474, 5
      %v1477 = vshll.u32 %v1289, 16
      %v1479 = vrot.slane %v1477, 6
      %v1480 = vor.u32 %v1476, %v1479
      %v1481 = vsel %vm1323, %v1472, %v1480
      %v1482 = vrot.slane %v1480, 4
      %v1484 = vshrl.u32 %v1290, 16
      %v1486 = vrot.slane %v1484, 5
      %v1487 = vshll.u32 %v1290, 16
      %v1489 = vrot.slane %v1487, 6
      %v1490 = vor.u32 %v1486, %v1489
      %v1491 = vsel %vm1323, %v1482, %v1490
      %v1493 = vshrl.u32 %v1291, 16
      %v1495 = vrot.slane %v1493, 5
      %v1496 = vshll.u32 %v1291, 16
      %v1498 = vrot.slane %v1496, 6
      %v1499 = vor.u32 %v1495, %v1498
      %v1500 = vrot.slane %v1499, 4
      %v1502 = vshrl.u32 %v1292, 16
      %v1504 = vrot.slane %v1502, 5
      %v1505 = vshll.u32 %v1292, 16
      %v1507 = vrot.slane %v1505, 6
      %v1508 = vor.u32 %v1504, %v1507
      %v1509 = vsel %vm1323, %v1500, %v1508
      %v1510 = vrot.slane %v1508, 4
      %v1512 = vshrl.u32 %v1293, 16
      %v1514 = vrot.slane %v1512, 5
      %v1515 = vshll.u32 %v1293, 16
      %v1517 = vrot.slane %v1515, 6
      %v1518 = vor.u32 %v1514, %v1517
      %v1519 = vsel %vm1323, %v1510, %v1518
      %v1521 = vshrl.u32 %v1294, 16
      %v1523 = vrot.slane %v1521, 5
      %v1524 = vshll.u32 %v1294, 16
      %v1526 = vrot.slane %v1524, 6
      %v1527 = vor.u32 %v1523, %v1526
      %v1528 = vrot.slane %v1527, 4
      %v1530 = vshrl.u32 %v1295, 16
      %v1532 = vrot.slane %v1530, 5
      %v1533 = vshll.u32 %v1295, 16
      %v1535 = vrot.slane %v1533, 6
      %v1536 = vor.u32 %v1532, %v1535
      %v1537 = vsel %vm1323, %v1528, %v1536
      %v1538 = vrot.slane %v1536, 4
      %v1540 = vshrl.u32 %v1296, 16
      %v1542 = vrot.slane %v1540, 5
      %v1543 = vshll.u32 %v1296, 16
      %v1545 = vrot.slane %v1543, 6
      %v1546 = vor.u32 %v1542, %v1545
      %v1547 = vsel %vm1323, %v1538, %v1546
      %v1549 = vshrl.u32 %v1297, 16
      %v1551 = vrot.slane %v1549, 5
      %v1552 = vshll.u32 %v1297, 16
      %v1554 = vrot.slane %v1552, 6
      %v1555 = vor.u32 %v1551, %v1554
      %v1556 = vrot.slane %v1555, 4
      %v1558 = vshrl.u32 %v1298, 16
      %v1560 = vrot.slane %v1558, 5
      %v1561 = vshll.u32 %v1298, 16
      %v1563 = vrot.slane %v1561, 6
      %v1564 = vor.u32 %v1560, %v1563
      %v1565 = vsel %vm1323, %v1556, %v1564
      %v1566 = vrot.slane %v1564, 4
      %v1568 = vshrl.u32 %v1299, 16
      %v1570 = vrot.slane %v1568, 5
      %v1571 = vshll.u32 %v1299, 16
      %v1573 = vrot.slane %v1571, 6
      %v1574 = vor.u32 %v1570, %v1573
      %v1575 = vsel %vm1323, %v1566, %v1574
      %v1577 = vshrl.u32 %v1300, 16
      %v1579 = vrot.slane %v1577, 5
      %v1580 = vshll.u32 %v1300, 16
      %v1582 = vrot.slane %v1580, 6
      %v1583 = vor.u32 %v1579, %v1582
      %v1584 = vrot.slane %v1583, 4
      %v1586 = vshrl.u32 %v1301, 16
      %v1588 = vrot.slane %v1586, 5
      %v1589 = vshll.u32 %v1301, 16
      %v1591 = vrot.slane %v1589, 6
      %v1592 = vor.u32 %v1588, %v1591
      %v1593 = vsel %vm1323, %v1584, %v1592
      %v1594 = vrot.slane %v1592, 4
      %v1596 = vshrl.u32 %v1302, 16
      %v1598 = vrot.slane %v1596, 5
      %v1599 = vshll.u32 %v1302, 16
      %v1601 = vrot.slane %v1599, 6
      %v1602 = vor.u32 %v1598, %v1601
      %v1603 = vsel %vm1323, %v1594, %v1602
      %v1605 = vshrl.u32 %v1303, 16
      %v1607 = vrot.slane %v1605, 5
      %v1608 = vshll.u32 %v1303, 16
      %v1610 = vrot.slane %v1608, 6
      %v1611 = vor.u32 %v1607, %v1610
      %v1612 = vrot.slane %v1611, 4
      %v1614 = vshrl.u32 %v1304, 16
      %v1616 = vrot.slane %v1614, 5
      %v1617 = vshll.u32 %v1304, 16
      %v1619 = vrot.slane %v1617, 6
      %v1620 = vor.u32 %v1616, %v1619
      %v1621 = vsel %vm1323, %v1612, %v1620
      %v1622 = vrot.slane %v1620, 4
      %v1624 = vshrl.u32 %v1305, 16
      %v1626 = vrot.slane %v1624, 5
      %v1627 = vshll.u32 %v1305, 16
      %v1629 = vrot.slane %v1627, 6
      %v1630 = vor.u32 %v1626, %v1629
      %v1631 = vsel %vm1323, %v1622, %v1630
      %v1633 = vshrl.u32 %v1306, 16
      %v1635 = vrot.slane %v1633, 5
      %v1636 = vshll.u32 %v1306, 16
      %v1638 = vrot.slane %v1636, 6
      %v1639 = vor.u32 %v1635, %v1638
      %v1640 = vrot.slane %v1639, 4
      %v1642 = vshrl.u32 %v1307, 16
      %v1644 = vrot.slane %v1642, 5
      %v1645 = vshll.u32 %v1307, 16
      %v1647 = vrot.slane %v1645, 6
      %v1648 = vor.u32 %v1644, %v1647
      %v1649 = vsel %vm1323, %v1640, %v1648
      %v1650 = vrot.slane %v1648, 4
      %v1652 = vshrl.u32 %v1308, 16
      %v1654 = vrot.slane %v1652, 5
      %v1655 = vshll.u32 %v1308, 16
      %v1657 = vrot.slane %v1655, 6
      %v1658 = vor.u32 %v1654, %v1657
      %v1659 = vsel %vm1323, %v1650, %v1658
      %v1661 = vshrl.u32 %v1309, 16
      %v1663 = vrot.slane %v1661, 5
      %v1664 = vshll.u32 %v1309, 16
      %v1666 = vrot.slane %v1664, 6
      %v1667 = vor.u32 %v1663, %v1666
      %v1668 = vrot.slane %v1667, 4
      %v1670 = vshrl.u32 %v1310, 16
      %v1672 = vrot.slane %v1670, 5
      %v1673 = vshll.u32 %v1310, 16
      %v1675 = vrot.slane %v1673, 6
      %v1676 = vor.u32 %v1672, %v1675
      %v1677 = vsel %vm1323, %v1668, %v1676
      %v1678 = vrot.slane %v1676, 4
      %v1680 = vshrl.u32 %v1311, 16
      %v1682 = vrot.slane %v1680, 5
      %v1683 = vshll.u32 %v1311, 16
      %v1685 = vrot.slane %v1683, 6
      %v1686 = vor.u32 %v1682, %v1685
      %v1687 = vsel %vm1323, %v1678, %v1686
      %v1689 = vshrl.u32 %v1312, 16
      %v1691 = vrot.slane %v1689, 5
      %v1692 = vshll.u32 %v1312, 16
      %v1694 = vrot.slane %v1692, 6
      %v1695 = vor.u32 %v1691, %v1694
      %v1696 = vrot.slane %v1695, 4
      %v1698 = vshrl.u32 %v1313, 16
      %v1700 = vrot.slane %v1698, 5
      %v1701 = vshll.u32 %v1313, 16
      %v1703 = vrot.slane %v1701, 6
      %v1704 = vor.u32 %v1700, %v1703
      %v1705 = vsel %vm1323, %v1696, %v1704
      %v1706 = vrot.slane %v1704, 4
      %v1708 = vshrl.u32 %v1314, 16
      %v1710 = vrot.slane %v1708, 5
      %v1711 = vshll.u32 %v1314, 16
      %v1713 = vrot.slane %v1711, 6
      %v1714 = vor.u32 %v1710, %v1713
      %v1715 = vsel %vm1323, %v1706, %v1714
      %v1717 = vshrl.u32 %v1315, 16
      %v1719 = vrot.slane %v1717, 5
      %v1720 = vshll.u32 %v1315, 16
      %v1722 = vrot.slane %v1720, 6
      %v1723 = vor.u32 %v1719, %v1722
      %v1724 = vrot.slane %v1723, 4
      %v1726 = vshrl.u32 %v1316, 16
      %v1728 = vrot.slane %v1726, 5
      %v1729 = vshll.u32 %v1316, 16
      %v1731 = vrot.slane %v1729, 6
      %v1732 = vor.u32 %v1728, %v1731
      %v1733 = vsel %vm1323, %v1724, %v1732
      %v1734 = vrot.slane %v1732, 4
      %v1736 = vshrl.u32 %v1317, 16
      %v1738 = vrot.slane %v1736, 5
      %v1739 = vshll.u32 %v1317, 16
      %v1741 = vrot.slane %v1739, 6
      %v1742 = vor.u32 %v1738, %v1741
      %v1743 = vsel %vm1323, %v1734, %v1742
      %v1745 = vshrl.u32 %v1318, 16
      %v1747 = vrot.slane %v1745, 5
      %v1748 = vshll.u32 %v1318, 16
      %v1750 = vrot.slane %v1748, 6
      %v1751 = vor.u32 %v1747, %v1750
      %v1752 = vrot.slane %v1751, 4
      %v1754 = vshrl.u32 %v1319, 16
      %v1756 = vrot.slane %v1754, 5
      %v1757 = vshll.u32 %v1319, 16
      %v1759 = vrot.slane %v1757, 6
      %v1760 = vor.u32 %v1756, %v1759
      %v1761 = vsel %vm1323, %v1752, %v1760
      %v1762 = vrot.slane %v1760, 4
      %v1764 = vshrl.u32 %v1320, 16
      %v1766 = vrot.slane %v1764, 5
      %v1767 = vshll.u32 %v1320, 16
      %v1769 = vrot.slane %v1767, 6
      %v1770 = vor.u32 %v1766, %v1769
      %v1771 = vsel %vm1323, %v1762, %v1770
      %v1772 = vunpack.c.l.b16 %v1341
      %v1773 = vunpack.c.l.b16 %v1351
      %v1774 = vunpack.c.l.b16 %v1369
      %v1775 = vunpack.c.l.b16 %v1379
      %v1776 = vunpack.c.l.b16 %v1397
      %v1777 = vunpack.c.l.b16 %v1407
      %v1778 = vunpack.c.l.b16 %v1425
      %v1779 = vunpack.c.l.b16 %v1435
      %v1780 = vunpack.c.l.b16 %v1453
      %v1781 = vunpack.c.l.b16 %v1463
      %v1782 = vunpack.c.l.b16 %v1481
      %v1783 = vunpack.c.l.b16 %v1491
      %v1784 = vunpack.c.l.b16 %v1509
      %v1785 = vunpack.c.l.b16 %v1519
      %v1786 = vunpack.c.l.b16 %v1537
      %v1787 = vunpack.c.l.b16 %v1547
      %v1788 = vunpack.c.l.b16 %v1565
      %v1789 = vunpack.c.l.b16 %v1575
      %v1790 = vunpack.c.l.b16 %v1593
      %v1791 = vunpack.c.l.b16 %v1603
      %v1792 = vunpack.c.l.b16 %v1621
      %v1793 = vunpack.c.l.b16 %v1631
      %v1794 = vunpack.c.l.b16 %v1649
      %v1795 = vunpack.c.l.b16 %v1659
      %v1796 = vunpack.c.l.b16 %v1677
      %v1797 = vunpack.c.l.b16 %v1687
      %v1798 = vunpack.c.l.b16 %v1705
      %v1799 = vunpack.c.l.b16 %v1715
      %v1800 = vunpack.c.l.b16 %v1733
      %v1801 = vunpack.c.l.b16 %v1743
      %v1802 = vunpack.c.l.b16 %v1761
      %v1803 = vunpack.c.l.b16 %v1771
      %v1804 = vpack.c.b16 %v1773, %v1772
      %v1805 = vpack.c.b16 %v1775, %v1774
      %v1806 = vpack.c.b16 %v1777, %v1776
      %v1807 = vpack.c.b16 %v1779, %v1778
      %v1808 = vpack.c.b16 %v1781, %v1780
      %v1809 = vpack.c.b16 %v1783, %v1782
      %v1810 = vpack.c.b16 %v1785, %v1784
      %v1811 = vpack.c.b16 %v1787, %v1786
      %v1812 = vpack.c.b16 %v1789, %v1788
      %v1813 = vpack.c.b16 %v1791, %v1790
      %v1814 = vpack.c.b16 %v1793, %v1792
      %v1815 = vpack.c.b16 %v1795, %v1794
      %v1816 = vpack.c.b16 %v1797, %v1796
      %v1817 = vpack.c.b16 %v1799, %v1798
      %v1818 = vpack.c.b16 %v1801, %v1800
      %v1819 = vpack.c.b16 %v1803, %v1802
      %1836 = vxpose.xlu0.c.b16.start [1/8] %v1804, 128
      %1837 = vxpose.xlu0.c.b16.cont [2/8] %v1805, 128
      %1838 = vxpose.xlu0.c.b16.cont [3/8] %v1806, 128
      %1839 = vxpose.xlu0.c.b16.cont [4/8] %v1807, 128
      %1840 = vxpose.xlu0.c.b16.cont [5/8] %v1808, 128
      %1841 = vxpose.xlu0.c.b16.cont [6/8] %v1809, 128
      %1842 = vxpose.xlu0.c.b16.cont [7/8] %v1810, 128
      %1843 = vxpose.xlu0.c.b16.end [8/8] %v1811, 128
      %v1844 = vpop.trf.xlu0
      %v1845 = vpop.trf.xlu0
      %v1846 = vpop.trf.xlu0
      %v1847 = vpop.trf.xlu0
      %v1848 = vpop.trf.xlu0
      %v1849 = vpop.trf.xlu0
      %v1850 = vpop.trf.xlu0
      %v1851 = vpop.trf.xlu0
      %1852 = vxpose.xlu0.c.b16.start [1/8] %v1812, 128
      %1853 = vxpose.xlu0.c.b16.cont [2/8] %v1813, 128
      %1854 = vxpose.xlu0.c.b16.cont [3/8] %v1814, 128
      %1855 = vxpose.xlu0.c.b16.cont [4/8] %v1815, 128
      %1856 = vxpose.xlu0.c.b16.cont [5/8] %v1816, 128
      %1857 = vxpose.xlu0.c.b16.cont [6/8] %v1817, 128
      %1858 = vxpose.xlu0.c.b16.cont [7/8] %v1818, 128
      %1859 = vxpose.xlu0.c.b16.end [8/8] %v1819, 128
      %v1860 = vpop.trf.xlu0
      %v1861 = vpop.trf.xlu0
      %v1862 = vpop.trf.xlu0
      %v1863 = vpop.trf.xlu0
      %v1864 = vpop.trf.xlu0
      %v1865 = vpop.trf.xlu0
      %v1866 = vpop.trf.xlu0
      %v1867 = vpop.trf.xlu0
      %v1868 = vld [vmem:[%s499] sm:$0xc]
      %v1869 = vld [vmem:[%s499 + $0x4] sm:$0xf]
      %v1870 = vld [vmem:[%s499 + $0x8] sm:$0x7]
      %v1871 = vld [vmem:[%s499 + $0x10] sm:$0xc]
      %v1872 = vld [vmem:[%s499 + $0x14] sm:$0xf]
      %v1873 = vld [vmem:[%s499 + $0x18] sm:$0x7]
      %v1874 = vld [vmem:[%s499 + $0x20] sm:$0xc]
      %v1875 = vld [vmem:[%s499 + $0x24] sm:$0xf]
      %v1876 = vld [vmem:[%s499 + $0x28] sm:$0x7]
      %v1877 = vld [vmem:[%s499 + $0x30] sm:$0xc]
      %v1878 = vld [vmem:[%s499 + $0x34] sm:$0xf]
      %v1879 = vld [vmem:[%s499 + $0x38] sm:$0x7]
      %v1880 = vld [vmem:[%s499 + $0x40] sm:$0xc]
      %v1881 = vld [vmem:[%s499 + $0x44] sm:$0xf]
      %v1882 = vld [vmem:[%s499 + $0x48] sm:$0x7]
      %v1883 = vld [vmem:[%s499 + $0x50] sm:$0xc]
      %v1884 = vld [vmem:[%s499 + $0x54] sm:$0xf]
      %v1885 = vld [vmem:[%s499 + $0x58] sm:$0x7]
      %v1886 = vld [vmem:[%s499 + $0x60] sm:$0xc]
      %v1887 = vld [vmem:[%s499 + $0x64] sm:$0xf]
      %v1888 = vld [vmem:[%s499 + $0x68] sm:$0x7]
      %v1889 = vld [vmem:[%s499 + $0x70] sm:$0xc]
      %v1890 = vld [vmem:[%s499 + $0x74] sm:$0xf]
      %v1891 = vld [vmem:[%s499 + $0x78] sm:$0x7]
      %v1892 = vld [vmem:[%s499 + $0x80] sm:$0xc]
      %v1893 = vld [vmem:[%s499 + $0x84] sm:$0xf]
      %v1894 = vld [vmem:[%s499 + $0x88] sm:$0x7]
      %v1895 = vld [vmem:[%s499 + $0x90] sm:$0xc]
      %v1896 = vld [vmem:[%s499 + $0x94] sm:$0xf]
      %v1897 = vld [vmem:[%s499 + $0x98] sm:$0x7]
      %v1898 = vld [vmem:[%s499 + $0xa0] sm:$0xc]
      %v1899 = vld [vmem:[%s499 + $0xa4] sm:$0xf]
      %v1900 = vld [vmem:[%s499 + $0xa8] sm:$0x7]
      %v1901 = vld [vmem:[%s499 + $0xb0] sm:$0xc]
      %v1902 = vld [vmem:[%s499 + $0xb4] sm:$0xf]
      %v1903 = vld [vmem:[%s499 + $0xb8] sm:$0x7]
      %v1904 = vld [vmem:[%s499 + $0xc0] sm:$0xc]
      %v1905 = vld [vmem:[%s499 + $0xc4] sm:$0xf]
      %v1906 = vld [vmem:[%s499 + $0xc8] sm:$0x7]
      %v1907 = vld [vmem:[%s499 + $0xd0] sm:$0xc]
      %v1908 = vld [vmem:[%s499 + $0xd4] sm:$0xf]
      %v1909 = vld [vmem:[%s499 + $0xd8] sm:$0x7]
      %v1910 = vld [vmem:[%s499 + $0xe0] sm:$0xc]
      %v1911 = vld [vmem:[%s499 + $0xe4] sm:$0xf]
      %v1912 = vld [vmem:[%s499 + $0xe8] sm:$0x7]
      %v1913 = vld [vmem:[%s499 + $0xf0] sm:$0xc]
      %v1914 = vld [vmem:[%s499 + $0xf4] sm:$0xf]
      %v1915 = vld [vmem:[%s499 + $0xf8] sm:$0x7]
      %v1917 = vshrl.u32 %v1868, 16
      %v1919 = vrot.slane %v1917, 6
      %v1920 = vshll.u32 %v1868, 16
      %v1922 = vrot.slane %v1920, 7
      %v1923 = vor.u32 %v1919, %v1922
      %v1924 = vrot.slane %v1923, 4
      %v1926 = vshrl.u32 %v1869, 16
      %v1928 = vrot.slane %v1926, 6
      %v1929 = vshll.u32 %v1869, 16
      %v1931 = vrot.slane %v1929, 7
      %v1932 = vor.u32 %v1928, %v1931
      %v1933 = vsel %vm584, %v1924, %v1932
      %v1934 = vrot.slane %v1932, 4
      %v1936 = vshrl.u32 %v1870, 16
      %v1938 = vrot.slane %v1936, 6
      %v1939 = vshll.u32 %v1870, 16
      %v1941 = vrot.slane %v1939, 7
      %v1942 = vor.u32 %v1938, %v1941
      %v1943 = vsel %vm584, %v1934, %v1942
      %v1945 = vshrl.u32 %v1871, 16
      %v1947 = vrot.slane %v1945, 6
      %v1948 = vshll.u32 %v1871, 16
      %v1950 = vrot.slane %v1948, 7
      %v1951 = vor.u32 %v1947, %v1950
      %v1952 = vrot.slane %v1951, 4
      %v1954 = vshrl.u32 %v1872, 16
      %v1956 = vrot.slane %v1954, 6
      %v1957 = vshll.u32 %v1872, 16
      %v1959 = vrot.slane %v1957, 7
      %v1960 = vor.u32 %v1956, %v1959
      %v1961 = vsel %vm584, %v1952, %v1960
      %v1962 = vrot.slane %v1960, 4
      %v1964 = vshrl.u32 %v1873, 16
      %v1966 = vrot.slane %v1964, 6
      %v1967 = vshll.u32 %v1873, 16
      %v1969 = vrot.slane %v1967, 7
      %v1970 = vor.u32 %v1966, %v1969
      %v1971 = vsel %vm584, %v1962, %v1970
      %v1973 = vshrl.u32 %v1874, 16
      %v1975 = vrot.slane %v1973, 6
      %v1976 = vshll.u32 %v1874, 16
      %v1978 = vrot.slane %v1976, 7
      %v1979 = vor.u32 %v1975, %v1978
      %v1980 = vrot.slane %v1979, 4
      %v1982 = vshrl.u32 %v1875, 16
      %v1984 = vrot.slane %v1982, 6
      %v1985 = vshll.u32 %v1875, 16
      %v1987 = vrot.slane %v1985, 7
      %v1988 = vor.u32 %v1984, %v1987
      %v1989 = vsel %vm584, %v1980, %v1988
      %v1990 = vrot.slane %v1988, 4
      %v1992 = vshrl.u32 %v1876, 16
      %v1994 = vrot.slane %v1992, 6
      %v1995 = vshll.u32 %v1876, 16
      %v1997 = vrot.slane %v1995, 7
      %v1998 = vor.u32 %v1994, %v1997
      %v1999 = vsel %vm584, %v1990, %v1998
      %v2001 = vshrl.u32 %v1877, 16
      %v2003 = vrot.slane %v2001, 6
      %v2004 = vshll.u32 %v1877, 16
      %v2006 = vrot.slane %v2004, 7
      %v2007 = vor.u32 %v2003, %v2006
      %v2008 = vrot.slane %v2007, 4
      %v2010 = vshrl.u32 %v1878, 16
      %v2012 = vrot.slane %v2010, 6
      %v2013 = vshll.u32 %v1878, 16
      %v2015 = vrot.slane %v2013, 7
      %v2016 = vor.u32 %v2012, %v2015
      %v2017 = vsel %vm584, %v2008, %v2016
      %v2018 = vrot.slane %v2016, 4
      %v2020 = vshrl.u32 %v1879, 16
      %v2022 = vrot.slane %v2020, 6
      %v2023 = vshll.u32 %v1879, 16
      %v2025 = vrot.slane %v2023, 7
      %v2026 = vor.u32 %v2022, %v2025
      %v2027 = vsel %vm584, %v2018, %v2026
      %v2029 = vshrl.u32 %v1880, 16
      %v2031 = vrot.slane %v2029, 6
      %v2032 = vshll.u32 %v1880, 16
      %v2034 = vrot.slane %v2032, 7
      %v2035 = vor.u32 %v2031, %v2034
      %v2036 = vrot.slane %v2035, 4
      %v2038 = vshrl.u32 %v1881, 16
      %v2040 = vrot.slane %v2038, 6
      %v2041 = vshll.u32 %v1881, 16
      %v2043 = vrot.slane %v2041, 7
      %v2044 = vor.u32 %v2040, %v2043
      %v2045 = vsel %vm584, %v2036, %v2044
      %v2046 = vrot.slane %v2044, 4
      %v2048 = vshrl.u32 %v1882, 16
      %v2050 = vrot.slane %v2048, 6
      %v2051 = vshll.u32 %v1882, 16
      %v2053 = vrot.slane %v2051, 7
      %v2054 = vor.u32 %v2050, %v2053
      %v2055 = vsel %vm584, %v2046, %v2054
      %v2057 = vshrl.u32 %v1883, 16
      %v2059 = vrot.slane %v2057, 6
      %v2060 = vshll.u32 %v1883, 16
      %v2062 = vrot.slane %v2060, 7
      %v2063 = vor.u32 %v2059, %v2062
      %v2064 = vrot.slane %v2063, 4
      %v2066 = vshrl.u32 %v1884, 16
      %v2068 = vrot.slane %v2066, 6
      %v2069 = vshll.u32 %v1884, 16
      %v2071 = vrot.slane %v2069, 7
      %v2072 = vor.u32 %v2068, %v2071
      %v2073 = vsel %vm584, %v2064, %v2072
      %v2074 = vrot.slane %v2072, 4
      %v2076 = vshrl.u32 %v1885, 16
      %v2078 = vrot.slane %v2076, 6
      %v2079 = vshll.u32 %v1885, 16
      %v2081 = vrot.slane %v2079, 7
      %v2082 = vor.u32 %v2078, %v2081
      %v2083 = vsel %vm584, %v2074, %v2082
      %v2085 = vshrl.u32 %v1886, 16
      %v2087 = vrot.slane %v2085, 6
      %v2088 = vshll.u32 %v1886, 16
      %v2090 = vrot.slane %v2088, 7
      %v2091 = vor.u32 %v2087, %v2090
      %v2092 = vrot.slane %v2091, 4
      %v2094 = vshrl.u32 %v1887, 16
      %v2096 = vrot.slane %v2094, 6
      %v2097 = vshll.u32 %v1887, 16
      %v2099 = vrot.slane %v2097, 7
      %v2100 = vor.u32 %v2096, %v2099
      %v2101 = vsel %vm584, %v2092, %v2100
      %v2102 = vrot.slane %v2100, 4
      %v2104 = vshrl.u32 %v1888, 16
      %v2106 = vrot.slane %v2104, 6
      %v2107 = vshll.u32 %v1888, 16
      %v2109 = vrot.slane %v2107, 7
      %v2110 = vor.u32 %v2106, %v2109
      %v2111 = vsel %vm584, %v2102, %v2110
      %v2113 = vshrl.u32 %v1889, 16
      %v2115 = vrot.slane %v2113, 6
      %v2116 = vshll.u32 %v1889, 16
      %v2118 = vrot.slane %v2116, 7
      %v2119 = vor.u32 %v2115, %v2118
      %v2120 = vrot.slane %v2119, 4
      %v2122 = vshrl.u32 %v1890, 16
      %v2124 = vrot.slane %v2122, 6
      %v2125 = vshll.u32 %v1890, 16
      %v2127 = vrot.slane %v2125, 7
      %v2128 = vor.u32 %v2124, %v2127
      %v2129 = vsel %vm584, %v2120, %v2128
      %v2130 = vrot.slane %v2128, 4
      %v2132 = vshrl.u32 %v1891, 16
      %v2134 = vrot.slane %v2132, 6
      %v2135 = vshll.u32 %v1891, 16
      %v2137 = vrot.slane %v2135, 7
      %v2138 = vor.u32 %v2134, %v2137
      %v2139 = vsel %vm584, %v2130, %v2138
      %v2141 = vshrl.u32 %v1892, 16
      %v2143 = vrot.slane %v2141, 6
      %v2144 = vshll.u32 %v1892, 16
      %v2146 = vrot.slane %v2144, 7
      %v2147 = vor.u32 %v2143, %v2146
      %v2148 = vrot.slane %v2147, 4
      %v2150 = vshrl.u32 %v1893, 16
      %v2152 = vrot.slane %v2150, 6
      %v2153 = vshll.u32 %v1893, 16
      %v2155 = vrot.slane %v2153, 7
      %v2156 = vor.u32 %v2152, %v2155
      %v2157 = vsel %vm584, %v2148, %v2156
      %v2158 = vrot.slane %v2156, 4
      %v2160 = vshrl.u32 %v1894, 16
      %v2162 = vrot.slane %v2160, 6
      %v2163 = vshll.u32 %v1894, 16
      %v2165 = vrot.slane %v2163, 7
      %v2166 = vor.u32 %v2162, %v2165
      %v2167 = vsel %vm584, %v2158, %v2166
      %v2169 = vshrl.u32 %v1895, 16
      %v2171 = vrot.slane %v2169, 6
      %v2172 = vshll.u32 %v1895, 16
      %v2174 = vrot.slane %v2172, 7
      %v2175 = vor.u32 %v2171, %v2174
      %v2176 = vrot.slane %v2175, 4
      %v2178 = vshrl.u32 %v1896, 16
      %v2180 = vrot.slane %v2178, 6
      %v2181 = vshll.u32 %v1896, 16
      %v2183 = vrot.slane %v2181, 7
      %v2184 = vor.u32 %v2180, %v2183
      %v2185 = vsel %vm584, %v2176, %v2184
      %v2186 = vrot.slane %v2184, 4
      %v2188 = vshrl.u32 %v1897, 16
      %v2190 = vrot.slane %v2188, 6
      %v2191 = vshll.u32 %v1897, 16
      %v2193 = vrot.slane %v2191, 7
      %v2194 = vor.u32 %v2190, %v2193
      %v2195 = vsel %vm584, %v2186, %v2194
      %v2197 = vshrl.u32 %v1898, 16
      %v2199 = vrot.slane %v2197, 6
      %v2200 = vshll.u32 %v1898, 16
      %v2202 = vrot.slane %v2200, 7
      %v2203 = vor.u32 %v2199, %v2202
      %v2204 = vrot.slane %v2203, 4
      %v2206 = vshrl.u32 %v1899, 16
      %v2208 = vrot.slane %v2206, 6
      %v2209 = vshll.u32 %v1899, 16
      %v2211 = vrot.slane %v2209, 7
      %v2212 = vor.u32 %v2208, %v2211
      %v2213 = vsel %vm584, %v2204, %v2212
      %v2214 = vrot.slane %v2212, 4
      %v2216 = vshrl.u32 %v1900, 16
      %v2218 = vrot.slane %v2216, 6
      %v2219 = vshll.u32 %v1900, 16
      %v2221 = vrot.slane %v2219, 7
      %v2222 = vor.u32 %v2218, %v2221
      %v2223 = vsel %vm584, %v2214, %v2222
      %v2225 = vshrl.u32 %v1901, 16
      %v2227 = vrot.slane %v2225, 6
      %v2228 = vshll.u32 %v1901, 16
      %v2230 = vrot.slane %v2228, 7
      %v2231 = vor.u32 %v2227, %v2230
      %v2232 = vrot.slane %v2231, 4
      %v2234 = vshrl.u32 %v1902, 16
      %v2236 = vrot.slane %v2234, 6
      %v2237 = vshll.u32 %v1902, 16
      %v2239 = vrot.slane %v2237, 7
      %v2240 = vor.u32 %v2236, %v2239
      %v2241 = vsel %vm584, %v2232, %v2240
      %v2242 = vrot.slane %v2240, 4
      %v2244 = vshrl.u32 %v1903, 16
      %v2246 = vrot.slane %v2244, 6
      %v2247 = vshll.u32 %v1903, 16
      %v2249 = vrot.slane %v2247, 7
      %v2250 = vor.u32 %v2246, %v2249
      %v2251 = vsel %vm584, %v2242, %v2250
      %v2253 = vshrl.u32 %v1904, 16
      %v2255 = vrot.slane %v2253, 6
      %v2256 = vshll.u32 %v1904, 16
      %v2258 = vrot.slane %v2256, 7
      %v2259 = vor.u32 %v2255, %v2258
      %v2260 = vrot.slane %v2259, 4
      %v2262 = vshrl.u32 %v1905, 16
      %v2264 = vrot.slane %v2262, 6
      %v2265 = vshll.u32 %v1905, 16
      %v2267 = vrot.slane %v2265, 7
      %v2268 = vor.u32 %v2264, %v2267
      %v2269 = vsel %vm584, %v2260, %v2268
      %v2270 = vrot.slane %v2268, 4
      %v2272 = vshrl.u32 %v1906, 16
      %v2274 = vrot.slane %v2272, 6
      %v2275 = vshll.u32 %v1906, 16
      %v2277 = vrot.slane %v2275, 7
      %v2278 = vor.u32 %v2274, %v2277
      %v2279 = vsel %vm584, %v2270, %v2278
      %v2281 = vshrl.u32 %v1907, 16
      %v2283 = vrot.slane %v2281, 6
      %v2284 = vshll.u32 %v1907, 16
      %v2286 = vrot.slane %v2284, 7
      %v2287 = vor.u32 %v2283, %v2286
      %v2288 = vrot.slane %v2287, 4
      %v2290 = vshrl.u32 %v1908, 16
      %v2292 = vrot.slane %v2290, 6
      %v2293 = vshll.u32 %v1908, 16
      %v2295 = vrot.slane %v2293, 7
      %v2296 = vor.u32 %v2292, %v2295
      %v2297 = vsel %vm584, %v2288, %v2296
      %v2298 = vrot.slane %v2296, 4
      %v2300 = vshrl.u32 %v1909, 16
      %v2302 = vrot.slane %v2300, 6
      %v2303 = vshll.u32 %v1909, 16
      %v2305 = vrot.slane %v2303, 7
      %v2306 = vor.u32 %v2302, %v2305
      %v2307 = vsel %vm584, %v2298, %v2306
      %v2309 = vshrl.u32 %v1910, 16
      %v2311 = vrot.slane %v2309, 6
      %v2312 = vshll.u32 %v1910, 16
      %v2314 = vrot.slane %v2312, 7
      %v2315 = vor.u32 %v2311, %v2314
      %v2316 = vrot.slane %v2315, 4
      %v2318 = vshrl.u32 %v1911, 16
      %v2320 = vrot.slane %v2318, 6
      %v2321 = vshll.u32 %v1911, 16
      %v2323 = vrot.slane %v2321, 7
      %v2324 = vor.u32 %v2320, %v2323
      %v2325 = vsel %vm584, %v2316, %v2324
      %v2326 = vrot.slane %v2324, 4
      %v2328 = vshrl.u32 %v1912, 16
      %v2330 = vrot.slane %v2328, 6
      %v2331 = vshll.u32 %v1912, 16
      %v2333 = vrot.slane %v2331, 7
      %v2334 = vor.u32 %v2330, %v2333
      %v2335 = vsel %vm584, %v2326, %v2334
      %v2337 = vshrl.u32 %v1913, 16
      %v2339 = vrot.slane %v2337, 6
      %v2340 = vshll.u32 %v1913, 16
      %v2342 = vrot.slane %v2340, 7
      %v2343 = vor.u32 %v2339, %v2342
      %v2344 = vrot.slane %v2343, 4
      %v2346 = vshrl.u32 %v1914, 16
      %v2348 = vrot.slane %v2346, 6
      %v2349 = vshll.u32 %v1914, 16
      %v2351 = vrot.slane %v2349, 7
      %v2352 = vor.u32 %v2348, %v2351
      %v2353 = vsel %vm584, %v2344, %v2352
      %v2354 = vrot.slane %v2352, 4
      %v2356 = vshrl.u32 %v1915, 16
      %v2358 = vrot.slane %v2356, 6
      %v2359 = vshll.u32 %v1915, 16
      %v2361 = vrot.slane %v2359, 7
      %v2362 = vor.u32 %v2358, %v2361
      %v2363 = vsel %vm584, %v2354, %v2362
      %v2364 = vunpack.c.l.b16 %v1933
      %v2365 = vunpack.c.l.b16 %v1943
      %v2366 = vunpack.c.l.b16 %v1961
      %v2367 = vunpack.c.l.b16 %v1971
      %v2368 = vunpack.c.l.b16 %v1989
      %v2369 = vunpack.c.l.b16 %v1999
      %v2370 = vunpack.c.l.b16 %v2017
      %v2371 = vunpack.c.l.b16 %v2027
      %v2372 = vunpack.c.l.b16 %v2045
      %v2373 = vunpack.c.l.b16 %v2055
      %v2374 = vunpack.c.l.b16 %v2073
      %v2375 = vunpack.c.l.b16 %v2083
      %v2376 = vunpack.c.l.b16 %v2101
      %v2377 = vunpack.c.l.b16 %v2111
      %v2378 = vunpack.c.l.b16 %v2129
      %v2379 = vunpack.c.l.b16 %v2139
      %v2380 = vunpack.c.l.b16 %v2157
      %v2381 = vunpack.c.l.b16 %v2167
      %v2382 = vunpack.c.l.b16 %v2185
      %v2383 = vunpack.c.l.b16 %v2195
      %v2384 = vunpack.c.l.b16 %v2213
      %v2385 = vunpack.c.l.b16 %v2223
      %v2386 = vunpack.c.l.b16 %v2241
      %v2387 = vunpack.c.l.b16 %v2251
      %v2388 = vunpack.c.l.b16 %v2269
      %v2389 = vunpack.c.l.b16 %v2279
      %v2390 = vunpack.c.l.b16 %v2297
      %v2391 = vunpack.c.l.b16 %v2307
      %v2392 = vunpack.c.l.b16 %v2325
      %v2393 = vunpack.c.l.b16 %v2335
      %v2394 = vunpack.c.l.b16 %v2353
      %v2395 = vunpack.c.l.b16 %v2363
      %v2396 = vpack.c.b16 %v2365, %v2364
      %v2397 = vpack.c.b16 %v2367, %v2366
      %v2398 = vpack.c.b16 %v2369, %v2368
      %v2399 = vpack.c.b16 %v2371, %v2370
      %v2400 = vpack.c.b16 %v2373, %v2372
      %v2401 = vpack.c.b16 %v2375, %v2374
      %v2402 = vpack.c.b16 %v2377, %v2376
      %v2403 = vpack.c.b16 %v2379, %v2378
      %v2404 = vpack.c.b16 %v2381, %v2380
      %v2405 = vpack.c.b16 %v2383, %v2382
      %v2406 = vpack.c.b16 %v2385, %v2384
      %v2407 = vpack.c.b16 %v2387, %v2386
      %v2408 = vpack.c.b16 %v2389, %v2388
      %v2409 = vpack.c.b16 %v2391, %v2390
      %v2410 = vpack.c.b16 %v2393, %v2392
      %v2411 = vpack.c.b16 %v2395, %v2394
      %2428 = vxpose.xlu0.c.b16.start [1/8] %v2396, 128
      %2429 = vxpose.xlu0.c.b16.cont [2/8] %v2397, 128
      %2430 = vxpose.xlu0.c.b16.cont [3/8] %v2398, 128
      %2431 = vxpose.xlu0.c.b16.cont [4/8] %v2399, 128
      %2432 = vxpose.xlu0.c.b16.cont [5/8] %v2400, 128
      %2433 = vxpose.xlu0.c.b16.cont [6/8] %v2401, 128
      %2434 = vxpose.xlu0.c.b16.cont [7/8] %v2402, 128
      %2435 = vxpose.xlu0.c.b16.end [8/8] %v2403, 128
      %v2436 = vpop.trf.xlu0
      %v2437 = vpop.trf.xlu0
      %v2438 = vpop.trf.xlu0
      %v2439 = vpop.trf.xlu0
      %v2440 = vpop.trf.xlu0
      %v2441 = vpop.trf.xlu0
      %v2442 = vpop.trf.xlu0
      %v2443 = vpop.trf.xlu0
      %2444 = vxpose.xlu0.c.b16.start [1/8] %v2404, 128
      %2445 = vxpose.xlu0.c.b16.cont [2/8] %v2405, 128
      %2446 = vxpose.xlu0.c.b16.cont [3/8] %v2406, 128
      %2447 = vxpose.xlu0.c.b16.cont [4/8] %v2407, 128
      %2448 = vxpose.xlu0.c.b16.cont [5/8] %v2408, 128
      %2449 = vxpose.xlu0.c.b16.cont [6/8] %v2409, 128
      %2450 = vxpose.xlu0.c.b16.cont [7/8] %v2410, 128
      %2451 = vxpose.xlu0.c.b16.end [8/8] %v2411, 128
      %v2452 = vpop.trf.xlu0
      %v2453 = vpop.trf.xlu0
      %v2454 = vpop.trf.xlu0
      %v2455 = vpop.trf.xlu0
      %v2456 = vpop.trf.xlu0
      %v2457 = vpop.trf.xlu0
      %v2458 = vpop.trf.xlu0
      %v2459 = vpop.trf.xlu0
      %v2460 = vld [vmem:[%s499 + $0x8] sm:$0xf]
      %v2461 = vld [vmem:[%s499 + $0x18] sm:$0xf]
      %v2462 = vld [vmem:[%s499 + $0x28] sm:$0xf]
      %v2463 = vld [vmem:[%s499 + $0x38] sm:$0xf]
      %v2464 = vld [vmem:[%s499 + $0x48] sm:$0xf]
      %v2465 = vld [vmem:[%s499 + $0x58] sm:$0xf]
      %v2466 = vld [vmem:[%s499 + $0x68] sm:$0xf]
      %v2467 = vld [vmem:[%s499 + $0x78] sm:$0xf]
      %v2468 = vld [vmem:[%s499 + $0x88] sm:$0xf]
      %v2469 = vld [vmem:[%s499 + $0x98] sm:$0xf]
      %v2470 = vld [vmem:[%s499 + $0xa8] sm:$0xf]
      %v2471 = vld [vmem:[%s499 + $0xb8] sm:$0xf]
      %v2472 = vld [vmem:[%s499 + $0xc8] sm:$0xf]
      %v2473 = vld [vmem:[%s499 + $0xd8] sm:$0xf]
      %v2474 = vld [vmem:[%s499 + $0xe8] sm:$0xf]
      %v2475 = vld [vmem:[%s499 + $0xf8] sm:$0xf]
      %v2508 = vunpack.c.l.b16 %v1869
      %v2509 = vunpack.c.l.b16 %v2460
      %v2510 = vunpack.c.l.b16 %v1872
      %v2511 = vunpack.c.l.b16 %v2461
      %v2512 = vunpack.c.l.b16 %v1875
      %v2513 = vunpack.c.l.b16 %v2462
      %v2514 = vunpack.c.l.b16 %v1878
      %v2515 = vunpack.c.l.b16 %v2463
      %v2516 = vunpack.c.l.b16 %v1881
      %v2517 = vunpack.c.l.b16 %v2464
      %v2518 = vunpack.c.l.b16 %v1884
      %v2519 = vunpack.c.l.b16 %v2465
      %v2520 = vunpack.c.l.b16 %v1887
      %v2521 = vunpack.c.l.b16 %v2466
      %v2522 = vunpack.c.l.b16 %v1890
      %v2523 = vunpack.c.l.b16 %v2467
      %v2524 = vunpack.c.l.b16 %v1893
      %v2525 = vunpack.c.l.b16 %v2468
      %v2526 = vunpack.c.l.b16 %v1896
      %v2527 = vunpack.c.l.b16 %v2469
      %v2528 = vunpack.c.l.b16 %v1899
      %v2529 = vunpack.c.l.b16 %v2470
      %v2530 = vunpack.c.l.b16 %v1902
      %v2531 = vunpack.c.l.b16 %v2471
      %v2532 = vunpack.c.l.b16 %v1905
      %v2533 = vunpack.c.l.b16 %v2472
      %v2534 = vunpack.c.l.b16 %v1908
      %v2535 = vunpack.c.l.b16 %v2473
      %v2536 = vunpack.c.l.b16 %v1911
      %v2537 = vunpack.c.l.b16 %v2474
      %v2538 = vunpack.c.l.b16 %v1914
      %v2539 = vunpack.c.l.b16 %v2475
      %v2540 = vpack.c.b16 %v2509, %v2508
      %v2541 = vpack.c.b16 %v2511, %v2510
      %v2542 = vpack.c.b16 %v2513, %v2512
      %v2543 = vpack.c.b16 %v2515, %v2514
      %v2544 = vpack.c.b16 %v2517, %v2516
      %v2545 = vpack.c.b16 %v2519, %v2518
      %v2546 = vpack.c.b16 %v2521, %v2520
      %v2547 = vpack.c.b16 %v2523, %v2522
      %v2548 = vpack.c.b16 %v2525, %v2524
      %v2549 = vpack.c.b16 %v2527, %v2526
      %v2550 = vpack.c.b16 %v2529, %v2528
      %v2551 = vpack.c.b16 %v2531, %v2530
      %v2552 = vpack.c.b16 %v2533, %v2532
      %v2553 = vpack.c.b16 %v2535, %v2534
      %v2554 = vpack.c.b16 %v2537, %v2536
      %v2555 = vpack.c.b16 %v2539, %v2538
      %2572 = vxpose.xlu0.c.b16.start [1/8] %v2540, 128
      %2573 = vxpose.xlu0.c.b16.cont [2/8] %v2541, 128
      %2574 = vxpose.xlu0.c.b16.cont [3/8] %v2542, 128
      %2575 = vxpose.xlu0.c.b16.cont [4/8] %v2543, 128
      %2576 = vxpose.xlu0.c.b16.cont [5/8] %v2544, 128
      %2577 = vxpose.xlu0.c.b16.cont [6/8] %v2545, 128
      %2578 = vxpose.xlu0.c.b16.cont [7/8] %v2546, 128
      %2579 = vxpose.xlu0.c.b16.end [8/8] %v2547, 128
      %v2580 = vpop.trf.xlu0
      %v2581 = vpop.trf.xlu0
      %v2582 = vpop.trf.xlu0
      %v2583 = vpop.trf.xlu0
      %v2584 = vpop.trf.xlu0
      %v2585 = vpop.trf.xlu0
      %v2586 = vpop.trf.xlu0
      %v2587 = vpop.trf.xlu0
      %2588 = vxpose.xlu0.c.b16.start [1/8] %v2548, 128
      %2589 = vxpose.xlu0.c.b16.cont [2/8] %v2549, 128
      %2590 = vxpose.xlu0.c.b16.cont [3/8] %v2550, 128
      %2591 = vxpose.xlu0.c.b16.cont [4/8] %v2551, 128
      %2592 = vxpose.xlu0.c.b16.cont [5/8] %v2552, 128
      %2593 = vxpose.xlu0.c.b16.cont [6/8] %v2553, 128
      %2594 = vxpose.xlu0.c.b16.cont [7/8] %v2554, 128
      %2595 = vxpose.xlu0.c.b16.end [8/8] %v2555, 128
      %v2596 = vpop.trf.xlu0
      %v2597 = vpop.trf.xlu0
      %v2598 = vpop.trf.xlu0
      %v2599 = vpop.trf.xlu0
      %v2600 = vpop.trf.xlu0
      %v2601 = vpop.trf.xlu0
      %v2602 = vpop.trf.xlu0
      %v2603 = vpop.trf.xlu0
      %v2604 = vld [vmem:[%s499 + $0x4] sm:$0xe]
      %v2605 = vld [vmem:[%s499 + $0x8] sm:$0xf]
      %v2606 = vld [vmem:[%s499 + $0xc] sm:$0x3]
      %v2607 = vld [vmem:[%s499 + $0x14] sm:$0xe]
      %v2608 = vld [vmem:[%s499 + $0x18] sm:$0xf]
      %v2609 = vld [vmem:[%s499 + $0x1c] sm:$0x3]
      %v2610 = vld [vmem:[%s499 + $0x24] sm:$0xe]
      %v2611 = vld [vmem:[%s499 + $0x28] sm:$0xf]
      %v2612 = vld [vmem:[%s499 + $0x2c] sm:$0x3]
      %v2613 = vld [vmem:[%s499 + $0x34] sm:$0xe]
      %v2614 = vld [vmem:[%s499 + $0x38] sm:$0xf]
      %v2615 = vld [vmem:[%s499 + $0x3c] sm:$0x3]
      %v2616 = vld [vmem:[%s499 + $0x44] sm:$0xe]
      %v2617 = vld [vmem:[%s499 + $0x48] sm:$0xf]
      %v2618 = vld [vmem:[%s499 + $0x4c] sm:$0x3]
      %v2619 = vld [vmem:[%s499 + $0x54] sm:$0xe]
      %v2620 = vld [vmem:[%s499 + $0x58] sm:$0xf]
      %v2621 = vld [vmem:[%s499 + $0x5c] sm:$0x3]
      %v2622 = vld [vmem:[%s499 + $0x64] sm:$0xe]
      %v2623 = vld [vmem:[%s499 + $0x68] sm:$0xf]
      %v2624 = vld [vmem:[%s499 + $0x6c] sm:$0x3]
      %v2625 = vld [vmem:[%s499 + $0x74] sm:$0xe]
      %v2626 = vld [vmem:[%s499 + $0x78] sm:$0xf]
      %v2627 = vld [vmem:[%s499 + $0x7c] sm:$0x3]
      %v2628 = vld [vmem:[%s499 + $0x84] sm:$0xe]
      %v2629 = vld [vmem:[%s499 + $0x88] sm:$0xf]
      %v2630 = vld [vmem:[%s499 + $0x8c] sm:$0x3]
      %v2631 = vld [vmem:[%s499 + $0x94] sm:$0xe]
      %v2632 = vld [vmem:[%s499 + $0x98] sm:$0xf]
      %v2633 = vld [vmem:[%s499 + $0x9c] sm:$0x3]
      %v2634 = vld [vmem:[%s499 + $0xa4] sm:$0xe]
      %v2635 = vld [vmem:[%s499 + $0xa8] sm:$0xf]
      %v2636 = vld [vmem:[%s499 + $0xac] sm:$0x3]
      %v2637 = vld [vmem:[%s499 + $0xb4] sm:$0xe]
      %v2638 = vld [vmem:[%s499 + $0xb8] sm:$0xf]
      %v2639 = vld [vmem:[%s499 + $0xbc] sm:$0x3]
      %v2640 = vld [vmem:[%s499 + $0xc4] sm:$0xe]
      %v2641 = vld [vmem:[%s499 + $0xc8] sm:$0xf]
      %v2642 = vld [vmem:[%s499 + $0xcc] sm:$0x3]
      %v2643 = vld [vmem:[%s499 + $0xd4] sm:$0xe]
      %v2644 = vld [vmem:[%s499 + $0xd8] sm:$0xf]
      %v2645 = vld [vmem:[%s499 + $0xdc] sm:$0x3]
      %v2646 = vld [vmem:[%s499 + $0xe4] sm:$0xe]
      %v2647 = vld [vmem:[%s499 + $0xe8] sm:$0xf]
      %v2648 = vld [vmem:[%s499 + $0xec] sm:$0x3]
      %v2649 = vld [vmem:[%s499 + $0xf4] sm:$0xe]
      %v2650 = vld [vmem:[%s499 + $0xf8] sm:$0xf]
      %v2651 = vld [vmem:[%s499 + $0xfc] sm:$0x3]
      %v2653 = vshrl.u32 %v2604, 16
      %v2655 = vrot.slane %v2653, 5
      %v2656 = vshll.u32 %v2604, 16
      %v2658 = vrot.slane %v2656, 6
      %v2659 = vor.u32 %v2655, %v2658
      %v2660 = vrot.slane %v2659, 4
      %v2662 = vshrl.u32 %v2605, 16
      %v2664 = vrot.slane %v2662, 5
      %v2665 = vshll.u32 %v2605, 16
      %v2667 = vrot.slane %v2665, 6
      %v2668 = vor.u32 %v2664, %v2667
      %v2669 = vsel %vm1323, %v2660, %v2668
      %v2670 = vrot.slane %v2668, 4
      %v2672 = vshrl.u32 %v2606, 16
      %v2674 = vrot.slane %v2672, 5
      %v2675 = vshll.u32 %v2606, 16
      %v2677 = vrot.slane %v2675, 6
      %v2678 = vor.u32 %v2674, %v2677
      %v2679 = vsel %vm1323, %v2670, %v2678
      %v2681 = vshrl.u32 %v2607, 16
      %v2683 = vrot.slane %v2681, 5
      %v2684 = vshll.u32 %v2607, 16
      %v2686 = vrot.slane %v2684, 6
      %v2687 = vor.u32 %v2683, %v2686
      %v2688 = vrot.slane %v2687, 4
      %v2690 = vshrl.u32 %v2608, 16
      %v2692 = vrot.slane %v2690, 5
      %v2693 = vshll.u32 %v2608, 16
      %v2695 = vrot.slane %v2693, 6
      %v2696 = vor.u32 %v2692, %v2695
      %v2697 = vsel %vm1323, %v2688, %v2696
      %v2698 = vrot.slane %v2696, 4
      %v2700 = vshrl.u32 %v2609, 16
      %v2702 = vrot.slane %v2700, 5
      %v2703 = vshll.u32 %v2609, 16
      %v2705 = vrot.slane %v2703, 6
      %v2706 = vor.u32 %v2702, %v2705
      %v2707 = vsel %vm1323, %v2698, %v2706
      %v2709 = vshrl.u32 %v2610, 16
      %v2711 = vrot.slane %v2709, 5
      %v2712 = vshll.u32 %v2610, 16
      %v2714 = vrot.slane %v2712, 6
      %v2715 = vor.u32 %v2711, %v2714
      %v2716 = vrot.slane %v2715, 4
      %v2718 = vshrl.u32 %v2611, 16
      %v2720 = vrot.slane %v2718, 5
      %v2721 = vshll.u32 %v2611, 16
      %v2723 = vrot.slane %v2721, 6
      %v2724 = vor.u32 %v2720, %v2723
      %v2725 = vsel %vm1323, %v2716, %v2724
      %v2726 = vrot.slane %v2724, 4
      %v2728 = vshrl.u32 %v2612, 16
      %v2730 = vrot.slane %v2728, 5
      %v2731 = vshll.u32 %v2612, 16
      %v2733 = vrot.slane %v2731, 6
      %v2734 = vor.u32 %v2730, %v2733
      %v2735 = vsel %vm1323, %v2726, %v2734
      %v2737 = vshrl.u32 %v2613, 16
      %v2739 = vrot.slane %v2737, 5
      %v2740 = vshll.u32 %v2613, 16
      %v2742 = vrot.slane %v2740, 6
      %v2743 = vor.u32 %v2739, %v2742
      %v2744 = vrot.slane %v2743, 4
      %v2746 = vshrl.u32 %v2614, 16
      %v2748 = vrot.slane %v2746, 5
      %v2749 = vshll.u32 %v2614, 16
      %v2751 = vrot.slane %v2749, 6
      %v2752 = vor.u32 %v2748, %v2751
      %v2753 = vsel %vm1323, %v2744, %v2752
      %v2754 = vrot.slane %v2752, 4
      %v2756 = vshrl.u32 %v2615, 16
      %v2758 = vrot.slane %v2756, 5
      %v2759 = vshll.u32 %v2615, 16
      %v2761 = vrot.slane %v2759, 6
      %v2762 = vor.u32 %v2758, %v2761
      %v2763 = vsel %vm1323, %v2754, %v2762
      %v2765 = vshrl.u32 %v2616, 16
      %v2767 = vrot.slane %v2765, 5
      %v2768 = vshll.u32 %v2616, 16
      %v2770 = vrot.slane %v2768, 6
      %v2771 = vor.u32 %v2767, %v2770
      %v2772 = vrot.slane %v2771, 4
      %v2774 = vshrl.u32 %v2617, 16
      %v2776 = vrot.slane %v2774, 5
      %v2777 = vshll.u32 %v2617, 16
      %v2779 = vrot.slane %v2777, 6
      %v2780 = vor.u32 %v2776, %v2779
      %v2781 = vsel %vm1323, %v2772, %v2780
      %v2782 = vrot.slane %v2780, 4
      %v2784 = vshrl.u32 %v2618, 16
      %v2786 = vrot.slane %v2784, 5
      %v2787 = vshll.u32 %v2618, 16
      %v2789 = vrot.slane %v2787, 6
      %v2790 = vor.u32 %v2786, %v2789
      %v2791 = vsel %vm1323, %v2782, %v2790
      %v2793 = vshrl.u32 %v2619, 16
      %v2795 = vrot.slane %v2793, 5
      %v2796 = vshll.u32 %v2619, 16
      %v2798 = vrot.slane %v2796, 6
      %v2799 = vor.u32 %v2795, %v2798
      %v2800 = vrot.slane %v2799, 4
      %v2802 = vshrl.u32 %v2620, 16
      %v2804 = vrot.slane %v2802, 5
      %v2805 = vshll.u32 %v2620, 16
      %v2807 = vrot.slane %v2805, 6
      %v2808 = vor.u32 %v2804, %v2807
      %v2809 = vsel %vm1323, %v2800, %v2808
      %v2810 = vrot.slane %v2808, 4
      %v2812 = vshrl.u32 %v2621, 16
      %v2814 = vrot.slane %v2812, 5
      %v2815 = vshll.u32 %v2621, 16
      %v2817 = vrot.slane %v2815, 6
      %v2818 = vor.u32 %v2814, %v2817
      %v2819 = vsel %vm1323, %v2810, %v2818
      %v2821 = vshrl.u32 %v2622, 16
      %v2823 = vrot.slane %v2821, 5
      %v2824 = vshll.u32 %v2622, 16
      %v2826 = vrot.slane %v2824, 6
      %v2827 = vor.u32 %v2823, %v2826
      %v2828 = vrot.slane %v2827, 4
      %v2830 = vshrl.u32 %v2623, 16
      %v2832 = vrot.slane %v2830, 5
      %v2833 = vshll.u32 %v2623, 16
      %v2835 = vrot.slane %v2833, 6
      %v2836 = vor.u32 %v2832, %v2835
      %v2837 = vsel %vm1323, %v2828, %v2836
      %v2838 = vrot.slane %v2836, 4
      %v2840 = vshrl.u32 %v2624, 16
      %v2842 = vrot.slane %v2840, 5
      %v2843 = vshll.u32 %v2624, 16
      %v2845 = vrot.slane %v2843, 6
      %v2846 = vor.u32 %v2842, %v2845
      %v2847 = vsel %vm1323, %v2838, %v2846
      %v2849 = vshrl.u32 %v2625, 16
      %v2851 = vrot.slane %v2849, 5
      %v2852 = vshll.u32 %v2625, 16
      %v2854 = vrot.slane %v2852, 6
      %v2855 = vor.u32 %v2851, %v2854
      %v2856 = vrot.slane %v2855, 4
      %v2858 = vshrl.u32 %v2626, 16
      %v2860 = vrot.slane %v2858, 5
      %v2861 = vshll.u32 %v2626, 16
      %v2863 = vrot.slane %v2861, 6
      %v2864 = vor.u32 %v2860, %v2863
      %v2865 = vsel %vm1323, %v2856, %v2864
      %v2866 = vrot.slane %v2864, 4
      %v2868 = vshrl.u32 %v2627, 16
      %v2870 = vrot.slane %v2868, 5
      %v2871 = vshll.u32 %v2627, 16
      %v2873 = vrot.slane %v2871, 6
      %v2874 = vor.u32 %v2870, %v2873
      %v2875 = vsel %vm1323, %v2866, %v2874
      %v2877 = vshrl.u32 %v2628, 16
      %v2879 = vrot.slane %v2877, 5
      %v2880 = vshll.u32 %v2628, 16
      %v2882 = vrot.slane %v2880, 6
      %v2883 = vor.u32 %v2879, %v2882
      %v2884 = vrot.slane %v2883, 4
      %v2886 = vshrl.u32 %v2629, 16
      %v2888 = vrot.slane %v2886, 5
      %v2889 = vshll.u32 %v2629, 16
      %v2891 = vrot.slane %v2889, 6
      %v2892 = vor.u32 %v2888, %v2891
      %v2893 = vsel %vm1323, %v2884, %v2892
      %v2894 = vrot.slane %v2892, 4
      %v2896 = vshrl.u32 %v2630, 16
      %v2898 = vrot.slane %v2896, 5
      %v2899 = vshll.u32 %v2630, 16
      %v2901 = vrot.slane %v2899, 6
      %v2902 = vor.u32 %v2898, %v2901
      %v2903 = vsel %vm1323, %v2894, %v2902
      %v2905 = vshrl.u32 %v2631, 16
      %v2907 = vrot.slane %v2905, 5
      %v2908 = vshll.u32 %v2631, 16
      %v2910 = vrot.slane %v2908, 6
      %v2911 = vor.u32 %v2907, %v2910
      %v2912 = vrot.slane %v2911, 4
      %v2914 = vshrl.u32 %v2632, 16
      %v2916 = vrot.slane %v2914, 5
      %v2917 = vshll.u32 %v2632, 16
      %v2919 = vrot.slane %v2917, 6
      %v2920 = vor.u32 %v2916, %v2919
      %v2921 = vsel %vm1323, %v2912, %v2920
      %v2922 = vrot.slane %v2920, 4
      %v2924 = vshrl.u32 %v2633, 16
      %v2926 = vrot.slane %v2924, 5
      %v2927 = vshll.u32 %v2633, 16
      %v2929 = vrot.slane %v2927, 6
      %v2930 = vor.u32 %v2926, %v2929
      %v2931 = vsel %vm1323, %v2922, %v2930
      %v2933 = vshrl.u32 %v2634, 16
      %v2935 = vrot.slane %v2933, 5
      %v2936 = vshll.u32 %v2634, 16
      %v2938 = vrot.slane %v2936, 6
      %v2939 = vor.u32 %v2935, %v2938
      %v2940 = vrot.slane %v2939, 4
      %v2942 = vshrl.u32 %v2635, 16
      %v2944 = vrot.slane %v2942, 5
      %v2945 = vshll.u32 %v2635, 16
      %v2947 = vrot.slane %v2945, 6
      %v2948 = vor.u32 %v2944, %v2947
      %v2949 = vsel %vm1323, %v2940, %v2948
      %v2950 = vrot.slane %v2948, 4
      %v2952 = vshrl.u32 %v2636, 16
      %v2954 = vrot.slane %v2952, 5
      %v2955 = vshll.u32 %v2636, 16
      %v2957 = vrot.slane %v2955, 6
      %v2958 = vor.u32 %v2954, %v2957
      %v2959 = vsel %vm1323, %v2950, %v2958
      %v2961 = vshrl.u32 %v2637, 16
      %v2963 = vrot.slane %v2961, 5
      %v2964 = vshll.u32 %v2637, 16
      %v2966 = vrot.slane %v2964, 6
      %v2967 = vor.u32 %v2963, %v2966
      %v2968 = vrot.slane %v2967, 4
      %v2970 = vshrl.u32 %v2638, 16
      %v2972 = vrot.slane %v2970, 5
      %v2973 = vshll.u32 %v2638, 16
      %v2975 = vrot.slane %v2973, 6
      %v2976 = vor.u32 %v2972, %v2975
      %v2977 = vsel %vm1323, %v2968, %v2976
      %v2978 = vrot.slane %v2976, 4
      %v2980 = vshrl.u32 %v2639, 16
      %v2982 = vrot.slane %v2980, 5
      %v2983 = vshll.u32 %v2639, 16
      %v2985 = vrot.slane %v2983, 6
      %v2986 = vor.u32 %v2982, %v2985
      %v2987 = vsel %vm1323, %v2978, %v2986
      %v2989 = vshrl.u32 %v2640, 16
      %v2991 = vrot.slane %v2989, 5
      %v2992 = vshll.u32 %v2640, 16
      %v2994 = vrot.slane %v2992, 6
      %v2995 = vor.u32 %v2991, %v2994
      %v2996 = vrot.slane %v2995, 4
      %v2998 = vshrl.u32 %v2641, 16
      %v3000 = vrot.slane %v2998, 5
      %v3001 = vshll.u32 %v2641, 16
      %v3003 = vrot.slane %v3001, 6
      %v3004 = vor.u32 %v3000, %v3003
      %v3005 = vsel %vm1323, %v2996, %v3004
      %v3006 = vrot.slane %v3004, 4
      %v3008 = vshrl.u32 %v2642, 16
      %v3010 = vrot.slane %v3008, 5
      %v3011 = vshll.u32 %v2642, 16
      %v3013 = vrot.slane %v3011, 6
      %v3014 = vor.u32 %v3010, %v3013
      %v3015 = vsel %vm1323, %v3006, %v3014
      %v3017 = vshrl.u32 %v2643, 16
      %v3019 = vrot.slane %v3017, 5
      %v3020 = vshll.u32 %v2643, 16
      %v3022 = vrot.slane %v3020, 6
      %v3023 = vor.u32 %v3019, %v3022
      %v3024 = vrot.slane %v3023, 4
      %v3026 = vshrl.u32 %v2644, 16
      %v3028 = vrot.slane %v3026, 5
      %v3029 = vshll.u32 %v2644, 16
      %v3031 = vrot.slane %v3029, 6
      %v3032 = vor.u32 %v3028, %v3031
      %v3033 = vsel %vm1323, %v3024, %v3032
      %v3034 = vrot.slane %v3032, 4
      %v3036 = vshrl.u32 %v2645, 16
      %v3038 = vrot.slane %v3036, 5
      %v3039 = vshll.u32 %v2645, 16
      %v3041 = vrot.slane %v3039, 6
      %v3042 = vor.u32 %v3038, %v3041
      %v3043 = vsel %vm1323, %v3034, %v3042
      %v3045 = vshrl.u32 %v2646, 16
      %v3047 = vrot.slane %v3045, 5
      %v3048 = vshll.u32 %v2646, 16
      %v3050 = vrot.slane %v3048, 6
      %v3051 = vor.u32 %v3047, %v3050
      %v3052 = vrot.slane %v3051, 4
      %v3054 = vshrl.u32 %v2647, 16
      %v3056 = vrot.slane %v3054, 5
      %v3057 = vshll.u32 %v2647, 16
      %v3059 = vrot.slane %v3057, 6
      %v3060 = vor.u32 %v3056, %v3059
      %v3061 = vsel %vm1323, %v3052, %v3060
      %v3062 = vrot.slane %v3060, 4
      %v3064 = vshrl.u32 %v2648, 16
      %v3066 = vrot.slane %v3064, 5
      %v3067 = vshll.u32 %v2648, 16
      %v3069 = vrot.slane %v3067, 6
      %v3070 = vor.u32 %v3066, %v3069
      %v3071 = vsel %vm1323, %v3062, %v3070
      %v3073 = vshrl.u32 %v2649, 16
      %v3075 = vrot.slane %v3073, 5
      %v3076 = vshll.u32 %v2649, 16
      %v3078 = vrot.slane %v3076, 6
      %v3079 = vor.u32 %v3075, %v3078
      %v3080 = vrot.slane %v3079, 4
      %v3082 = vshrl.u32 %v2650, 16
      %v3084 = vrot.slane %v3082, 5
      %v3085 = vshll.u32 %v2650, 16
      %v3087 = vrot.slane %v3085, 6
      %v3088 = vor.u32 %v3084, %v3087
      %v3089 = vsel %vm1323, %v3080, %v3088
      %v3090 = vrot.slane %v3088, 4
      %v3092 = vshrl.u32 %v2651, 16
      %v3094 = vrot.slane %v3092, 5
      %v3095 = vshll.u32 %v2651, 16
      %v3097 = vrot.slane %v3095, 6
      %v3098 = vor.u32 %v3094, %v3097
      %v3099 = vsel %vm1323, %v3090, %v3098
      %v3100 = vunpack.c.l.b16 %v2669
      %v3101 = vunpack.c.l.b16 %v2679
      %v3102 = vunpack.c.l.b16 %v2697
      %v3103 = vunpack.c.l.b16 %v2707
      %v3104 = vunpack.c.l.b16 %v2725
      %v3105 = vunpack.c.l.b16 %v2735
      %v3106 = vunpack.c.l.b16 %v2753
      %v3107 = vunpack.c.l.b16 %v2763
      %v3108 = vunpack.c.l.b16 %v2781
      %v3109 = vunpack.c.l.b16 %v2791
      %v3110 = vunpack.c.l.b16 %v2809
      %v3111 = vunpack.c.l.b16 %v2819
      %v3112 = vunpack.c.l.b16 %v2837
      %v3113 = vunpack.c.l.b16 %v2847
      %v3114 = vunpack.c.l.b16 %v2865
      %v3115 = vunpack.c.l.b16 %v2875
      %v3116 = vunpack.c.l.b16 %v2893
      %v3117 = vunpack.c.l.b16 %v2903
      %v3118 = vunpack.c.l.b16 %v2921
      %v3119 = vunpack.c.l.b16 %v2931
      %v3120 = vunpack.c.l.b16 %v2949
      %v3121 = vunpack.c.l.b16 %v2959
      %v3122 = vunpack.c.l.b16 %v2977
      %v3123 = vunpack.c.l.b16 %v2987
      %v3124 = vunpack.c.l.b16 %v3005
      %v3125 = vunpack.c.l.b16 %v3015
      %v3126 = vunpack.c.l.b16 %v3033
      %v3127 = vunpack.c.l.b16 %v3043
      %v3128 = vunpack.c.l.b16 %v3061
      %v3129 = vunpack.c.l.b16 %v3071
      %v3130 = vunpack.c.l.b16 %v3089
      %v3131 = vunpack.c.l.b16 %v3099
      %v3132 = vpack.c.b16 %v3101, %v3100
      %v3133 = vpack.c.b16 %v3103, %v3102
      %v3134 = vpack.c.b16 %v3105, %v3104
      %v3135 = vpack.c.b16 %v3107, %v3106
      %v3136 = vpack.c.b16 %v3109, %v3108
      %v3137 = vpack.c.b16 %v3111, %v3110
      %v3138 = vpack.c.b16 %v3113, %v3112
      %v3139 = vpack.c.b16 %v3115, %v3114
      %v3140 = vpack.c.b16 %v3117, %v3116
      %v3141 = vpack.c.b16 %v3119, %v3118
      %v3142 = vpack.c.b16 %v3121, %v3120
      %v3143 = vpack.c.b16 %v3123, %v3122
      %v3144 = vpack.c.b16 %v3125, %v3124
      %v3145 = vpack.c.b16 %v3127, %v3126
      %v3146 = vpack.c.b16 %v3129, %v3128
      %v3147 = vpack.c.b16 %v3131, %v3130
      %3164 = vxpose.xlu0.c.b16.start [1/8] %v3132, 128
      %3165 = vxpose.xlu0.c.b16.cont [2/8] %v3133, 128
      %3166 = vxpose.xlu0.c.b16.cont [3/8] %v3134, 128
      %3167 = vxpose.xlu0.c.b16.cont [4/8] %v3135, 128
      %3168 = vxpose.xlu0.c.b16.cont [5/8] %v3136, 128
      %3169 = vxpose.xlu0.c.b16.cont [6/8] %v3137, 128
      %3170 = vxpose.xlu0.c.b16.cont [7/8] %v3138, 128
      %3171 = vxpose.xlu0.c.b16.end [8/8] %v3139, 128
      %v3172 = vpop.trf.xlu0
      %v3173 = vpop.trf.xlu0
      %v3174 = vpop.trf.xlu0
      %v3175 = vpop.trf.xlu0
      %v3176 = vpop.trf.xlu0
      %v3177 = vpop.trf.xlu0
      %v3178 = vpop.trf.xlu0
      %v3179 = vpop.trf.xlu0
      %3180 = vxpose.xlu0.c.b16.start [1/8] %v3140, 128
      %3181 = vxpose.xlu0.c.b16.cont [2/8] %v3141, 128
      %3182 = vxpose.xlu0.c.b16.cont [3/8] %v3142, 128
      %3183 = vxpose.xlu0.c.b16.cont [4/8] %v3143, 128
      %3184 = vxpose.xlu0.c.b16.cont [5/8] %v3144, 128
      %3185 = vxpose.xlu0.c.b16.cont [6/8] %v3145, 128
      %3186 = vxpose.xlu0.c.b16.cont [7/8] %v3146, 128
      %3187 = vxpose.xlu0.c.b16.end [8/8] %v3147, 128
      %v3188 = vpop.trf.xlu0
      %v3189 = vpop.trf.xlu0
      %v3190 = vpop.trf.xlu0
      %v3191 = vpop.trf.xlu0
      %v3192 = vpop.trf.xlu0
      %v3193 = vpop.trf.xlu0
      %v3194 = vpop.trf.xlu0
      %v3195 = vpop.trf.xlu0
      %s3196 = scalar_lea.vmem [#allocation2], 176
      %v3197 = vld [vmem:[%s3196] sm:$0xc]
      %v3198 = vld [vmem:[%s3196 + $0x4] sm:$0xf]
      %v3199 = vld [vmem:[%s3196 + $0x8] sm:$0x7]
      %v3200 = vld [vmem:[%s3196 + $0x10] sm:$0xc]
      %v3201 = vld [vmem:[%s3196 + $0x14] sm:$0xf]
      %v3202 = vld [vmem:[%s3196 + $0x18] sm:$0x7]
      %v3203 = vld [vmem:[%s3196 + $0x20] sm:$0xc]
      %v3204 = vld [vmem:[%s3196 + $0x24] sm:$0xf]
      %v3205 = vld [vmem:[%s3196 + $0x28] sm:$0x7]
      %v3206 = vld [vmem:[%s3196 + $0x30] sm:$0xc]
      %v3207 = vld [vmem:[%s3196 + $0x34] sm:$0xf]
      %v3208 = vld [vmem:[%s3196 + $0x38] sm:$0x7]
      %v3209 = vld [vmem:[%s3196 + $0x40] sm:$0xc]
      %v3210 = vld [vmem:[%s3196 + $0x44] sm:$0xf]
      %v3211 = vld [vmem:[%s3196 + $0x48] sm:$0x7]
      %v3212 = vld [vmem:[%s3196 + $0x50] sm:$0xc]
      %v3213 = vld [vmem:[%s3196 + $0x54] sm:$0xf]
      %v3214 = vld [vmem:[%s3196 + $0x58] sm:$0x7]
      %v3215 = vld [vmem:[%s3196 + $0x60] sm:$0xc]
      %v3216 = vld [vmem:[%s3196 + $0x64] sm:$0xf]
      %v3217 = vld [vmem:[%s3196 + $0x68] sm:$0x7]
      %v3218 = vld [vmem:[%s3196 + $0x70] sm:$0xc]
      %v3219 = vld [vmem:[%s3196 + $0x74] sm:$0xf]
      %v3220 = vld [vmem:[%s3196 + $0x78] sm:$0x7]
      %v3221 = vld [vmem:[%s3196 + $0x80] sm:$0xc]
      %v3222 = vld [vmem:[%s3196 + $0x84] sm:$0xf]
      %v3223 = vld [vmem:[%s3196 + $0x88] sm:$0x7]
      %v3224 = vld [vmem:[%s3196 + $0x90] sm:$0xc]
      %v3225 = vld [vmem:[%s3196 + $0x94] sm:$0xf]
      %v3226 = vld [vmem:[%s3196 + $0x98] sm:$0x7]
      %v3227 = vld [vmem:[%s3196 + $0xa0] sm:$0xc]
      %v3228 = vld [vmem:[%s3196 + $0xa4] sm:$0xf]
      %v3229 = vld [vmem:[%s3196 + $0xa8] sm:$0x7]
      %v3230 = vld [vmem:[%s3196 + $0xb0] sm:$0xc]
      %v3231 = vld [vmem:[%s3196 + $0xb4] sm:$0xf]
      %v3232 = vld [vmem:[%s3196 + $0xb8] sm:$0x7]
      %v3233 = vld [vmem:[%s3196 + $0xc0] sm:$0xc]
      %v3234 = vld [vmem:[%s3196 + $0xc4] sm:$0xf]
      %v3235 = vld [vmem:[%s3196 + $0xc8] sm:$0x7]
      %v3236 = vld [vmem:[%s3196 + $0xd0] sm:$0xc]
      %v3237 = vld [vmem:[%s3196 + $0xd4] sm:$0xf]
      %v3238 = vld [vmem:[%s3196 + $0xd8] sm:$0x7]
      %v3239 = vld [vmem:[%s3196 + $0xe0] sm:$0xc]
      %v3240 = vld [vmem:[%s3196 + $0xe4] sm:$0xf]
      %v3241 = vld [vmem:[%s3196 + $0xe8] sm:$0x7]
      %v3242 = vld [vmem:[%s3196 + $0xf0] sm:$0xc]
      %v3243 = vld [vmem:[%s3196 + $0xf4] sm:$0xf]
      %v3244 = vld [vmem:[%s3196 + $0xf8] sm:$0x7]
      %v3246 = vshrl.u32 %v3197, 16
      %v3248 = vrot.slane %v3246, 6
      %v3249 = vshll.u32 %v3197, 16
      %v3251 = vrot.slane %v3249, 7
      %v3252 = vor.u32 %v3248, %v3251
      %v3253 = vrot.slane %v3252, 4
      %v3255 = vshrl.u32 %v3198, 16
      %v3257 = vrot.slane %v3255, 6
      %v3258 = vshll.u32 %v3198, 16
      %v3260 = vrot.slane %v3258, 7
      %v3261 = vor.u32 %v3257, %v3260
      %v3262 = vsel %vm584, %v3253, %v3261
      %v3263 = vrot.slane %v3261, 4
      %v3265 = vshrl.u32 %v3199, 16
      %v3267 = vrot.slane %v3265, 6
      %v3268 = vshll.u32 %v3199, 16
      %v3270 = vrot.slane %v3268, 7
      %v3271 = vor.u32 %v3267, %v3270
      %v3272 = vsel %vm584, %v3263, %v3271
      %v3274 = vshrl.u32 %v3200, 16
      %v3276 = vrot.slane %v3274, 6
      %v3277 = vshll.u32 %v3200, 16
      %v3279 = vrot.slane %v3277, 7
      %v3280 = vor.u32 %v3276, %v3279
      %v3281 = vrot.slane %v3280, 4
      %v3283 = vshrl.u32 %v3201, 16
      %v3285 = vrot.slane %v3283, 6
      %v3286 = vshll.u32 %v3201, 16
      %v3288 = vrot.slane %v3286, 7
      %v3289 = vor.u32 %v3285, %v3288
      %v3290 = vsel %vm584, %v3281, %v3289
      %v3291 = vrot.slane %v3289, 4
      %v3293 = vshrl.u32 %v3202, 16
      %v3295 = vrot.slane %v3293, 6
      %v3296 = vshll.u32 %v3202, 16
      %v3298 = vrot.slane %v3296, 7
      %v3299 = vor.u32 %v3295, %v3298
      %v3300 = vsel %vm584, %v3291, %v3299
      %v3302 = vshrl.u32 %v3203, 16
      %v3304 = vrot.slane %v3302, 6
      %v3305 = vshll.u32 %v3203, 16
      %v3307 = vrot.slane %v3305, 7
      %v3308 = vor.u32 %v3304, %v3307
      %v3309 = vrot.slane %v3308, 4
      %v3311 = vshrl.u32 %v3204, 16
      %v3313 = vrot.slane %v3311, 6
      %v3314 = vshll.u32 %v3204, 16
      %v3316 = vrot.slane %v3314, 7
      %v3317 = vor.u32 %v3313, %v3316
      %v3318 = vsel %vm584, %v3309, %v3317
      %v3319 = vrot.slane %v3317, 4
      %v3321 = vshrl.u32 %v3205, 16
      %v3323 = vrot.slane %v3321, 6
      %v3324 = vshll.u32 %v3205, 16
      %v3326 = vrot.slane %v3324, 7
      %v3327 = vor.u32 %v3323, %v3326
      %v3328 = vsel %vm584, %v3319, %v3327
      %v3330 = vshrl.u32 %v3206, 16
      %v3332 = vrot.slane %v3330, 6
      %v3333 = vshll.u32 %v3206, 16
      %v3335 = vrot.slane %v3333, 7
      %v3336 = vor.u32 %v3332, %v3335
      %v3337 = vrot.slane %v3336, 4
      %v3339 = vshrl.u32 %v3207, 16
      %v3341 = vrot.slane %v3339, 6
      %v3342 = vshll.u32 %v3207, 16
      %v3344 = vrot.slane %v3342, 7
      %v3345 = vor.u32 %v3341, %v3344
      %v3346 = vsel %vm584, %v3337, %v3345
      %v3347 = vrot.slane %v3345, 4
      %v3349 = vshrl.u32 %v3208, 16
      %v3351 = vrot.slane %v3349, 6
      %v3352 = vshll.u32 %v3208, 16
      %v3354 = vrot.slane %v3352, 7
      %v3355 = vor.u32 %v3351, %v3354
      %v3356 = vsel %vm584, %v3347, %v3355
      %v3358 = vshrl.u32 %v3209, 16
      %v3360 = vrot.slane %v3358, 6
      %v3361 = vshll.u32 %v3209, 16
      %v3363 = vrot.slane %v3361, 7
      %v3364 = vor.u32 %v3360, %v3363
      %v3365 = vrot.slane %v3364, 4
      %v3367 = vshrl.u32 %v3210, 16
      %v3369 = vrot.slane %v3367, 6
      %v3370 = vshll.u32 %v3210, 16
      %v3372 = vrot.slane %v3370, 7
      %v3373 = vor.u32 %v3369, %v3372
      %v3374 = vsel %vm584, %v3365, %v3373
      %v3375 = vrot.slane %v3373, 4
      %v3377 = vshrl.u32 %v3211, 16
      %v3379 = vrot.slane %v3377, 6
      %v3380 = vshll.u32 %v3211, 16
      %v3382 = vrot.slane %v3380, 7
      %v3383 = vor.u32 %v3379, %v3382
      %v3384 = vsel %vm584, %v3375, %v3383
      %v3386 = vshrl.u32 %v3212, 16
      %v3388 = vrot.slane %v3386, 6
      %v3389 = vshll.u32 %v3212, 16
      %v3391 = vrot.slane %v3389, 7
      %v3392 = vor.u32 %v3388, %v3391
      %v3393 = vrot.slane %v3392, 4
      %v3395 = vshrl.u32 %v3213, 16
      %v3397 = vrot.slane %v3395, 6
      %v3398 = vshll.u32 %v3213, 16
      %v3400 = vrot.slane %v3398, 7
      %v3401 = vor.u32 %v3397, %v3400
      %v3402 = vsel %vm584, %v3393, %v3401
      %v3403 = vrot.slane %v3401, 4
      %v3405 = vshrl.u32 %v3214, 16
      %v3407 = vrot.slane %v3405, 6
      %v3408 = vshll.u32 %v3214, 16
      %v3410 = vrot.slane %v3408, 7
      %v3411 = vor.u32 %v3407, %v3410
      %v3412 = vsel %vm584, %v3403, %v3411
      %v3414 = vshrl.u32 %v3215, 16
      %v3416 = vrot.slane %v3414, 6
      %v3417 = vshll.u32 %v3215, 16
      %v3419 = vrot.slane %v3417, 7
      %v3420 = vor.u32 %v3416, %v3419
      %v3421 = vrot.slane %v3420, 4
      %v3423 = vshrl.u32 %v3216, 16
      %v3425 = vrot.slane %v3423, 6
      %v3426 = vshll.u32 %v3216, 16
      %v3428 = vrot.slane %v3426, 7
      %v3429 = vor.u32 %v3425, %v3428
      %v3430 = vsel %vm584, %v3421, %v3429
      %v3431 = vrot.slane %v3429, 4
      %v3433 = vshrl.u32 %v3217, 16
      %v3435 = vrot.slane %v3433, 6
      %v3436 = vshll.u32 %v3217, 16
      %v3438 = vrot.slane %v3436, 7
      %v3439 = vor.u32 %v3435, %v3438
      %v3440 = vsel %vm584, %v3431, %v3439
      %v3442 = vshrl.u32 %v3218, 16
      %v3444 = vrot.slane %v3442, 6
      %v3445 = vshll.u32 %v3218, 16
      %v3447 = vrot.slane %v3445, 7
      %v3448 = vor.u32 %v3444, %v3447
      %v3449 = vrot.slane %v3448, 4
      %v3451 = vshrl.u32 %v3219, 16
      %v3453 = vrot.slane %v3451, 6
      %v3454 = vshll.u32 %v3219, 16
      %v3456 = vrot.slane %v3454, 7
      %v3457 = vor.u32 %v3453, %v3456
      %v3458 = vsel %vm584, %v3449, %v3457
      %v3459 = vrot.slane %v3457, 4
      %v3461 = vshrl.u32 %v3220, 16
      %v3463 = vrot.slane %v3461, 6
      %v3464 = vshll.u32 %v3220, 16
      %v3466 = vrot.slane %v3464, 7
      %v3467 = vor.u32 %v3463, %v3466
      %v3468 = vsel %vm584, %v3459, %v3467
      %v3470 = vshrl.u32 %v3221, 16
      %v3472 = vrot.slane %v3470, 6
      %v3473 = vshll.u32 %v3221, 16
      %v3475 = vrot.slane %v3473, 7
      %v3476 = vor.u32 %v3472, %v3475
      %v3477 = vrot.slane %v3476, 4
      %v3479 = vshrl.u32 %v3222, 16
      %v3481 = vrot.slane %v3479, 6
      %v3482 = vshll.u32 %v3222, 16
      %v3484 = vrot.slane %v3482, 7
      %v3485 = vor.u32 %v3481, %v3484
      %v3486 = vsel %vm584, %v3477, %v3485
      %v3487 = vrot.slane %v3485, 4
      %v3489 = vshrl.u32 %v3223, 16
      %v3491 = vrot.slane %v3489, 6
      %v3492 = vshll.u32 %v3223, 16
      %v3494 = vrot.slane %v3492, 7
      %v3495 = vor.u32 %v3491, %v3494
      %v3496 = vsel %vm584, %v3487, %v3495
      %v3498 = vshrl.u32 %v3224, 16
      %v3500 = vrot.slane %v3498, 6
      %v3501 = vshll.u32 %v3224, 16
      %v3503 = vrot.slane %v3501, 7
      %v3504 = vor.u32 %v3500, %v3503
      %v3505 = vrot.slane %v3504, 4
      %v3507 = vshrl.u32 %v3225, 16
      %v3509 = vrot.slane %v3507, 6
      %v3510 = vshll.u32 %v3225, 16
      %v3512 = vrot.slane %v3510, 7
      %v3513 = vor.u32 %v3509, %v3512
      %v3514 = vsel %vm584, %v3505, %v3513
      %v3515 = vrot.slane %v3513, 4
      %v3517 = vshrl.u32 %v3226, 16
      %v3519 = vrot.slane %v3517, 6
      %v3520 = vshll.u32 %v3226, 16
      %v3522 = vrot.slane %v3520, 7
      %v3523 = vor.u32 %v3519, %v3522
      %v3524 = vsel %vm584, %v3515, %v3523
      %v3526 = vshrl.u32 %v3227, 16
      %v3528 = vrot.slane %v3526, 6
      %v3529 = vshll.u32 %v3227, 16
      %v3531 = vrot.slane %v3529, 7
      %v3532 = vor.u32 %v3528, %v3531
      %v3533 = vrot.slane %v3532, 4
      %v3535 = vshrl.u32 %v3228, 16
      %v3537 = vrot.slane %v3535, 6
      %v3538 = vshll.u32 %v3228, 16
      %v3540 = vrot.slane %v3538, 7
      %v3541 = vor.u32 %v3537, %v3540
      %v3542 = vsel %vm584, %v3533, %v3541
      %v3543 = vrot.slane %v3541, 4
      %v3545 = vshrl.u32 %v3229, 16
      %v3547 = vrot.slane %v3545, 6
      %v3548 = vshll.u32 %v3229, 16
      %v3550 = vrot.slane %v3548, 7
      %v3551 = vor.u32 %v3547, %v3550
      %v3552 = vsel %vm584, %v3543, %v3551
      %v3554 = vshrl.u32 %v3230, 16
      %v3556 = vrot.slane %v3554, 6
      %v3557 = vshll.u32 %v3230, 16
      %v3559 = vrot.slane %v3557, 7
      %v3560 = vor.u32 %v3556, %v3559
      %v3561 = vrot.slane %v3560, 4
      %v3563 = vshrl.u32 %v3231, 16
      %v3565 = vrot.slane %v3563, 6
      %v3566 = vshll.u32 %v3231, 16
      %v3568 = vrot.slane %v3566, 7
      %v3569 = vor.u32 %v3565, %v3568
      %v3570 = vsel %vm584, %v3561, %v3569
      %v3571 = vrot.slane %v3569, 4
      %v3573 = vshrl.u32 %v3232, 16
      %v3575 = vrot.slane %v3573, 6
      %v3576 = vshll.u32 %v3232, 16
      %v3578 = vrot.slane %v3576, 7
      %v3579 = vor.u32 %v3575, %v3578
      %v3580 = vsel %vm584, %v3571, %v3579
      %v3582 = vshrl.u32 %v3233, 16
      %v3584 = vrot.slane %v3582, 6
      %v3585 = vshll.u32 %v3233, 16
      %v3587 = vrot.slane %v3585, 7
      %v3588 = vor.u32 %v3584, %v3587
      %v3589 = vrot.slane %v3588, 4
      %v3591 = vshrl.u32 %v3234, 16
      %v3593 = vrot.slane %v3591, 6
      %v3594 = vshll.u32 %v3234, 16
      %v3596 = vrot.slane %v3594, 7
      %v3597 = vor.u32 %v3593, %v3596
      %v3598 = vsel %vm584, %v3589, %v3597
      %v3599 = vrot.slane %v3597, 4
      %v3601 = vshrl.u32 %v3235, 16
      %v3603 = vrot.slane %v3601, 6
      %v3604 = vshll.u32 %v3235, 16
      %v3606 = vrot.slane %v3604, 7
      %v3607 = vor.u32 %v3603, %v3606
      %v3608 = vsel %vm584, %v3599, %v3607
      %v3610 = vshrl.u32 %v3236, 16
      %v3612 = vrot.slane %v3610, 6
      %v3613 = vshll.u32 %v3236, 16
      %v3615 = vrot.slane %v3613, 7
      %v3616 = vor.u32 %v3612, %v3615
      %v3617 = vrot.slane %v3616, 4
      %v3619 = vshrl.u32 %v3237, 16
      %v3621 = vrot.slane %v3619, 6
      %v3622 = vshll.u32 %v3237, 16
      %v3624 = vrot.slane %v3622, 7
      %v3625 = vor.u32 %v3621, %v3624
      %v3626 = vsel %vm584, %v3617, %v3625
      %v3627 = vrot.slane %v3625, 4
      %v3629 = vshrl.u32 %v3238, 16
      %v3631 = vrot.slane %v3629, 6
      %v3632 = vshll.u32 %v3238, 16
      %v3634 = vrot.slane %v3632, 7
      %v3635 = vor.u32 %v3631, %v3634
      %v3636 = vsel %vm584, %v3627, %v3635
      %v3638 = vshrl.u32 %v3239, 16
      %v3640 = vrot.slane %v3638, 6
      %v3641 = vshll.u32 %v3239, 16
      %v3643 = vrot.slane %v3641, 7
      %v3644 = vor.u32 %v3640, %v3643
      %v3645 = vrot.slane %v3644, 4
      %v3647 = vshrl.u32 %v3240, 16
      %v3649 = vrot.slane %v3647, 6
      %v3650 = vshll.u32 %v3240, 16
      %v3652 = vrot.slane %v3650, 7
      %v3653 = vor.u32 %v3649, %v3652
      %v3654 = vsel %vm584, %v3645, %v3653
      %v3655 = vrot.slane %v3653, 4
      %v3657 = vshrl.u32 %v3241, 16
      %v3659 = vrot.slane %v3657, 6
      %v3660 = vshll.u32 %v3241, 16
      %v3662 = vrot.slane %v3660, 7
      %v3663 = vor.u32 %v3659, %v3662
      %v3664 = vsel %vm584, %v3655, %v3663
      %v3666 = vshrl.u32 %v3242, 16
      %v3668 = vrot.slane %v3666, 6
      %v3669 = vshll.u32 %v3242, 16
      %v3671 = vrot.slane %v3669, 7
      %v3672 = vor.u32 %v3668, %v3671
      %v3673 = vrot.slane %v3672, 4
      %v3675 = vshrl.u32 %v3243, 16
      %v3677 = vrot.slane %v3675, 6
      %v3678 = vshll.u32 %v3243, 16
      %v3680 = vrot.slane %v3678, 7
      %v3681 = vor.u32 %v3677, %v3680
      %v3682 = vsel %vm584, %v3673, %v3681
      %v3683 = vrot.slane %v3681, 4
      %v3685 = vshrl.u32 %v3244, 16
      %v3687 = vrot.slane %v3685, 6
      %v3688 = vshll.u32 %v3244, 16
      %v3690 = vrot.slane %v3688, 7
      %v3691 = vor.u32 %v3687, %v3690
      %v3692 = vsel %vm584, %v3683, %v3691
      %v3693 = vunpack.c.l.b16 %v3262
      %v3694 = vunpack.c.l.b16 %v3272
      %v3695 = vunpack.c.l.b16 %v3290
      %v3696 = vunpack.c.l.b16 %v3300
      %v3697 = vunpack.c.l.b16 %v3318
      %v3698 = vunpack.c.l.b16 %v3328
      %v3699 = vunpack.c.l.b16 %v3346
      %v3700 = vunpack.c.l.b16 %v3356
      %v3701 = vunpack.c.l.b16 %v3374
      %v3702 = vunpack.c.l.b16 %v3384
      %v3703 = vunpack.c.l.b16 %v3402
      %v3704 = vunpack.c.l.b16 %v3412
      %v3705 = vunpack.c.l.b16 %v3430
      %v3706 = vunpack.c.l.b16 %v3440
      %v3707 = vunpack.c.l.b16 %v3458
      %v3708 = vunpack.c.l.b16 %v3468
      %v3709 = vunpack.c.l.b16 %v3486
      %v3710 = vunpack.c.l.b16 %v3496
      %v3711 = vunpack.c.l.b16 %v3514
      %v3712 = vunpack.c.l.b16 %v3524
      %v3713 = vunpack.c.l.b16 %v3542
      %v3714 = vunpack.c.l.b16 %v3552
      %v3715 = vunpack.c.l.b16 %v3570
      %v3716 = vunpack.c.l.b16 %v3580
      %v3717 = vunpack.c.l.b16 %v3598
      %v3718 = vunpack.c.l.b16 %v3608
      %v3719 = vunpack.c.l.b16 %v3626
      %v3720 = vunpack.c.l.b16 %v3636
      %v3721 = vunpack.c.l.b16 %v3654
      %v3722 = vunpack.c.l.b16 %v3664
      %v3723 = vunpack.c.l.b16 %v3682
      %v3724 = vunpack.c.l.b16 %v3692
      %v3725 = vpack.c.b16 %v3694, %v3693
      %v3726 = vpack.c.b16 %v3696, %v3695
      %v3727 = vpack.c.b16 %v3698, %v3697
      %v3728 = vpack.c.b16 %v3700, %v3699
      %v3729 = vpack.c.b16 %v3702, %v3701
      %v3730 = vpack.c.b16 %v3704, %v3703
      %v3731 = vpack.c.b16 %v3706, %v3705
      %v3732 = vpack.c.b16 %v3708, %v3707
      %v3733 = vpack.c.b16 %v3710, %v3709
      %v3734 = vpack.c.b16 %v3712, %v3711
      %v3735 = vpack.c.b16 %v3714, %v3713
      %v3736 = vpack.c.b16 %v3716, %v3715
      %v3737 = vpack.c.b16 %v3718, %v3717
      %v3738 = vpack.c.b16 %v3720, %v3719
      %v3739 = vpack.c.b16 %v3722, %v3721
      %v3740 = vpack.c.b16 %v3724, %v3723
      %3757 = vxpose.xlu0.c.b16.start [1/8] %v3725, 128
      %3758 = vxpose.xlu0.c.b16.cont [2/8] %v3726, 128
      %3759 = vxpose.xlu0.c.b16.cont [3/8] %v3727, 128
      %3760 = vxpose.xlu0.c.b16.cont [4/8] %v3728, 128
      %3761 = vxpose.xlu0.c.b16.cont [5/8] %v3729, 128
      %3762 = vxpose.xlu0.c.b16.cont [6/8] %v3730, 128
      %3763 = vxpose.xlu0.c.b16.cont [7/8] %v3731, 128
      %3764 = vxpose.xlu0.c.b16.end [8/8] %v3732, 128
      %v3765 = vpop.trf.xlu0
      %v3766 = vpop.trf.xlu0
      %v3767 = vpop.trf.xlu0
      %v3768 = vpop.trf.xlu0
      %v3769 = vpop.trf.xlu0
      %v3770 = vpop.trf.xlu0
      %v3771 = vpop.trf.xlu0
      %v3772 = vpop.trf.xlu0
      %3773 = vxpose.xlu0.c.b16.start [1/8] %v3733, 128
      %3774 = vxpose.xlu0.c.b16.cont [2/8] %v3734, 128
      %3775 = vxpose.xlu0.c.b16.cont [3/8] %v3735, 128
      %3776 = vxpose.xlu0.c.b16.cont [4/8] %v3736, 128
      %3777 = vxpose.xlu0.c.b16.cont [5/8] %v3737, 128
      %3778 = vxpose.xlu0.c.b16.cont [6/8] %v3738, 128
      %3779 = vxpose.xlu0.c.b16.cont [7/8] %v3739, 128
      %3780 = vxpose.xlu0.c.b16.end [8/8] %v3740, 128
      %v3781 = vpop.trf.xlu0
      %v3782 = vpop.trf.xlu0
      %v3783 = vpop.trf.xlu0
      %v3784 = vpop.trf.xlu0
      %v3785 = vpop.trf.xlu0
      %v3786 = vpop.trf.xlu0
      %v3787 = vpop.trf.xlu0
      %v3788 = vpop.trf.xlu0
      %v3789 = vld [vmem:[%s3196 + $0x8] sm:$0xf]
      %v3790 = vld [vmem:[%s3196 + $0x18] sm:$0xf]
      %v3791 = vld [vmem:[%s3196 + $0x28] sm:$0xf]
      %v3792 = vld [vmem:[%s3196 + $0x38] sm:$0xf]
      %v3793 = vld [vmem:[%s3196 + $0x48] sm:$0xf]
      %v3794 = vld [vmem:[%s3196 + $0x58] sm:$0xf]
      %v3795 = vld [vmem:[%s3196 + $0x68] sm:$0xf]
      %v3796 = vld [vmem:[%s3196 + $0x78] sm:$0xf]
      %v3797 = vld [vmem:[%s3196 + $0x88] sm:$0xf]
      %v3798 = vld [vmem:[%s3196 + $0x98] sm:$0xf]
      %v3799 = vld [vmem:[%s3196 + $0xa8] sm:$0xf]
      %v3800 = vld [vmem:[%s3196 + $0xb8] sm:$0xf]
      %v3801 = vld [vmem:[%s3196 + $0xc8] sm:$0xf]
      %v3802 = vld [vmem:[%s3196 + $0xd8] sm:$0xf]
      %v3803 = vld [vmem:[%s3196 + $0xe8] sm:$0xf]
      %v3804 = vld [vmem:[%s3196 + $0xf8] sm:$0xf]
      %v3837 = vunpack.c.l.b16 %v3198
      %v3838 = vunpack.c.l.b16 %v3789
      %v3839 = vunpack.c.l.b16 %v3201
      %v3840 = vunpack.c.l.b16 %v3790
      %v3841 = vunpack.c.l.b16 %v3204
      %v3842 = vunpack.c.l.b16 %v3791
      %v3843 = vunpack.c.l.b16 %v3207
      %v3844 = vunpack.c.l.b16 %v3792
      %v3845 = vunpack.c.l.b16 %v3210
      %v3846 = vunpack.c.l.b16 %v3793
      %v3847 = vunpack.c.l.b16 %v3213
      %v3848 = vunpack.c.l.b16 %v3794
      %v3849 = vunpack.c.l.b16 %v3216
      %v3850 = vunpack.c.l.b16 %v3795
      %v3851 = vunpack.c.l.b16 %v3219
      %v3852 = vunpack.c.l.b16 %v3796
      %v3853 = vunpack.c.l.b16 %v3222
      %v3854 = vunpack.c.l.b16 %v3797
      %v3855 = vunpack.c.l.b16 %v3225
      %v3856 = vunpack.c.l.b16 %v3798
      %v3857 = vunpack.c.l.b16 %v3228
      %v3858 = vunpack.c.l.b16 %v3799
      %v3859 = vunpack.c.l.b16 %v3231
      %v3860 = vunpack.c.l.b16 %v3800
      %v3861 = vunpack.c.l.b16 %v3234
      %v3862 = vunpack.c.l.b16 %v3801
      %v3863 = vunpack.c.l.b16 %v3237
      %v3864 = vunpack.c.l.b16 %v3802
      %v3865 = vunpack.c.l.b16 %v3240
      %v3866 = vunpack.c.l.b16 %v3803
      %v3867 = vunpack.c.l.b16 %v3243
      %v3868 = vunpack.c.l.b16 %v3804
      %v3869 = vpack.c.b16 %v3838, %v3837
      %v3870 = vpack.c.b16 %v3840, %v3839
      %v3871 = vpack.c.b16 %v3842, %v3841
      %v3872 = vpack.c.b16 %v3844, %v3843
      %v3873 = vpack.c.b16 %v3846, %v3845
      %v3874 = vpack.c.b16 %v3848, %v3847
      %v3875 = vpack.c.b16 %v3850, %v3849
      %v3876 = vpack.c.b16 %v3852, %v3851
      %v3877 = vpack.c.b16 %v3854, %v3853
      %v3878 = vpack.c.b16 %v3856, %v3855
      %v3879 = vpack.c.b16 %v3858, %v3857
      %v3880 = vpack.c.b16 %v3860, %v3859
      %v3881 = vpack.c.b16 %v3862, %v3861
      %v3882 = vpack.c.b16 %v3864, %v3863
      %v3883 = vpack.c.b16 %v3866, %v3865
      %v3884 = vpack.c.b16 %v3868, %v3867
      %3901 = vxpose.xlu0.c.b16.start [1/8] %v3869, 128
      %3902 = vxpose.xlu0.c.b16.cont [2/8] %v3870, 128
      %3903 = vxpose.xlu0.c.b16.cont [3/8] %v3871, 128
      %3904 = vxpose.xlu0.c.b16.cont [4/8] %v3872, 128
      %3905 = vxpose.xlu0.c.b16.cont [5/8] %v3873, 128
      %3906 = vxpose.xlu0.c.b16.cont [6/8] %v3874, 128
      %3907 = vxpose.xlu0.c.b16.cont [7/8] %v3875, 128
      %3908 = vxpose.xlu0.c.b16.end [8/8] %v3876, 128
      %v3909 = vpop.trf.xlu0
      %v3910 = vpop.trf.xlu0
      %v3911 = vpop.trf.xlu0
      %v3912 = vpop.trf.xlu0
      %v3913 = vpop.trf.xlu0
      %v3914 = vpop.trf.xlu0
      %v3915 = vpop.trf.xlu0
      %v3916 = vpop.trf.xlu0
      %3917 = vxpose.xlu0.c.b16.start [1/8] %v3877, 128
      %3918 = vxpose.xlu0.c.b16.cont [2/8] %v3878, 128
      %3919 = vxpose.xlu0.c.b16.cont [3/8] %v3879, 128
      %3920 = vxpose.xlu0.c.b16.cont [4/8] %v3880, 128
      %3921 = vxpose.xlu0.c.b16.cont [5/8] %v3881, 128
      %3922 = vxpose.xlu0.c.b16.cont [6/8] %v3882, 128
      %3923 = vxpose.xlu0.c.b16.cont [7/8] %v3883, 128
      %3924 = vxpose.xlu0.c.b16.end [8/8] %v3884, 128
      %v3925 = vpop.trf.xlu0
      %v3926 = vpop.trf.xlu0
      %v3927 = vpop.trf.xlu0
      %v3928 = vpop.trf.xlu0
      %v3929 = vpop.trf.xlu0
      %v3930 = vpop.trf.xlu0
      %v3931 = vpop.trf.xlu0
      %v3932 = vpop.trf.xlu0
      %v3933 = vld [vmem:[%s3196 + $0x4] sm:$0xe]
      %v3934 = vld [vmem:[%s3196 + $0x8] sm:$0xf]
      %v3935 = vld [vmem:[%s3196 + $0xc] sm:$0x3]
      %v3936 = vld [vmem:[%s3196 + $0x14] sm:$0xe]
      %v3937 = vld [vmem:[%s3196 + $0x18] sm:$0xf]
      %v3938 = vld [vmem:[%s3196 + $0x1c] sm:$0x3]
      %v3939 = vld [vmem:[%s3196 + $0x24] sm:$0xe]
      %v3940 = vld [vmem:[%s3196 + $0x28] sm:$0xf]
      %v3941 = vld [vmem:[%s3196 + $0x2c] sm:$0x3]
      %v3942 = vld [vmem:[%s3196 + $0x34] sm:$0xe]
      %v3943 = vld [vmem:[%s3196 + $0x38] sm:$0xf]
      %v3944 = vld [vmem:[%s3196 + $0x3c] sm:$0x3]
      %v3945 = vld [vmem:[%s3196 + $0x44] sm:$0xe]
      %v3946 = vld [vmem:[%s3196 + $0x48] sm:$0xf]
      %v3947 = vld [vmem:[%s3196 + $0x4c] sm:$0x3]
      %v3948 = vld [vmem:[%s3196 + $0x54] sm:$0xe]
      %v3949 = vld [vmem:[%s3196 + $0x58] sm:$0xf]
      %v3950 = vld [vmem:[%s3196 + $0x5c] sm:$0x3]
      %v3951 = vld [vmem:[%s3196 + $0x64] sm:$0xe]
      %v3952 = vld [vmem:[%s3196 + $0x68] sm:$0xf]
      %v3953 = vld [vmem:[%s3196 + $0x6c] sm:$0x3]
      %v3954 = vld [vmem:[%s3196 + $0x74] sm:$0xe]
      %v3955 = vld [vmem:[%s3196 + $0x78] sm:$0xf]
      %v3956 = vld [vmem:[%s3196 + $0x7c] sm:$0x3]
      %v3957 = vld [vmem:[%s3196 + $0x84] sm:$0xe]
      %v3958 = vld [vmem:[%s3196 + $0x88] sm:$0xf]
      %v3959 = vld [vmem:[%s3196 + $0x8c] sm:$0x3]
      %v3960 = vld [vmem:[%s3196 + $0x94] sm:$0xe]
      %v3961 = vld [vmem:[%s3196 + $0x98] sm:$0xf]
      %v3962 = vld [vmem:[%s3196 + $0x9c] sm:$0x3]
      %v3963 = vld [vmem:[%s3196 + $0xa4] sm:$0xe]
      %v3964 = vld [vmem:[%s3196 + $0xa8] sm:$0xf]
      %v3965 = vld [vmem:[%s3196 + $0xac] sm:$0x3]
      %v3966 = vld [vmem:[%s3196 + $0xb4] sm:$0xe]
      %v3967 = vld [vmem:[%s3196 + $0xb8] sm:$0xf]
      %v3968 = vld [vmem:[%s3196 + $0xbc] sm:$0x3]
      %v3969 = vld [vmem:[%s3196 + $0xc4] sm:$0xe]
      %v3970 = vld [vmem:[%s3196 + $0xc8] sm:$0xf]
      %v3971 = vld [vmem:[%s3196 + $0xcc] sm:$0x3]
      %v3972 = vld [vmem:[%s3196 + $0xd4] sm:$0xe]
      %v3973 = vld [vmem:[%s3196 + $0xd8] sm:$0xf]
      %v3974 = vld [vmem:[%s3196 + $0xdc] sm:$0x3]
      %v3975 = vld [vmem:[%s3196 + $0xe4] sm:$0xe]
      %v3976 = vld [vmem:[%s3196 + $0xe8] sm:$0xf]
      %v3977 = vld [vmem:[%s3196 + $0xec] sm:$0x3]
      %v3978 = vld [vmem:[%s3196 + $0xf4] sm:$0xe]
      %v3979 = vld [vmem:[%s3196 + $0xf8] sm:$0xf]
      %v3980 = vld [vmem:[%s3196 + $0xfc] sm:$0x3]
      %v3982 = vshrl.u32 %v3933, 16
      %v3984 = vrot.slane %v3982, 5
      %v3985 = vshll.u32 %v3933, 16
      %v3987 = vrot.slane %v3985, 6
      %v3988 = vor.u32 %v3984, %v3987
      %v3989 = vrot.slane %v3988, 4
      %v3991 = vshrl.u32 %v3934, 16
      %v3993 = vrot.slane %v3991, 5
      %v3994 = vshll.u32 %v3934, 16
      %v3996 = vrot.slane %v3994, 6
      %v3997 = vor.u32 %v3993, %v3996
      %v3998 = vsel %vm1323, %v3989, %v3997
      %v3999 = vrot.slane %v3997, 4
      %v4001 = vshrl.u32 %v3935, 16
      %v4003 = vrot.slane %v4001, 5
      %v4004 = vshll.u32 %v3935, 16
      %v4006 = vrot.slane %v4004, 6
      %v4007 = vor.u32 %v4003, %v4006
      %v4008 = vsel %vm1323, %v3999, %v4007
      %v4010 = vshrl.u32 %v3936, 16
      %v4012 = vrot.slane %v4010, 5
      %v4013 = vshll.u32 %v3936, 16
      %v4015 = vrot.slane %v4013, 6
      %v4016 = vor.u32 %v4012, %v4015
      %v4017 = vrot.slane %v4016, 4
      %v4019 = vshrl.u32 %v3937, 16
      %v4021 = vrot.slane %v4019, 5
      %v4022 = vshll.u32 %v3937, 16
      %v4024 = vrot.slane %v4022, 6
      %v4025 = vor.u32 %v4021, %v4024
      %v4026 = vsel %vm1323, %v4017, %v4025
      %v4027 = vrot.slane %v4025, 4
      %v4029 = vshrl.u32 %v3938, 16
      %v4031 = vrot.slane %v4029, 5
      %v4032 = vshll.u32 %v3938, 16
      %v4034 = vrot.slane %v4032, 6
      %v4035 = vor.u32 %v4031, %v4034
      %v4036 = vsel %vm1323, %v4027, %v4035
      %v4038 = vshrl.u32 %v3939, 16
      %v4040 = vrot.slane %v4038, 5
      %v4041 = vshll.u32 %v3939, 16
      %v4043 = vrot.slane %v4041, 6
      %v4044 = vor.u32 %v4040, %v4043
      %v4045 = vrot.slane %v4044, 4
      %v4047 = vshrl.u32 %v3940, 16
      %v4049 = vrot.slane %v4047, 5
      %v4050 = vshll.u32 %v3940, 16
      %v4052 = vrot.slane %v4050, 6
      %v4053 = vor.u32 %v4049, %v4052
      %v4054 = vsel %vm1323, %v4045, %v4053
      %v4055 = vrot.slane %v4053, 4
      %v4057 = vshrl.u32 %v3941, 16
      %v4059 = vrot.slane %v4057, 5
      %v4060 = vshll.u32 %v3941, 16
      %v4062 = vrot.slane %v4060, 6
      %v4063 = vor.u32 %v4059, %v4062
      %v4064 = vsel %vm1323, %v4055, %v4063
      %v4066 = vshrl.u32 %v3942, 16
      %v4068 = vrot.slane %v4066, 5
      %v4069 = vshll.u32 %v3942, 16
      %v4071 = vrot.slane %v4069, 6
      %v4072 = vor.u32 %v4068, %v4071
      %v4073 = vrot.slane %v4072, 4
      %v4075 = vshrl.u32 %v3943, 16
      %v4077 = vrot.slane %v4075, 5
      %v4078 = vshll.u32 %v3943, 16
      %v4080 = vrot.slane %v4078, 6
      %v4081 = vor.u32 %v4077, %v4080
      %v4082 = vsel %vm1323, %v4073, %v4081
      %v4083 = vrot.slane %v4081, 4
      %v4085 = vshrl.u32 %v3944, 16
      %v4087 = vrot.slane %v4085, 5
      %v4088 = vshll.u32 %v3944, 16
      %v4090 = vrot.slane %v4088, 6
      %v4091 = vor.u32 %v4087, %v4090
      %v4092 = vsel %vm1323, %v4083, %v4091
      %v4094 = vshrl.u32 %v3945, 16
      %v4096 = vrot.slane %v4094, 5
      %v4097 = vshll.u32 %v3945, 16
      %v4099 = vrot.slane %v4097, 6
      %v4100 = vor.u32 %v4096, %v4099
      %v4101 = vrot.slane %v4100, 4
      %v4103 = vshrl.u32 %v3946, 16
      %v4105 = vrot.slane %v4103, 5
      %v4106 = vshll.u32 %v3946, 16
      %v4108 = vrot.slane %v4106, 6
      %v4109 = vor.u32 %v4105, %v4108
      %v4110 = vsel %vm1323, %v4101, %v4109
      %v4111 = vrot.slane %v4109, 4
      %v4113 = vshrl.u32 %v3947, 16
      %v4115 = vrot.slane %v4113, 5
      %v4116 = vshll.u32 %v3947, 16
      %v4118 = vrot.slane %v4116, 6
      %v4119 = vor.u32 %v4115, %v4118
      %v4120 = vsel %vm1323, %v4111, %v4119
      %v4122 = vshrl.u32 %v3948, 16
      %v4124 = vrot.slane %v4122, 5
      %v4125 = vshll.u32 %v3948, 16
      %v4127 = vrot.slane %v4125, 6
      %v4128 = vor.u32 %v4124, %v4127
      %v4129 = vrot.slane %v4128, 4
      %v4131 = vshrl.u32 %v3949, 16
      %v4133 = vrot.slane %v4131, 5
      %v4134 = vshll.u32 %v3949, 16
      %v4136 = vrot.slane %v4134, 6
      %v4137 = vor.u32 %v4133, %v4136
      %v4138 = vsel %vm1323, %v4129, %v4137
      %v4139 = vrot.slane %v4137, 4
      %v4141 = vshrl.u32 %v3950, 16
      %v4143 = vrot.slane %v4141, 5
      %v4144 = vshll.u32 %v3950, 16
      %v4146 = vrot.slane %v4144, 6
      %v4147 = vor.u32 %v4143, %v4146
      %v4148 = vsel %vm1323, %v4139, %v4147
      %v4150 = vshrl.u32 %v3951, 16
      %v4152 = vrot.slane %v4150, 5
      %v4153 = vshll.u32 %v3951, 16
      %v4155 = vrot.slane %v4153, 6
      %v4156 = vor.u32 %v4152, %v4155
      %v4157 = vrot.slane %v4156, 4
      %v4159 = vshrl.u32 %v3952, 16
      %v4161 = vrot.slane %v4159, 5
      %v4162 = vshll.u32 %v3952, 16
      %v4164 = vrot.slane %v4162, 6
      %v4165 = vor.u32 %v4161, %v4164
      %v4166 = vsel %vm1323, %v4157, %v4165
      %v4167 = vrot.slane %v4165, 4
      %v4169 = vshrl.u32 %v3953, 16
      %v4171 = vrot.slane %v4169, 5
      %v4172 = vshll.u32 %v3953, 16
      %v4174 = vrot.slane %v4172, 6
      %v4175 = vor.u32 %v4171, %v4174
      %v4176 = vsel %vm1323, %v4167, %v4175
      %v4178 = vshrl.u32 %v3954, 16
      %v4180 = vrot.slane %v4178, 5
      %v4181 = vshll.u32 %v3954, 16
      %v4183 = vrot.slane %v4181, 6
      %v4184 = vor.u32 %v4180, %v4183
      %v4185 = vrot.slane %v4184, 4
      %v4187 = vshrl.u32 %v3955, 16
      %v4189 = vrot.slane %v4187, 5
      %v4190 = vshll.u32 %v3955, 16
      %v4192 = vrot.slane %v4190, 6
      %v4193 = vor.u32 %v4189, %v4192
      %v4194 = vsel %vm1323, %v4185, %v4193
      %v4195 = vrot.slane %v4193, 4
      %v4197 = vshrl.u32 %v3956, 16
      %v4199 = vrot.slane %v4197, 5
      %v4200 = vshll.u32 %v3956, 16
      %v4202 = vrot.slane %v4200, 6
      %v4203 = vor.u32 %v4199, %v4202
      %v4204 = vsel %vm1323, %v4195, %v4203
      %v4206 = vshrl.u32 %v3957, 16
      %v4208 = vrot.slane %v4206, 5
      %v4209 = vshll.u32 %v3957, 16
      %v4211 = vrot.slane %v4209, 6
      %v4212 = vor.u32 %v4208, %v4211
      %v4213 = vrot.slane %v4212, 4
      %v4215 = vshrl.u32 %v3958, 16
      %v4217 = vrot.slane %v4215, 5
      %v4218 = vshll.u32 %v3958, 16
      %v4220 = vrot.slane %v4218, 6
      %v4221 = vor.u32 %v4217, %v4220
      %v4222 = vsel %vm1323, %v4213, %v4221
      %v4223 = vrot.slane %v4221, 4
      %v4225 = vshrl.u32 %v3959, 16
      %v4227 = vrot.slane %v4225, 5
      %v4228 = vshll.u32 %v3959, 16
      %v4230 = vrot.slane %v4228, 6
      %v4231 = vor.u32 %v4227, %v4230
      %v4232 = vsel %vm1323, %v4223, %v4231
      %v4234 = vshrl.u32 %v3960, 16
      %v4236 = vrot.slane %v4234, 5
      %v4237 = vshll.u32 %v3960, 16
      %v4239 = vrot.slane %v4237, 6
      %v4240 = vor.u32 %v4236, %v4239
      %v4241 = vrot.slane %v4240, 4
      %v4243 = vshrl.u32 %v3961, 16
      %v4245 = vrot.slane %v4243, 5
      %v4246 = vshll.u32 %v3961, 16
      %v4248 = vrot.slane %v4246, 6
      %v4249 = vor.u32 %v4245, %v4248
      %v4250 = vsel %vm1323, %v4241, %v4249
      %v4251 = vrot.slane %v4249, 4
      %v4253 = vshrl.u32 %v3962, 16
      %v4255 = vrot.slane %v4253, 5
      %v4256 = vshll.u32 %v3962, 16
      %v4258 = vrot.slane %v4256, 6
      %v4259 = vor.u32 %v4255, %v4258
      %v4260 = vsel %vm1323, %v4251, %v4259
      %v4262 = vshrl.u32 %v3963, 16
      %v4264 = vrot.slane %v4262, 5
      %v4265 = vshll.u32 %v3963, 16
      %v4267 = vrot.slane %v4265, 6
      %v4268 = vor.u32 %v4264, %v4267
      %v4269 = vrot.slane %v4268, 4
      %v4271 = vshrl.u32 %v3964, 16
      %v4273 = vrot.slane %v4271, 5
      %v4274 = vshll.u32 %v3964, 16
      %v4276 = vrot.slane %v4274, 6
      %v4277 = vor.u32 %v4273, %v4276
      %v4278 = vsel %vm1323, %v4269, %v4277
      %v4279 = vrot.slane %v4277, 4
      %v4281 = vshrl.u32 %v3965, 16
      %v4283 = vrot.slane %v4281, 5
      %v4284 = vshll.u32 %v3965, 16
      %v4286 = vrot.slane %v4284, 6
      %v4287 = vor.u32 %v4283, %v4286
      %v4288 = vsel %vm1323, %v4279, %v4287
      %v4290 = vshrl.u32 %v3966, 16
      %v4292 = vrot.slane %v4290, 5
      %v4293 = vshll.u32 %v3966, 16
      %v4295 = vrot.slane %v4293, 6
      %v4296 = vor.u32 %v4292, %v4295
      %v4297 = vrot.slane %v4296, 4
      %v4299 = vshrl.u32 %v3967, 16
      %v4301 = vrot.slane %v4299, 5
      %v4302 = vshll.u32 %v3967, 16
      %v4304 = vrot.slane %v4302, 6
      %v4305 = vor.u32 %v4301, %v4304
      %v4306 = vsel %vm1323, %v4297, %v4305
      %v4307 = vrot.slane %v4305, 4
      %v4309 = vshrl.u32 %v3968, 16
      %v4311 = vrot.slane %v4309, 5
      %v4312 = vshll.u32 %v3968, 16
      %v4314 = vrot.slane %v4312, 6
      %v4315 = vor.u32 %v4311, %v4314
      %v4316 = vsel %vm1323, %v4307, %v4315
      %v4318 = vshrl.u32 %v3969, 16
      %v4320 = vrot.slane %v4318, 5
      %v4321 = vshll.u32 %v3969, 16
      %v4323 = vrot.slane %v4321, 6
      %v4324 = vor.u32 %v4320, %v4323
      %v4325 = vrot.slane %v4324, 4
      %v4327 = vshrl.u32 %v3970, 16
      %v4329 = vrot.slane %v4327, 5
      %v4330 = vshll.u32 %v3970, 16
      %v4332 = vrot.slane %v4330, 6
      %v4333 = vor.u32 %v4329, %v4332
      %v4334 = vsel %vm1323, %v4325, %v4333
      %v4335 = vrot.slane %v4333, 4
      %v4337 = vshrl.u32 %v3971, 16
      %v4339 = vrot.slane %v4337, 5
      %v4340 = vshll.u32 %v3971, 16
      %v4342 = vrot.slane %v4340, 6
      %v4343 = vor.u32 %v4339, %v4342
      %v4344 = vsel %vm1323, %v4335, %v4343
      %v4346 = vshrl.u32 %v3972, 16
      %v4348 = vrot.slane %v4346, 5
      %v4349 = vshll.u32 %v3972, 16
      %v4351 = vrot.slane %v4349, 6
      %v4352 = vor.u32 %v4348, %v4351
      %v4353 = vrot.slane %v4352, 4
      %v4355 = vshrl.u32 %v3973, 16
      %v4357 = vrot.slane %v4355, 5
      %v4358 = vshll.u32 %v3973, 16
      %v4360 = vrot.slane %v4358, 6
      %v4361 = vor.u32 %v4357, %v4360
      %v4362 = vsel %vm1323, %v4353, %v4361
      %v4363 = vrot.slane %v4361, 4
      %v4365 = vshrl.u32 %v3974, 16
      %v4367 = vrot.slane %v4365, 5
      %v4368 = vshll.u32 %v3974, 16
      %v4370 = vrot.slane %v4368, 6
      %v4371 = vor.u32 %v4367, %v4370
      %v4372 = vsel %vm1323, %v4363, %v4371
      %v4374 = vshrl.u32 %v3975, 16
      %v4376 = vrot.slane %v4374, 5
      %v4377 = vshll.u32 %v3975, 16
      %v4379 = vrot.slane %v4377, 6
      %v4380 = vor.u32 %v4376, %v4379
      %v4381 = vrot.slane %v4380, 4
      %v4383 = vshrl.u32 %v3976, 16
      %v4385 = vrot.slane %v4383, 5
      %v4386 = vshll.u32 %v3976, 16
      %v4388 = vrot.slane %v4386, 6
      %v4389 = vor.u32 %v4385, %v4388
      %v4390 = vsel %vm1323, %v4381, %v4389
      %v4391 = vrot.slane %v4389, 4
      %v4393 = vshrl.u32 %v3977, 16
      %v4395 = vrot.slane %v4393, 5
      %v4396 = vshll.u32 %v3977, 16
      %v4398 = vrot.slane %v4396, 6
      %v4399 = vor.u32 %v4395, %v4398
      %v4400 = vsel %vm1323, %v4391, %v4399
      %v4402 = vshrl.u32 %v3978, 16
      %v4404 = vrot.slane %v4402, 5
      %v4405 = vshll.u32 %v3978, 16
      %v4407 = vrot.slane %v4405, 6
      %v4408 = vor.u32 %v4404, %v4407
      %v4409 = vrot.slane %v4408, 4
      %v4411 = vshrl.u32 %v3979, 16
      %v4413 = vrot.slane %v4411, 5
      %v4414 = vshll.u32 %v3979, 16
      %v4416 = vrot.slane %v4414, 6
      %v4417 = vor.u32 %v4413, %v4416
      %v4418 = vsel %vm1323, %v4409, %v4417
      %v4419 = vrot.slane %v4417, 4
      %v4421 = vshrl.u32 %v3980, 16
      %v4423 = vrot.slane %v4421, 5
      %v4424 = vshll.u32 %v3980, 16
      %v4426 = vrot.slane %v4424, 6
      %v4427 = vor.u32 %v4423, %v4426
      %v4428 = vsel %vm1323, %v4419, %v4427
      %v4429 = vunpack.c.l.b16 %v3998
      %v4430 = vunpack.c.l.b16 %v4008
      %v4431 = vunpack.c.l.b16 %v4026
      %v4432 = vunpack.c.l.b16 %v4036
      %v4433 = vunpack.c.l.b16 %v4054
      %v4434 = vunpack.c.l.b16 %v4064
      %v4435 = vunpack.c.l.b16 %v4082
      %v4436 = vunpack.c.l.b16 %v4092
      %v4437 = vunpack.c.l.b16 %v4110
      %v4438 = vunpack.c.l.b16 %v4120
      %v4439 = vunpack.c.l.b16 %v4138
      %v4440 = vunpack.c.l.b16 %v4148
      %v4441 = vunpack.c.l.b16 %v4166
      %v4442 = vunpack.c.l.b16 %v4176
      %v4443 = vunpack.c.l.b16 %v4194
      %v4444 = vunpack.c.l.b16 %v4204
      %v4445 = vunpack.c.l.b16 %v4222
      %v4446 = vunpack.c.l.b16 %v4232
      %v4447 = vunpack.c.l.b16 %v4250
      %v4448 = vunpack.c.l.b16 %v4260
      %v4449 = vunpack.c.l.b16 %v4278
      %v4450 = vunpack.c.l.b16 %v4288
      %v4451 = vunpack.c.l.b16 %v4306
      %v4452 = vunpack.c.l.b16 %v4316
      %v4453 = vunpack.c.l.b16 %v4334
      %v4454 = vunpack.c.l.b16 %v4344
      %v4455 = vunpack.c.l.b16 %v4362
      %v4456 = vunpack.c.l.b16 %v4372
      %v4457 = vunpack.c.l.b16 %v4390
      %v4458 = vunpack.c.l.b16 %v4400
      %v4459 = vunpack.c.l.b16 %v4418
      %v4460 = vunpack.c.l.b16 %v4428
      %v4461 = vpack.c.b16 %v4430, %v4429
      %v4462 = vpack.c.b16 %v4432, %v4431
      %v4463 = vpack.c.b16 %v4434, %v4433
      %v4464 = vpack.c.b16 %v4436, %v4435
      %v4465 = vpack.c.b16 %v4438, %v4437
      %v4466 = vpack.c.b16 %v4440, %v4439
      %v4467 = vpack.c.b16 %v4442, %v4441
      %v4468 = vpack.c.b16 %v4444, %v4443
      %v4469 = vpack.c.b16 %v4446, %v4445
      %v4470 = vpack.c.b16 %v4448, %v4447
      %v4471 = vpack.c.b16 %v4450, %v4449
      %v4472 = vpack.c.b16 %v4452, %v4451
      %v4473 = vpack.c.b16 %v4454, %v4453
      %v4474 = vpack.c.b16 %v4456, %v4455
      %v4475 = vpack.c.b16 %v4458, %v4457
      %v4476 = vpack.c.b16 %v4460, %v4459
      %4493 = vxpose.xlu0.c.b16.start [1/8] %v4461, 128
      %4494 = vxpose.xlu0.c.b16.cont [2/8] %v4462, 128
      %4495 = vxpose.xlu0.c.b16.cont [3/8] %v4463, 128
      %4496 = vxpose.xlu0.c.b16.cont [4/8] %v4464, 128
      %4497 = vxpose.xlu0.c.b16.cont [5/8] %v4465, 128
      %4498 = vxpose.xlu0.c.b16.cont [6/8] %v4466, 128
      %4499 = vxpose.xlu0.c.b16.cont [7/8] %v4467, 128
      %4500 = vxpose.xlu0.c.b16.end [8/8] %v4468, 128
      %v4501 = vpop.trf.xlu0
      %v4502 = vpop.trf.xlu0
      %v4503 = vpop.trf.xlu0
      %v4504 = vpop.trf.xlu0
      %v4505 = vpop.trf.xlu0
      %v4506 = vpop.trf.xlu0
      %v4507 = vpop.trf.xlu0
      %v4508 = vpop.trf.xlu0
      %4509 = vxpose.xlu0.c.b16.start [1/8] %v4469, 128
      %4510 = vxpose.xlu0.c.b16.cont [2/8] %v4470, 128
      %4511 = vxpose.xlu0.c.b16.cont [3/8] %v4471, 128
      %4512 = vxpose.xlu0.c.b16.cont [4/8] %v4472, 128
      %4513 = vxpose.xlu0.c.b16.cont [5/8] %v4473, 128
      %4514 = vxpose.xlu0.c.b16.cont [6/8] %v4474, 128
      %4515 = vxpose.xlu0.c.b16.cont [7/8] %v4475, 128
      %4516 = vxpose.xlu0.c.b16.end [8/8] %v4476, 128
      %v4517 = vpop.trf.xlu0
      %v4518 = vpop.trf.xlu0
      %v4519 = vpop.trf.xlu0
      %v4520 = vpop.trf.xlu0
      %v4521 = vpop.trf.xlu0
      %v4522 = vpop.trf.xlu0
      %v4523 = vpop.trf.xlu0
      %v4524 = vpop.trf.xlu0
      %v4525 = vld [vmem:[%s1] sm:$0xff]
      %v4526 = vld [vmem:[%s1 + $0x8] sm:$0xf]
      %v4527 = vld [vmem:[%s1 + $0xc] sm:$0xff]
      %v4528 = vld [vmem:[%s1 + $0x14] sm:$0xf]
      %v4529 = vld [vmem:[%s1 + $0x18] sm:$0xff]
      %v4530 = vld [vmem:[%s1 + $0x20] sm:$0xf]
      %v4531 = vld [vmem:[%s1 + $0x24] sm:$0xff]
      %v4532 = vld [vmem:[%s1 + $0x2c] sm:$0xf]
      %v4541 = vunpack.c.l.b16 %v4525
      %v4542 = vunpack.c.h.b16 %v4525
      %v4543 = vunpack.c.l.b16 %v4526
      %v4544 = vunpack.c.l.b16 %v4527
      %v4545 = vunpack.c.h.b16 %v4527
      %v4546 = vunpack.c.l.b16 %v4528
      %v4547 = vunpack.c.l.b16 %v4529
      %v4548 = vunpack.c.h.b16 %v4529
      %v4549 = vunpack.c.l.b16 %v4530
      %v4550 = vunpack.c.l.b16 %v4531
      %v4551 = vunpack.c.h.b16 %v4531
      %v4552 = vunpack.c.l.b16 %v4532
      %v4553 = vpack.c.b16 %v4544, %v4541
      %v4554 = vpack.c.b16 %v4545, %v4542
      %v4555 = vpack.c.b16 %v4546, %v4543
      %v4556 = vpack.c.b16 %v4550, %v4547
      %v4557 = vpack.c.b16 %v4551, %v4548
      %v4558 = vpack.c.b16 %v4552, %v4549
      %vm4563 = vcmask 261120
      %v4565 = vsel %vm4563, %v4555, 0
      %v4568 = vsel %vm4563, %v4558, 0
      %4570 = vmatprep.subr.bf16.mxu0 %v2453
      %4571 = vmatpush1.bf16.msra.mxu0 %v2437
      %4572 = vmatprep.subr.bf16.mxu0 %v2452
      %4573 = vmatpush1.bf16.msra.mxu0 %v2436
      %4574 = vmatprep.subr.bf16.mxu0 %v1861
      %4575 = vmatpush1.bf16.msra.mxu0 %v1845
      %4576 = vmatprep.subr.bf16.mxu0 %v1860
      %4577 = vmatpush1.bf16.msra.mxu0 %v1844
      %4578 = vmatprep.subr.bf16.mxu0 %v1266
      %4579 = vmatpush1.bf16.msra.mxu0 %v1250
      %4580 = vmatprep.subr.bf16.mxu0 %v1265
      %4581 = vmatpush1.bf16.msra.mxu0 %v1249
      %4582 = vmatprep.subr.bf16.mxu0 %v1122
      %4583 = vmatpush1.bf16.msra.mxu0 %v1106
      %4584 = vmatprep.subr.bf16.mxu0 %v1121
      %4585 = vmatpush1.bf16.msra.mxu0 %v1105
      %4586 = vmatprep.subr.bf16.mxu0 %v3926
      %4587 = vmatpush2.bf16.msra.mxu0 %v3910
      %4588 = vmatprep.subr.bf16.mxu0 %v3925
      %4589 = vmatpush2.bf16.msra.mxu0 %v3909
      %4590 = vmatprep.subr.bf16.mxu0 %v3782
      %4591 = vmatpush2.bf16.msra.mxu0 %v3766
      %4592 = vmatprep.subr.bf16.mxu0 %v3781
      %4593 = vmatpush2.bf16.msra.mxu0 %v3765
      %4594 = vmatprep.subr.bf16.mxu0 %v3189
      %4595 = vmatpush2.bf16.msra.mxu0 %v3173
      %4596 = vmatprep.subr.bf16.mxu0 %v3188
      %4597 = vmatpush2.bf16.msra.mxu0 %v3172
      %4598 = vmatprep.subr.bf16.mxu0 %v2597
      %4599 = vmatpush2.bf16.msra.mxu0 %v2581
      %4600 = vmatprep.subr.bf16.mxu0 %v2596
      %4601 = vmatpush2.bf16.msra.mxu0 %v2580
      %4602 = vmatprep.mubr.bf16.mxu0 %v4554
      %4603 = vmatmul.mubr.bf16.gmra.mxu0 %v4553
      %v4604 = vpop.f32.mrf.mxu0
      %v4605 = vadd.f32 0.0, %v4604
      %v4606 = vpop.f32.mrf.mxu0
      %v4607 = vadd.f32 0.0, %v4606
      %v4608 = vpop.f32.mrf.mxu0
      %v4609 = vadd.f32 0.0, %v4608
      %v4610 = vpop.f32.mrf.mxu0
      %v4611 = vadd.f32 0.0, %v4610
      %4612 = vmatprep.mubr.bf16.mxu0 %v4557
      %4613 = vmatmul.mubr.bf16.gmra.mxu0 %v4556
      %v4614 = vpop.f32.mrf.mxu0
      %v4615 = vadd.f32 0.0, %v4614
      %v4616 = vpop.f32.mrf.mxu0
      %v4617 = vadd.f32 0.0, %v4616
      %v4618 = vpop.f32.mrf.mxu0
      %v4619 = vadd.f32 0.0, %v4618
      %v4620 = vpop.f32.mrf.mxu0
      %v4621 = vadd.f32 0.0, %v4620
      %4622 = vdwg.mxu0
      %4623 = vmatprep.subr.bf16.mxu0 0
      %4624 = vmatpush1.bf16.msra.mxu0 0
      %4625 = vmatprep.subr.bf16.mxu0 0
      %4626 = vmatpush1.bf16.msra.mxu0 0
      %4627 = vmatprep.subr.bf16.mxu0 0
      %4628 = vmatpush1.bf16.msra.mxu0 0
      %4629 = vmatprep.subr.bf16.mxu0 0
      %4630 = vmatpush1.bf16.msra.mxu0 0
      %4631 = vmatprep.subr.bf16.mxu0 0
      %4632 = vmatpush1.bf16.msra.mxu0 0
      %4633 = vmatprep.subr.bf16.mxu0 0
      %4634 = vmatpush1.bf16.msra.mxu0 0
      %4635 = vmatprep.subr.bf16.mxu0 %v4518
      %4636 = vmatpush1.bf16.msra.mxu0 %v4502
      %4637 = vmatprep.subr.bf16.mxu0 %v4517
      %4638 = vmatpush1.bf16.msra.mxu0 %v4501
      %4639 = vmatprep.subr.bf16.mxu0 0
      %4640 = vmatpush2.bf16.msra.mxu0 0
      %4641 = vmatprep.subr.bf16.mxu0 0
      %4642 = vmatpush2.bf16.msra.mxu0 0
      %4643 = vmatprep.subr.bf16.mxu0 0
      %4644 = vmatpush2.bf16.msra.mxu0 0
      %4645 = vmatprep.subr.bf16.mxu0 0
      %4646 = vmatpush2.bf16.msra.mxu0 0
      %4647 = vmatprep.subr.bf16.mxu0 0
      %4648 = vmatpush2.bf16.msra.mxu0 0
      %4649 = vmatprep.subr.bf16.mxu0 0
      %4650 = vmatpush2.bf16.msra.mxu0 0
      %4651 = vmatprep.subr.bf16.mxu0 0
      %4652 = vmatpush2.bf16.msra.mxu0 0
      %4653 = vmatprep.subr.bf16.mxu0 0
      %4654 = vmatpush2.bf16.msra.mxu0 0
      %4655 = vmatprep.mubr.bf16.mxu0 0
      %4656 = vmatmul.mubr.bf16.gmra.mxu0 %v4565
      %v4657 = vpop.f32.mrf.mxu0
      %v4658 = vadd.f32 %v4605, %v4657
      %v4659 = vpop.f32.mrf.mxu0
      %v4660 = vadd.f32 %v4607, %v4659
      %v4661 = vpop.f32.mrf.mxu0
      %v4662 = vadd.f32 %v4609, %v4661
      %v4663 = vpop.f32.mrf.mxu0
      %v4664 = vadd.f32 %v4611, %v4663
      %4665 = vmatprep.mubr.bf16.mxu0 0
      %4666 = vmatmul.mubr.bf16.gmra.mxu0 %v4568
      %v4667 = vpop.f32.mrf.mxu0
      %v4668 = vadd.f32 %v4615, %v4667
      %v4669 = vpop.f32.mrf.mxu0
      %v4670 = vadd.f32 %v4617, %v4669
      %v4671 = vpop.f32.mrf.mxu0
      %v4672 = vadd.f32 %v4619, %v4671
      %v4673 = vpop.f32.mrf.mxu0
      %v4674 = vadd.f32 %v4621, %v4673
      %4675 = vdwg.mxu0
      %v4676 = vld [vmem:[%s2] sm:$0xff]
      %v4677 = vld [vmem:[%s2 + $0x8] sm:$0xff]
      %v4678 = vld [vmem:[%s2 + $0x10] sm:$0xff]
      %v4679 = vld [vmem:[%s2 + $0x18] sm:$0xff]
      %4681 = vset.pattern.permute.xlu0 0
      %4682 = vperm.xlu0 %4681, %v4676
      %v4683 = vpop.permute.xlu0 %4682
      %4686 = vset.pattern.permute.xlu0 0
      %4687 = vperm.xlu0 %4686, %v4677
      %v4688 = vpop.permute.xlu0 %4687
      %4691 = vset.pattern.permute.xlu0 0
      %4692 = vperm.xlu0 %4691, %v4678
      %v4693 = vpop.permute.xlu0 %4692
      %4696 = vset.pattern.permute.xlu0 0
      %4697 = vperm.xlu0 %4696, %v4679
      %v4698 = vpop.permute.xlu0 %4697
      %v4700 = vmul.f32 %v4658, %v4683
      %v4701 = vmul.f32 %v4660, %v4683
      %v4702 = vmul.f32 %v4662, %v4688
      %v4703 = vmul.f32 %v4664, %v4688
      %v4704 = vmul.f32 %v4668, %v4693
      %v4705 = vmul.f32 %v4670, %v4693
      %v4706 = vmul.f32 %v4672, %v4698
      %v4707 = vmul.f32 %v4674, %v4698
      %v4708 = vld [vmem:[%s3] sm:$0xff]
      %v4709 = vld [vmem:[%s3 + $0x8] sm:$0xff]
      %v4710 = vld [vmem:[%s3 + $0x10] sm:$0xff]
      %v4711 = vld [vmem:[%s3 + $0x18] sm:$0xff]
      %4713 = vset.pattern.permute.xlu0 0
      %4714 = vperm.xlu0 %4713, %v4708
      %v4715 = vpop.permute.xlu0 %4714
      %4718 = vset.pattern.permute.xlu0 0
      %4719 = vperm.xlu0 %4718, %v4709
      %v4720 = vpop.permute.xlu0 %4719
      %4723 = vset.pattern.permute.xlu0 0
      %4724 = vperm.xlu0 %4723, %v4710
      %v4725 = vpop.permute.xlu0 %4724
      %4728 = vset.pattern.permute.xlu0 0
      %4729 = vperm.xlu0 %4728, %v4711
      %v4730 = vpop.permute.xlu0 %4729
      %v4732 = vadd.f32 %v4700, %v4715
      %v4733 = vadd.f32 %v4701, %v4715
      %v4734 = vadd.f32 %v4702, %v4720
      %v4735 = vadd.f32 %v4703, %v4720
      %v4736 = vadd.f32 %v4704, %v4725
      %v4737 = vadd.f32 %v4705, %v4725
      %v4738 = vadd.f32 %v4706, %v4730
      %v4739 = vadd.f32 %v4707, %v4730
      %v4740 = vmax.f32 %v4732, 0.0
      %v4741 = vmax.f32 %v4733, 0.0
      %v4742 = vmax.f32 %v4734, 0.0
      %v4743 = vmax.f32 %v4735, 0.0
      %v4744 = vmax.f32 %v4736, 0.0
      %v4745 = vmax.f32 %v4737, 0.0
      %v4746 = vmax.f32 %v4738, 0.0
      %v4747 = vmax.f32 %v4739, 0.0
      %v4748 = vadd.f32 %v4740, %v4741
      %4749 = vadd.xlane.f32.xlu0 %v4748
      %v4750 = vpop.xlane.xlu0 %4749
      %v4751 = vadd.f32 %v4742, %v4743
      %4752 = vadd.xlane.f32.xlu0 %v4751
      %v4753 = vpop.xlane.xlu0 %4752
      %v4754 = vadd.f32 %v4744, %v4745
      %4755 = vadd.xlane.f32.xlu0 %v4754
      %v4756 = vpop.xlane.xlu0 %4755
      %v4757 = vadd.f32 %v4746, %v4747
      %4758 = vadd.xlane.f32.xlu0 %v4757
      %v4759 = vpop.xlane.xlu0 %4758
      %v4760 = vmul.f32 %v4750, 0.00390625
      %v4761 = vmul.f32 %v4753, 0.00390625
      %v4762 = vmul.f32 %v4756, 0.00390625
      %v4763 = vmul.f32 %v4759, 0.00390625
      %v4764 = vld [vmem:[%s4] sm:$0xff]
      %v4765 = vld [vmem:[%s4 + $0x8] sm:$0xff]
      %v4766 = vld [vmem:[%s4 + $0x10] sm:$0xff]
      %v4767 = vld [vmem:[%s4 + $0x18] sm:$0xff]
      %v4768 = vmul.f32 %v4764, %v4760
      %v4769 = vmul.f32 %v4765, %v4761
      %v4770 = vmul.f32 %v4766, %v4762
      %v4771 = vmul.f32 %v4767, %v4763
      %vm4772 = vcmask 15360
      %v4773 = vsel %vm4772, %v4768, 0.0
      %v4774 = vsel %vm4772, %v4769, 0.0
      %v4775 = vadd.f32 %v4773, %v4774
      %v4776 = vsel %vm4772, %v4770, 0.0
      %v4777 = vadd.f32 %v4775, %v4776
      %v4778 = vsel %vm4772, %v4771, 0.0
      %v4779 = vadd.f32 %v4777, %v4778
      %v4780 = vrot.slane %v4779, 4
      %v4781 = vadd.f32 %v4779, %v4780
      %v4782 = vrot.slane %v4781, 2
      %v4783 = vadd.f32 %v4781, %v4782
      %v4784 = vrot.slane %v4783, 1
      %v4785 = vadd.f32 %v4783, %v4784
      %v4786 = vmax.f32 %v4785, 0.0
      %v4787 = vld [vmem:[%s5] sm:$0xff]
      %v4788 = vld [vmem:[%s5 + $0x8] sm:$0xff]
      %v4789 = vld [vmem:[%s5 + $0x10] sm:$0xff]
      %v4790 = vld [vmem:[%s5 + $0x18] sm:$0xff]
      %v4791 = vmul.f32 %v4787, %v4786
      %v4792 = vmul.f32 %v4788, %v4786
      %v4793 = vmul.f32 %v4789, %v4786
      %v4794 = vmul.f32 %v4790, %v4786
      %v4795 = vsel %vm4772, %v4791, 0.0
      %4796 = vadd.xlane.f32.xlu0 %v4795
      %v4797 = vpop.xlane.xlu0 %4796
      %v4798 = vsel %vm4772, %v4792, 0.0
      %4799 = vadd.xlane.f32.xlu0 %v4798
      %v4800 = vpop.xlane.xlu0 %4799
      %v4801 = vsel %vm4772, %v4793, 0.0
      %4802 = vadd.xlane.f32.xlu0 %v4801
      %v4803 = vpop.xlane.xlu0 %4802
      %v4804 = vsel %vm4772, %v4794, 0.0
      %4805 = vadd.xlane.f32.xlu0 %v4804
      %v4806 = vpop.xlane.xlu0 %4805
      %v4807 = vxor.u32 %v4797, 2147483648
      %v4808 = vxor.u32 %v4800, 2147483648
      %v4809 = vxor.u32 %v4803, 2147483648
      %v4810 = vxor.u32 %v4806, 2147483648
      %v4811 = vmul.f32 %v4807, 1.442695
      %v4812 = vpow.pop %v4811
      %v4813 = vmul.f32 %v4808, 1.442695
      %v4814 = vpow.pop %v4813
      %v4815 = vmul.f32 %v4809, 1.442695
      %v4816 = vpow.pop %v4815
      %v4817 = vmul.f32 %v4810, 1.442695
      %v4818 = vpow.pop %v4817
      %v4819 = vadd.f32 %v4812, 1.0
      %v4820 = vadd.f32 %v4814, 1.0
      %v4821 = vadd.f32 %v4816, 1.0
      %v4822 = vadd.f32 %v4818, 1.0
      %v4823 = vrcp.pop %v4819
      %v4824 = vmul.f32 1.0, %v4823
      %v4825 = vrcp.pop %v4820
      %v4826 = vmul.f32 1.0, %v4825
      %v4827 = vrcp.pop %v4821
      %v4828 = vmul.f32 1.0, %v4827
      %v4829 = vrcp.pop %v4822
      %v4830 = vmul.f32 1.0, %v4829
      %v4831 = vmul.f32 %v4740, %v4824
      %v4832 = vmul.f32 %v4741, %v4824
      %v4833 = vmul.f32 %v4742, %v4826
      %v4834 = vmul.f32 %v4743, %v4826
      %v4835 = vmul.f32 %v4744, %v4828
      %v4836 = vmul.f32 %v4745, %v4828
      %v4837 = vmul.f32 %v4746, %v4830
      %v4838 = vmul.f32 %v4747, %v4830
      %4839 = vxpose.xlu0.b32.start [1/16] %v4831, 128
      %4840 = vxpose.xlu0.b32.cont [2/16] %v4833, 128
      %4841 = vxpose.xlu0.b32.cont [3/16] %v4835, 128
      %4842 = vxpose.xlu0.b32.cont [4/16] %v4837, 128
      %4843 = vxpose.xlu0.b32.cont [5/16] 0.0, 128
      %4844 = vxpose.xlu0.b32.cont [6/16] 0.0, 128
      %4845 = vxpose.xlu0.b32.cont [7/16] 0.0, 128
      %4846 = vxpose.xlu0.b32.cont [8/16] 0.0, 128
      %4847 = vxpose.xlu0.b32.cont [9/16] 0.0, 128
      %4848 = vxpose.xlu0.b32.cont [10/16] 0.0, 128
      %4849 = vxpose.xlu0.b32.cont [11/16] 0.0, 128
      %4850 = vxpose.xlu0.b32.cont [12/16] 0.0, 128
      %4851 = vxpose.xlu0.b32.cont [13/16] 0.0, 128
      %4852 = vxpose.xlu0.b32.cont [14/16] 0.0, 128
      %4853 = vxpose.xlu0.b32.cont [15/16] 0.0, 128
      %4854 = vxpose.xlu0.b32.end [16/16] 0.0, 128
      %v4855 = vpop.trf.xlu0
      %v4856 = vpop.trf.xlu0
      %v4857 = vpop.trf.xlu0
      %v4858 = vpop.trf.xlu0
      %v4859 = vpop.trf.xlu0
      %v4860 = vpop.trf.xlu0
      %v4861 = vpop.trf.xlu0
      %v4862 = vpop.trf.xlu0
      %v4863 = vpop.trf.xlu0
      %v4864 = vpop.trf.xlu0
      %v4865 = vpop.trf.xlu0
      %v4866 = vpop.trf.xlu0
      %v4867 = vpop.trf.xlu0
      %v4868 = vpop.trf.xlu0
      %v4869 = vpop.trf.xlu0
      %v4870 = vpop.trf.xlu0
      %4871 = vxpose.xlu0.b32.start [1/16] %v4832, 128
      %4872 = vxpose.xlu0.b32.cont [2/16] %v4834, 128
      %4873 = vxpose.xlu0.b32.cont [3/16] %v4836, 128
      %4874 = vxpose.xlu0.b32.cont [4/16] %v4838, 128
      %4875 = vxpose.xlu0.b32.cont [5/16] 0.0, 128
      %4876 = vxpose.xlu0.b32.cont [6/16] 0.0, 128
      %4877 = vxpose.xlu0.b32.cont [7/16] 0.0, 128
      %4878 = vxpose.xlu0.b32.cont [8/16] 0.0, 128
      %4879 = vxpose.xlu0.b32.cont [9/16] 0.0, 128
      %4880 = vxpose.xlu0.b32.cont [10/16] 0.0, 128
      %4881 = vxpose.xlu0.b32.cont [11/16] 0.0, 128
      %4882 = vxpose.xlu0.b32.cont [12/16] 0.0, 128
      %4883 = vxpose.xlu0.b32.cont [13/16] 0.0, 128
      %4884 = vxpose.xlu0.b32.cont [14/16] 0.0, 128
      %4885 = vxpose.xlu0.b32.cont [15/16] 0.0, 128
      %4886 = vxpose.xlu0.b32.end [16/16] 0.0, 128
      %v4887 = vpop.trf.xlu0
      %v4888 = vpop.trf.xlu0
      %v4889 = vpop.trf.xlu0
      %v4890 = vpop.trf.xlu0
      %v4891 = vpop.trf.xlu0
      %v4892 = vpop.trf.xlu0
      %v4893 = vpop.trf.xlu0
      %v4894 = vpop.trf.xlu0
      %v4895 = vpop.trf.xlu0
      %v4896 = vpop.trf.xlu0
      %v4897 = vpop.trf.xlu0
      %v4898 = vpop.trf.xlu0
      %v4899 = vpop.trf.xlu0
      %v4900 = vpop.trf.xlu0
      %v4901 = vpop.trf.xlu0
      %v4902 = vpop.trf.xlu0
      %v4903 = vpack.c.bf16 %v4856, %v4855
      %v4904 = vpack.c.bf16 %v4858, %v4857
      %v4905 = vpack.c.bf16 %v4860, %v4859
      %v4906 = vpack.c.bf16 %v4862, %v4861
      %v4907 = vpack.c.bf16 %v4864, %v4863
      %v4908 = vpack.c.bf16 %v4866, %v4865
      %v4909 = vpack.c.bf16 %v4868, %v4867
      %v4910 = vpack.c.bf16 %v4870, %v4869
      %v4911 = vpack.c.bf16 %v4888, %v4887
      %v4912 = vpack.c.bf16 %v4890, %v4889
      %v4913 = vpack.c.bf16 %v4892, %v4891
      %v4914 = vpack.c.bf16 %v4894, %v4893
      %v4915 = vpack.c.bf16 %v4896, %v4895
      %v4916 = vpack.c.bf16 %v4898, %v4897
      %v4917 = vpack.c.bf16 %v4900, %v4899
      %v4918 = vpack.c.bf16 %v4902, %v4901
      %v4935 = vunpack.c.l.b16 %v4903
      %v4936 = vunpack.c.h.b16 %v4903
      %v4937 = vunpack.c.l.b16 %v4904
      %v4938 = vunpack.c.h.b16 %v4904
      %v4939 = vunpack.c.l.b16 %v4905
      %v4940 = vunpack.c.h.b16 %v4905
      %v4941 = vunpack.c.l.b16 %v4906
      %v4942 = vunpack.c.h.b16 %v4906
      %v4943 = vunpack.c.l.b16 %v4907
      %v4944 = vunpack.c.h.b16 %v4907
      %v4945 = vunpack.c.l.b16 %v4908
      %v4946 = vunpack.c.h.b16 %v4908
      %v4947 = vunpack.c.l.b16 %v4909
      %v4948 = vunpack.c.h.b16 %v4909
      %v4949 = vunpack.c.l.b16 %v4910
      %v4950 = vunpack.c.h.b16 %v4910
      %v4951 = vunpack.c.l.b16 %v4911
      %v4952 = vunpack.c.h.b16 %v4911
      %v4953 = vunpack.c.l.b16 %v4912
      %v4954 = vunpack.c.h.b16 %v4912
      %v4955 = vunpack.c.l.b16 %v4913
      %v4956 = vunpack.c.h.b16 %v4913
      %v4957 = vunpack.c.l.b16 %v4914
      %v4958 = vunpack.c.h.b16 %v4914
      %v4959 = vunpack.c.l.b16 %v4915
      %v4960 = vunpack.c.h.b16 %v4915
      %v4961 = vunpack.c.l.b16 %v4916
      %v4962 = vunpack.c.h.b16 %v4916
      %v4963 = vunpack.c.l.b16 %v4917
      %v4964 = vunpack.c.h.b16 %v4917
      %v4965 = vunpack.c.l.b16 %v4918
      %v4966 = vunpack.c.h.b16 %v4918
      %v4967 = vpack.c.b16 %v4935, %v4935
      %v4968 = vpack.c.b16 %v4936, %v4936
      %v4969 = vpack.c.b16 %v4937, %v4937
      %v4970 = vpack.c.b16 %v4938, %v4938
      %v4971 = vpack.c.b16 %v4939, %v4939
      %v4972 = vpack.c.b16 %v4940, %v4940
      %v4973 = vpack.c.b16 %v4941, %v4941
      %v4974 = vpack.c.b16 %v4942, %v4942
      %v4975 = vpack.c.b16 %v4943, %v4943
      %v4976 = vpack.c.b16 %v4944, %v4944
      %v4977 = vpack.c.b16 %v4945, %v4945
      %v4978 = vpack.c.b16 %v4946, %v4946
      %v4979 = vpack.c.b16 %v4947, %v4947
      %v4980 = vpack.c.b16 %v4948, %v4948
      %v4981 = vpack.c.b16 %v4949, %v4949
      %v4982 = vpack.c.b16 %v4950, %v4950
      %v4983 = vpack.c.b16 %v4951, %v4951
      %v4984 = vpack.c.b16 %v4952, %v4952
      %v4985 = vpack.c.b16 %v4953, %v4953
      %v4986 = vpack.c.b16 %v4954, %v4954
      %v4987 = vpack.c.b16 %v4955, %v4955
      %v4988 = vpack.c.b16 %v4956, %v4956
      %v4989 = vpack.c.b16 %v4957, %v4957
      %v4990 = vpack.c.b16 %v4958, %v4958
      %v4991 = vpack.c.b16 %v4959, %v4959
      %v4992 = vpack.c.b16 %v4960, %v4960
      %v4993 = vpack.c.b16 %v4961, %v4961
      %v4994 = vpack.c.b16 %v4962, %v4962
      %v4995 = vpack.c.b16 %v4963, %v4963
      %v4996 = vpack.c.b16 %v4964, %v4964
      %v4997 = vpack.c.b16 %v4965, %v4965
      %v4998 = vpack.c.b16 %v4966, %v4966
      %5031 = vst.msk [vmem:[%s499 + $0x4] sm:$0xf] %vm500, %v4967
      %5032 = vst.msk [vmem:[%s499 + $0x8] sm:$0xf] %vm500, %v4968
      %5033 = vst.msk [vmem:[%s499 + $0x14] sm:$0xf] %vm500, %v4969
      %5034 = vst.msk [vmem:[%s499 + $0x18] sm:$0xf] %vm500, %v4970
      %5035 = vst.msk [vmem:[%s499 + $0x24] sm:$0xf] %vm500, %v4971
      %5036 = vst.msk [vmem:[%s499 + $0x28] sm:$0xf] %vm500, %v4972
      %5037 = vst.msk [vmem:[%s499 + $0x34] sm:$0xf] %vm500, %v4973
      %5038 = vst.msk [vmem:[%s499 + $0x38] sm:$0xf] %vm500, %v4974
      %5039 = vst.msk [vmem:[%s499 + $0x44] sm:$0xf] %vm500, %v4975
      %5040 = vst.msk [vmem:[%s499 + $0x48] sm:$0xf] %vm500, %v4976
      %5041 = vst.msk [vmem:[%s499 + $0x54] sm:$0xf] %vm500, %v4977
      %5042 = vst.msk [vmem:[%s499 + $0x58] sm:$0xf] %vm500, %v4978
      %5043 = vst.msk [vmem:[%s499 + $0x64] sm:$0xf] %vm500, %v4979
      %5044 = vst.msk [vmem:[%s499 + $0x68] sm:$0xf] %vm500, %v4980
      %5045 = vst.msk [vmem:[%s499 + $0x74] sm:$0xf] %vm500, %v4981
      %5046 = vst.msk [vmem:[%s499 + $0x78] sm:$0xf] %vm500, %v4982
      %5047 = vst.msk [vmem:[%s499 + $0x84] sm:$0xf] %vm500, %v4983
      %5048 = vst.msk [vmem:[%s499 + $0x88] sm:$0xf] %vm500, %v4984
      %5049 = vst.msk [vmem:[%s499 + $0x94] sm:$0xf] %vm500, %v4985
      %5050 = vst.msk [vmem:[%s499 + $0x98] sm:$0xf] %vm500, %v4986
      %5051 = vst.msk [vmem:[%s499 + $0xa4] sm:$0xf] %vm500, %v4987
      %5052 = vst.msk [vmem:[%s499 + $0xa8] sm:$0xf] %vm500, %v4988
      %5053 = vst.msk [vmem:[%s499 + $0xb4] sm:$0xf] %vm500, %v4989
      %5054 = vst.msk [vmem:[%s499 + $0xb8] sm:$0xf] %vm500, %v4990
      %5055 = vst.msk [vmem:[%s499 + $0xc4] sm:$0xf] %vm500, %v4991
      %5056 = vst.msk [vmem:[%s499 + $0xc8] sm:$0xf] %vm500, %v4992
      %5057 = vst.msk [vmem:[%s499 + $0xd4] sm:$0xf] %vm500, %v4993
      %5058 = vst.msk [vmem:[%s499 + $0xd8] sm:$0xf] %vm500, %v4994
      %5059 = vst.msk [vmem:[%s499 + $0xe4] sm:$0xf] %vm500, %v4995
      %5060 = vst.msk [vmem:[%s499 + $0xe8] sm:$0xf] %vm500, %v4996
      %5061 = vst.msk [vmem:[%s499 + $0xf4] sm:$0xf] %vm500, %v4997
      %5062 = vst.msk [vmem:[%s499 + $0xf8] sm:$0xf] %vm500, %v4998
      %s5063 = scalar_lea.vmem [#allocation2], 48
      %v5064 = vld [vmem:[%s5063] sm:$0xe]
      %v5065 = vld [vmem:[%s5063 + $0x4] sm:$0xf]
      %v5066 = vld [vmem:[%s5063 + $0x8] sm:$0x3]
      %v5067 = vld [vmem:[%s5063 + $0x10] sm:$0xe]
      %v5068 = vld [vmem:[%s5063 + $0x14] sm:$0xf]
      %v5069 = vld [vmem:[%s5063 + $0x18] sm:$0x3]
      %v5070 = vld [vmem:[%s5063 + $0x20] sm:$0xe]
      %v5071 = vld [vmem:[%s5063 + $0x24] sm:$0xf]
      %v5072 = vld [vmem:[%s5063 + $0x28] sm:$0x3]
      %v5073 = vld [vmem:[%s5063 + $0x30] sm:$0xe]
      %v5074 = vld [vmem:[%s5063 + $0x34] sm:$0xf]
      %v5075 = vld [vmem:[%s5063 + $0x38] sm:$0x3]
      %v5076 = vld [vmem:[%s5063 + $0x40] sm:$0xe]
      %v5077 = vld [vmem:[%s5063 + $0x44] sm:$0xf]
      %v5078 = vld [vmem:[%s5063 + $0x48] sm:$0x3]
      %v5079 = vld [vmem:[%s5063 + $0x50] sm:$0xe]
      %v5080 = vld [vmem:[%s5063 + $0x54] sm:$0xf]
      %v5081 = vld [vmem:[%s5063 + $0x58] sm:$0x3]
      %v5082 = vld [vmem:[%s5063 + $0x60] sm:$0xe]
      %v5083 = vld [vmem:[%s5063 + $0x64] sm:$0xf]
      %v5084 = vld [vmem:[%s5063 + $0x68] sm:$0x3]
      %v5085 = vld [vmem:[%s5063 + $0x70] sm:$0xe]
      %v5086 = vld [vmem:[%s5063 + $0x74] sm:$0xf]
      %v5087 = vld [vmem:[%s5063 + $0x78] sm:$0x3]
      %v5088 = vld [vmem:[%s5063 + $0x80] sm:$0xe]
      %v5089 = vld [vmem:[%s5063 + $0x84] sm:$0xf]
      %v5090 = vld [vmem:[%s5063 + $0x88] sm:$0x3]
      %v5091 = vld [vmem:[%s5063 + $0x90] sm:$0xe]
      %v5092 = vld [vmem:[%s5063 + $0x94] sm:$0xf]
      %v5093 = vld [vmem:[%s5063 + $0x98] sm:$0x3]
      %v5094 = vld [vmem:[%s5063 + $0xa0] sm:$0xe]
      %v5095 = vld [vmem:[%s5063 + $0xa4] sm:$0xf]
      %v5096 = vld [vmem:[%s5063 + $0xa8] sm:$0x3]
      %v5097 = vld [vmem:[%s5063 + $0xb0] sm:$0xe]
      %v5098 = vld [vmem:[%s5063 + $0xb4] sm:$0xf]
      %v5099 = vld [vmem:[%s5063 + $0xb8] sm:$0x3]
      %v5100 = vld [vmem:[%s5063 + $0xc0] sm:$0xe]
      %v5101 = vld [vmem:[%s5063 + $0xc4] sm:$0xf]
      %v5102 = vld [vmem:[%s5063 + $0xc8] sm:$0x3]
      %v5103 = vld [vmem:[%s5063 + $0xd0] sm:$0xe]
      %v5104 = vld [vmem:[%s5063 + $0xd4] sm:$0xf]
      %v5105 = vld [vmem:[%s5063 + $0xd8] sm:$0x3]
      %v5106 = vld [vmem:[%s5063 + $0xe0] sm:$0xe]
      %v5107 = vld [vmem:[%s5063 + $0xe4] sm:$0xf]
      %v5108 = vld [vmem:[%s5063 + $0xe8] sm:$0x3]
      %v5109 = vld [vmem:[%s5063 + $0xf0] sm:$0xe]
      %v5110 = vld [vmem:[%s5063 + $0xf4] sm:$0xf]
      %v5111 = vld [vmem:[%s5063 + $0xf8] sm:$0x3]
      %v5113 = vshrl.u32 %v5064, 16
      %v5115 = vrot.slane %v5113, 5
      %v5116 = vshll.u32 %v5064, 16
      %v5118 = vrot.slane %v5116, 6
      %v5119 = vor.u32 %v5115, %v5118
      %v5120 = vrot.slane %v5119, 4
      %v5122 = vshrl.u32 %v5065, 16
      %v5124 = vrot.slane %v5122, 5
      %v5125 = vshll.u32 %v5065, 16
      %v5127 = vrot.slane %v5125, 6
      %v5128 = vor.u32 %v5124, %v5127
      %v5129 = vsel %vm1323, %v5120, %v5128
      %v5130 = vrot.slane %v5128, 4
      %v5132 = vshrl.u32 %v5066, 16
      %v5134 = vrot.slane %v5132, 5
      %v5135 = vshll.u32 %v5066, 16
      %v5137 = vrot.slane %v5135, 6
      %v5138 = vor.u32 %v5134, %v5137
      %v5139 = vsel %vm1323, %v5130, %v5138
      %v5141 = vshrl.u32 %v5067, 16
      %v5143 = vrot.slane %v5141, 5
      %v5144 = vshll.u32 %v5067, 16
      %v5146 = vrot.slane %v5144, 6
      %v5147 = vor.u32 %v5143, %v5146
      %v5148 = vrot.slane %v5147, 4
      %v5150 = vshrl.u32 %v5068, 16
      %v5152 = vrot.slane %v5150, 5
      %v5153 = vshll.u32 %v5068, 16
      %v5155 = vrot.slane %v5153, 6
      %v5156 = vor.u32 %v5152, %v5155
      %v5157 = vsel %vm1323, %v5148, %v5156
      %v5158 = vrot.slane %v5156, 4
      %v5160 = vshrl.u32 %v5069, 16
      %v5162 = vrot.slane %v5160, 5
      %v5163 = vshll.u32 %v5069, 16
      %v5165 = vrot.slane %v5163, 6
      %v5166 = vor.u32 %v5162, %v5165
      %v5167 = vsel %vm1323, %v5158, %v5166
      %v5169 = vshrl.u32 %v5070, 16
      %v5171 = vrot.slane %v5169, 5
      %v5172 = vshll.u32 %v5070, 16
      %v5174 = vrot.slane %v5172, 6
      %v5175 = vor.u32 %v5171, %v5174
      %v5176 = vrot.slane %v5175, 4
      %v5178 = vshrl.u32 %v5071, 16
      %v5180 = vrot.slane %v5178, 5
      %v5181 = vshll.u32 %v5071, 16
      %v5183 = vrot.slane %v5181, 6
      %v5184 = vor.u32 %v5180, %v5183
      %v5185 = vsel %vm1323, %v5176, %v5184
      %v5186 = vrot.slane %v5184, 4
      %v5188 = vshrl.u32 %v5072, 16
      %v5190 = vrot.slane %v5188, 5
      %v5191 = vshll.u32 %v5072, 16
      %v5193 = vrot.slane %v5191, 6
      %v5194 = vor.u32 %v5190, %v5193
      %v5195 = vsel %vm1323, %v5186, %v5194
      %v5197 = vshrl.u32 %v5073, 16
      %v5199 = vrot.slane %v5197, 5
      %v5200 = vshll.u32 %v5073, 16
      %v5202 = vrot.slane %v5200, 6
      %v5203 = vor.u32 %v5199, %v5202
      %v5204 = vrot.slane %v5203, 4
      %v5206 = vshrl.u32 %v5074, 16
      %v5208 = vrot.slane %v5206, 5
      %v5209 = vshll.u32 %v5074, 16
      %v5211 = vrot.slane %v5209, 6
      %v5212 = vor.u32 %v5208, %v5211
      %v5213 = vsel %vm1323, %v5204, %v5212
      %v5214 = vrot.slane %v5212, 4
      %v5216 = vshrl.u32 %v5075, 16
      %v5218 = vrot.slane %v5216, 5
      %v5219 = vshll.u32 %v5075, 16
      %v5221 = vrot.slane %v5219, 6
      %v5222 = vor.u32 %v5218, %v5221
      %v5223 = vsel %vm1323, %v5214, %v5222
      %v5225 = vshrl.u32 %v5076, 16
      %v5227 = vrot.slane %v5225, 5
      %v5228 = vshll.u32 %v5076, 16
      %v5230 = vrot.slane %v5228, 6
      %v5231 = vor.u32 %v5227, %v5230
      %v5232 = vrot.slane %v5231, 4
      %v5234 = vshrl.u32 %v5077, 16
      %v5236 = vrot.slane %v5234, 5
      %v5237 = vshll.u32 %v5077, 16
      %v5239 = vrot.slane %v5237, 6
      %v5240 = vor.u32 %v5236, %v5239
      %v5241 = vsel %vm1323, %v5232, %v5240
      %v5242 = vrot.slane %v5240, 4
      %v5244 = vshrl.u32 %v5078, 16
      %v5246 = vrot.slane %v5244, 5
      %v5247 = vshll.u32 %v5078, 16
      %v5249 = vrot.slane %v5247, 6
      %v5250 = vor.u32 %v5246, %v5249
      %v5251 = vsel %vm1323, %v5242, %v5250
      %v5253 = vshrl.u32 %v5079, 16
      %v5255 = vrot.slane %v5253, 5
      %v5256 = vshll.u32 %v5079, 16
      %v5258 = vrot.slane %v5256, 6
      %v5259 = vor.u32 %v5255, %v5258
      %v5260 = vrot.slane %v5259, 4
      %v5262 = vshrl.u32 %v5080, 16
      %v5264 = vrot.slane %v5262, 5
      %v5265 = vshll.u32 %v5080, 16
      %v5267 = vrot.slane %v5265, 6
      %v5268 = vor.u32 %v5264, %v5267
      %v5269 = vsel %vm1323, %v5260, %v5268
      %v5270 = vrot.slane %v5268, 4
      %v5272 = vshrl.u32 %v5081, 16
      %v5274 = vrot.slane %v5272, 5
      %v5275 = vshll.u32 %v5081, 16
      %v5277 = vrot.slane %v5275, 6
      %v5278 = vor.u32 %v5274, %v5277
      %v5279 = vsel %vm1323, %v5270, %v5278
      %v5281 = vshrl.u32 %v5082, 16
      %v5283 = vrot.slane %v5281, 5
      %v5284 = vshll.u32 %v5082, 16
      %v5286 = vrot.slane %v5284, 6
      %v5287 = vor.u32 %v5283, %v5286
      %v5288 = vrot.slane %v5287, 4
      %v5290 = vshrl.u32 %v5083, 16
      %v5292 = vrot.slane %v5290, 5
      %v5293 = vshll.u32 %v5083, 16
      %v5295 = vrot.slane %v5293, 6
      %v5296 = vor.u32 %v5292, %v5295
      %v5297 = vsel %vm1323, %v5288, %v5296
      %v5298 = vrot.slane %v5296, 4
      %v5300 = vshrl.u32 %v5084, 16
      %v5302 = vrot.slane %v5300, 5
      %v5303 = vshll.u32 %v5084, 16
      %v5305 = vrot.slane %v5303, 6
      %v5306 = vor.u32 %v5302, %v5305
      %v5307 = vsel %vm1323, %v5298, %v5306
      %v5309 = vshrl.u32 %v5085, 16
      %v5311 = vrot.slane %v5309, 5
      %v5312 = vshll.u32 %v5085, 16
      %v5314 = vrot.slane %v5312, 6
      %v5315 = vor.u32 %v5311, %v5314
      %v5316 = vrot.slane %v5315, 4
      %v5318 = vshrl.u32 %v5086, 16
      %v5320 = vrot.slane %v5318, 5
      %v5321 = vshll.u32 %v5086, 16
      %v5323 = vrot.slane %v5321, 6
      %v5324 = vor.u32 %v5320, %v5323
      %v5325 = vsel %vm1323, %v5316, %v5324
      %v5326 = vrot.slane %v5324, 4
      %v5328 = vshrl.u32 %v5087, 16
      %v5330 = vrot.slane %v5328, 5
      %v5331 = vshll.u32 %v5087, 16
      %v5333 = vrot.slane %v5331, 6
      %v5334 = vor.u32 %v5330, %v5333
      %v5335 = vsel %vm1323, %v5326, %v5334
      %v5337 = vshrl.u32 %v5088, 16
      %v5339 = vrot.slane %v5337, 5
      %v5340 = vshll.u32 %v5088, 16
      %v5342 = vrot.slane %v5340, 6
      %v5343 = vor.u32 %v5339, %v5342
      %v5344 = vrot.slane %v5343, 4
      %v5346 = vshrl.u32 %v5089, 16
      %v5348 = vrot.slane %v5346, 5
      %v5349 = vshll.u32 %v5089, 16
      %v5351 = vrot.slane %v5349, 6
      %v5352 = vor.u32 %v5348, %v5351
      %v5353 = vsel %vm1323, %v5344, %v5352
      %v5354 = vrot.slane %v5352, 4
      %v5356 = vshrl.u32 %v5090, 16
      %v5358 = vrot.slane %v5356, 5
      %v5359 = vshll.u32 %v5090, 16
      %v5361 = vrot.slane %v5359, 6
      %v5362 = vor.u32 %v5358, %v5361
      %v5363 = vsel %vm1323, %v5354, %v5362
      %v5365 = vshrl.u32 %v5091, 16
      %v5367 = vrot.slane %v5365, 5
      %v5368 = vshll.u32 %v5091, 16
      %v5370 = vrot.slane %v5368, 6
      %v5371 = vor.u32 %v5367, %v5370
      %v5372 = vrot.slane %v5371, 4
      %v5374 = vshrl.u32 %v5092, 16
      %v5376 = vrot.slane %v5374, 5
      %v5377 = vshll.u32 %v5092, 16
      %v5379 = vrot.slane %v5377, 6
      %v5380 = vor.u32 %v5376, %v5379
      %v5381 = vsel %vm1323, %v5372, %v5380
      %v5382 = vrot.slane %v5380, 4
      %v5384 = vshrl.u32 %v5093, 16
      %v5386 = vrot.slane %v5384, 5
      %v5387 = vshll.u32 %v5093, 16
      %v5389 = vrot.slane %v5387, 6
      %v5390 = vor.u32 %v5386, %v5389
      %v5391 = vsel %vm1323, %v5382, %v5390
      %v5393 = vshrl.u32 %v5094, 16
      %v5395 = vrot.slane %v5393, 5
      %v5396 = vshll.u32 %v5094, 16
      %v5398 = vrot.slane %v5396, 6
      %v5399 = vor.u32 %v5395, %v5398
      %v5400 = vrot.slane %v5399, 4
      %v5402 = vshrl.u32 %v5095, 16
      %v5404 = vrot.slane %v5402, 5
      %v5405 = vshll.u32 %v5095, 16
      %v5407 = vrot.slane %v5405, 6
      %v5408 = vor.u32 %v5404, %v5407
      %v5409 = vsel %vm1323, %v5400, %v5408
      %v5410 = vrot.slane %v5408, 4
      %v5412 = vshrl.u32 %v5096, 16
      %v5414 = vrot.slane %v5412, 5
      %v5415 = vshll.u32 %v5096, 16
      %v5417 = vrot.slane %v5415, 6
      %v5418 = vor.u32 %v5414, %v5417
      %v5419 = vsel %vm1323, %v5410, %v5418
      %v5421 = vshrl.u32 %v5097, 16
      %v5423 = vrot.slane %v5421, 5
      %v5424 = vshll.u32 %v5097, 16
      %v5426 = vrot.slane %v5424, 6
      %v5427 = vor.u32 %v5423, %v5426
      %v5428 = vrot.slane %v5427, 4
      %v5430 = vshrl.u32 %v5098, 16
      %v5432 = vrot.slane %v5430, 5
      %v5433 = vshll.u32 %v5098, 16
      %v5435 = vrot.slane %v5433, 6
      %v5436 = vor.u32 %v5432, %v5435
      %v5437 = vsel %vm1323, %v5428, %v5436
      %v5438 = vrot.slane %v5436, 4
      %v5440 = vshrl.u32 %v5099, 16
      %v5442 = vrot.slane %v5440, 5
      %v5443 = vshll.u32 %v5099, 16
      %v5445 = vrot.slane %v5443, 6
      %v5446 = vor.u32 %v5442, %v5445
      %v5447 = vsel %vm1323, %v5438, %v5446
      %v5449 = vshrl.u32 %v5100, 16
      %v5451 = vrot.slane %v5449, 5
      %v5452 = vshll.u32 %v5100, 16
      %v5454 = vrot.slane %v5452, 6
      %v5455 = vor.u32 %v5451, %v5454
      %v5456 = vrot.slane %v5455, 4
      %v5458 = vshrl.u32 %v5101, 16
      %v5460 = vrot.slane %v5458, 5
      %v5461 = vshll.u32 %v5101, 16
      %v5463 = vrot.slane %v5461, 6
      %v5464 = vor.u32 %v5460, %v5463
      %v5465 = vsel %vm1323, %v5456, %v5464
      %v5466 = vrot.slane %v5464, 4
      %v5468 = vshrl.u32 %v5102, 16
      %v5470 = vrot.slane %v5468, 5
      %v5471 = vshll.u32 %v5102, 16
      %v5473 = vrot.slane %v5471, 6
      %v5474 = vor.u32 %v5470, %v5473
      %v5475 = vsel %vm1323, %v5466, %v5474
      %v5477 = vshrl.u32 %v5103, 16
      %v5479 = vrot.slane %v5477, 5
      %v5480 = vshll.u32 %v5103, 16
      %v5482 = vrot.slane %v5480, 6
      %v5483 = vor.u32 %v5479, %v5482
      %v5484 = vrot.slane %v5483, 4
      %v5486 = vshrl.u32 %v5104, 16
      %v5488 = vrot.slane %v5486, 5
      %v5489 = vshll.u32 %v5104, 16
      %v5491 = vrot.slane %v5489, 6
      %v5492 = vor.u32 %v5488, %v5491
      %v5493 = vsel %vm1323, %v5484, %v5492
      %v5494 = vrot.slane %v5492, 4
      %v5496 = vshrl.u32 %v5105, 16
      %v5498 = vrot.slane %v5496, 5
      %v5499 = vshll.u32 %v5105, 16
      %v5501 = vrot.slane %v5499, 6
      %v5502 = vor.u32 %v5498, %v5501
      %v5503 = vsel %vm1323, %v5494, %v5502
      %v5505 = vshrl.u32 %v5106, 16
      %v5507 = vrot.slane %v5505, 5
      %v5508 = vshll.u32 %v5106, 16
      %v5510 = vrot.slane %v5508, 6
      %v5511 = vor.u32 %v5507, %v5510
      %v5512 = vrot.slane %v5511, 4
      %v5514 = vshrl.u32 %v5107, 16
      %v5516 = vrot.slane %v5514, 5
      %v5517 = vshll.u32 %v5107, 16
      %v5519 = vrot.slane %v5517, 6
      %v5520 = vor.u32 %v5516, %v5519
      %v5521 = vsel %vm1323, %v5512, %v5520
      %v5522 = vrot.slane %v5520, 4
      %v5524 = vshrl.u32 %v5108, 16
      %v5526 = vrot.slane %v5524, 5
      %v5527 = vshll.u32 %v5108, 16
      %v5529 = vrot.slane %v5527, 6
      %v5530 = vor.u32 %v5526, %v5529
      %v5531 = vsel %vm1323, %v5522, %v5530
      %v5533 = vshrl.u32 %v5109, 16
      %v5535 = vrot.slane %v5533, 5
      %v5536 = vshll.u32 %v5109, 16
      %v5538 = vrot.slane %v5536, 6
      %v5539 = vor.u32 %v5535, %v5538
      %v5540 = vrot.slane %v5539, 4
      %v5542 = vshrl.u32 %v5110, 16
      %v5544 = vrot.slane %v5542, 5
      %v5545 = vshll.u32 %v5110, 16
      %v5547 = vrot.slane %v5545, 6
      %v5548 = vor.u32 %v5544, %v5547
      %v5549 = vsel %vm1323, %v5540, %v5548
      %v5550 = vrot.slane %v5548, 4
      %v5552 = vshrl.u32 %v5111, 16
      %v5554 = vrot.slane %v5552, 5
      %v5555 = vshll.u32 %v5111, 16
      %v5557 = vrot.slane %v5555, 6
      %v5558 = vor.u32 %v5554, %v5557
      %v5559 = vsel %vm1323, %v5550, %v5558
      %v5560 = vunpack.c.l.b16 %v5129
      %v5561 = vunpack.c.l.b16 %v5139
      %v5562 = vunpack.c.l.b16 %v5157
      %v5563 = vunpack.c.l.b16 %v5167
      %v5564 = vunpack.c.l.b16 %v5185
      %v5565 = vunpack.c.l.b16 %v5195
      %v5566 = vunpack.c.l.b16 %v5213
      %v5567 = vunpack.c.l.b16 %v5223
      %v5568 = vunpack.c.l.b16 %v5241
      %v5569 = vunpack.c.l.b16 %v5251
      %v5570 = vunpack.c.l.b16 %v5269
      %v5571 = vunpack.c.l.b16 %v5279
      %v5572 = vunpack.c.l.b16 %v5297
      %v5573 = vunpack.c.l.b16 %v5307
      %v5574 = vunpack.c.l.b16 %v5325
      %v5575 = vunpack.c.l.b16 %v5335
      %v5576 = vunpack.c.l.b16 %v5353
      %v5577 = vunpack.c.l.b16 %v5363
      %v5578 = vunpack.c.l.b16 %v5381
      %v5579 = vunpack.c.l.b16 %v5391
      %v5580 = vunpack.c.l.b16 %v5409
      %v5581 = vunpack.c.l.b16 %v5419
      %v5582 = vunpack.c.l.b16 %v5437
      %v5583 = vunpack.c.l.b16 %v5447
      %v5584 = vunpack.c.l.b16 %v5465
      %v5585 = vunpack.c.l.b16 %v5475
      %v5586 = vunpack.c.l.b16 %v5493
      %v5587 = vunpack.c.l.b16 %v5503
      %v5588 = vunpack.c.l.b16 %v5521
      %v5589 = vunpack.c.l.b16 %v5531
      %v5590 = vunpack.c.l.b16 %v5549
      %v5591 = vunpack.c.l.b16 %v5559
      %v5592 = vpack.c.b16 %v5561, %v5560
      %v5593 = vpack.c.b16 %v5563, %v5562
      %v5594 = vpack.c.b16 %v5565, %v5564
      %v5595 = vpack.c.b16 %v5567, %v5566
      %v5596 = vpack.c.b16 %v5569, %v5568
      %v5597 = vpack.c.b16 %v5571, %v5570
      %v5598 = vpack.c.b16 %v5573, %v5572
      %v5599 = vpack.c.b16 %v5575, %v5574
      %v5600 = vpack.c.b16 %v5577, %v5576
      %v5601 = vpack.c.b16 %v5579, %v5578
      %v5602 = vpack.c.b16 %v5581, %v5580
      %v5603 = vpack.c.b16 %v5583, %v5582
      %v5604 = vpack.c.b16 %v5585, %v5584
      %v5605 = vpack.c.b16 %v5587, %v5586
      %v5606 = vpack.c.b16 %v5589, %v5588
      %v5607 = vpack.c.b16 %v5591, %v5590
      %5624 = vxpose.xlu0.c.b16.start [1/8] %v5592, 128
      %5625 = vxpose.xlu0.c.b16.cont [2/8] %v5593, 128
      %5626 = vxpose.xlu0.c.b16.cont [3/8] %v5594, 128
      %5627 = vxpose.xlu0.c.b16.cont [4/8] %v5595, 128
      %5628 = vxpose.xlu0.c.b16.cont [5/8] %v5596, 128
      %5629 = vxpose.xlu0.c.b16.cont [6/8] %v5597, 128
      %5630 = vxpose.xlu0.c.b16.cont [7/8] %v5598, 128
      %5631 = vxpose.xlu0.c.b16.end [8/8] %v5599, 128
      %v5632 = vpop.trf.xlu0
      %v5633 = vpop.trf.xlu0
      %v5634 = vpop.trf.xlu0
      %v5635 = vpop.trf.xlu0
      %v5636 = vpop.trf.xlu0
      %v5637 = vpop.trf.xlu0
      %v5638 = vpop.trf.xlu0
      %v5639 = vpop.trf.xlu0
      %5640 = vxpose.xlu0.c.b16.start [1/8] %v5600, 128
      %5641 = vxpose.xlu0.c.b16.cont [2/8] %v5601, 128
      %5642 = vxpose.xlu0.c.b16.cont [3/8] %v5602, 128
      %5643 = vxpose.xlu0.c.b16.cont [4/8] %v5603, 128
      %5644 = vxpose.xlu0.c.b16.cont [5/8] %v5604, 128
      %5645 = vxpose.xlu0.c.b16.cont [6/8] %v5605, 128
      %5646 = vxpose.xlu0.c.b16.cont [7/8] %v5606, 128
      %5647 = vxpose.xlu0.c.b16.end [8/8] %v5607, 128
      %v5648 = vpop.trf.xlu0
      %v5649 = vpop.trf.xlu0
      %v5650 = vpop.trf.xlu0
      %v5651 = vpop.trf.xlu0
      %v5652 = vpop.trf.xlu0
      %v5653 = vpop.trf.xlu0
      %v5654 = vpop.trf.xlu0
      %v5655 = vpop.trf.xlu0
      %v5656 = vld [vmem:[%s5063 + $0x8] sm:$0xf]
      %v5657 = vld [vmem:[%s5063 + $0x18] sm:$0xf]
      %v5658 = vld [vmem:[%s5063 + $0x28] sm:$0xf]
      %v5659 = vld [vmem:[%s5063 + $0x38] sm:$0xf]
      %v5660 = vld [vmem:[%s5063 + $0x48] sm:$0xf]
      %v5661 = vld [vmem:[%s5063 + $0x58] sm:$0xf]
      %v5662 = vld [vmem:[%s5063 + $0x68] sm:$0xf]
      %v5663 = vld [vmem:[%s5063 + $0x78] sm:$0xf]
      %v5664 = vld [vmem:[%s5063 + $0x88] sm:$0xf]
      %v5665 = vld [vmem:[%s5063 + $0x98] sm:$0xf]
      %v5666 = vld [vmem:[%s5063 + $0xa8] sm:$0xf]
      %v5667 = vld [vmem:[%s5063 + $0xb8] sm:$0xf]
      %v5668 = vld [vmem:[%s5063 + $0xc8] sm:$0xf]
      %v5669 = vld [vmem:[%s5063 + $0xd8] sm:$0xf]
      %v5670 = vld [vmem:[%s5063 + $0xe8] sm:$0xf]
      %v5671 = vld [vmem:[%s5063 + $0xf8] sm:$0xf]
      %v5704 = vunpack.c.l.b16 %v5065
      %v5705 = vunpack.c.l.b16 %v5656
      %v5706 = vunpack.c.l.b16 %v5068
      %v5707 = vunpack.c.l.b16 %v5657
      %v5708 = vunpack.c.l.b16 %v5071
      %v5709 = vunpack.c.l.b16 %v5658
      %v5710 = vunpack.c.l.b16 %v5074
      %v5711 = vunpack.c.l.b16 %v5659
      %v5712 = vunpack.c.l.b16 %v5077
      %v5713 = vunpack.c.l.b16 %v5660
      %v5714 = vunpack.c.l.b16 %v5080
      %v5715 = vunpack.c.l.b16 %v5661
      %v5716 = vunpack.c.l.b16 %v5083
      %v5717 = vunpack.c.l.b16 %v5662
      %v5718 = vunpack.c.l.b16 %v5086
      %v5719 = vunpack.c.l.b16 %v5663
      %v5720 = vunpack.c.l.b16 %v5089
      %v5721 = vunpack.c.l.b16 %v5664
      %v5722 = vunpack.c.l.b16 %v5092
      %v5723 = vunpack.c.l.b16 %v5665
      %v5724 = vunpack.c.l.b16 %v5095
      %v5725 = vunpack.c.l.b16 %v5666
      %v5726 = vunpack.c.l.b16 %v5098
      %v5727 = vunpack.c.l.b16 %v5667
      %v5728 = vunpack.c.l.b16 %v5101
      %v5729 = vunpack.c.l.b16 %v5668
      %v5730 = vunpack.c.l.b16 %v5104
      %v5731 = vunpack.c.l.b16 %v5669
      %v5732 = vunpack.c.l.b16 %v5107
      %v5733 = vunpack.c.l.b16 %v5670
      %v5734 = vunpack.c.l.b16 %v5110
      %v5735 = vunpack.c.l.b16 %v5671
      %v5736 = vpack.c.b16 %v5705, %v5704
      %v5737 = vpack.c.b16 %v5707, %v5706
      %v5738 = vpack.c.b16 %v5709, %v5708
      %v5739 = vpack.c.b16 %v5711, %v5710
      %v5740 = vpack.c.b16 %v5713, %v5712
      %v5741 = vpack.c.b16 %v5715, %v5714
      %v5742 = vpack.c.b16 %v5717, %v5716
      %v5743 = vpack.c.b16 %v5719, %v5718
      %v5744 = vpack.c.b16 %v5721, %v5720
      %v5745 = vpack.c.b16 %v5723, %v5722
      %v5746 = vpack.c.b16 %v5725, %v5724
      %v5747 = vpack.c.b16 %v5727, %v5726
      %v5748 = vpack.c.b16 %v5729, %v5728
      %v5749 = vpack.c.b16 %v5731, %v5730
      %v5750 = vpack.c.b16 %v5733, %v5732
      %v5751 = vpack.c.b16 %v5735, %v5734
      %5768 = vxpose.xlu0.c.b16.start [1/8] %v5736, 128
      %5769 = vxpose.xlu0.c.b16.cont [2/8] %v5737, 128
      %5770 = vxpose.xlu0.c.b16.cont [3/8] %v5738, 128
      %5771 = vxpose.xlu0.c.b16.cont [4/8] %v5739, 128
      %5772 = vxpose.xlu0.c.b16.cont [5/8] %v5740, 128
      %5773 = vxpose.xlu0.c.b16.cont [6/8] %v5741, 128
      %5774 = vxpose.xlu0.c.b16.cont [7/8] %v5742, 128
      %5775 = vxpose.xlu0.c.b16.end [8/8] %v5743, 128
      %v5776 = vpop.trf.xlu0
      %v5777 = vpop.trf.xlu0
      %v5778 = vpop.trf.xlu0
      %v5779 = vpop.trf.xlu0
      %v5780 = vpop.trf.xlu0
      %v5781 = vpop.trf.xlu0
      %v5782 = vpop.trf.xlu0
      %v5783 = vpop.trf.xlu0
      %5784 = vxpose.xlu0.c.b16.start [1/8] %v5744, 128
      %5785 = vxpose.xlu0.c.b16.cont [2/8] %v5745, 128
      %5786 = vxpose.xlu0.c.b16.cont [3/8] %v5746, 128
      %5787 = vxpose.xlu0.c.b16.cont [4/8] %v5747, 128
      %5788 = vxpose.xlu0.c.b16.cont [5/8] %v5748, 128
      %5789 = vxpose.xlu0.c.b16.cont [6/8] %v5749, 128
      %5790 = vxpose.xlu0.c.b16.cont [7/8] %v5750, 128
      %5791 = vxpose.xlu0.c.b16.end [8/8] %v5751, 128
      %v5792 = vpop.trf.xlu0
      %v5793 = vpop.trf.xlu0
      %v5794 = vpop.trf.xlu0
      %v5795 = vpop.trf.xlu0
      %v5796 = vpop.trf.xlu0
      %v5797 = vpop.trf.xlu0
      %v5798 = vpop.trf.xlu0
      %v5799 = vpop.trf.xlu0
      %v5800 = vld [vmem:[%s5063 + $0x4] sm:$0xc]
      %v5801 = vld [vmem:[%s5063 + $0x8] sm:$0xf]
      %v5802 = vld [vmem:[%s5063 + $0xc] sm:$0x7]
      %v5803 = vld [vmem:[%s5063 + $0x14] sm:$0xc]
      %v5804 = vld [vmem:[%s5063 + $0x18] sm:$0xf]
      %v5805 = vld [vmem:[%s5063 + $0x1c] sm:$0x7]
      %v5806 = vld [vmem:[%s5063 + $0x24] sm:$0xc]
      %v5807 = vld [vmem:[%s5063 + $0x28] sm:$0xf]
      %v5808 = vld [vmem:[%s5063 + $0x2c] sm:$0x7]
      %v5809 = vld [vmem:[%s5063 + $0x34] sm:$0xc]
      %v5810 = vld [vmem:[%s5063 + $0x38] sm:$0xf]
      %v5811 = vld [vmem:[%s5063 + $0x3c] sm:$0x7]
      %v5812 = vld [vmem:[%s5063 + $0x44] sm:$0xc]
      %v5813 = vld [vmem:[%s5063 + $0x48] sm:$0xf]
      %v5814 = vld [vmem:[%s5063 + $0x4c] sm:$0x7]
      %v5815 = vld [vmem:[%s5063 + $0x54] sm:$0xc]
      %v5816 = vld [vmem:[%s5063 + $0x58] sm:$0xf]
      %v5817 = vld [vmem:[%s5063 + $0x5c] sm:$0x7]
      %v5818 = vld [vmem:[%s5063 + $0x64] sm:$0xc]
      %v5819 = vld [vmem:[%s5063 + $0x68] sm:$0xf]
      %v5820 = vld [vmem:[%s5063 + $0x6c] sm:$0x7]
      %v5821 = vld [vmem:[%s5063 + $0x74] sm:$0xc]
      %v5822 = vld [vmem:[%s5063 + $0x78] sm:$0xf]
      %v5823 = vld [vmem:[%s5063 + $0x7c] sm:$0x7]
      %v5824 = vld [vmem:[%s5063 + $0x84] sm:$0xc]
      %v5825 = vld [vmem:[%s5063 + $0x88] sm:$0xf]
      %v5826 = vld [vmem:[%s5063 + $0x8c] sm:$0x7]
      %v5827 = vld [vmem:[%s5063 + $0x94] sm:$0xc]
      %v5828 = vld [vmem:[%s5063 + $0x98] sm:$0xf]
      %v5829 = vld [vmem:[%s5063 + $0x9c] sm:$0x7]
      %v5830 = vld [vmem:[%s5063 + $0xa4] sm:$0xc]
      %v5831 = vld [vmem:[%s5063 + $0xa8] sm:$0xf]
      %v5832 = vld [vmem:[%s5063 + $0xac] sm:$0x7]
      %v5833 = vld [vmem:[%s5063 + $0xb4] sm:$0xc]
      %v5834 = vld [vmem:[%s5063 + $0xb8] sm:$0xf]
      %v5835 = vld [vmem:[%s5063 + $0xbc] sm:$0x7]
      %v5836 = vld [vmem:[%s5063 + $0xc4] sm:$0xc]
      %v5837 = vld [vmem:[%s5063 + $0xc8] sm:$0xf]
      %v5838 = vld [vmem:[%s5063 + $0xcc] sm:$0x7]
      %v5839 = vld [vmem:[%s5063 + $0xd4] sm:$0xc]
      %v5840 = vld [vmem:[%s5063 + $0xd8] sm:$0xf]
      %v5841 = vld [vmem:[%s5063 + $0xdc] sm:$0x7]
      %v5842 = vld [vmem:[%s5063 + $0xe4] sm:$0xc]
      %v5843 = vld [vmem:[%s5063 + $0xe8] sm:$0xf]
      %v5844 = vld [vmem:[%s5063 + $0xec] sm:$0x7]
      %v5845 = vld [vmem:[%s5063 + $0xf4] sm:$0xc]
      %v5846 = vld [vmem:[%s5063 + $0xf8] sm:$0xf]
      %v5847 = vld [vmem:[%s5063 + $0xfc] sm:$0x7]
      %v5849 = vshrl.u32 %v5800, 16
      %v5851 = vrot.slane %v5849, 6
      %v5852 = vshll.u32 %v5800, 16
      %v5854 = vrot.slane %v5852, 7
      %v5855 = vor.u32 %v5851, %v5854
      %v5856 = vrot.slane %v5855, 4
      %v5858 = vshrl.u32 %v5801, 16
      %v5860 = vrot.slane %v5858, 6
      %v5861 = vshll.u32 %v5801, 16
      %v5863 = vrot.slane %v5861, 7
      %v5864 = vor.u32 %v5860, %v5863
      %v5865 = vsel %vm584, %v5856, %v5864
      %v5866 = vrot.slane %v5864, 4
      %v5868 = vshrl.u32 %v5802, 16
      %v5870 = vrot.slane %v5868, 6
      %v5871 = vshll.u32 %v5802, 16
      %v5873 = vrot.slane %v5871, 7
      %v5874 = vor.u32 %v5870, %v5873
      %v5875 = vsel %vm584, %v5866, %v5874
      %v5877 = vshrl.u32 %v5803, 16
      %v5879 = vrot.slane %v5877, 6
      %v5880 = vshll.u32 %v5803, 16
      %v5882 = vrot.slane %v5880, 7
      %v5883 = vor.u32 %v5879, %v5882
      %v5884 = vrot.slane %v5883, 4
      %v5886 = vshrl.u32 %v5804, 16
      %v5888 = vrot.slane %v5886, 6
      %v5889 = vshll.u32 %v5804, 16
      %v5891 = vrot.slane %v5889, 7
      %v5892 = vor.u32 %v5888, %v5891
      %v5893 = vsel %vm584, %v5884, %v5892
      %v5894 = vrot.slane %v5892, 4
      %v5896 = vshrl.u32 %v5805, 16
      %v5898 = vrot.slane %v5896, 6
      %v5899 = vshll.u32 %v5805, 16
      %v5901 = vrot.slane %v5899, 7
      %v5902 = vor.u32 %v5898, %v5901
      %v5903 = vsel %vm584, %v5894, %v5902
      %v5905 = vshrl.u32 %v5806, 16
      %v5907 = vrot.slane %v5905, 6
      %v5908 = vshll.u32 %v5806, 16
      %v5910 = vrot.slane %v5908, 7
      %v5911 = vor.u32 %v5907, %v5910
      %v5912 = vrot.slane %v5911, 4
      %v5914 = vshrl.u32 %v5807, 16
      %v5916 = vrot.slane %v5914, 6
      %v5917 = vshll.u32 %v5807, 16
      %v5919 = vrot.slane %v5917, 7
      %v5920 = vor.u32 %v5916, %v5919
      %v5921 = vsel %vm584, %v5912, %v5920
      %v5922 = vrot.slane %v5920, 4
      %v5924 = vshrl.u32 %v5808, 16
      %v5926 = vrot.slane %v5924, 6
      %v5927 = vshll.u32 %v5808, 16
      %v5929 = vrot.slane %v5927, 7
      %v5930 = vor.u32 %v5926, %v5929
      %v5931 = vsel %vm584, %v5922, %v5930
      %v5933 = vshrl.u32 %v5809, 16
      %v5935 = vrot.slane %v5933, 6
      %v5936 = vshll.u32 %v5809, 16
      %v5938 = vrot.slane %v5936, 7
      %v5939 = vor.u32 %v5935, %v5938
      %v5940 = vrot.slane %v5939, 4
      %v5942 = vshrl.u32 %v5810, 16
      %v5944 = vrot.slane %v5942, 6
      %v5945 = vshll.u32 %v5810, 16
      %v5947 = vrot.slane %v5945, 7
      %v5948 = vor.u32 %v5944, %v5947
      %v5949 = vsel %vm584, %v5940, %v5948
      %v5950 = vrot.slane %v5948, 4
      %v5952 = vshrl.u32 %v5811, 16
      %v5954 = vrot.slane %v5952, 6
      %v5955 = vshll.u32 %v5811, 16
      %v5957 = vrot.slane %v5955, 7
      %v5958 = vor.u32 %v5954, %v5957
      %v5959 = vsel %vm584, %v5950, %v5958
      %v5961 = vshrl.u32 %v5812, 16
      %v5963 = vrot.slane %v5961, 6
      %v5964 = vshll.u32 %v5812, 16
      %v5966 = vrot.slane %v5964, 7
      %v5967 = vor.u32 %v5963, %v5966
      %v5968 = vrot.slane %v5967, 4
      %v5970 = vshrl.u32 %v5813, 16
      %v5972 = vrot.slane %v5970, 6
      %v5973 = vshll.u32 %v5813, 16
      %v5975 = vrot.slane %v5973, 7
      %v5976 = vor.u32 %v5972, %v5975
      %v5977 = vsel %vm584, %v5968, %v5976
      %v5978 = vrot.slane %v5976, 4
      %v5980 = vshrl.u32 %v5814, 16
      %v5982 = vrot.slane %v5980, 6
      %v5983 = vshll.u32 %v5814, 16
      %v5985 = vrot.slane %v5983, 7
      %v5986 = vor.u32 %v5982, %v5985
      %v5987 = vsel %vm584, %v5978, %v5986
      %v5989 = vshrl.u32 %v5815, 16
      %v5991 = vrot.slane %v5989, 6
      %v5992 = vshll.u32 %v5815, 16
      %v5994 = vrot.slane %v5992, 7
      %v5995 = vor.u32 %v5991, %v5994
      %v5996 = vrot.slane %v5995, 4
      %v5998 = vshrl.u32 %v5816, 16
      %v6000 = vrot.slane %v5998, 6
      %v6001 = vshll.u32 %v5816, 16
      %v6003 = vrot.slane %v6001, 7
      %v6004 = vor.u32 %v6000, %v6003
      %v6005 = vsel %vm584, %v5996, %v6004
      %v6006 = vrot.slane %v6004, 4
      %v6008 = vshrl.u32 %v5817, 16
      %v6010 = vrot.slane %v6008, 6
      %v6011 = vshll.u32 %v5817, 16
      %v6013 = vrot.slane %v6011, 7
      %v6014 = vor.u32 %v6010, %v6013
      %v6015 = vsel %vm584, %v6006, %v6014
      %v6017 = vshrl.u32 %v5818, 16
      %v6019 = vrot.slane %v6017, 6
      %v6020 = vshll.u32 %v5818, 16
      %v6022 = vrot.slane %v6020, 7
      %v6023 = vor.u32 %v6019, %v6022
      %v6024 = vrot.slane %v6023, 4
      %v6026 = vshrl.u32 %v5819, 16
      %v6028 = vrot.slane %v6026, 6
      %v6029 = vshll.u32 %v5819, 16
      %v6031 = vrot.slane %v6029, 7
      %v6032 = vor.u32 %v6028, %v6031
      %v6033 = vsel %vm584, %v6024, %v6032
      %v6034 = vrot.slane %v6032, 4
      %v6036 = vshrl.u32 %v5820, 16
      %v6038 = vrot.slane %v6036, 6
      %v6039 = vshll.u32 %v5820, 16
      %v6041 = vrot.slane %v6039, 7
      %v6042 = vor.u32 %v6038, %v6041
      %v6043 = vsel %vm584, %v6034, %v6042
      %v6045 = vshrl.u32 %v5821, 16
      %v6047 = vrot.slane %v6045, 6
      %v6048 = vshll.u32 %v5821, 16
      %v6050 = vrot.slane %v6048, 7
      %v6051 = vor.u32 %v6047, %v6050
      %v6052 = vrot.slane %v6051, 4
      %v6054 = vshrl.u32 %v5822, 16
      %v6056 = vrot.slane %v6054, 6
      %v6057 = vshll.u32 %v5822, 16
      %v6059 = vrot.slane %v6057, 7
      %v6060 = vor.u32 %v6056, %v6059
      %v6061 = vsel %vm584, %v6052, %v6060
      %v6062 = vrot.slane %v6060, 4
      %v6064 = vshrl.u32 %v5823, 16
      %v6066 = vrot.slane %v6064, 6
      %v6067 = vshll.u32 %v5823, 16
      %v6069 = vrot.slane %v6067, 7
      %v6070 = vor.u32 %v6066, %v6069
      %v6071 = vsel %vm584, %v6062, %v6070
      %v6073 = vshrl.u32 %v5824, 16
      %v6075 = vrot.slane %v6073, 6
      %v6076 = vshll.u32 %v5824, 16
      %v6078 = vrot.slane %v6076, 7
      %v6079 = vor.u32 %v6075, %v6078
      %v6080 = vrot.slane %v6079, 4
      %v6082 = vshrl.u32 %v5825, 16
      %v6084 = vrot.slane %v6082, 6
      %v6085 = vshll.u32 %v5825, 16
      %v6087 = vrot.slane %v6085, 7
      %v6088 = vor.u32 %v6084, %v6087
      %v6089 = vsel %vm584, %v6080, %v6088
      %v6090 = vrot.slane %v6088, 4
      %v6092 = vshrl.u32 %v5826, 16
      %v6094 = vrot.slane %v6092, 6
      %v6095 = vshll.u32 %v5826, 16
      %v6097 = vrot.slane %v6095, 7
      %v6098 = vor.u32 %v6094, %v6097
      %v6099 = vsel %vm584, %v6090, %v6098
      %v6101 = vshrl.u32 %v5827, 16
      %v6103 = vrot.slane %v6101, 6
      %v6104 = vshll.u32 %v5827, 16
      %v6106 = vrot.slane %v6104, 7
      %v6107 = vor.u32 %v6103, %v6106
      %v6108 = vrot.slane %v6107, 4
      %v6110 = vshrl.u32 %v5828, 16
      %v6112 = vrot.slane %v6110, 6
      %v6113 = vshll.u32 %v5828, 16
      %v6115 = vrot.slane %v6113, 7
      %v6116 = vor.u32 %v6112, %v6115
      %v6117 = vsel %vm584, %v6108, %v6116
      %v6118 = vrot.slane %v6116, 4
      %v6120 = vshrl.u32 %v5829, 16
      %v6122 = vrot.slane %v6120, 6
      %v6123 = vshll.u32 %v5829, 16
      %v6125 = vrot.slane %v6123, 7
      %v6126 = vor.u32 %v6122, %v6125
      %v6127 = vsel %vm584, %v6118, %v6126
      %v6129 = vshrl.u32 %v5830, 16
      %v6131 = vrot.slane %v6129, 6
      %v6132 = vshll.u32 %v5830, 16
      %v6134 = vrot.slane %v6132, 7
      %v6135 = vor.u32 %v6131, %v6134
      %v6136 = vrot.slane %v6135, 4
      %v6138 = vshrl.u32 %v5831, 16
      %v6140 = vrot.slane %v6138, 6
      %v6141 = vshll.u32 %v5831, 16
      %v6143 = vrot.slane %v6141, 7
      %v6144 = vor.u32 %v6140, %v6143
      %v6145 = vsel %vm584, %v6136, %v6144
      %v6146 = vrot.slane %v6144, 4
      %v6148 = vshrl.u32 %v5832, 16
      %v6150 = vrot.slane %v6148, 6
      %v6151 = vshll.u32 %v5832, 16
      %v6153 = vrot.slane %v6151, 7
      %v6154 = vor.u32 %v6150, %v6153
      %v6155 = vsel %vm584, %v6146, %v6154
      %v6157 = vshrl.u32 %v5833, 16
      %v6159 = vrot.slane %v6157, 6
      %v6160 = vshll.u32 %v5833, 16
      %v6162 = vrot.slane %v6160, 7
      %v6163 = vor.u32 %v6159, %v6162
      %v6164 = vrot.slane %v6163, 4
      %v6166 = vshrl.u32 %v5834, 16
      %v6168 = vrot.slane %v6166, 6
      %v6169 = vshll.u32 %v5834, 16
      %v6171 = vrot.slane %v6169, 7
      %v6172 = vor.u32 %v6168, %v6171
      %v6173 = vsel %vm584, %v6164, %v6172
      %v6174 = vrot.slane %v6172, 4
      %v6176 = vshrl.u32 %v5835, 16
      %v6178 = vrot.slane %v6176, 6
      %v6179 = vshll.u32 %v5835, 16
      %v6181 = vrot.slane %v6179, 7
      %v6182 = vor.u32 %v6178, %v6181
      %v6183 = vsel %vm584, %v6174, %v6182
      %v6185 = vshrl.u32 %v5836, 16
      %v6187 = vrot.slane %v6185, 6
      %v6188 = vshll.u32 %v5836, 16
      %v6190 = vrot.slane %v6188, 7
      %v6191 = vor.u32 %v6187, %v6190
      %v6192 = vrot.slane %v6191, 4
      %v6194 = vshrl.u32 %v5837, 16
      %v6196 = vrot.slane %v6194, 6
      %v6197 = vshll.u32 %v5837, 16
      %v6199 = vrot.slane %v6197, 7
      %v6200 = vor.u32 %v6196, %v6199
      %v6201 = vsel %vm584, %v6192, %v6200
      %v6202 = vrot.slane %v6200, 4
      %v6204 = vshrl.u32 %v5838, 16
      %v6206 = vrot.slane %v6204, 6
      %v6207 = vshll.u32 %v5838, 16
      %v6209 = vrot.slane %v6207, 7
      %v6210 = vor.u32 %v6206, %v6209
      %v6211 = vsel %vm584, %v6202, %v6210
      %v6213 = vshrl.u32 %v5839, 16
      %v6215 = vrot.slane %v6213, 6
      %v6216 = vshll.u32 %v5839, 16
      %v6218 = vrot.slane %v6216, 7
      %v6219 = vor.u32 %v6215, %v6218
      %v6220 = vrot.slane %v6219, 4
      %v6222 = vshrl.u32 %v5840, 16
      %v6224 = vrot.slane %v6222, 6
      %v6225 = vshll.u32 %v5840, 16
      %v6227 = vrot.slane %v6225, 7
      %v6228 = vor.u32 %v6224, %v6227
      %v6229 = vsel %vm584, %v6220, %v6228
      %v6230 = vrot.slane %v6228, 4
      %v6232 = vshrl.u32 %v5841, 16
      %v6234 = vrot.slane %v6232, 6
      %v6235 = vshll.u32 %v5841, 16
      %v6237 = vrot.slane %v6235, 7
      %v6238 = vor.u32 %v6234, %v6237
      %v6239 = vsel %vm584, %v6230, %v6238
      %v6241 = vshrl.u32 %v5842, 16
      %v6243 = vrot.slane %v6241, 6
      %v6244 = vshll.u32 %v5842, 16
      %v6246 = vrot.slane %v6244, 7
      %v6247 = vor.u32 %v6243, %v6246
      %v6248 = vrot.slane %v6247, 4
      %v6250 = vshrl.u32 %v5843, 16
      %v6252 = vrot.slane %v6250, 6
      %v6253 = vshll.u32 %v5843, 16
      %v6255 = vrot.slane %v6253, 7
      %v6256 = vor.u32 %v6252, %v6255
      %v6257 = vsel %vm584, %v6248, %v6256
      %v6258 = vrot.slane %v6256, 4
      %v6260 = vshrl.u32 %v5844, 16
      %v6262 = vrot.slane %v6260, 6
      %v6263 = vshll.u32 %v5844, 16
      %v6265 = vrot.slane %v6263, 7
      %v6266 = vor.u32 %v6262, %v6265
      %v6267 = vsel %vm584, %v6258, %v6266
      %v6269 = vshrl.u32 %v5845, 16
      %v6271 = vrot.slane %v6269, 6
      %v6272 = vshll.u32 %v5845, 16
      %v6274 = vrot.slane %v6272, 7
      %v6275 = vor.u32 %v6271, %v6274
      %v6276 = vrot.slane %v6275, 4
      %v6278 = vshrl.u32 %v5846, 16
      %v6280 = vrot.slane %v6278, 6
      %v6281 = vshll.u32 %v5846, 16
      %v6283 = vrot.slane %v6281, 7
      %v6284 = vor.u32 %v6280, %v6283
      %v6285 = vsel %vm584, %v6276, %v6284
      %v6286 = vrot.slane %v6284, 4
      %v6288 = vshrl.u32 %v5847, 16
      %v6290 = vrot.slane %v6288, 6
      %v6291 = vshll.u32 %v5847, 16
      %v6293 = vrot.slane %v6291, 7
      %v6294 = vor.u32 %v6290, %v6293
      %v6295 = vsel %vm584, %v6286, %v6294
      %v6296 = vunpack.c.l.b16 %v5865
      %v6297 = vunpack.c.l.b16 %v5875
      %v6298 = vunpack.c.l.b16 %v5893
      %v6299 = vunpack.c.l.b16 %v5903
      %v6300 = vunpack.c.l.b16 %v5921
      %v6301 = vunpack.c.l.b16 %v5931
      %v6302 = vunpack.c.l.b16 %v5949
      %v6303 = vunpack.c.l.b16 %v5959
      %v6304 = vunpack.c.l.b16 %v5977
      %v6305 = vunpack.c.l.b16 %v5987
      %v6306 = vunpack.c.l.b16 %v6005
      %v6307 = vunpack.c.l.b16 %v6015
      %v6308 = vunpack.c.l.b16 %v6033
      %v6309 = vunpack.c.l.b16 %v6043
      %v6310 = vunpack.c.l.b16 %v6061
      %v6311 = vunpack.c.l.b16 %v6071
      %v6312 = vunpack.c.l.b16 %v6089
      %v6313 = vunpack.c.l.b16 %v6099
      %v6314 = vunpack.c.l.b16 %v6117
      %v6315 = vunpack.c.l.b16 %v6127
      %v6316 = vunpack.c.l.b16 %v6145
      %v6317 = vunpack.c.l.b16 %v6155
      %v6318 = vunpack.c.l.b16 %v6173
      %v6319 = vunpack.c.l.b16 %v6183
      %v6320 = vunpack.c.l.b16 %v6201
      %v6321 = vunpack.c.l.b16 %v6211
      %v6322 = vunpack.c.l.b16 %v6229
      %v6323 = vunpack.c.l.b16 %v6239
      %v6324 = vunpack.c.l.b16 %v6257
      %v6325 = vunpack.c.l.b16 %v6267
      %v6326 = vunpack.c.l.b16 %v6285
      %v6327 = vunpack.c.l.b16 %v6295
      %v6328 = vpack.c.b16 %v6297, %v6296
      %v6329 = vpack.c.b16 %v6299, %v6298
      %v6330 = vpack.c.b16 %v6301, %v6300
      %v6331 = vpack.c.b16 %v6303, %v6302
      %v6332 = vpack.c.b16 %v6305, %v6304
      %v6333 = vpack.c.b16 %v6307, %v6306
      %v6334 = vpack.c.b16 %v6309, %v6308
      %v6335 = vpack.c.b16 %v6311, %v6310
      %v6336 = vpack.c.b16 %v6313, %v6312
      %v6337 = vpack.c.b16 %v6315, %v6314
      %v6338 = vpack.c.b16 %v6317, %v6316
      %v6339 = vpack.c.b16 %v6319, %v6318
      %v6340 = vpack.c.b16 %v6321, %v6320
      %v6341 = vpack.c.b16 %v6323, %v6322
      %v6342 = vpack.c.b16 %v6325, %v6324
      %v6343 = vpack.c.b16 %v6327, %v6326
      %6360 = vxpose.xlu0.c.b16.start [1/8] %v6328, 128
      %6361 = vxpose.xlu0.c.b16.cont [2/8] %v6329, 128
      %6362 = vxpose.xlu0.c.b16.cont [3/8] %v6330, 128
      %6363 = vxpose.xlu0.c.b16.cont [4/8] %v6331, 128
      %6364 = vxpose.xlu0.c.b16.cont [5/8] %v6332, 128
      %6365 = vxpose.xlu0.c.b16.cont [6/8] %v6333, 128
      %6366 = vxpose.xlu0.c.b16.cont [7/8] %v6334, 128
      %6367 = vxpose.xlu0.c.b16.end [8/8] %v6335, 128
      %v6368 = vpop.trf.xlu0
      %v6369 = vpop.trf.xlu0
      %v6370 = vpop.trf.xlu0
      %v6371 = vpop.trf.xlu0
      %v6372 = vpop.trf.xlu0
      %v6373 = vpop.trf.xlu0
      %v6374 = vpop.trf.xlu0
      %v6375 = vpop.trf.xlu0
      %6376 = vxpose.xlu0.c.b16.start [1/8] %v6336, 128
      %6377 = vxpose.xlu0.c.b16.cont [2/8] %v6337, 128
      %6378 = vxpose.xlu0.c.b16.cont [3/8] %v6338, 128
      %6379 = vxpose.xlu0.c.b16.cont [4/8] %v6339, 128
      %6380 = vxpose.xlu0.c.b16.cont [5/8] %v6340, 128
      %6381 = vxpose.xlu0.c.b16.cont [6/8] %v6341, 128
      %6382 = vxpose.xlu0.c.b16.cont [7/8] %v6342, 128
      %6383 = vxpose.xlu0.c.b16.end [8/8] %v6343, 128
      %v6384 = vpop.trf.xlu0
      %v6385 = vpop.trf.xlu0
      %v6386 = vpop.trf.xlu0
      %v6387 = vpop.trf.xlu0
      %v6388 = vpop.trf.xlu0
      %v6389 = vpop.trf.xlu0
      %v6390 = vpop.trf.xlu0
      %v6391 = vpop.trf.xlu0
      %v6392 = vld [vmem:[%s499] sm:$0xe]
      %v6393 = vld [vmem:[%s499 + $0x4] sm:$0xf]
      %v6394 = vld [vmem:[%s499 + $0x8] sm:$0x3]
      %v6395 = vld [vmem:[%s499 + $0x10] sm:$0xe]
      %v6396 = vld [vmem:[%s499 + $0x14] sm:$0xf]
      %v6397 = vld [vmem:[%s499 + $0x18] sm:$0x3]
      %v6398 = vld [vmem:[%s499 + $0x20] sm:$0xe]
      %v6399 = vld [vmem:[%s499 + $0x24] sm:$0xf]
      %v6400 = vld [vmem:[%s499 + $0x28] sm:$0x3]
      %v6401 = vld [vmem:[%s499 + $0x30] sm:$0xe]
      %v6402 = vld [vmem:[%s499 + $0x34] sm:$0xf]
      %v6403 = vld [vmem:[%s499 + $0x38] sm:$0x3]
      %v6404 = vld [vmem:[%s499 + $0x40] sm:$0xe]
      %v6405 = vld [vmem:[%s499 + $0x44] sm:$0xf]
      %v6406 = vld [vmem:[%s499 + $0x48] sm:$0x3]
      %v6407 = vld [vmem:[%s499 + $0x50] sm:$0xe]
      %v6408 = vld [vmem:[%s499 + $0x54] sm:$0xf]
      %v6409 = vld [vmem:[%s499 + $0x58] sm:$0x3]
      %v6410 = vld [vmem:[%s499 + $0x60] sm:$0xe]
      %v6411 = vld [vmem:[%s499 + $0x64] sm:$0xf]
      %v6412 = vld [vmem:[%s499 + $0x68] sm:$0x3]
      %v6413 = vld [vmem:[%s499 + $0x70] sm:$0xe]
      %v6414 = vld [vmem:[%s499 + $0x74] sm:$0xf]
      %v6415 = vld [vmem:[%s499 + $0x78] sm:$0x3]
      %v6416 = vld [vmem:[%s499 + $0x80] sm:$0xe]
      %v6417 = vld [vmem:[%s499 + $0x84] sm:$0xf]
      %v6418 = vld [vmem:[%s499 + $0x88] sm:$0x3]
      %v6419 = vld [vmem:[%s499 + $0x90] sm:$0xe]
      %v6420 = vld [vmem:[%s499 + $0x94] sm:$0xf]
      %v6421 = vld [vmem:[%s499 + $0x98] sm:$0x3]
      %v6422 = vld [vmem:[%s499 + $0xa0] sm:$0xe]
      %v6423 = vld [vmem:[%s499 + $0xa4] sm:$0xf]
      %v6424 = vld [vmem:[%s499 + $0xa8] sm:$0x3]
      %v6425 = vld [vmem:[%s499 + $0xb0] sm:$0xe]
      %v6426 = vld [vmem:[%s499 + $0xb4] sm:$0xf]
      %v6427 = vld [vmem:[%s499 + $0xb8] sm:$0x3]
      %v6428 = vld [vmem:[%s499 + $0xc0] sm:$0xe]
      %v6429 = vld [vmem:[%s499 + $0xc4] sm:$0xf]
      %v6430 = vld [vmem:[%s499 + $0xc8] sm:$0x3]
      %v6431 = vld [vmem:[%s499 + $0xd0] sm:$0xe]
      %v6432 = vld [vmem:[%s499 + $0xd4] sm:$0xf]
      %v6433 = vld [vmem:[%s499 + $0xd8] sm:$0x3]
      %v6434 = vld [vmem:[%s499 + $0xe0] sm:$0xe]
      %v6435 = vld [vmem:[%s499 + $0xe4] sm:$0xf]
      %v6436 = vld [vmem:[%s499 + $0xe8] sm:$0x3]
      %v6437 = vld [vmem:[%s499 + $0xf0] sm:$0xe]
      %v6438 = vld [vmem:[%s499 + $0xf4] sm:$0xf]
      %v6439 = vld [vmem:[%s499 + $0xf8] sm:$0x3]
      %v6441 = vshrl.u32 %v6392, 16
      %v6443 = vrot.slane %v6441, 5
      %v6444 = vshll.u32 %v6392, 16
      %v6446 = vrot.slane %v6444, 6
      %v6447 = vor.u32 %v6443, %v6446
      %v6448 = vrot.slane %v6447, 4
      %v6450 = vshrl.u32 %v6393, 16
      %v6452 = vrot.slane %v6450, 5
      %v6453 = vshll.u32 %v6393, 16
      %v6455 = vrot.slane %v6453, 6
      %v6456 = vor.u32 %v6452, %v6455
      %v6457 = vsel %vm1323, %v6448, %v6456
      %v6458 = vrot.slane %v6456, 4
      %v6460 = vshrl.u32 %v6394, 16
      %v6462 = vrot.slane %v6460, 5
      %v6463 = vshll.u32 %v6394, 16
      %v6465 = vrot.slane %v6463, 6
      %v6466 = vor.u32 %v6462, %v6465
      %v6467 = vsel %vm1323, %v6458, %v6466
      %v6469 = vshrl.u32 %v6395, 16
      %v6471 = vrot.slane %v6469, 5
      %v6472 = vshll.u32 %v6395, 16
      %v6474 = vrot.slane %v6472, 6
      %v6475 = vor.u32 %v6471, %v6474
      %v6476 = vrot.slane %v6475, 4
      %v6478 = vshrl.u32 %v6396, 16
      %v6480 = vrot.slane %v6478, 5
      %v6481 = vshll.u32 %v6396, 16
      %v6483 = vrot.slane %v6481, 6
      %v6484 = vor.u32 %v6480, %v6483
      %v6485 = vsel %vm1323, %v6476, %v6484
      %v6486 = vrot.slane %v6484, 4
      %v6488 = vshrl.u32 %v6397, 16
      %v6490 = vrot.slane %v6488, 5
      %v6491 = vshll.u32 %v6397, 16
      %v6493 = vrot.slane %v6491, 6
      %v6494 = vor.u32 %v6490, %v6493
      %v6495 = vsel %vm1323, %v6486, %v6494
      %v6497 = vshrl.u32 %v6398, 16
      %v6499 = vrot.slane %v6497, 5
      %v6500 = vshll.u32 %v6398, 16
      %v6502 = vrot.slane %v6500, 6
      %v6503 = vor.u32 %v6499, %v6502
      %v6504 = vrot.slane %v6503, 4
      %v6506 = vshrl.u32 %v6399, 16
      %v6508 = vrot.slane %v6506, 5
      %v6509 = vshll.u32 %v6399, 16
      %v6511 = vrot.slane %v6509, 6
      %v6512 = vor.u32 %v6508, %v6511
      %v6513 = vsel %vm1323, %v6504, %v6512
      %v6514 = vrot.slane %v6512, 4
      %v6516 = vshrl.u32 %v6400, 16
      %v6518 = vrot.slane %v6516, 5
      %v6519 = vshll.u32 %v6400, 16
      %v6521 = vrot.slane %v6519, 6
      %v6522 = vor.u32 %v6518, %v6521
      %v6523 = vsel %vm1323, %v6514, %v6522
      %v6525 = vshrl.u32 %v6401, 16
      %v6527 = vrot.slane %v6525, 5
      %v6528 = vshll.u32 %v6401, 16
      %v6530 = vrot.slane %v6528, 6
      %v6531 = vor.u32 %v6527, %v6530
      %v6532 = vrot.slane %v6531, 4
      %v6534 = vshrl.u32 %v6402, 16
      %v6536 = vrot.slane %v6534, 5
      %v6537 = vshll.u32 %v6402, 16
      %v6539 = vrot.slane %v6537, 6
      %v6540 = vor.u32 %v6536, %v6539
      %v6541 = vsel %vm1323, %v6532, %v6540
      %v6542 = vrot.slane %v6540, 4
      %v6544 = vshrl.u32 %v6403, 16
      %v6546 = vrot.slane %v6544, 5
      %v6547 = vshll.u32 %v6403, 16
      %v6549 = vrot.slane %v6547, 6
      %v6550 = vor.u32 %v6546, %v6549
      %v6551 = vsel %vm1323, %v6542, %v6550
      %v6553 = vshrl.u32 %v6404, 16
      %v6555 = vrot.slane %v6553, 5
      %v6556 = vshll.u32 %v6404, 16
      %v6558 = vrot.slane %v6556, 6
      %v6559 = vor.u32 %v6555, %v6558
      %v6560 = vrot.slane %v6559, 4
      %v6562 = vshrl.u32 %v6405, 16
      %v6564 = vrot.slane %v6562, 5
      %v6565 = vshll.u32 %v6405, 16
      %v6567 = vrot.slane %v6565, 6
      %v6568 = vor.u32 %v6564, %v6567
      %v6569 = vsel %vm1323, %v6560, %v6568
      %v6570 = vrot.slane %v6568, 4
      %v6572 = vshrl.u32 %v6406, 16
      %v6574 = vrot.slane %v6572, 5
      %v6575 = vshll.u32 %v6406, 16
      %v6577 = vrot.slane %v6575, 6
      %v6578 = vor.u32 %v6574, %v6577
      %v6579 = vsel %vm1323, %v6570, %v6578
      %v6581 = vshrl.u32 %v6407, 16
      %v6583 = vrot.slane %v6581, 5
      %v6584 = vshll.u32 %v6407, 16
      %v6586 = vrot.slane %v6584, 6
      %v6587 = vor.u32 %v6583, %v6586
      %v6588 = vrot.slane %v6587, 4
      %v6590 = vshrl.u32 %v6408, 16
      %v6592 = vrot.slane %v6590, 5
      %v6593 = vshll.u32 %v6408, 16
      %v6595 = vrot.slane %v6593, 6
      %v6596 = vor.u32 %v6592, %v6595
      %v6597 = vsel %vm1323, %v6588, %v6596
      %v6598 = vrot.slane %v6596, 4
      %v6600 = vshrl.u32 %v6409, 16
      %v6602 = vrot.slane %v6600, 5
      %v6603 = vshll.u32 %v6409, 16
      %v6605 = vrot.slane %v6603, 6
      %v6606 = vor.u32 %v6602, %v6605
      %v6607 = vsel %vm1323, %v6598, %v6606
      %v6609 = vshrl.u32 %v6410, 16
      %v6611 = vrot.slane %v6609, 5
      %v6612 = vshll.u32 %v6410, 16
      %v6614 = vrot.slane %v6612, 6
      %v6615 = vor.u32 %v6611, %v6614
      %v6616 = vrot.slane %v6615, 4
      %v6618 = vshrl.u32 %v6411, 16
      %v6620 = vrot.slane %v6618, 5
      %v6621 = vshll.u32 %v6411, 16
      %v6623 = vrot.slane %v6621, 6
      %v6624 = vor.u32 %v6620, %v6623
      %v6625 = vsel %vm1323, %v6616, %v6624
      %v6626 = vrot.slane %v6624, 4
      %v6628 = vshrl.u32 %v6412, 16
      %v6630 = vrot.slane %v6628, 5
      %v6631 = vshll.u32 %v6412, 16
      %v6633 = vrot.slane %v6631, 6
      %v6634 = vor.u32 %v6630, %v6633
      %v6635 = vsel %vm1323, %v6626, %v6634
      %v6637 = vshrl.u32 %v6413, 16
      %v6639 = vrot.slane %v6637, 5
      %v6640 = vshll.u32 %v6413, 16
      %v6642 = vrot.slane %v6640, 6
      %v6643 = vor.u32 %v6639, %v6642
      %v6644 = vrot.slane %v6643, 4
      %v6646 = vshrl.u32 %v6414, 16
      %v6648 = vrot.slane %v6646, 5
      %v6649 = vshll.u32 %v6414, 16
      %v6651 = vrot.slane %v6649, 6
      %v6652 = vor.u32 %v6648, %v6651
      %v6653 = vsel %vm1323, %v6644, %v6652
      %v6654 = vrot.slane %v6652, 4
      %v6656 = vshrl.u32 %v6415, 16
      %v6658 = vrot.slane %v6656, 5
      %v6659 = vshll.u32 %v6415, 16
      %v6661 = vrot.slane %v6659, 6
      %v6662 = vor.u32 %v6658, %v6661
      %v6663 = vsel %vm1323, %v6654, %v6662
      %v6665 = vshrl.u32 %v6416, 16
      %v6667 = vrot.slane %v6665, 5
      %v6668 = vshll.u32 %v6416, 16
      %v6670 = vrot.slane %v6668, 6
      %v6671 = vor.u32 %v6667, %v6670
      %v6672 = vrot.slane %v6671, 4
      %v6674 = vshrl.u32 %v6417, 16
      %v6676 = vrot.slane %v6674, 5
      %v6677 = vshll.u32 %v6417, 16
      %v6679 = vrot.slane %v6677, 6
      %v6680 = vor.u32 %v6676, %v6679
      %v6681 = vsel %vm1323, %v6672, %v6680
      %v6682 = vrot.slane %v6680, 4
      %v6684 = vshrl.u32 %v6418, 16
      %v6686 = vrot.slane %v6684, 5
      %v6687 = vshll.u32 %v6418, 16
      %v6689 = vrot.slane %v6687, 6
      %v6690 = vor.u32 %v6686, %v6689
      %v6691 = vsel %vm1323, %v6682, %v6690
      %v6693 = vshrl.u32 %v6419, 16
      %v6695 = vrot.slane %v6693, 5
      %v6696 = vshll.u32 %v6419, 16
      %v6698 = vrot.slane %v6696, 6
      %v6699 = vor.u32 %v6695, %v6698
      %v6700 = vrot.slane %v6699, 4
      %v6702 = vshrl.u32 %v6420, 16
      %v6704 = vrot.slane %v6702, 5
      %v6705 = vshll.u32 %v6420, 16
      %v6707 = vrot.slane %v6705, 6
      %v6708 = vor.u32 %v6704, %v6707
      %v6709 = vsel %vm1323, %v6700, %v6708
      %v6710 = vrot.slane %v6708, 4
      %v6712 = vshrl.u32 %v6421, 16
      %v6714 = vrot.slane %v6712, 5
      %v6715 = vshll.u32 %v6421, 16
      %v6717 = vrot.slane %v6715, 6
      %v6718 = vor.u32 %v6714, %v6717
      %v6719 = vsel %vm1323, %v6710, %v6718
      %v6721 = vshrl.u32 %v6422, 16
      %v6723 = vrot.slane %v6721, 5
      %v6724 = vshll.u32 %v6422, 16
      %v6726 = vrot.slane %v6724, 6
      %v6727 = vor.u32 %v6723, %v6726
      %v6728 = vrot.slane %v6727, 4
      %v6730 = vshrl.u32 %v6423, 16
      %v6732 = vrot.slane %v6730, 5
      %v6733 = vshll.u32 %v6423, 16
      %v6735 = vrot.slane %v6733, 6
      %v6736 = vor.u32 %v6732, %v6735
      %v6737 = vsel %vm1323, %v6728, %v6736
      %v6738 = vrot.slane %v6736, 4
      %v6740 = vshrl.u32 %v6424, 16
      %v6742 = vrot.slane %v6740, 5
      %v6743 = vshll.u32 %v6424, 16
      %v6745 = vrot.slane %v6743, 6
      %v6746 = vor.u32 %v6742, %v6745
      %v6747 = vsel %vm1323, %v6738, %v6746
      %v6749 = vshrl.u32 %v6425, 16
      %v6751 = vrot.slane %v6749, 5
      %v6752 = vshll.u32 %v6425, 16
      %v6754 = vrot.slane %v6752, 6
      %v6755 = vor.u32 %v6751, %v6754
      %v6756 = vrot.slane %v6755, 4
      %v6758 = vshrl.u32 %v6426, 16
      %v6760 = vrot.slane %v6758, 5
      %v6761 = vshll.u32 %v6426, 16
      %v6763 = vrot.slane %v6761, 6
      %v6764 = vor.u32 %v6760, %v6763
      %v6765 = vsel %vm1323, %v6756, %v6764
      %v6766 = vrot.slane %v6764, 4
      %v6768 = vshrl.u32 %v6427, 16
      %v6770 = vrot.slane %v6768, 5
      %v6771 = vshll.u32 %v6427, 16
      %v6773 = vrot.slane %v6771, 6
      %v6774 = vor.u32 %v6770, %v6773
      %v6775 = vsel %vm1323, %v6766, %v6774
      %v6777 = vshrl.u32 %v6428, 16
      %v6779 = vrot.slane %v6777, 5
      %v6780 = vshll.u32 %v6428, 16
      %v6782 = vrot.slane %v6780, 6
      %v6783 = vor.u32 %v6779, %v6782
      %v6784 = vrot.slane %v6783, 4
      %v6786 = vshrl.u32 %v6429, 16
      %v6788 = vrot.slane %v6786, 5
      %v6789 = vshll.u32 %v6429, 16
      %v6791 = vrot.slane %v6789, 6
      %v6792 = vor.u32 %v6788, %v6791
      %v6793 = vsel %vm1323, %v6784, %v6792
      %v6794 = vrot.slane %v6792, 4
      %v6796 = vshrl.u32 %v6430, 16
      %v6798 = vrot.slane %v6796, 5
      %v6799 = vshll.u32 %v6430, 16
      %v6801 = vrot.slane %v6799, 6
      %v6802 = vor.u32 %v6798, %v6801
      %v6803 = vsel %vm1323, %v6794, %v6802
      %v6805 = vshrl.u32 %v6431, 16
      %v6807 = vrot.slane %v6805, 5
      %v6808 = vshll.u32 %v6431, 16
      %v6810 = vrot.slane %v6808, 6
      %v6811 = vor.u32 %v6807, %v6810
      %v6812 = vrot.slane %v6811, 4
      %v6814 = vshrl.u32 %v6432, 16
      %v6816 = vrot.slane %v6814, 5
      %v6817 = vshll.u32 %v6432, 16
      %v6819 = vrot.slane %v6817, 6
      %v6820 = vor.u32 %v6816, %v6819
      %v6821 = vsel %vm1323, %v6812, %v6820
      %v6822 = vrot.slane %v6820, 4
      %v6824 = vshrl.u32 %v6433, 16
      %v6826 = vrot.slane %v6824, 5
      %v6827 = vshll.u32 %v6433, 16
      %v6829 = vrot.slane %v6827, 6
      %v6830 = vor.u32 %v6826, %v6829
      %v6831 = vsel %vm1323, %v6822, %v6830
      %v6833 = vshrl.u32 %v6434, 16
      %v6835 = vrot.slane %v6833, 5
      %v6836 = vshll.u32 %v6434, 16
      %v6838 = vrot.slane %v6836, 6
      %v6839 = vor.u32 %v6835, %v6838
      %v6840 = vrot.slane %v6839, 4
      %v6842 = vshrl.u32 %v6435, 16
      %v6844 = vrot.slane %v6842, 5
      %v6845 = vshll.u32 %v6435, 16
      %v6847 = vrot.slane %v6845, 6
      %v6848 = vor.u32 %v6844, %v6847
      %v6849 = vsel %vm1323, %v6840, %v6848
      %v6850 = vrot.slane %v6848, 4
      %v6852 = vshrl.u32 %v6436, 16
      %v6854 = vrot.slane %v6852, 5
      %v6855 = vshll.u32 %v6436, 16
      %v6857 = vrot.slane %v6855, 6
      %v6858 = vor.u32 %v6854, %v6857
      %v6859 = vsel %vm1323, %v6850, %v6858
      %v6861 = vshrl.u32 %v6437, 16
      %v6863 = vrot.slane %v6861, 5
      %v6864 = vshll.u32 %v6437, 16
      %v6866 = vrot.slane %v6864, 6
      %v6867 = vor.u32 %v6863, %v6866
      %v6868 = vrot.slane %v6867, 4
      %v6870 = vshrl.u32 %v6438, 16
      %v6872 = vrot.slane %v6870, 5
      %v6873 = vshll.u32 %v6438, 16
      %v6875 = vrot.slane %v6873, 6
      %v6876 = vor.u32 %v6872, %v6875
      %v6877 = vsel %vm1323, %v6868, %v6876
      %v6878 = vrot.slane %v6876, 4
      %v6880 = vshrl.u32 %v6439, 16
      %v6882 = vrot.slane %v6880, 5
      %v6883 = vshll.u32 %v6439, 16
      %v6885 = vrot.slane %v6883, 6
      %v6886 = vor.u32 %v6882, %v6885
      %v6887 = vsel %vm1323, %v6878, %v6886
      %v6888 = vunpack.c.l.b16 %v6457
      %v6889 = vunpack.c.l.b16 %v6467
      %v6890 = vunpack.c.l.b16 %v6485
      %v6891 = vunpack.c.l.b16 %v6495
      %v6892 = vunpack.c.l.b16 %v6513
      %v6893 = vunpack.c.l.b16 %v6523
      %v6894 = vunpack.c.l.b16 %v6541
      %v6895 = vunpack.c.l.b16 %v6551
      %v6896 = vunpack.c.l.b16 %v6569
      %v6897 = vunpack.c.l.b16 %v6579
      %v6898 = vunpack.c.l.b16 %v6597
      %v6899 = vunpack.c.l.b16 %v6607
      %v6900 = vunpack.c.l.b16 %v6625
      %v6901 = vunpack.c.l.b16 %v6635
      %v6902 = vunpack.c.l.b16 %v6653
      %v6903 = vunpack.c.l.b16 %v6663
      %v6904 = vunpack.c.l.b16 %v6681
      %v6905 = vunpack.c.l.b16 %v6691
      %v6906 = vunpack.c.l.b16 %v6709
      %v6907 = vunpack.c.l.b16 %v6719
      %v6908 = vunpack.c.l.b16 %v6737
      %v6909 = vunpack.c.l.b16 %v6747
      %v6910 = vunpack.c.l.b16 %v6765
      %v6911 = vunpack.c.l.b16 %v6775
      %v6912 = vunpack.c.l.b16 %v6793
      %v6913 = vunpack.c.l.b16 %v6803
      %v6914 = vunpack.c.l.b16 %v6821
      %v6915 = vunpack.c.l.b16 %v6831
      %v6916 = vunpack.c.l.b16 %v6849
      %v6917 = vunpack.c.l.b16 %v6859
      %v6918 = vunpack.c.l.b16 %v6877
      %v6919 = vunpack.c.l.b16 %v6887
      %v6920 = vpack.c.b16 %v6889, %v6888
      %v6921 = vpack.c.b16 %v6891, %v6890
      %v6922 = vpack.c.b16 %v6893, %v6892
      %v6923 = vpack.c.b16 %v6895, %v6894
      %v6924 = vpack.c.b16 %v6897, %v6896
      %v6925 = vpack.c.b16 %v6899, %v6898
      %v6926 = vpack.c.b16 %v6901, %v6900
      %v6927 = vpack.c.b16 %v6903, %v6902
      %v6928 = vpack.c.b16 %v6905, %v6904
      %v6929 = vpack.c.b16 %v6907, %v6906
      %v6930 = vpack.c.b16 %v6909, %v6908
      %v6931 = vpack.c.b16 %v6911, %v6910
      %v6932 = vpack.c.b16 %v6913, %v6912
      %v6933 = vpack.c.b16 %v6915, %v6914
      %v6934 = vpack.c.b16 %v6917, %v6916
      %v6935 = vpack.c.b16 %v6919, %v6918
      %6952 = vxpose.xlu0.c.b16.start [1/8] %v6920, 128
      %6953 = vxpose.xlu0.c.b16.cont [2/8] %v6921, 128
      %6954 = vxpose.xlu0.c.b16.cont [3/8] %v6922, 128
      %6955 = vxpose.xlu0.c.b16.cont [4/8] %v6923, 128
      %6956 = vxpose.xlu0.c.b16.cont [5/8] %v6924, 128
      %6957 = vxpose.xlu0.c.b16.cont [6/8] %v6925, 128
      %6958 = vxpose.xlu0.c.b16.cont [7/8] %v6926, 128
      %6959 = vxpose.xlu0.c.b16.end [8/8] %v6927, 128
      %v6960 = vpop.trf.xlu0
      %v6961 = vpop.trf.xlu0
      %v6962 = vpop.trf.xlu0
      %v6963 = vpop.trf.xlu0
      %v6964 = vpop.trf.xlu0
      %v6965 = vpop.trf.xlu0
      %v6966 = vpop.trf.xlu0
      %v6967 = vpop.trf.xlu0
      %6968 = vxpose.xlu0.c.b16.start [1/8] %v6928, 128
      %6969 = vxpose.xlu0.c.b16.cont [2/8] %v6929, 128
      %6970 = vxpose.xlu0.c.b16.cont [3/8] %v6930, 128
      %6971 = vxpose.xlu0.c.b16.cont [4/8] %v6931, 128
      %6972 = vxpose.xlu0.c.b16.cont [5/8] %v6932, 128
      %6973 = vxpose.xlu0.c.b16.cont [6/8] %v6933, 128
      %6974 = vxpose.xlu0.c.b16.cont [7/8] %v6934, 128
      %6975 = vxpose.xlu0.c.b16.end [8/8] %v6935, 128
      %v6976 = vpop.trf.xlu0
      %v6977 = vpop.trf.xlu0
      %v6978 = vpop.trf.xlu0
      %v6979 = vpop.trf.xlu0
      %v6980 = vpop.trf.xlu0
      %v6981 = vpop.trf.xlu0
      %v6982 = vpop.trf.xlu0
      %v6983 = vpop.trf.xlu0
      %v6984 = vld [vmem:[%s499 + $0x8] sm:$0xf]
      %v6985 = vld [vmem:[%s499 + $0x18] sm:$0xf]
      %v6986 = vld [vmem:[%s499 + $0x28] sm:$0xf]
      %v6987 = vld [vmem:[%s499 + $0x38] sm:$0xf]
      %v6988 = vld [vmem:[%s499 + $0x48] sm:$0xf]
      %v6989 = vld [vmem:[%s499 + $0x58] sm:$0xf]
      %v6990 = vld [vmem:[%s499 + $0x68] sm:$0xf]
      %v6991 = vld [vmem:[%s499 + $0x78] sm:$0xf]
      %v6992 = vld [vmem:[%s499 + $0x88] sm:$0xf]
      %v6993 = vld [vmem:[%s499 + $0x98] sm:$0xf]
      %v6994 = vld [vmem:[%s499 + $0xa8] sm:$0xf]
      %v6995 = vld [vmem:[%s499 + $0xb8] sm:$0xf]
      %v6996 = vld [vmem:[%s499 + $0xc8] sm:$0xf]
      %v6997 = vld [vmem:[%s499 + $0xd8] sm:$0xf]
      %v6998 = vld [vmem:[%s499 + $0xe8] sm:$0xf]
      %v6999 = vld [vmem:[%s499 + $0xf8] sm:$0xf]
      %v7032 = vunpack.c.l.b16 %v6393
      %v7033 = vunpack.c.l.b16 %v6984
      %v7034 = vunpack.c.l.b16 %v6396
      %v7035 = vunpack.c.l.b16 %v6985
      %v7036 = vunpack.c.l.b16 %v6399
      %v7037 = vunpack.c.l.b16 %v6986
      %v7038 = vunpack.c.l.b16 %v6402
      %v7039 = vunpack.c.l.b16 %v6987
      %v7040 = vunpack.c.l.b16 %v6405
      %v7041 = vunpack.c.l.b16 %v6988
      %v7042 = vunpack.c.l.b16 %v6408
      %v7043 = vunpack.c.l.b16 %v6989
      %v7044 = vunpack.c.l.b16 %v6411
      %v7045 = vunpack.c.l.b16 %v6990
      %v7046 = vunpack.c.l.b16 %v6414
      %v7047 = vunpack.c.l.b16 %v6991
      %v7048 = vunpack.c.l.b16 %v6417
      %v7049 = vunpack.c.l.b16 %v6992
      %v7050 = vunpack.c.l.b16 %v6420
      %v7051 = vunpack.c.l.b16 %v6993
      %v7052 = vunpack.c.l.b16 %v6423
      %v7053 = vunpack.c.l.b16 %v6994
      %v7054 = vunpack.c.l.b16 %v6426
      %v7055 = vunpack.c.l.b16 %v6995
      %v7056 = vunpack.c.l.b16 %v6429
      %v7057 = vunpack.c.l.b16 %v6996
      %v7058 = vunpack.c.l.b16 %v6432
      %v7059 = vunpack.c.l.b16 %v6997
      %v7060 = vunpack.c.l.b16 %v6435
      %v7061 = vunpack.c.l.b16 %v6998
      %v7062 = vunpack.c.l.b16 %v6438
      %v7063 = vunpack.c.l.b16 %v6999
      %v7064 = vpack.c.b16 %v7033, %v7032
      %v7065 = vpack.c.b16 %v7035, %v7034
      %v7066 = vpack.c.b16 %v7037, %v7036
      %v7067 = vpack.c.b16 %v7039, %v7038
      %v7068 = vpack.c.b16 %v7041, %v7040
      %v7069 = vpack.c.b16 %v7043, %v7042
      %v7070 = vpack.c.b16 %v7045, %v7044
      %v7071 = vpack.c.b16 %v7047, %v7046
      %v7072 = vpack.c.b16 %v7049, %v7048
      %v7073 = vpack.c.b16 %v7051, %v7050
      %v7074 = vpack.c.b16 %v7053, %v7052
      %v7075 = vpack.c.b16 %v7055, %v7054
      %v7076 = vpack.c.b16 %v7057, %v7056
      %v7077 = vpack.c.b16 %v7059, %v7058
      %v7078 = vpack.c.b16 %v7061, %v7060
      %v7079 = vpack.c.b16 %v7063, %v7062
      %7096 = vxpose.xlu0.c.b16.start [1/8] %v7064, 128
      %7097 = vxpose.xlu0.c.b16.cont [2/8] %v7065, 128
      %7098 = vxpose.xlu0.c.b16.cont [3/8] %v7066, 128
      %7099 = vxpose.xlu0.c.b16.cont [4/8] %v7067, 128
      %7100 = vxpose.xlu0.c.b16.cont [5/8] %v7068, 128
      %7101 = vxpose.xlu0.c.b16.cont [6/8] %v7069, 128
      %7102 = vxpose.xlu0.c.b16.cont [7/8] %v7070, 128
      %7103 = vxpose.xlu0.c.b16.end [8/8] %v7071, 128
      %v7104 = vpop.trf.xlu0
      %v7105 = vpop.trf.xlu0
      %v7106 = vpop.trf.xlu0
      %v7107 = vpop.trf.xlu0
      %v7108 = vpop.trf.xlu0
      %v7109 = vpop.trf.xlu0
      %v7110 = vpop.trf.xlu0
      %v7111 = vpop.trf.xlu0
      %7112 = vxpose.xlu0.c.b16.start [1/8] %v7072, 128
      %7113 = vxpose.xlu0.c.b16.cont [2/8] %v7073, 128
      %7114 = vxpose.xlu0.c.b16.cont [3/8] %v7074, 128
      %7115 = vxpose.xlu0.c.b16.cont [4/8] %v7075, 128
      %7116 = vxpose.xlu0.c.b16.cont [5/8] %v7076, 128
      %7117 = vxpose.xlu0.c.b16.cont [6/8] %v7077, 128
      %7118 = vxpose.xlu0.c.b16.cont [7/8] %v7078, 128
      %7119 = vxpose.xlu0.c.b16.end [8/8] %v7079, 128
      %v7120 = vpop.trf.xlu0
      %v7121 = vpop.trf.xlu0
      %v7122 = vpop.trf.xlu0
      %v7123 = vpop.trf.xlu0
      %v7124 = vpop.trf.xlu0
      %v7125 = vpop.trf.xlu0
      %v7126 = vpop.trf.xlu0
      %v7127 = vpop.trf.xlu0
      %v7128 = vld [vmem:[%s499 + $0x4] sm:$0xc]
      %v7129 = vld [vmem:[%s499 + $0x8] sm:$0xf]
      %v7130 = vld [vmem:[%s499 + $0xc] sm:$0x7]
      %v7131 = vld [vmem:[%s499 + $0x14] sm:$0xc]
      %v7132 = vld [vmem:[%s499 + $0x18] sm:$0xf]
      %v7133 = vld [vmem:[%s499 + $0x1c] sm:$0x7]
      %v7134 = vld [vmem:[%s499 + $0x24] sm:$0xc]
      %v7135 = vld [vmem:[%s499 + $0x28] sm:$0xf]
      %v7136 = vld [vmem:[%s499 + $0x2c] sm:$0x7]
      %v7137 = vld [vmem:[%s499 + $0x34] sm:$0xc]
      %v7138 = vld [vmem:[%s499 + $0x38] sm:$0xf]
      %v7139 = vld [vmem:[%s499 + $0x3c] sm:$0x7]
      %v7140 = vld [vmem:[%s499 + $0x44] sm:$0xc]
      %v7141 = vld [vmem:[%s499 + $0x48] sm:$0xf]
      %v7142 = vld [vmem:[%s499 + $0x4c] sm:$0x7]
      %v7143 = vld [vmem:[%s499 + $0x54] sm:$0xc]
      %v7144 = vld [vmem:[%s499 + $0x58] sm:$0xf]
      %v7145 = vld [vmem:[%s499 + $0x5c] sm:$0x7]
      %v7146 = vld [vmem:[%s499 + $0x64] sm:$0xc]
      %v7147 = vld [vmem:[%s499 + $0x68] sm:$0xf]
      %v7148 = vld [vmem:[%s499 + $0x6c] sm:$0x7]
      %v7149 = vld [vmem:[%s499 + $0x74] sm:$0xc]
      %v7150 = vld [vmem:[%s499 + $0x78] sm:$0xf]
      %v7151 = vld [vmem:[%s499 + $0x7c] sm:$0x7]
      %v7152 = vld [vmem:[%s499 + $0x84] sm:$0xc]
      %v7153 = vld [vmem:[%s499 + $0x88] sm:$0xf]
      %v7154 = vld [vmem:[%s499 + $0x8c] sm:$0x7]
      %v7155 = vld [vmem:[%s499 + $0x94] sm:$0xc]
      %v7156 = vld [vmem:[%s499 + $0x98] sm:$0xf]
      %v7157 = vld [vmem:[%s499 + $0x9c] sm:$0x7]
      %v7158 = vld [vmem:[%s499 + $0xa4] sm:$0xc]
      %v7159 = vld [vmem:[%s499 + $0xa8] sm:$0xf]
      %v7160 = vld [vmem:[%s499 + $0xac] sm:$0x7]
      %v7161 = vld [vmem:[%s499 + $0xb4] sm:$0xc]
      %v7162 = vld [vmem:[%s499 + $0xb8] sm:$0xf]
      %v7163 = vld [vmem:[%s499 + $0xbc] sm:$0x7]
      %v7164 = vld [vmem:[%s499 + $0xc4] sm:$0xc]
      %v7165 = vld [vmem:[%s499 + $0xc8] sm:$0xf]
      %v7166 = vld [vmem:[%s499 + $0xcc] sm:$0x7]
      %v7167 = vld [vmem:[%s499 + $0xd4] sm:$0xc]
      %v7168 = vld [vmem:[%s499 + $0xd8] sm:$0xf]
      %v7169 = vld [vmem:[%s499 + $0xdc] sm:$0x7]
      %v7170 = vld [vmem:[%s499 + $0xe4] sm:$0xc]
      %v7171 = vld [vmem:[%s499 + $0xe8] sm:$0xf]
      %v7172 = vld [vmem:[%s499 + $0xec] sm:$0x7]
      %v7173 = vld [vmem:[%s499 + $0xf4] sm:$0xc]
      %v7174 = vld [vmem:[%s499 + $0xf8] sm:$0xf]
      %v7175 = vld [vmem:[%s499 + $0xfc] sm:$0x7]
      %v7177 = vshrl.u32 %v7128, 16
      %v7179 = vrot.slane %v7177, 6
      %v7180 = vshll.u32 %v7128, 16
      %v7182 = vrot.slane %v7180, 7
      %v7183 = vor.u32 %v7179, %v7182
      %v7184 = vrot.slane %v7183, 4
      %v7186 = vshrl.u32 %v7129, 16
      %v7188 = vrot.slane %v7186, 6
      %v7189 = vshll.u32 %v7129, 16
      %v7191 = vrot.slane %v7189, 7
      %v7192 = vor.u32 %v7188, %v7191
      %v7193 = vsel %vm584, %v7184, %v7192
      %v7194 = vrot.slane %v7192, 4
      %v7196 = vshrl.u32 %v7130, 16
      %v7198 = vrot.slane %v7196, 6
      %v7199 = vshll.u32 %v7130, 16
      %v7201 = vrot.slane %v7199, 7
      %v7202 = vor.u32 %v7198, %v7201
      %v7203 = vsel %vm584, %v7194, %v7202
      %v7205 = vshrl.u32 %v7131, 16
      %v7207 = vrot.slane %v7205, 6
      %v7208 = vshll.u32 %v7131, 16
      %v7210 = vrot.slane %v7208, 7
      %v7211 = vor.u32 %v7207, %v7210
      %v7212 = vrot.slane %v7211, 4
      %v7214 = vshrl.u32 %v7132, 16
      %v7216 = vrot.slane %v7214, 6
      %v7217 = vshll.u32 %v7132, 16
      %v7219 = vrot.slane %v7217, 7
      %v7220 = vor.u32 %v7216, %v7219
      %v7221 = vsel %vm584, %v7212, %v7220
      %v7222 = vrot.slane %v7220, 4
      %v7224 = vshrl.u32 %v7133, 16
      %v7226 = vrot.slane %v7224, 6
      %v7227 = vshll.u32 %v7133, 16
      %v7229 = vrot.slane %v7227, 7
      %v7230 = vor.u32 %v7226, %v7229
      %v7231 = vsel %vm584, %v7222, %v7230
      %v7233 = vshrl.u32 %v7134, 16
      %v7235 = vrot.slane %v7233, 6
      %v7236 = vshll.u32 %v7134, 16
      %v7238 = vrot.slane %v7236, 7
      %v7239 = vor.u32 %v7235, %v7238
      %v7240 = vrot.slane %v7239, 4
      %v7242 = vshrl.u32 %v7135, 16
      %v7244 = vrot.slane %v7242, 6
      %v7245 = vshll.u32 %v7135, 16
      %v7247 = vrot.slane %v7245, 7
      %v7248 = vor.u32 %v7244, %v7247
      %v7249 = vsel %vm584, %v7240, %v7248
      %v7250 = vrot.slane %v7248, 4
      %v7252 = vshrl.u32 %v7136, 16
      %v7254 = vrot.slane %v7252, 6
      %v7255 = vshll.u32 %v7136, 16
      %v7257 = vrot.slane %v7255, 7
      %v7258 = vor.u32 %v7254, %v7257
      %v7259 = vsel %vm584, %v7250, %v7258
      %v7261 = vshrl.u32 %v7137, 16
      %v7263 = vrot.slane %v7261, 6
      %v7264 = vshll.u32 %v7137, 16
      %v7266 = vrot.slane %v7264, 7
      %v7267 = vor.u32 %v7263, %v7266
      %v7268 = vrot.slane %v7267, 4
      %v7270 = vshrl.u32 %v7138, 16
      %v7272 = vrot.slane %v7270, 6
      %v7273 = vshll.u32 %v7138, 16
      %v7275 = vrot.slane %v7273, 7
      %v7276 = vor.u32 %v7272, %v7275
      %v7277 = vsel %vm584, %v7268, %v7276
      %v7278 = vrot.slane %v7276, 4
      %v7280 = vshrl.u32 %v7139, 16
      %v7282 = vrot.slane %v7280, 6
      %v7283 = vshll.u32 %v7139, 16
      %v7285 = vrot.slane %v7283, 7
      %v7286 = vor.u32 %v7282, %v7285
      %v7287 = vsel %vm584, %v7278, %v7286
      %v7289 = vshrl.u32 %v7140, 16
      %v7291 = vrot.slane %v7289, 6
      %v7292 = vshll.u32 %v7140, 16
      %v7294 = vrot.slane %v7292, 7
      %v7295 = vor.u32 %v7291, %v7294
      %v7296 = vrot.slane %v7295, 4
      %v7298 = vshrl.u32 %v7141, 16
      %v7300 = vrot.slane %v7298, 6
      %v7301 = vshll.u32 %v7141, 16
      %v7303 = vrot.slane %v7301, 7
      %v7304 = vor.u32 %v7300, %v7303
      %v7305 = vsel %vm584, %v7296, %v7304
      %v7306 = vrot.slane %v7304, 4
      %v7308 = vshrl.u32 %v7142, 16
      %v7310 = vrot.slane %v7308, 6
      %v7311 = vshll.u32 %v7142, 16
      %v7313 = vrot.slane %v7311, 7
      %v7314 = vor.u32 %v7310, %v7313
      %v7315 = vsel %vm584, %v7306, %v7314
      %v7317 = vshrl.u32 %v7143, 16
      %v7319 = vrot.slane %v7317, 6
      %v7320 = vshll.u32 %v7143, 16
      %v7322 = vrot.slane %v7320, 7
      %v7323 = vor.u32 %v7319, %v7322
      %v7324 = vrot.slane %v7323, 4
      %v7326 = vshrl.u32 %v7144, 16
      %v7328 = vrot.slane %v7326, 6
      %v7329 = vshll.u32 %v7144, 16
      %v7331 = vrot.slane %v7329, 7
      %v7332 = vor.u32 %v7328, %v7331
      %v7333 = vsel %vm584, %v7324, %v7332
      %v7334 = vrot.slane %v7332, 4
      %v7336 = vshrl.u32 %v7145, 16
      %v7338 = vrot.slane %v7336, 6
      %v7339 = vshll.u32 %v7145, 16
      %v7341 = vrot.slane %v7339, 7
      %v7342 = vor.u32 %v7338, %v7341
      %v7343 = vsel %vm584, %v7334, %v7342
      %v7345 = vshrl.u32 %v7146, 16
      %v7347 = vrot.slane %v7345, 6
      %v7348 = vshll.u32 %v7146, 16
      %v7350 = vrot.slane %v7348, 7
      %v7351 = vor.u32 %v7347, %v7350
      %v7352 = vrot.slane %v7351, 4
      %v7354 = vshrl.u32 %v7147, 16
      %v7356 = vrot.slane %v7354, 6
      %v7357 = vshll.u32 %v7147, 16
      %v7359 = vrot.slane %v7357, 7
      %v7360 = vor.u32 %v7356, %v7359
      %v7361 = vsel %vm584, %v7352, %v7360
      %v7362 = vrot.slane %v7360, 4
      %v7364 = vshrl.u32 %v7148, 16
      %v7366 = vrot.slane %v7364, 6
      %v7367 = vshll.u32 %v7148, 16
      %v7369 = vrot.slane %v7367, 7
      %v7370 = vor.u32 %v7366, %v7369
      %v7371 = vsel %vm584, %v7362, %v7370
      %v7373 = vshrl.u32 %v7149, 16
      %v7375 = vrot.slane %v7373, 6
      %v7376 = vshll.u32 %v7149, 16
      %v7378 = vrot.slane %v7376, 7
      %v7379 = vor.u32 %v7375, %v7378
      %v7380 = vrot.slane %v7379, 4
      %v7382 = vshrl.u32 %v7150, 16
      %v7384 = vrot.slane %v7382, 6
      %v7385 = vshll.u32 %v7150, 16
      %v7387 = vrot.slane %v7385, 7
      %v7388 = vor.u32 %v7384, %v7387
      %v7389 = vsel %vm584, %v7380, %v7388
      %v7390 = vrot.slane %v7388, 4
      %v7392 = vshrl.u32 %v7151, 16
      %v7394 = vrot.slane %v7392, 6
      %v7395 = vshll.u32 %v7151, 16
      %v7397 = vrot.slane %v7395, 7
      %v7398 = vor.u32 %v7394, %v7397
      %v7399 = vsel %vm584, %v7390, %v7398
      %v7401 = vshrl.u32 %v7152, 16
      %v7403 = vrot.slane %v7401, 6
      %v7404 = vshll.u32 %v7152, 16
      %v7406 = vrot.slane %v7404, 7
      %v7407 = vor.u32 %v7403, %v7406
      %v7408 = vrot.slane %v7407, 4
      %v7410 = vshrl.u32 %v7153, 16
      %v7412 = vrot.slane %v7410, 6
      %v7413 = vshll.u32 %v7153, 16
      %v7415 = vrot.slane %v7413, 7
      %v7416 = vor.u32 %v7412, %v7415
      %v7417 = vsel %vm584, %v7408, %v7416
      %v7418 = vrot.slane %v7416, 4
      %v7420 = vshrl.u32 %v7154, 16
      %v7422 = vrot.slane %v7420, 6
      %v7423 = vshll.u32 %v7154, 16
      %v7425 = vrot.slane %v7423, 7
      %v7426 = vor.u32 %v7422, %v7425
      %v7427 = vsel %vm584, %v7418, %v7426
      %v7429 = vshrl.u32 %v7155, 16
      %v7431 = vrot.slane %v7429, 6
      %v7432 = vshll.u32 %v7155, 16
      %v7434 = vrot.slane %v7432, 7
      %v7435 = vor.u32 %v7431, %v7434
      %v7436 = vrot.slane %v7435, 4
      %v7438 = vshrl.u32 %v7156, 16
      %v7440 = vrot.slane %v7438, 6
      %v7441 = vshll.u32 %v7156, 16
      %v7443 = vrot.slane %v7441, 7
      %v7444 = vor.u32 %v7440, %v7443
      %v7445 = vsel %vm584, %v7436, %v7444
      %v7446 = vrot.slane %v7444, 4
      %v7448 = vshrl.u32 %v7157, 16
      %v7450 = vrot.slane %v7448, 6
      %v7451 = vshll.u32 %v7157, 16
      %v7453 = vrot.slane %v7451, 7
      %v7454 = vor.u32 %v7450, %v7453
      %v7455 = vsel %vm584, %v7446, %v7454
      %v7457 = vshrl.u32 %v7158, 16
      %v7459 = vrot.slane %v7457, 6
      %v7460 = vshll.u32 %v7158, 16
      %v7462 = vrot.slane %v7460, 7
      %v7463 = vor.u32 %v7459, %v7462
      %v7464 = vrot.slane %v7463, 4
      %v7466 = vshrl.u32 %v7159, 16
      %v7468 = vrot.slane %v7466, 6
      %v7469 = vshll.u32 %v7159, 16
      %v7471 = vrot.slane %v7469, 7
      %v7472 = vor.u32 %v7468, %v7471
      %v7473 = vsel %vm584, %v7464, %v7472
      %v7474 = vrot.slane %v7472, 4
      %v7476 = vshrl.u32 %v7160, 16
      %v7478 = vrot.slane %v7476, 6
      %v7479 = vshll.u32 %v7160, 16
      %v7481 = vrot.slane %v7479, 7
      %v7482 = vor.u32 %v7478, %v7481
      %v7483 = vsel %vm584, %v7474, %v7482
      %v7485 = vshrl.u32 %v7161, 16
      %v7487 = vrot.slane %v7485, 6
      %v7488 = vshll.u32 %v7161, 16
      %v7490 = vrot.slane %v7488, 7
      %v7491 = vor.u32 %v7487, %v7490
      %v7492 = vrot.slane %v7491, 4
      %v7494 = vshrl.u32 %v7162, 16
      %v7496 = vrot.slane %v7494, 6
      %v7497 = vshll.u32 %v7162, 16
      %v7499 = vrot.slane %v7497, 7
      %v7500 = vor.u32 %v7496, %v7499
      %v7501 = vsel %vm584, %v7492, %v7500
      %v7502 = vrot.slane %v7500, 4
      %v7504 = vshrl.u32 %v7163, 16
      %v7506 = vrot.slane %v7504, 6
      %v7507 = vshll.u32 %v7163, 16
      %v7509 = vrot.slane %v7507, 7
      %v7510 = vor.u32 %v7506, %v7509
      %v7511 = vsel %vm584, %v7502, %v7510
      %v7513 = vshrl.u32 %v7164, 16
      %v7515 = vrot.slane %v7513, 6
      %v7516 = vshll.u32 %v7164, 16
      %v7518 = vrot.slane %v7516, 7
      %v7519 = vor.u32 %v7515, %v7518
      %v7520 = vrot.slane %v7519, 4
      %v7522 = vshrl.u32 %v7165, 16
      %v7524 = vrot.slane %v7522, 6
      %v7525 = vshll.u32 %v7165, 16
      %v7527 = vrot.slane %v7525, 7
      %v7528 = vor.u32 %v7524, %v7527
      %v7529 = vsel %vm584, %v7520, %v7528
      %v7530 = vrot.slane %v7528, 4
      %v7532 = vshrl.u32 %v7166, 16
      %v7534 = vrot.slane %v7532, 6
      %v7535 = vshll.u32 %v7166, 16
      %v7537 = vrot.slane %v7535, 7
      %v7538 = vor.u32 %v7534, %v7537
      %v7539 = vsel %vm584, %v7530, %v7538
      %v7541 = vshrl.u32 %v7167, 16
      %v7543 = vrot.slane %v7541, 6
      %v7544 = vshll.u32 %v7167, 16
      %v7546 = vrot.slane %v7544, 7
      %v7547 = vor.u32 %v7543, %v7546
      %v7548 = vrot.slane %v7547, 4
      %v7550 = vshrl.u32 %v7168, 16
      %v7552 = vrot.slane %v7550, 6
      %v7553 = vshll.u32 %v7168, 16
      %v7555 = vrot.slane %v7553, 7
      %v7556 = vor.u32 %v7552, %v7555
      %v7557 = vsel %vm584, %v7548, %v7556
      %v7558 = vrot.slane %v7556, 4
      %v7560 = vshrl.u32 %v7169, 16
      %v7562 = vrot.slane %v7560, 6
      %v7563 = vshll.u32 %v7169, 16
      %v7565 = vrot.slane %v7563, 7
      %v7566 = vor.u32 %v7562, %v7565
      %v7567 = vsel %vm584, %v7558, %v7566
      %v7569 = vshrl.u32 %v7170, 16
      %v7571 = vrot.slane %v7569, 6
      %v7572 = vshll.u32 %v7170, 16
      %v7574 = vrot.slane %v7572, 7
      %v7575 = vor.u32 %v7571, %v7574
      %v7576 = vrot.slane %v7575, 4
      %v7578 = vshrl.u32 %v7171, 16
      %v7580 = vrot.slane %v7578, 6
      %v7581 = vshll.u32 %v7171, 16
      %v7583 = vrot.slane %v7581, 7
      %v7584 = vor.u32 %v7580, %v7583
      %v7585 = vsel %vm584, %v7576, %v7584
      %v7586 = vrot.slane %v7584, 4
      %v7588 = vshrl.u32 %v7172, 16
      %v7590 = vrot.slane %v7588, 6
      %v7591 = vshll.u32 %v7172, 16
      %v7593 = vrot.slane %v7591, 7
      %v7594 = vor.u32 %v7590, %v7593
      %v7595 = vsel %vm584, %v7586, %v7594
      %v7597 = vshrl.u32 %v7173, 16
      %v7599 = vrot.slane %v7597, 6
      %v7600 = vshll.u32 %v7173, 16
      %v7602 = vrot.slane %v7600, 7
      %v7603 = vor.u32 %v7599, %v7602
      %v7604 = vrot.slane %v7603, 4
      %v7606 = vshrl.u32 %v7174, 16
      %v7608 = vrot.slane %v7606, 6
      %v7609 = vshll.u32 %v7174, 16
      %v7611 = vrot.slane %v7609, 7
      %v7612 = vor.u32 %v7608, %v7611
      %v7613 = vsel %vm584, %v7604, %v7612
      %v7614 = vrot.slane %v7612, 4
      %v7616 = vshrl.u32 %v7175, 16
      %v7618 = vrot.slane %v7616, 6
      %v7619 = vshll.u32 %v7175, 16
      %v7621 = vrot.slane %v7619, 7
      %v7622 = vor.u32 %v7618, %v7621
      %v7623 = vsel %vm584, %v7614, %v7622
      %v7624 = vunpack.c.l.b16 %v7193
      %v7625 = vunpack.c.l.b16 %v7203
      %v7626 = vunpack.c.l.b16 %v7221
      %v7627 = vunpack.c.l.b16 %v7231
      %v7628 = vunpack.c.l.b16 %v7249
      %v7629 = vunpack.c.l.b16 %v7259
      %v7630 = vunpack.c.l.b16 %v7277
      %v7631 = vunpack.c.l.b16 %v7287
      %v7632 = vunpack.c.l.b16 %v7305
      %v7633 = vunpack.c.l.b16 %v7315
      %v7634 = vunpack.c.l.b16 %v7333
      %v7635 = vunpack.c.l.b16 %v7343
      %v7636 = vunpack.c.l.b16 %v7361
      %v7637 = vunpack.c.l.b16 %v7371
      %v7638 = vunpack.c.l.b16 %v7389
      %v7639 = vunpack.c.l.b16 %v7399
      %v7640 = vunpack.c.l.b16 %v7417
      %v7641 = vunpack.c.l.b16 %v7427
      %v7642 = vunpack.c.l.b16 %v7445
      %v7643 = vunpack.c.l.b16 %v7455
      %v7644 = vunpack.c.l.b16 %v7473
      %v7645 = vunpack.c.l.b16 %v7483
      %v7646 = vunpack.c.l.b16 %v7501
      %v7647 = vunpack.c.l.b16 %v7511
      %v7648 = vunpack.c.l.b16 %v7529
      %v7649 = vunpack.c.l.b16 %v7539
      %v7650 = vunpack.c.l.b16 %v7557
      %v7651 = vunpack.c.l.b16 %v7567
      %v7652 = vunpack.c.l.b16 %v7585
      %v7653 = vunpack.c.l.b16 %v7595
      %v7654 = vunpack.c.l.b16 %v7613
      %v7655 = vunpack.c.l.b16 %v7623
      %v7656 = vpack.c.b16 %v7625, %v7624
      %v7657 = vpack.c.b16 %v7627, %v7626
      %v7658 = vpack.c.b16 %v7629, %v7628
      %v7659 = vpack.c.b16 %v7631, %v7630
      %v7660 = vpack.c.b16 %v7633, %v7632
      %v7661 = vpack.c.b16 %v7635, %v7634
      %v7662 = vpack.c.b16 %v7637, %v7636
      %v7663 = vpack.c.b16 %v7639, %v7638
      %v7664 = vpack.c.b16 %v7641, %v7640
      %v7665 = vpack.c.b16 %v7643, %v7642
      %v7666 = vpack.c.b16 %v7645, %v7644
      %v7667 = vpack.c.b16 %v7647, %v7646
      %v7668 = vpack.c.b16 %v7649, %v7648
      %v7669 = vpack.c.b16 %v7651, %v7650
      %v7670 = vpack.c.b16 %v7653, %v7652
      %v7671 = vpack.c.b16 %v7655, %v7654
      %7688 = vxpose.xlu0.c.b16.start [1/8] %v7656, 128
      %7689 = vxpose.xlu0.c.b16.cont [2/8] %v7657, 128
      %7690 = vxpose.xlu0.c.b16.cont [3/8] %v7658, 128
      %7691 = vxpose.xlu0.c.b16.cont [4/8] %v7659, 128
      %7692 = vxpose.xlu0.c.b16.cont [5/8] %v7660, 128
      %7693 = vxpose.xlu0.c.b16.cont [6/8] %v7661, 128
      %7694 = vxpose.xlu0.c.b16.cont [7/8] %v7662, 128
      %7695 = vxpose.xlu0.c.b16.end [8/8] %v7663, 128
      %v7696 = vpop.trf.xlu0
      %v7697 = vpop.trf.xlu0
      %v7698 = vpop.trf.xlu0
      %v7699 = vpop.trf.xlu0
      %v7700 = vpop.trf.xlu0
      %v7701 = vpop.trf.xlu0
      %v7702 = vpop.trf.xlu0
      %v7703 = vpop.trf.xlu0
      %7704 = vxpose.xlu0.c.b16.start [1/8] %v7664, 128
      %7705 = vxpose.xlu0.c.b16.cont [2/8] %v7665, 128
      %7706 = vxpose.xlu0.c.b16.cont [3/8] %v7666, 128
      %7707 = vxpose.xlu0.c.b16.cont [4/8] %v7667, 128
      %7708 = vxpose.xlu0.c.b16.cont [5/8] %v7668, 128
      %7709 = vxpose.xlu0.c.b16.cont [6/8] %v7669, 128
      %7710 = vxpose.xlu0.c.b16.cont [7/8] %v7670, 128
      %7711 = vxpose.xlu0.c.b16.end [8/8] %v7671, 128
      %v7712 = vpop.trf.xlu0
      %v7713 = vpop.trf.xlu0
      %v7714 = vpop.trf.xlu0
      %v7715 = vpop.trf.xlu0
      %v7716 = vpop.trf.xlu0
      %v7717 = vpop.trf.xlu0
      %v7718 = vpop.trf.xlu0
      %v7719 = vpop.trf.xlu0
      %s7720 = scalar_lea.vmem [#allocation2], 208
      %v7721 = vld [vmem:[%s7720] sm:$0xe]
      %v7722 = vld [vmem:[%s7720 + $0x4] sm:$0xf]
      %v7723 = vld [vmem:[%s7720 + $0x8] sm:$0x3]
      %v7724 = vld [vmem:[%s7720 + $0x10] sm:$0xe]
      %v7725 = vld [vmem:[%s7720 + $0x14] sm:$0xf]
      %v7726 = vld [vmem:[%s7720 + $0x18] sm:$0x3]
      %v7727 = vld [vmem:[%s7720 + $0x20] sm:$0xe]
      %v7728 = vld [vmem:[%s7720 + $0x24] sm:$0xf]
      %v7729 = vld [vmem:[%s7720 + $0x28] sm:$0x3]
      %v7730 = vld [vmem:[%s7720 + $0x30] sm:$0xe]
      %v7731 = vld [vmem:[%s7720 + $0x34] sm:$0xf]
      %v7732 = vld [vmem:[%s7720 + $0x38] sm:$0x3]
      %v7733 = vld [vmem:[%s7720 + $0x40] sm:$0xe]
      %v7734 = vld [vmem:[%s7720 + $0x44] sm:$0xf]
      %v7735 = vld [vmem:[%s7720 + $0x48] sm:$0x3]
      %v7736 = vld [vmem:[%s7720 + $0x50] sm:$0xe]
      %v7737 = vld [vmem:[%s7720 + $0x54] sm:$0xf]
      %v7738 = vld [vmem:[%s7720 + $0x58] sm:$0x3]
      %v7739 = vld [vmem:[%s7720 + $0x60] sm:$0xe]
      %v7740 = vld [vmem:[%s7720 + $0x64] sm:$0xf]
      %v7741 = vld [vmem:[%s7720 + $0x68] sm:$0x3]
      %v7742 = vld [vmem:[%s7720 + $0x70] sm:$0xe]
      %v7743 = vld [vmem:[%s7720 + $0x74] sm:$0xf]
      %v7744 = vld [vmem:[%s7720 + $0x78] sm:$0x3]
      %v7745 = vld [vmem:[%s7720 + $0x80] sm:$0xe]
      %v7746 = vld [vmem:[%s7720 + $0x84] sm:$0xf]
      %v7747 = vld [vmem:[%s7720 + $0x88] sm:$0x3]
      %v7748 = vld [vmem:[%s7720 + $0x90] sm:$0xe]
      %v7749 = vld [vmem:[%s7720 + $0x94] sm:$0xf]
      %v7750 = vld [vmem:[%s7720 + $0x98] sm:$0x3]
      %v7751 = vld [vmem:[%s7720 + $0xa0] sm:$0xe]
      %v7752 = vld [vmem:[%s7720 + $0xa4] sm:$0xf]
      %v7753 = vld [vmem:[%s7720 + $0xa8] sm:$0x3]
      %v7754 = vld [vmem:[%s7720 + $0xb0] sm:$0xe]
      %v7755 = vld [vmem:[%s7720 + $0xb4] sm:$0xf]
      %v7756 = vld [vmem:[%s7720 + $0xb8] sm:$0x3]
      %v7757 = vld [vmem:[%s7720 + $0xc0] sm:$0xe]
      %v7758 = vld [vmem:[%s7720 + $0xc4] sm:$0xf]
      %v7759 = vld [vmem:[%s7720 + $0xc8] sm:$0x3]
      %v7760 = vld [vmem:[%s7720 + $0xd0] sm:$0xe]
      %v7761 = vld [vmem:[%s7720 + $0xd4] sm:$0xf]
      %v7762 = vld [vmem:[%s7720 + $0xd8] sm:$0x3]
      %v7763 = vld [vmem:[%s7720 + $0xe0] sm:$0xe]
      %v7764 = vld [vmem:[%s7720 + $0xe4] sm:$0xf]
      %v7765 = vld [vmem:[%s7720 + $0xe8] sm:$0x3]
      %v7766 = vld [vmem:[%s7720 + $0xf0] sm:$0xe]
      %v7767 = vld [vmem:[%s7720 + $0xf4] sm:$0xf]
      %v7768 = vld [vmem:[%s7720 + $0xf8] sm:$0x3]
      %v7770 = vshrl.u32 %v7721, 16
      %v7772 = vrot.slane %v7770, 5
      %v7773 = vshll.u32 %v7721, 16
      %v7775 = vrot.slane %v7773, 6
      %v7776 = vor.u32 %v7772, %v7775
      %v7777 = vrot.slane %v7776, 4
      %v7779 = vshrl.u32 %v7722, 16
      %v7781 = vrot.slane %v7779, 5
      %v7782 = vshll.u32 %v7722, 16
      %v7784 = vrot.slane %v7782, 6
      %v7785 = vor.u32 %v7781, %v7784
      %v7786 = vsel %vm1323, %v7777, %v7785
      %v7787 = vrot.slane %v7785, 4
      %v7789 = vshrl.u32 %v7723, 16
      %v7791 = vrot.slane %v7789, 5
      %v7792 = vshll.u32 %v7723, 16
      %v7794 = vrot.slane %v7792, 6
      %v7795 = vor.u32 %v7791, %v7794
      %v7796 = vsel %vm1323, %v7787, %v7795
      %v7798 = vshrl.u32 %v7724, 16
      %v7800 = vrot.slane %v7798, 5
      %v7801 = vshll.u32 %v7724, 16
      %v7803 = vrot.slane %v7801, 6
      %v7804 = vor.u32 %v7800, %v7803
      %v7805 = vrot.slane %v7804, 4
      %v7807 = vshrl.u32 %v7725, 16
      %v7809 = vrot.slane %v7807, 5
      %v7810 = vshll.u32 %v7725, 16
      %v7812 = vrot.slane %v7810, 6
      %v7813 = vor.u32 %v7809, %v7812
      %v7814 = vsel %vm1323, %v7805, %v7813
      %v7815 = vrot.slane %v7813, 4
      %v7817 = vshrl.u32 %v7726, 16
      %v7819 = vrot.slane %v7817, 5
      %v7820 = vshll.u32 %v7726, 16
      %v7822 = vrot.slane %v7820, 6
      %v7823 = vor.u32 %v7819, %v7822
      %v7824 = vsel %vm1323, %v7815, %v7823
      %v7826 = vshrl.u32 %v7727, 16
      %v7828 = vrot.slane %v7826, 5
      %v7829 = vshll.u32 %v7727, 16
      %v7831 = vrot.slane %v7829, 6
      %v7832 = vor.u32 %v7828, %v7831
      %v7833 = vrot.slane %v7832, 4
      %v7835 = vshrl.u32 %v7728, 16
      %v7837 = vrot.slane %v7835, 5
      %v7838 = vshll.u32 %v7728, 16
      %v7840 = vrot.slane %v7838, 6
      %v7841 = vor.u32 %v7837, %v7840
      %v7842 = vsel %vm1323, %v7833, %v7841
      %v7843 = vrot.slane %v7841, 4
      %v7845 = vshrl.u32 %v7729, 16
      %v7847 = vrot.slane %v7845, 5
      %v7848 = vshll.u32 %v7729, 16
      %v7850 = vrot.slane %v7848, 6
      %v7851 = vor.u32 %v7847, %v7850
      %v7852 = vsel %vm1323, %v7843, %v7851
      %v7854 = vshrl.u32 %v7730, 16
      %v7856 = vrot.slane %v7854, 5
      %v7857 = vshll.u32 %v7730, 16
      %v7859 = vrot.slane %v7857, 6
      %v7860 = vor.u32 %v7856, %v7859
      %v7861 = vrot.slane %v7860, 4
      %v7863 = vshrl.u32 %v7731, 16
      %v7865 = vrot.slane %v7863, 5
      %v7866 = vshll.u32 %v7731, 16
      %v7868 = vrot.slane %v7866, 6
      %v7869 = vor.u32 %v7865, %v7868
      %v7870 = vsel %vm1323, %v7861, %v7869
      %v7871 = vrot.slane %v7869, 4
      %v7873 = vshrl.u32 %v7732, 16
      %v7875 = vrot.slane %v7873, 5
      %v7876 = vshll.u32 %v7732, 16
      %v7878 = vrot.slane %v7876, 6
      %v7879 = vor.u32 %v7875, %v7878
      %v7880 = vsel %vm1323, %v7871, %v7879
      %v7882 = vshrl.u32 %v7733, 16
      %v7884 = vrot.slane %v7882, 5
      %v7885 = vshll.u32 %v7733, 16
      %v7887 = vrot.slane %v7885, 6
      %v7888 = vor.u32 %v7884, %v7887
      %v7889 = vrot.slane %v7888, 4
      %v7891 = vshrl.u32 %v7734, 16
      %v7893 = vrot.slane %v7891, 5
      %v7894 = vshll.u32 %v7734, 16
      %v7896 = vrot.slane %v7894, 6
      %v7897 = vor.u32 %v7893, %v7896
      %v7898 = vsel %vm1323, %v7889, %v7897
      %v7899 = vrot.slane %v7897, 4
      %v7901 = vshrl.u32 %v7735, 16
      %v7903 = vrot.slane %v7901, 5
      %v7904 = vshll.u32 %v7735, 16
      %v7906 = vrot.slane %v7904, 6
      %v7907 = vor.u32 %v7903, %v7906
      %v7908 = vsel %vm1323, %v7899, %v7907
      %v7910 = vshrl.u32 %v7736, 16
      %v7912 = vrot.slane %v7910, 5
      %v7913 = vshll.u32 %v7736, 16
      %v7915 = vrot.slane %v7913, 6
      %v7916 = vor.u32 %v7912, %v7915
      %v7917 = vrot.slane %v7916, 4
      %v7919 = vshrl.u32 %v7737, 16
      %v7921 = vrot.slane %v7919, 5
      %v7922 = vshll.u32 %v7737, 16
      %v7924 = vrot.slane %v7922, 6
      %v7925 = vor.u32 %v7921, %v7924
      %v7926 = vsel %vm1323, %v7917, %v7925
      %v7927 = vrot.slane %v7925, 4
      %v7929 = vshrl.u32 %v7738, 16
      %v7931 = vrot.slane %v7929, 5
      %v7932 = vshll.u32 %v7738, 16
      %v7934 = vrot.slane %v7932, 6
      %v7935 = vor.u32 %v7931, %v7934
      %v7936 = vsel %vm1323, %v7927, %v7935
      %v7938 = vshrl.u32 %v7739, 16
      %v7940 = vrot.slane %v7938, 5
      %v7941 = vshll.u32 %v7739, 16
      %v7943 = vrot.slane %v7941, 6
      %v7944 = vor.u32 %v7940, %v7943
      %v7945 = vrot.slane %v7944, 4
      %v7947 = vshrl.u32 %v7740, 16
      %v7949 = vrot.slane %v7947, 5
      %v7950 = vshll.u32 %v7740, 16
      %v7952 = vrot.slane %v7950, 6
      %v7953 = vor.u32 %v7949, %v7952
      %v7954 = vsel %vm1323, %v7945, %v7953
      %v7955 = vrot.slane %v7953, 4
      %v7957 = vshrl.u32 %v7741, 16
      %v7959 = vrot.slane %v7957, 5
      %v7960 = vshll.u32 %v7741, 16
      %v7962 = vrot.slane %v7960, 6
      %v7963 = vor.u32 %v7959, %v7962
      %v7964 = vsel %vm1323, %v7955, %v7963
      %v7966 = vshrl.u32 %v7742, 16
      %v7968 = vrot.slane %v7966, 5
      %v7969 = vshll.u32 %v7742, 16
      %v7971 = vrot.slane %v7969, 6
      %v7972 = vor.u32 %v7968, %v7971
      %v7973 = vrot.slane %v7972, 4
      %v7975 = vshrl.u32 %v7743, 16
      %v7977 = vrot.slane %v7975, 5
      %v7978 = vshll.u32 %v7743, 16
      %v7980 = vrot.slane %v7978, 6
      %v7981 = vor.u32 %v7977, %v7980
      %v7982 = vsel %vm1323, %v7973, %v7981
      %v7983 = vrot.slane %v7981, 4
      %v7985 = vshrl.u32 %v7744, 16
      %v7987 = vrot.slane %v7985, 5
      %v7988 = vshll.u32 %v7744, 16
      %v7990 = vrot.slane %v7988, 6
      %v7991 = vor.u32 %v7987, %v7990
      %v7992 = vsel %vm1323, %v7983, %v7991
      %v7994 = vshrl.u32 %v7745, 16
      %v7996 = vrot.slane %v7994, 5
      %v7997 = vshll.u32 %v7745, 16
      %v7999 = vrot.slane %v7997, 6
      %v8000 = vor.u32 %v7996, %v7999
      %v8001 = vrot.slane %v8000, 4
      %v8003 = vshrl.u32 %v7746, 16
      %v8005 = vrot.slane %v8003, 5
      %v8006 = vshll.u32 %v7746, 16
      %v8008 = vrot.slane %v8006, 6
      %v8009 = vor.u32 %v8005, %v8008
      %v8010 = vsel %vm1323, %v8001, %v8009
      %v8011 = vrot.slane %v8009, 4
      %v8013 = vshrl.u32 %v7747, 16
      %v8015 = vrot.slane %v8013, 5
      %v8016 = vshll.u32 %v7747, 16
      %v8018 = vrot.slane %v8016, 6
      %v8019 = vor.u32 %v8015, %v8018
      %v8020 = vsel %vm1323, %v8011, %v8019
      %v8022 = vshrl.u32 %v7748, 16
      %v8024 = vrot.slane %v8022, 5
      %v8025 = vshll.u32 %v7748, 16
      %v8027 = vrot.slane %v8025, 6
      %v8028 = vor.u32 %v8024, %v8027
      %v8029 = vrot.slane %v8028, 4
      %v8031 = vshrl.u32 %v7749, 16
      %v8033 = vrot.slane %v8031, 5
      %v8034 = vshll.u32 %v7749, 16
      %v8036 = vrot.slane %v8034, 6
      %v8037 = vor.u32 %v8033, %v8036
      %v8038 = vsel %vm1323, %v8029, %v8037
      %v8039 = vrot.slane %v8037, 4
      %v8041 = vshrl.u32 %v7750, 16
      %v8043 = vrot.slane %v8041, 5
      %v8044 = vshll.u32 %v7750, 16
      %v8046 = vrot.slane %v8044, 6
      %v8047 = vor.u32 %v8043, %v8046
      %v8048 = vsel %vm1323, %v8039, %v8047
      %v8050 = vshrl.u32 %v7751, 16
      %v8052 = vrot.slane %v8050, 5
      %v8053 = vshll.u32 %v7751, 16
      %v8055 = vrot.slane %v8053, 6
      %v8056 = vor.u32 %v8052, %v8055
      %v8057 = vrot.slane %v8056, 4
      %v8059 = vshrl.u32 %v7752, 16
      %v8061 = vrot.slane %v8059, 5
      %v8062 = vshll.u32 %v7752, 16
      %v8064 = vrot.slane %v8062, 6
      %v8065 = vor.u32 %v8061, %v8064
      %v8066 = vsel %vm1323, %v8057, %v8065
      %v8067 = vrot.slane %v8065, 4
      %v8069 = vshrl.u32 %v7753, 16
      %v8071 = vrot.slane %v8069, 5
      %v8072 = vshll.u32 %v7753, 16
      %v8074 = vrot.slane %v8072, 6
      %v8075 = vor.u32 %v8071, %v8074
      %v8076 = vsel %vm1323, %v8067, %v8075
      %v8078 = vshrl.u32 %v7754, 16
      %v8080 = vrot.slane %v8078, 5
      %v8081 = vshll.u32 %v7754, 16
      %v8083 = vrot.slane %v8081, 6
      %v8084 = vor.u32 %v8080, %v8083
      %v8085 = vrot.slane %v8084, 4
      %v8087 = vshrl.u32 %v7755, 16
      %v8089 = vrot.slane %v8087, 5
      %v8090 = vshll.u32 %v7755, 16
      %v8092 = vrot.slane %v8090, 6
      %v8093 = vor.u32 %v8089, %v8092
      %v8094 = vsel %vm1323, %v8085, %v8093
      %v8095 = vrot.slane %v8093, 4
      %v8097 = vshrl.u32 %v7756, 16
      %v8099 = vrot.slane %v8097, 5
      %v8100 = vshll.u32 %v7756, 16
      %v8102 = vrot.slane %v8100, 6
      %v8103 = vor.u32 %v8099, %v8102
      %v8104 = vsel %vm1323, %v8095, %v8103
      %v8106 = vshrl.u32 %v7757, 16
      %v8108 = vrot.slane %v8106, 5
      %v8109 = vshll.u32 %v7757, 16
      %v8111 = vrot.slane %v8109, 6
      %v8112 = vor.u32 %v8108, %v8111
      %v8113 = vrot.slane %v8112, 4
      %v8115 = vshrl.u32 %v7758, 16
      %v8117 = vrot.slane %v8115, 5
      %v8118 = vshll.u32 %v7758, 16
      %v8120 = vrot.slane %v8118, 6
      %v8121 = vor.u32 %v8117, %v8120
      %v8122 = vsel %vm1323, %v8113, %v8121
      %v8123 = vrot.slane %v8121, 4
      %v8125 = vshrl.u32 %v7759, 16
      %v8127 = vrot.slane %v8125, 5
      %v8128 = vshll.u32 %v7759, 16
      %v8130 = vrot.slane %v8128, 6
      %v8131 = vor.u32 %v8127, %v8130
      %v8132 = vsel %vm1323, %v8123, %v8131
      %v8134 = vshrl.u32 %v7760, 16
      %v8136 = vrot.slane %v8134, 5
      %v8137 = vshll.u32 %v7760, 16
      %v8139 = vrot.slane %v8137, 6
      %v8140 = vor.u32 %v8136, %v8139
      %v8141 = vrot.slane %v8140, 4
      %v8143 = vshrl.u32 %v7761, 16
      %v8145 = vrot.slane %v8143, 5
      %v8146 = vshll.u32 %v7761, 16
      %v8148 = vrot.slane %v8146, 6
      %v8149 = vor.u32 %v8145, %v8148
      %v8150 = vsel %vm1323, %v8141, %v8149
      %v8151 = vrot.slane %v8149, 4
      %v8153 = vshrl.u32 %v7762, 16
      %v8155 = vrot.slane %v8153, 5
      %v8156 = vshll.u32 %v7762, 16
      %v8158 = vrot.slane %v8156, 6
      %v8159 = vor.u32 %v8155, %v8158
      %v8160 = vsel %vm1323, %v8151, %v8159
      %v8162 = vshrl.u32 %v7763, 16
      %v8164 = vrot.slane %v8162, 5
      %v8165 = vshll.u32 %v7763, 16
      %v8167 = vrot.slane %v8165, 6
      %v8168 = vor.u32 %v8164, %v8167
      %v8169 = vrot.slane %v8168, 4
      %v8171 = vshrl.u32 %v7764, 16
      %v8173 = vrot.slane %v8171, 5
      %v8174 = vshll.u32 %v7764, 16
      %v8176 = vrot.slane %v8174, 6
      %v8177 = vor.u32 %v8173, %v8176
      %v8178 = vsel %vm1323, %v8169, %v8177
      %v8179 = vrot.slane %v8177, 4
      %v8181 = vshrl.u32 %v7765, 16
      %v8183 = vrot.slane %v8181, 5
      %v8184 = vshll.u32 %v7765, 16
      %v8186 = vrot.slane %v8184, 6
      %v8187 = vor.u32 %v8183, %v8186
      %v8188 = vsel %vm1323, %v8179, %v8187
      %v8190 = vshrl.u32 %v7766, 16
      %v8192 = vrot.slane %v8190, 5
      %v8193 = vshll.u32 %v7766, 16
      %v8195 = vrot.slane %v8193, 6
      %v8196 = vor.u32 %v8192, %v8195
      %v8197 = vrot.slane %v8196, 4
      %v8199 = vshrl.u32 %v7767, 16
      %v8201 = vrot.slane %v8199, 5
      %v8202 = vshll.u32 %v7767, 16
      %v8204 = vrot.slane %v8202, 6
      %v8205 = vor.u32 %v8201, %v8204
      %v8206 = vsel %vm1323, %v8197, %v8205
      %v8207 = vrot.slane %v8205, 4
      %v8209 = vshrl.u32 %v7768, 16
      %v8211 = vrot.slane %v8209, 5
      %v8212 = vshll.u32 %v7768, 16
      %v8214 = vrot.slane %v8212, 6
      %v8215 = vor.u32 %v8211, %v8214
      %v8216 = vsel %vm1323, %v8207, %v8215
      %v8217 = vunpack.c.l.b16 %v7786
      %v8218 = vunpack.c.l.b16 %v7796
      %v8219 = vunpack.c.l.b16 %v7814
      %v8220 = vunpack.c.l.b16 %v7824
      %v8221 = vunpack.c.l.b16 %v7842
      %v8222 = vunpack.c.l.b16 %v7852
      %v8223 = vunpack.c.l.b16 %v7870
      %v8224 = vunpack.c.l.b16 %v7880
      %v8225 = vunpack.c.l.b16 %v7898
      %v8226 = vunpack.c.l.b16 %v7908
      %v8227 = vunpack.c.l.b16 %v7926
      %v8228 = vunpack.c.l.b16 %v7936
      %v8229 = vunpack.c.l.b16 %v7954
      %v8230 = vunpack.c.l.b16 %v7964
      %v8231 = vunpack.c.l.b16 %v7982
      %v8232 = vunpack.c.l.b16 %v7992
      %v8233 = vunpack.c.l.b16 %v8010
      %v8234 = vunpack.c.l.b16 %v8020
      %v8235 = vunpack.c.l.b16 %v8038
      %v8236 = vunpack.c.l.b16 %v8048
      %v8237 = vunpack.c.l.b16 %v8066
      %v8238 = vunpack.c.l.b16 %v8076
      %v8239 = vunpack.c.l.b16 %v8094
      %v8240 = vunpack.c.l.b16 %v8104
      %v8241 = vunpack.c.l.b16 %v8122
      %v8242 = vunpack.c.l.b16 %v8132
      %v8243 = vunpack.c.l.b16 %v8150
      %v8244 = vunpack.c.l.b16 %v8160
      %v8245 = vunpack.c.l.b16 %v8178
      %v8246 = vunpack.c.l.b16 %v8188
      %v8247 = vunpack.c.l.b16 %v8206
      %v8248 = vunpack.c.l.b16 %v8216
      %v8249 = vpack.c.b16 %v8218, %v8217
      %v8250 = vpack.c.b16 %v8220, %v8219
      %v8251 = vpack.c.b16 %v8222, %v8221
      %v8252 = vpack.c.b16 %v8224, %v8223
      %v8253 = vpack.c.b16 %v8226, %v8225
      %v8254 = vpack.c.b16 %v8228, %v8227
      %v8255 = vpack.c.b16 %v8230, %v8229
      %v8256 = vpack.c.b16 %v8232, %v8231
      %v8257 = vpack.c.b16 %v8234, %v8233
      %v8258 = vpack.c.b16 %v8236, %v8235
      %v8259 = vpack.c.b16 %v8238, %v8237
      %v8260 = vpack.c.b16 %v8240, %v8239
      %v8261 = vpack.c.b16 %v8242, %v8241
      %v8262 = vpack.c.b16 %v8244, %v8243
      %v8263 = vpack.c.b16 %v8246, %v8245
      %v8264 = vpack.c.b16 %v8248, %v8247
      %8281 = vxpose.xlu0.c.b16.start [1/8] %v8249, 128
      %8282 = vxpose.xlu0.c.b16.cont [2/8] %v8250, 128
      %8283 = vxpose.xlu0.c.b16.cont [3/8] %v8251, 128
      %8284 = vxpose.xlu0.c.b16.cont [4/8] %v8252, 128
      %8285 = vxpose.xlu0.c.b16.cont [5/8] %v8253, 128
      %8286 = vxpose.xlu0.c.b16.cont [6/8] %v8254, 128
      %8287 = vxpose.xlu0.c.b16.cont [7/8] %v8255, 128
      %8288 = vxpose.xlu0.c.b16.end [8/8] %v8256, 128
      %v8289 = vpop.trf.xlu0
      %v8290 = vpop.trf.xlu0
      %v8291 = vpop.trf.xlu0
      %v8292 = vpop.trf.xlu0
      %v8293 = vpop.trf.xlu0
      %v8294 = vpop.trf.xlu0
      %v8295 = vpop.trf.xlu0
      %v8296 = vpop.trf.xlu0
      %8297 = vxpose.xlu0.c.b16.start [1/8] %v8257, 128
      %8298 = vxpose.xlu0.c.b16.cont [2/8] %v8258, 128
      %8299 = vxpose.xlu0.c.b16.cont [3/8] %v8259, 128
      %8300 = vxpose.xlu0.c.b16.cont [4/8] %v8260, 128
      %8301 = vxpose.xlu0.c.b16.cont [5/8] %v8261, 128
      %8302 = vxpose.xlu0.c.b16.cont [6/8] %v8262, 128
      %8303 = vxpose.xlu0.c.b16.cont [7/8] %v8263, 128
      %8304 = vxpose.xlu0.c.b16.end [8/8] %v8264, 128
      %v8305 = vpop.trf.xlu0
      %v8306 = vpop.trf.xlu0
      %v8307 = vpop.trf.xlu0
      %v8308 = vpop.trf.xlu0
      %v8309 = vpop.trf.xlu0
      %v8310 = vpop.trf.xlu0
      %v8311 = vpop.trf.xlu0
      %v8312 = vpop.trf.xlu0
      %v8313 = vld [vmem:[%s7720 + $0x8] sm:$0xf]
      %v8314 = vld [vmem:[%s7720 + $0x18] sm:$0xf]
      %v8315 = vld [vmem:[%s7720 + $0x28] sm:$0xf]
      %v8316 = vld [vmem:[%s7720 + $0x38] sm:$0xf]
      %v8317 = vld [vmem:[%s7720 + $0x48] sm:$0xf]
      %v8318 = vld [vmem:[%s7720 + $0x58] sm:$0xf]
      %v8319 = vld [vmem:[%s7720 + $0x68] sm:$0xf]
      %v8320 = vld [vmem:[%s7720 + $0x78] sm:$0xf]
      %v8321 = vld [vmem:[%s7720 + $0x88] sm:$0xf]
      %v8322 = vld [vmem:[%s7720 + $0x98] sm:$0xf]
      %v8323 = vld [vmem:[%s7720 + $0xa8] sm:$0xf]
      %v8324 = vld [vmem:[%s7720 + $0xb8] sm:$0xf]
      %v8325 = vld [vmem:[%s7720 + $0xc8] sm:$0xf]
      %v8326 = vld [vmem:[%s7720 + $0xd8] sm:$0xf]
      %v8327 = vld [vmem:[%s7720 + $0xe8] sm:$0xf]
      %v8328 = vld [vmem:[%s7720 + $0xf8] sm:$0xf]
      %v8361 = vunpack.c.l.b16 %v7722
      %v8362 = vunpack.c.l.b16 %v8313
      %v8363 = vunpack.c.l.b16 %v7725
      %v8364 = vunpack.c.l.b16 %v8314
      %v8365 = vunpack.c.l.b16 %v7728
      %v8366 = vunpack.c.l.b16 %v8315
      %v8367 = vunpack.c.l.b16 %v7731
      %v8368 = vunpack.c.l.b16 %v8316
      %v8369 = vunpack.c.l.b16 %v7734
      %v8370 = vunpack.c.l.b16 %v8317
      %v8371 = vunpack.c.l.b16 %v7737
      %v8372 = vunpack.c.l.b16 %v8318
      %v8373 = vunpack.c.l.b16 %v7740
      %v8374 = vunpack.c.l.b16 %v8319
      %v8375 = vunpack.c.l.b16 %v7743
      %v8376 = vunpack.c.l.b16 %v8320
      %v8377 = vunpack.c.l.b16 %v7746
      %v8378 = vunpack.c.l.b16 %v8321
      %v8379 = vunpack.c.l.b16 %v7749
      %v8380 = vunpack.c.l.b16 %v8322
      %v8381 = vunpack.c.l.b16 %v7752
      %v8382 = vunpack.c.l.b16 %v8323
      %v8383 = vunpack.c.l.b16 %v7755
      %v8384 = vunpack.c.l.b16 %v8324
      %v8385 = vunpack.c.l.b16 %v7758
      %v8386 = vunpack.c.l.b16 %v8325
      %v8387 = vunpack.c.l.b16 %v7761
      %v8388 = vunpack.c.l.b16 %v8326
      %v8389 = vunpack.c.l.b16 %v7764
      %v8390 = vunpack.c.l.b16 %v8327
      %v8391 = vunpack.c.l.b16 %v7767
      %v8392 = vunpack.c.l.b16 %v8328
      %v8393 = vpack.c.b16 %v8362, %v8361
      %v8394 = vpack.c.b16 %v8364, %v8363
      %v8395 = vpack.c.b16 %v8366, %v8365
      %v8396 = vpack.c.b16 %v8368, %v8367
      %v8397 = vpack.c.b16 %v8370, %v8369
      %v8398 = vpack.c.b16 %v8372, %v8371
      %v8399 = vpack.c.b16 %v8374, %v8373
      %v8400 = vpack.c.b16 %v8376, %v8375
      %v8401 = vpack.c.b16 %v8378, %v8377
      %v8402 = vpack.c.b16 %v8380, %v8379
      %v8403 = vpack.c.b16 %v8382, %v8381
      %v8404 = vpack.c.b16 %v8384, %v8383
      %v8405 = vpack.c.b16 %v8386, %v8385
      %v8406 = vpack.c.b16 %v8388, %v8387
      %v8407 = vpack.c.b16 %v8390, %v8389
      %v8408 = vpack.c.b16 %v8392, %v8391
      %8425 = vxpose.xlu0.c.b16.start [1/8] %v8393, 128
      %8426 = vxpose.xlu0.c.b16.cont [2/8] %v8394, 128
      %8427 = vxpose.xlu0.c.b16.cont [3/8] %v8395, 128
      %8428 = vxpose.xlu0.c.b16.cont [4/8] %v8396, 128
      %8429 = vxpose.xlu0.c.b16.cont [5/8] %v8397, 128
      %8430 = vxpose.xlu0.c.b16.cont [6/8] %v8398, 128
      %8431 = vxpose.xlu0.c.b16.cont [7/8] %v8399, 128
      %8432 = vxpose.xlu0.c.b16.end [8/8] %v8400, 128
      %v8433 = vpop.trf.xlu0
      %v8434 = vpop.trf.xlu0
      %v8435 = vpop.trf.xlu0
      %v8436 = vpop.trf.xlu0
      %v8437 = vpop.trf.xlu0
      %v8438 = vpop.trf.xlu0
      %v8439 = vpop.trf.xlu0
      %v8440 = vpop.trf.xlu0
      %8441 = vxpose.xlu0.c.b16.start [1/8] %v8401, 128
      %8442 = vxpose.xlu0.c.b16.cont [2/8] %v8402, 128
      %8443 = vxpose.xlu0.c.b16.cont [3/8] %v8403, 128
      %8444 = vxpose.xlu0.c.b16.cont [4/8] %v8404, 128
      %8445 = vxpose.xlu0.c.b16.cont [5/8] %v8405, 128
      %8446 = vxpose.xlu0.c.b16.cont [6/8] %v8406, 128
      %8447 = vxpose.xlu0.c.b16.cont [7/8] %v8407, 128
      %8448 = vxpose.xlu0.c.b16.end [8/8] %v8408, 128
      %v8449 = vpop.trf.xlu0
      %v8450 = vpop.trf.xlu0
      %v8451 = vpop.trf.xlu0
      %v8452 = vpop.trf.xlu0
      %v8453 = vpop.trf.xlu0
      %v8454 = vpop.trf.xlu0
      %v8455 = vpop.trf.xlu0
      %v8456 = vpop.trf.xlu0
      %v8457 = vld [vmem:[%s7720 + $0x4] sm:$0xc]
      %v8458 = vld [vmem:[%s7720 + $0x8] sm:$0xf]
      %v8459 = vld [vmem:[%s7720 + $0xc] sm:$0x7]
      %v8460 = vld [vmem:[%s7720 + $0x14] sm:$0xc]
      %v8461 = vld [vmem:[%s7720 + $0x18] sm:$0xf]
      %v8462 = vld [vmem:[%s7720 + $0x1c] sm:$0x7]
      %v8463 = vld [vmem:[%s7720 + $0x24] sm:$0xc]
      %v8464 = vld [vmem:[%s7720 + $0x28] sm:$0xf]
      %v8465 = vld [vmem:[%s7720 + $0x2c] sm:$0x7]
      %v8466 = vld [vmem:[%s7720 + $0x34] sm:$0xc]
      %v8467 = vld [vmem:[%s7720 + $0x38] sm:$0xf]
      %v8468 = vld [vmem:[%s7720 + $0x3c] sm:$0x7]
      %v8469 = vld [vmem:[%s7720 + $0x44] sm:$0xc]
      %v8470 = vld [vmem:[%s7720 + $0x48] sm:$0xf]
      %v8471 = vld [vmem:[%s7720 + $0x4c] sm:$0x7]
      %v8472 = vld [vmem:[%s7720 + $0x54] sm:$0xc]
      %v8473 = vld [vmem:[%s7720 + $0x58] sm:$0xf]
      %v8474 = vld [vmem:[%s7720 + $0x5c] sm:$0x7]
      %v8475 = vld [vmem:[%s7720 + $0x64] sm:$0xc]
      %v8476 = vld [vmem:[%s7720 + $0x68] sm:$0xf]
      %v8477 = vld [vmem:[%s7720 + $0x6c] sm:$0x7]
      %v8478 = vld [vmem:[%s7720 + $0x74] sm:$0xc]
      %v8479 = vld [vmem:[%s7720 + $0x78] sm:$0xf]
      %v8480 = vld [vmem:[%s7720 + $0x7c] sm:$0x7]
      %v8481 = vld [vmem:[%s7720 + $0x84] sm:$0xc]
      %v8482 = vld [vmem:[%s7720 + $0x88] sm:$0xf]
      %v8483 = vld [vmem:[%s7720 + $0x8c] sm:$0x7]
      %v8484 = vld [vmem:[%s7720 + $0x94] sm:$0xc]
      %v8485 = vld [vmem:[%s7720 + $0x98] sm:$0xf]
      %v8486 = vld [vmem:[%s7720 + $0x9c] sm:$0x7]
      %v8487 = vld [vmem:[%s7720 + $0xa4] sm:$0xc]
      %v8488 = vld [vmem:[%s7720 + $0xa8] sm:$0xf]
      %v8489 = vld [vmem:[%s7720 + $0xac] sm:$0x7]
      %v8490 = vld [vmem:[%s7720 + $0xb4] sm:$0xc]
      %v8491 = vld [vmem:[%s7720 + $0xb8] sm:$0xf]
      %v8492 = vld [vmem:[%s7720 + $0xbc] sm:$0x7]
      %v8493 = vld [vmem:[%s7720 + $0xc4] sm:$0xc]
      %v8494 = vld [vmem:[%s7720 + $0xc8] sm:$0xf]
      %v8495 = vld [vmem:[%s7720 + $0xcc] sm:$0x7]
      %v8496 = vld [vmem:[%s7720 + $0xd4] sm:$0xc]
      %v8497 = vld [vmem:[%s7720 + $0xd8] sm:$0xf]
      %v8498 = vld [vmem:[%s7720 + $0xdc] sm:$0x7]
      %v8499 = vld [vmem:[%s7720 + $0xe4] sm:$0xc]
      %v8500 = vld [vmem:[%s7720 + $0xe8] sm:$0xf]
      %v8501 = vld [vmem:[%s7720 + $0xec] sm:$0x7]
      %v8502 = vld [vmem:[%s7720 + $0xf4] sm:$0xc]
      %v8503 = vld [vmem:[%s7720 + $0xf8] sm:$0xf]
      %v8504 = vld [vmem:[%s7720 + $0xfc] sm:$0x7]
      %v8506 = vshrl.u32 %v8457, 16
      %v8508 = vrot.slane %v8506, 6
      %v8509 = vshll.u32 %v8457, 16
      %v8511 = vrot.slane %v8509, 7
      %v8512 = vor.u32 %v8508, %v8511
      %v8513 = vrot.slane %v8512, 4
      %v8515 = vshrl.u32 %v8458, 16
      %v8517 = vrot.slane %v8515, 6
      %v8518 = vshll.u32 %v8458, 16
      %v8520 = vrot.slane %v8518, 7
      %v8521 = vor.u32 %v8517, %v8520
      %v8522 = vsel %vm584, %v8513, %v8521
      %v8523 = vrot.slane %v8521, 4
      %v8525 = vshrl.u32 %v8459, 16
      %v8527 = vrot.slane %v8525, 6
      %v8528 = vshll.u32 %v8459, 16
      %v8530 = vrot.slane %v8528, 7
      %v8531 = vor.u32 %v8527, %v8530
      %v8532 = vsel %vm584, %v8523, %v8531
      %v8534 = vshrl.u32 %v8460, 16
      %v8536 = vrot.slane %v8534, 6
      %v8537 = vshll.u32 %v8460, 16
      %v8539 = vrot.slane %v8537, 7
      %v8540 = vor.u32 %v8536, %v8539
      %v8541 = vrot.slane %v8540, 4
      %v8543 = vshrl.u32 %v8461, 16
      %v8545 = vrot.slane %v8543, 6
      %v8546 = vshll.u32 %v8461, 16
      %v8548 = vrot.slane %v8546, 7
      %v8549 = vor.u32 %v8545, %v8548
      %v8550 = vsel %vm584, %v8541, %v8549
      %v8551 = vrot.slane %v8549, 4
      %v8553 = vshrl.u32 %v8462, 16
      %v8555 = vrot.slane %v8553, 6
      %v8556 = vshll.u32 %v8462, 16
      %v8558 = vrot.slane %v8556, 7
      %v8559 = vor.u32 %v8555, %v8558
      %v8560 = vsel %vm584, %v8551, %v8559
      %v8562 = vshrl.u32 %v8463, 16
      %v8564 = vrot.slane %v8562, 6
      %v8565 = vshll.u32 %v8463, 16
      %v8567 = vrot.slane %v8565, 7
      %v8568 = vor.u32 %v8564, %v8567
      %v8569 = vrot.slane %v8568, 4
      %v8571 = vshrl.u32 %v8464, 16
      %v8573 = vrot.slane %v8571, 6
      %v8574 = vshll.u32 %v8464, 16
      %v8576 = vrot.slane %v8574, 7
      %v8577 = vor.u32 %v8573, %v8576
      %v8578 = vsel %vm584, %v8569, %v8577
      %v8579 = vrot.slane %v8577, 4
      %v8581 = vshrl.u32 %v8465, 16
      %v8583 = vrot.slane %v8581, 6
      %v8584 = vshll.u32 %v8465, 16
      %v8586 = vrot.slane %v8584, 7
      %v8587 = vor.u32 %v8583, %v8586
      %v8588 = vsel %vm584, %v8579, %v8587
      %v8590 = vshrl.u32 %v8466, 16
      %v8592 = vrot.slane %v8590, 6
      %v8593 = vshll.u32 %v8466, 16
      %v8595 = vrot.slane %v8593, 7
      %v8596 = vor.u32 %v8592, %v8595
      %v8597 = vrot.slane %v8596, 4
      %v8599 = vshrl.u32 %v8467, 16
      %v8601 = vrot.slane %v8599, 6
      %v8602 = vshll.u32 %v8467, 16
      %v8604 = vrot.slane %v8602, 7
      %v8605 = vor.u32 %v8601, %v8604
      %v8606 = vsel %vm584, %v8597, %v8605
      %v8607 = vrot.slane %v8605, 4
      %v8609 = vshrl.u32 %v8468, 16
      %v8611 = vrot.slane %v8609, 6
      %v8612 = vshll.u32 %v8468, 16
      %v8614 = vrot.slane %v8612, 7
      %v8615 = vor.u32 %v8611, %v8614
      %v8616 = vsel %vm584, %v8607, %v8615
      %v8618 = vshrl.u32 %v8469, 16
      %v8620 = vrot.slane %v8618, 6
      %v8621 = vshll.u32 %v8469, 16
      %v8623 = vrot.slane %v8621, 7
      %v8624 = vor.u32 %v8620, %v8623
      %v8625 = vrot.slane %v8624, 4
      %v8627 = vshrl.u32 %v8470, 16
      %v8629 = vrot.slane %v8627, 6
      %v8630 = vshll.u32 %v8470, 16
      %v8632 = vrot.slane %v8630, 7
      %v8633 = vor.u32 %v8629, %v8632
      %v8634 = vsel %vm584, %v8625, %v8633
      %v8635 = vrot.slane %v8633, 4
      %v8637 = vshrl.u32 %v8471, 16
      %v8639 = vrot.slane %v8637, 6
      %v8640 = vshll.u32 %v8471, 16
      %v8642 = vrot.slane %v8640, 7
      %v8643 = vor.u32 %v8639, %v8642
      %v8644 = vsel %vm584, %v8635, %v8643
      %v8646 = vshrl.u32 %v8472, 16
      %v8648 = vrot.slane %v8646, 6
      %v8649 = vshll.u32 %v8472, 16
      %v8651 = vrot.slane %v8649, 7
      %v8652 = vor.u32 %v8648, %v8651
      %v8653 = vrot.slane %v8652, 4
      %v8655 = vshrl.u32 %v8473, 16
      %v8657 = vrot.slane %v8655, 6
      %v8658 = vshll.u32 %v8473, 16
      %v8660 = vrot.slane %v8658, 7
      %v8661 = vor.u32 %v8657, %v8660
      %v8662 = vsel %vm584, %v8653, %v8661
      %v8663 = vrot.slane %v8661, 4
      %v8665 = vshrl.u32 %v8474, 16
      %v8667 = vrot.slane %v8665, 6
      %v8668 = vshll.u32 %v8474, 16
      %v8670 = vrot.slane %v8668, 7
      %v8671 = vor.u32 %v8667, %v8670
      %v8672 = vsel %vm584, %v8663, %v8671
      %v8674 = vshrl.u32 %v8475, 16
      %v8676 = vrot.slane %v8674, 6
      %v8677 = vshll.u32 %v8475, 16
      %v8679 = vrot.slane %v8677, 7
      %v8680 = vor.u32 %v8676, %v8679
      %v8681 = vrot.slane %v8680, 4
      %v8683 = vshrl.u32 %v8476, 16
      %v8685 = vrot.slane %v8683, 6
      %v8686 = vshll.u32 %v8476, 16
      %v8688 = vrot.slane %v8686, 7
      %v8689 = vor.u32 %v8685, %v8688
      %v8690 = vsel %vm584, %v8681, %v8689
      %v8691 = vrot.slane %v8689, 4
      %v8693 = vshrl.u32 %v8477, 16
      %v8695 = vrot.slane %v8693, 6
      %v8696 = vshll.u32 %v8477, 16
      %v8698 = vrot.slane %v8696, 7
      %v8699 = vor.u32 %v8695, %v8698
      %v8700 = vsel %vm584, %v8691, %v8699
      %v8702 = vshrl.u32 %v8478, 16
      %v8704 = vrot.slane %v8702, 6
      %v8705 = vshll.u32 %v8478, 16
      %v8707 = vrot.slane %v8705, 7
      %v8708 = vor.u32 %v8704, %v8707
      %v8709 = vrot.slane %v8708, 4
      %v8711 = vshrl.u32 %v8479, 16
      %v8713 = vrot.slane %v8711, 6
      %v8714 = vshll.u32 %v8479, 16
      %v8716 = vrot.slane %v8714, 7
      %v8717 = vor.u32 %v8713, %v8716
      %v8718 = vsel %vm584, %v8709, %v8717
      %v8719 = vrot.slane %v8717, 4
      %v8721 = vshrl.u32 %v8480, 16
      %v8723 = vrot.slane %v8721, 6
      %v8724 = vshll.u32 %v8480, 16
      %v8726 = vrot.slane %v8724, 7
      %v8727 = vor.u32 %v8723, %v8726
      %v8728 = vsel %vm584, %v8719, %v8727
      %v8730 = vshrl.u32 %v8481, 16
      %v8732 = vrot.slane %v8730, 6
      %v8733 = vshll.u32 %v8481, 16
      %v8735 = vrot.slane %v8733, 7
      %v8736 = vor.u32 %v8732, %v8735
      %v8737 = vrot.slane %v8736, 4
      %v8739 = vshrl.u32 %v8482, 16
      %v8741 = vrot.slane %v8739, 6
      %v8742 = vshll.u32 %v8482, 16
      %v8744 = vrot.slane %v8742, 7
      %v8745 = vor.u32 %v8741, %v8744
      %v8746 = vsel %vm584, %v8737, %v8745
      %v8747 = vrot.slane %v8745, 4
      %v8749 = vshrl.u32 %v8483, 16
      %v8751 = vrot.slane %v8749, 6
      %v8752 = vshll.u32 %v8483, 16
      %v8754 = vrot.slane %v8752, 7
      %v8755 = vor.u32 %v8751, %v8754
      %v8756 = vsel %vm584, %v8747, %v8755
      %v8758 = vshrl.u32 %v8484, 16
      %v8760 = vrot.slane %v8758, 6
      %v8761 = vshll.u32 %v8484, 16
      %v8763 = vrot.slane %v8761, 7
      %v8764 = vor.u32 %v8760, %v8763
      %v8765 = vrot.slane %v8764, 4
      %v8767 = vshrl.u32 %v8485, 16
      %v8769 = vrot.slane %v8767, 6
      %v8770 = vshll.u32 %v8485, 16
      %v8772 = vrot.slane %v8770, 7
      %v8773 = vor.u32 %v8769, %v8772
      %v8774 = vsel %vm584, %v8765, %v8773
      %v8775 = vrot.slane %v8773, 4
      %v8777 = vshrl.u32 %v8486, 16
      %v8779 = vrot.slane %v8777, 6
      %v8780 = vshll.u32 %v8486, 16
      %v8782 = vrot.slane %v8780, 7
      %v8783 = vor.u32 %v8779, %v8782
      %v8784 = vsel %vm584, %v8775, %v8783
      %v8786 = vshrl.u32 %v8487, 16
      %v8788 = vrot.slane %v8786, 6
      %v8789 = vshll.u32 %v8487, 16
      %v8791 = vrot.slane %v8789, 7
      %v8792 = vor.u32 %v8788, %v8791
      %v8793 = vrot.slane %v8792, 4
      %v8795 = vshrl.u32 %v8488, 16
      %v8797 = vrot.slane %v8795, 6
      %v8798 = vshll.u32 %v8488, 16
      %v8800 = vrot.slane %v8798, 7
      %v8801 = vor.u32 %v8797, %v8800
      %v8802 = vsel %vm584, %v8793, %v8801
      %v8803 = vrot.slane %v8801, 4
      %v8805 = vshrl.u32 %v8489, 16
      %v8807 = vrot.slane %v8805, 6
      %v8808 = vshll.u32 %v8489, 16
      %v8810 = vrot.slane %v8808, 7
      %v8811 = vor.u32 %v8807, %v8810
      %v8812 = vsel %vm584, %v8803, %v8811
      %v8814 = vshrl.u32 %v8490, 16
      %v8816 = vrot.slane %v8814, 6
      %v8817 = vshll.u32 %v8490, 16
      %v8819 = vrot.slane %v8817, 7
      %v8820 = vor.u32 %v8816, %v8819
      %v8821 = vrot.slane %v8820, 4
      %v8823 = vshrl.u32 %v8491, 16
      %v8825 = vrot.slane %v8823, 6
      %v8826 = vshll.u32 %v8491, 16
      %v8828 = vrot.slane %v8826, 7
      %v8829 = vor.u32 %v8825, %v8828
      %v8830 = vsel %vm584, %v8821, %v8829
      %v8831 = vrot.slane %v8829, 4
      %v8833 = vshrl.u32 %v8492, 16
      %v8835 = vrot.slane %v8833, 6
      %v8836 = vshll.u32 %v8492, 16
      %v8838 = vrot.slane %v8836, 7
      %v8839 = vor.u32 %v8835, %v8838
      %v8840 = vsel %vm584, %v8831, %v8839
      %v8842 = vshrl.u32 %v8493, 16
      %v8844 = vrot.slane %v8842, 6
      %v8845 = vshll.u32 %v8493, 16
      %v8847 = vrot.slane %v8845, 7
      %v8848 = vor.u32 %v8844, %v8847
      %v8849 = vrot.slane %v8848, 4
      %v8851 = vshrl.u32 %v8494, 16
      %v8853 = vrot.slane %v8851, 6
      %v8854 = vshll.u32 %v8494, 16
      %v8856 = vrot.slane %v8854, 7
      %v8857 = vor.u32 %v8853, %v8856
      %v8858 = vsel %vm584, %v8849, %v8857
      %v8859 = vrot.slane %v8857, 4
      %v8861 = vshrl.u32 %v8495, 16
      %v8863 = vrot.slane %v8861, 6
      %v8864 = vshll.u32 %v8495, 16
      %v8866 = vrot.slane %v8864, 7
      %v8867 = vor.u32 %v8863, %v8866
      %v8868 = vsel %vm584, %v8859, %v8867
      %v8870 = vshrl.u32 %v8496, 16
      %v8872 = vrot.slane %v8870, 6
      %v8873 = vshll.u32 %v8496, 16
      %v8875 = vrot.slane %v8873, 7
      %v8876 = vor.u32 %v8872, %v8875
      %v8877 = vrot.slane %v8876, 4
      %v8879 = vshrl.u32 %v8497, 16
      %v8881 = vrot.slane %v8879, 6
      %v8882 = vshll.u32 %v8497, 16
      %v8884 = vrot.slane %v8882, 7
      %v8885 = vor.u32 %v8881, %v8884
      %v8886 = vsel %vm584, %v8877, %v8885
      %v8887 = vrot.slane %v8885, 4
      %v8889 = vshrl.u32 %v8498, 16
      %v8891 = vrot.slane %v8889, 6
      %v8892 = vshll.u32 %v8498, 16
      %v8894 = vrot.slane %v8892, 7
      %v8895 = vor.u32 %v8891, %v8894
      %v8896 = vsel %vm584, %v8887, %v8895
      %v8898 = vshrl.u32 %v8499, 16
      %v8900 = vrot.slane %v8898, 6
      %v8901 = vshll.u32 %v8499, 16
      %v8903 = vrot.slane %v8901, 7
      %v8904 = vor.u32 %v8900, %v8903
      %v8905 = vrot.slane %v8904, 4
      %v8907 = vshrl.u32 %v8500, 16
      %v8909 = vrot.slane %v8907, 6
      %v8910 = vshll.u32 %v8500, 16
      %v8912 = vrot.slane %v8910, 7
      %v8913 = vor.u32 %v8909, %v8912
      %v8914 = vsel %vm584, %v8905, %v8913
      %v8915 = vrot.slane %v8913, 4
      %v8917 = vshrl.u32 %v8501, 16
      %v8919 = vrot.slane %v8917, 6
      %v8920 = vshll.u32 %v8501, 16
      %v8922 = vrot.slane %v8920, 7
      %v8923 = vor.u32 %v8919, %v8922
      %v8924 = vsel %vm584, %v8915, %v8923
      %v8926 = vshrl.u32 %v8502, 16
      %v8928 = vrot.slane %v8926, 6
      %v8929 = vshll.u32 %v8502, 16
      %v8931 = vrot.slane %v8929, 7
      %v8932 = vor.u32 %v8928, %v8931
      %v8933 = vrot.slane %v8932, 4
      %v8935 = vshrl.u32 %v8503, 16
      %v8937 = vrot.slane %v8935, 6
      %v8938 = vshll.u32 %v8503, 16
      %v8940 = vrot.slane %v8938, 7
      %v8941 = vor.u32 %v8937, %v8940
      %v8942 = vsel %vm584, %v8933, %v8941
      %v8943 = vrot.slane %v8941, 4
      %v8945 = vshrl.u32 %v8504, 16
      %v8947 = vrot.slane %v8945, 6
      %v8948 = vshll.u32 %v8504, 16
      %v8950 = vrot.slane %v8948, 7
      %v8951 = vor.u32 %v8947, %v8950
      %v8952 = vsel %vm584, %v8943, %v8951
      %v8953 = vunpack.c.l.b16 %v8522
      %v8954 = vunpack.c.l.b16 %v8532
      %v8955 = vunpack.c.l.b16 %v8550
      %v8956 = vunpack.c.l.b16 %v8560
      %v8957 = vunpack.c.l.b16 %v8578
      %v8958 = vunpack.c.l.b16 %v8588
      %v8959 = vunpack.c.l.b16 %v8606
      %v8960 = vunpack.c.l.b16 %v8616
      %v8961 = vunpack.c.l.b16 %v8634
      %v8962 = vunpack.c.l.b16 %v8644
      %v8963 = vunpack.c.l.b16 %v8662
      %v8964 = vunpack.c.l.b16 %v8672
      %v8965 = vunpack.c.l.b16 %v8690
      %v8966 = vunpack.c.l.b16 %v8700
      %v8967 = vunpack.c.l.b16 %v8718
      %v8968 = vunpack.c.l.b16 %v8728
      %v8969 = vunpack.c.l.b16 %v8746
      %v8970 = vunpack.c.l.b16 %v8756
      %v8971 = vunpack.c.l.b16 %v8774
      %v8972 = vunpack.c.l.b16 %v8784
      %v8973 = vunpack.c.l.b16 %v8802
      %v8974 = vunpack.c.l.b16 %v8812
      %v8975 = vunpack.c.l.b16 %v8830
      %v8976 = vunpack.c.l.b16 %v8840
      %v8977 = vunpack.c.l.b16 %v8858
      %v8978 = vunpack.c.l.b16 %v8868
      %v8979 = vunpack.c.l.b16 %v8886
      %v8980 = vunpack.c.l.b16 %v8896
      %v8981 = vunpack.c.l.b16 %v8914
      %v8982 = vunpack.c.l.b16 %v8924
      %v8983 = vunpack.c.l.b16 %v8942
      %v8984 = vunpack.c.l.b16 %v8952
      %v8985 = vpack.c.b16 %v8954, %v8953
      %v8986 = vpack.c.b16 %v8956, %v8955
      %v8987 = vpack.c.b16 %v8958, %v8957
      %v8988 = vpack.c.b16 %v8960, %v8959
      %v8989 = vpack.c.b16 %v8962, %v8961
      %v8990 = vpack.c.b16 %v8964, %v8963
      %v8991 = vpack.c.b16 %v8966, %v8965
      %v8992 = vpack.c.b16 %v8968, %v8967
      %v8993 = vpack.c.b16 %v8970, %v8969
      %v8994 = vpack.c.b16 %v8972, %v8971
      %v8995 = vpack.c.b16 %v8974, %v8973
      %v8996 = vpack.c.b16 %v8976, %v8975
      %v8997 = vpack.c.b16 %v8978, %v8977
      %v8998 = vpack.c.b16 %v8980, %v8979
      %v8999 = vpack.c.b16 %v8982, %v8981
      %v9000 = vpack.c.b16 %v8984, %v8983
      %9017 = vxpose.xlu0.c.b16.start [1/8] %v8985, 128
      %9018 = vxpose.xlu0.c.b16.cont [2/8] %v8986, 128
      %9019 = vxpose.xlu0.c.b16.cont [3/8] %v8987, 128
      %9020 = vxpose.xlu0.c.b16.cont [4/8] %v8988, 128
      %9021 = vxpose.xlu0.c.b16.cont [5/8] %v8989, 128
      %9022 = vxpose.xlu0.c.b16.cont [6/8] %v8990, 128
      %9023 = vxpose.xlu0.c.b16.cont [7/8] %v8991, 128
      %9024 = vxpose.xlu0.c.b16.end [8/8] %v8992, 128
      %v9025 = vpop.trf.xlu0
      %v9026 = vpop.trf.xlu0
      %v9027 = vpop.trf.xlu0
      %v9028 = vpop.trf.xlu0
      %v9029 = vpop.trf.xlu0
      %v9030 = vpop.trf.xlu0
      %v9031 = vpop.trf.xlu0
      %v9032 = vpop.trf.xlu0
      %9033 = vxpose.xlu0.c.b16.start [1/8] %v8993, 128
      %9034 = vxpose.xlu0.c.b16.cont [2/8] %v8994, 128
      %9035 = vxpose.xlu0.c.b16.cont [3/8] %v8995, 128
      %9036 = vxpose.xlu0.c.b16.cont [4/8] %v8996, 128
      %9037 = vxpose.xlu0.c.b16.cont [5/8] %v8997, 128
      %9038 = vxpose.xlu0.c.b16.cont [6/8] %v8998, 128
      %9039 = vxpose.xlu0.c.b16.cont [7/8] %v8999, 128
      %9040 = vxpose.xlu0.c.b16.end [8/8] %v9000, 128
      %v9041 = vpop.trf.xlu0
      %v9042 = vpop.trf.xlu0
      %v9043 = vpop.trf.xlu0
      %v9044 = vpop.trf.xlu0
      %v9045 = vpop.trf.xlu0
      %v9046 = vpop.trf.xlu0
      %v9047 = vpop.trf.xlu0
      %v9048 = vpop.trf.xlu0
      %v9049 = vld [vmem:[%s6] sm:$0xff]
      %v9050 = vld [vmem:[%s6 + $0x8] sm:$0xf]
      %v9051 = vld [vmem:[%s6 + $0xc] sm:$0xff]
      %v9052 = vld [vmem:[%s6 + $0x14] sm:$0xf]
      %v9053 = vld [vmem:[%s6 + $0x18] sm:$0xff]
      %v9054 = vld [vmem:[%s6 + $0x20] sm:$0xf]
      %v9055 = vld [vmem:[%s6 + $0x24] sm:$0xff]
      %v9056 = vld [vmem:[%s6 + $0x2c] sm:$0xf]
      %v9065 = vunpack.c.l.b16 %v9049
      %v9066 = vunpack.c.h.b16 %v9049
      %v9067 = vunpack.c.l.b16 %v9050
      %v9068 = vunpack.c.l.b16 %v9051
      %v9069 = vunpack.c.h.b16 %v9051
      %v9070 = vunpack.c.l.b16 %v9052
      %v9071 = vunpack.c.l.b16 %v9053
      %v9072 = vunpack.c.h.b16 %v9053
      %v9073 = vunpack.c.l.b16 %v9054
      %v9074 = vunpack.c.l.b16 %v9055
      %v9075 = vunpack.c.h.b16 %v9055
      %v9076 = vunpack.c.l.b16 %v9056
      %v9077 = vpack.c.b16 %v9068, %v9065
      %v9078 = vpack.c.b16 %v9069, %v9066
      %v9079 = vpack.c.b16 %v9070, %v9067
      %v9080 = vpack.c.b16 %v9074, %v9071
      %v9081 = vpack.c.b16 %v9075, %v9072
      %v9082 = vpack.c.b16 %v9076, %v9073
      %v9088 = vsel %vm4563, %v9079, 0
      %v9091 = vsel %vm4563, %v9082, 0
      %9093 = vmatprep.subr.bf16.mxu0 %v6977
      %9094 = vmatpush1.bf16.msra.mxu0 %v6961
      %9095 = vmatprep.subr.bf16.mxu0 %v6976
      %9096 = vmatpush1.bf16.msra.mxu0 %v6960
      %9097 = vmatprep.subr.bf16.mxu0 %v6385
      %9098 = vmatpush1.bf16.msra.mxu0 %v6369
      %9099 = vmatprep.subr.bf16.mxu0 %v6384
      %9100 = vmatpush1.bf16.msra.mxu0 %v6368
      %9101 = vmatprep.subr.bf16.mxu0 %v5793
      %9102 = vmatpush1.bf16.msra.mxu0 %v5777
      %9103 = vmatprep.subr.bf16.mxu0 %v5792
      %9104 = vmatpush1.bf16.msra.mxu0 %v5776
      %9105 = vmatprep.subr.bf16.mxu0 %v5649
      %9106 = vmatpush1.bf16.msra.mxu0 %v5633
      %9107 = vmatprep.subr.bf16.mxu0 %v5648
      %9108 = vmatpush1.bf16.msra.mxu0 %v5632
      %9109 = vmatprep.subr.bf16.mxu0 %v8450
      %9110 = vmatpush2.bf16.msra.mxu0 %v8434
      %9111 = vmatprep.subr.bf16.mxu0 %v8449
      %9112 = vmatpush2.bf16.msra.mxu0 %v8433
      %9113 = vmatprep.subr.bf16.mxu0 %v8306
      %9114 = vmatpush2.bf16.msra.mxu0 %v8290
      %9115 = vmatprep.subr.bf16.mxu0 %v8305
      %9116 = vmatpush2.bf16.msra.mxu0 %v8289
      %9117 = vmatprep.subr.bf16.mxu0 %v7713
      %9118 = vmatpush2.bf16.msra.mxu0 %v7697
      %9119 = vmatprep.subr.bf16.mxu0 %v7712
      %9120 = vmatpush2.bf16.msra.mxu0 %v7696
      %9121 = vmatprep.subr.bf16.mxu0 %v7121
      %9122 = vmatpush2.bf16.msra.mxu0 %v7105
      %9123 = vmatprep.subr.bf16.mxu0 %v7120
      %9124 = vmatpush2.bf16.msra.mxu0 %v7104
      %9125 = vmatprep.mubr.bf16.mxu0 %v9078
      %9126 = vmatmul.mubr.bf16.gmra.mxu0 %v9077
      %v9127 = vpop.f32.mrf.mxu0
      %v9128 = vadd.f32 0.0, %v9127
      %v9129 = vpop.f32.mrf.mxu0
      %v9130 = vadd.f32 0.0, %v9129
      %v9131 = vpop.f32.mrf.mxu0
      %v9132 = vadd.f32 0.0, %v9131
      %v9133 = vpop.f32.mrf.mxu0
      %v9134 = vadd.f32 0.0, %v9133
      %9135 = vmatprep.mubr.bf16.mxu0 %v9081
      %9136 = vmatmul.mubr.bf16.gmra.mxu0 %v9080
      %v9137 = vpop.f32.mrf.mxu0
      %v9138 = vadd.f32 0.0, %v9137
      %v9139 = vpop.f32.mrf.mxu0
      %v9140 = vadd.f32 0.0, %v9139
      %v9141 = vpop.f32.mrf.mxu0
      %v9142 = vadd.f32 0.0, %v9141
      %v9143 = vpop.f32.mrf.mxu0
      %v9144 = vadd.f32 0.0, %v9143
      %9145 = vdwg.mxu0
      %9146 = vmatprep.subr.bf16.mxu0 0
      %9147 = vmatpush1.bf16.msra.mxu0 0
      %9148 = vmatprep.subr.bf16.mxu0 0
      %9149 = vmatpush1.bf16.msra.mxu0 0
      %9150 = vmatprep.subr.bf16.mxu0 0
      %9151 = vmatpush1.bf16.msra.mxu0 0
      %9152 = vmatprep.subr.bf16.mxu0 0
      %9153 = vmatpush1.bf16.msra.mxu0 0
      %9154 = vmatprep.subr.bf16.mxu0 0
      %9155 = vmatpush1.bf16.msra.mxu0 0
      %9156 = vmatprep.subr.bf16.mxu0 0
      %9157 = vmatpush1.bf16.msra.mxu0 0
      %9158 = vmatprep.subr.bf16.mxu0 %v9042
      %9159 = vmatpush1.bf16.msra.mxu0 %v9026
      %9160 = vmatprep.subr.bf16.mxu0 %v9041
      %9161 = vmatpush1.bf16.msra.mxu0 %v9025
      %9162 = vmatprep.subr.bf16.mxu0 0
      %9163 = vmatpush2.bf16.msra.mxu0 0
      %9164 = vmatprep.subr.bf16.mxu0 0
      %9165 = vmatpush2.bf16.msra.mxu0 0
      %9166 = vmatprep.subr.bf16.mxu0 0
      %9167 = vmatpush2.bf16.msra.mxu0 0
      %9168 = vmatprep.subr.bf16.mxu0 0
      %9169 = vmatpush2.bf16.msra.mxu0 0
      %9170 = vmatprep.subr.bf16.mxu0 0
      %9171 = vmatpush2.bf16.msra.mxu0 0
      %9172 = vmatprep.subr.bf16.mxu0 0
      %9173 = vmatpush2.bf16.msra.mxu0 0
      %9174 = vmatprep.subr.bf16.mxu0 0
      %9175 = vmatpush2.bf16.msra.mxu0 0
      %9176 = vmatprep.subr.bf16.mxu0 0
      %9177 = vmatpush2.bf16.msra.mxu0 0
      %9178 = vmatprep.mubr.bf16.mxu0 0
      %9179 = vmatmul.mubr.bf16.gmra.mxu0 %v9088
      %v9180 = vpop.f32.mrf.mxu0
      %v9181 = vadd.f32 %v9128, %v9180
      %v9182 = vpop.f32.mrf.mxu0
      %v9183 = vadd.f32 %v9130, %v9182
      %v9184 = vpop.f32.mrf.mxu0
      %v9185 = vadd.f32 %v9132, %v9184
      %v9186 = vpop.f32.mrf.mxu0
      %v9187 = vadd.f32 %v9134, %v9186
      %9188 = vmatprep.mubr.bf16.mxu0 0
      %9189 = vmatmul.mubr.bf16.gmra.mxu0 %v9091
      %v9190 = vpop.f32.mrf.mxu0
      %v9191 = vadd.f32 %v9138, %v9190
      %v9192 = vpop.f32.mrf.mxu0
      %v9193 = vadd.f32 %v9140, %v9192
      %v9194 = vpop.f32.mrf.mxu0
      %v9195 = vadd.f32 %v9142, %v9194
      %v9196 = vpop.f32.mrf.mxu0
      %v9197 = vadd.f32 %v9144, %v9196
      %9198 = vdwg.mxu0
      %v9199 = vld [vmem:[%s7] sm:$0xff]
      %v9200 = vld [vmem:[%s7 + $0x8] sm:$0xff]
      %v9201 = vld [vmem:[%s7 + $0x10] sm:$0xff]
      %v9202 = vld [vmem:[%s7 + $0x18] sm:$0xff]
      %9204 = vset.pattern.permute.xlu0 0
      %9205 = vperm.xlu0 %9204, %v9199
      %v9206 = vpop.permute.xlu0 %9205
      %9209 = vset.pattern.permute.xlu0 0
      %9210 = vperm.xlu0 %9209, %v9200
      %v9211 = vpop.permute.xlu0 %9210
      %9214 = vset.pattern.permute.xlu0 0
      %9215 = vperm.xlu0 %9214, %v9201
      %v9216 = vpop.permute.xlu0 %9215
      %9219 = vset.pattern.permute.xlu0 0
      %9220 = vperm.xlu0 %9219, %v9202
      %v9221 = vpop.permute.xlu0 %9220
      %v9223 = vmul.f32 %v9181, %v9206
      %v9224 = vmul.f32 %v9183, %v9206
      %v9225 = vmul.f32 %v9185, %v9211
      %v9226 = vmul.f32 %v9187, %v9211
      %v9227 = vmul.f32 %v9191, %v9216
      %v9228 = vmul.f32 %v9193, %v9216
      %v9229 = vmul.f32 %v9195, %v9221
      %v9230 = vmul.f32 %v9197, %v9221
      %v9231 = vld [vmem:[%s8] sm:$0xff]
      %v9232 = vld [vmem:[%s8 + $0x8] sm:$0xff]
      %v9233 = vld [vmem:[%s8 + $0x10] sm:$0xff]
      %v9234 = vld [vmem:[%s8 + $0x18] sm:$0xff]
      %9236 = vset.pattern.permute.xlu0 0
      %9237 = vperm.xlu0 %9236, %v9231
      %v9238 = vpop.permute.xlu0 %9237
      %9241 = vset.pattern.permute.xlu0 0
      %9242 = vperm.xlu0 %9241, %v9232
      %v9243 = vpop.permute.xlu0 %9242
      %9246 = vset.pattern.permute.xlu0 0
      %9247 = vperm.xlu0 %9246, %v9233
      %v9248 = vpop.permute.xlu0 %9247
      %9251 = vset.pattern.permute.xlu0 0
      %9252 = vperm.xlu0 %9251, %v9234
      %v9253 = vpop.permute.xlu0 %9252
      %v9255 = vadd.f32 %v9223, %v9238
      %v9256 = vadd.f32 %v9224, %v9238
      %v9257 = vadd.f32 %v9225, %v9243
      %v9258 = vadd.f32 %v9226, %v9243
      %v9259 = vadd.f32 %v9227, %v9248
      %v9260 = vadd.f32 %v9228, %v9248
      %v9261 = vadd.f32 %v9229, %v9253
      %v9262 = vadd.f32 %v9230, %v9253
      %v9263 = vmax.f32 %v9255, 0.0
      %v9264 = vmax.f32 %v9256, 0.0
      %v9265 = vmax.f32 %v9257, 0.0
      %v9266 = vmax.f32 %v9258, 0.0
      %v9267 = vmax.f32 %v9259, 0.0
      %v9268 = vmax.f32 %v9260, 0.0
      %v9269 = vmax.f32 %v9261, 0.0
      %v9270 = vmax.f32 %v9262, 0.0
      %9271 = vst [vmem:[%s332] sm:$0xff] %v9263
      %9272 = vst [vmem:[%s332 + $0x8] sm:$0xff] %v9264
      %9273 = vst [vmem:[%s332 + $0x10] sm:$0xff] %v9265
      %9274 = vst [vmem:[%s332 + $0x18] sm:$0xff] %v9266
      %9275 = vst [vmem:[%s332 + $0x20] sm:$0xff] %v9267
      %9276 = vst [vmem:[%s332 + $0x28] sm:$0xff] %v9268
      %9277 = vst [vmem:[%s332 + $0x30] sm:$0xff] %v9269
      %9278 = vst [vmem:[%s332 + $0x38] sm:$0xff] %v9270
      %p9279 = scmp.lt.s32.totalorder %s20, 1
      %s9280 = scalar_select %p9279, %s20, 1
      %s9281 = smul.addr %s9280, 8
      %s9282 = smul.addr %s9281, 8
      %s9283 = scalar_lea.vmem %s9, %s9282
      // Predicated region
      $region61: #{se_attention_forward.1} parent=55 // pred_check
        %p9284 = pneg %p232
      $region62: #{se_attention_forward.1} parent=55 // pred_check_branch
        %9286 = sbr.rel (%p9284) target = $region64
      $region63: #{se_attention_forward.1} parent=55 // pred_region
        _
      $region64: #{se_attention_forward.1} parent=55 // pred_fallthru
        _
    $region56: #{se_attention_forward.1} parent=5 // pred_fallthru
      _
    %p9287 = scmp.le.s32.totalorder 2, %s15
    // Predicated region
    $region65: #{se_attention_forward.1} parent=5 // pred_check
      %p9288 = pneg %p9287
    $region66: #{se_attention_forward.1} parent=5 // pred_check_branch
      %9290 = sbr.rel (%p9288) target = $region68
    $region67: #{se_attention_forward.1} parent=5 // pred_region
      %s9291 = ssub.s32 %s15, 2
      // Predicated region
      $region69: #{se_attention_forward.1} parent=67 // pred_check
        %p9292 = pneg %p238
      $region70: #{se_attention_forward.1} parent=67 // pred_check_branch
        %9294 = sbr.rel (%p9292) target = $region72
      $region71: #{se_attention_forward.1} parent=67 // pred_region
        %p9295 = scmp.lt.s32.totalorder %s21, 1
        %s9296 = scalar_select %p9295, %s21, 1
        %s9297 = smul.addr %s9296, 8
        %s9298 = smul.addr %s9297, 8
        %s9299 = scalar_lea.vmem %s9, %s9298
      $region72: #{se_attention_forward.1} parent=67 // pred_fallthru
        _
    $region68: #{se_attention_forward.1} parent=5 // pred_fallthru
      _
  $region6: #{se_attention_forward.1} parent=0 // loop_footer
    %s19 = sadd.s32 1, %s15
  $region7: #{se_attention_forward.1} parent=0 // loop_footer_branch
    %14 = sbr.rel target = $region3
  $region8: #{se_attention_forward.1} parent=0 // loop_exit
    _

</llo_original>
